<compile_context>
chip_gen: v7x
topology: tpu7x:2x2x1
jax: 0.10.0
libtpu: 0.0.40
codegen_flags: <defaults>
</compile_context>

<pallas_src>
import jax
import jax.numpy as jnp
from jax import lax
from jax.experimental import pallas as pl
from jax.experimental.pallas import tpu as pltpu

V = 17            # joints (fixed by the model: Linear(17,17), A is (3,17,17))
NUM_SUBSET = 3
NUM_QUARTER = 4
NUM_MAPS = NUM_SUBSET * NUM_QUARTER                       # 12
MAPS_PER_SAMPLE = NUM_SUBSET * (2 * NUM_QUARTER - 1)      # 21 (12 self + 9 cross)


def _vmem_capacity_bytes():
    """Generation-aware VMEM capacity (falls back to the smallest, v7x's 64 MiB)."""
    try:
        info = pltpu.get_tpu_info()
        cap = getattr(info, "vmem_capacity_bytes", None)
        if cap:
            return int(cap)
    except Exception:
        pass
    return 64 * 1024 * 1024


# ----------------------------------------------------------------------------- kernels
def _conv1x1_kernel(x_ref, w_ref, b_ref, o_ref):
    # x_ref: (NB, Cin, T*V) f32   w_ref: (3*Cout, Cin) bf16   b_ref: (3*Cout, 1) f32
    # o_ref: (NB, 3*Cout, T*V) bf16
    w = w_ref[...]
    b = b_ref[...]
    for i in range(x_ref.shape[0]):
        y = jnp.dot(w, x_ref[i].astype(jnp.bfloat16),
                    preferred_element_type=jnp.float32) + b
        o_ref[i] = y.astype(o_ref.dtype)


def _spa_attn_kernel(pq_ref, pk_ref, wsT_ref, bs_ref, wpT_ref, bp_ref, o_ref):
    # pq_ref / pk_ref: (NB, 12, V) pooled Q / K rows, ordered (subset, quarter)
    # o_ref: (NB, 12, V, V) combined per-quarter attention maps (before channel repeat)
    nb = pq_ref.shape[0]
    wsT = wsT_ref[...]   # Spa_Atten.linear weight, transposed
    bs = bs_ref[...]     # (1, V)
    wpT = wpT_ref[...]   # parent's linear weight, transposed
    bp = bp_ref[...]

    # Build all self + cross outer-product logits, then run ONE vectorized softmax.
    logits = []
    for b in range(nb):
        q = pq_ref[b]                        # (12, V)
        k = pk_ref[b]
        ql = jnp.maximum(jnp.dot(q, wsT, preferred_element_type=jnp.float32) + bs, 0.0)
        kl = jnp.maximum(jnp.dot(k, wsT, preferred_element_type=jnp.float32) + bs, 0.0)
        qp = jnp.maximum(jnp.dot(q, wpT, preferred_element_type=jnp.float32) + bp, 0.0)
        kp = jnp.maximum(jnp.dot(k, wpT, preferred_element_type=jnp.float32) + bp, 0.0)
        qlt = ql.T                           # (V, 12): joint index on sublanes
        kpt = kp.T
        for i in range(NUM_SUBSET):
            base = i * NUM_QUARTER
            for j in range(NUM_QUARTER):         # self: outer(Ws q_j, Ws k_j)
                logits.append(qlt[:, base + j:base + j + 1] * kl[base + j:base + j + 1, :])
            for j in range(NUM_QUARTER - 1):     # cross: outer(Wp k_j, Wp q_{j+1})
                logits.append(kpt[:, base + j:base + j + 1] * qp[base + j + 1:base + j + 2, :])

    L = jnp.concatenate(logits, axis=0)                      # (nb*21*V, V)
    L = L - jnp.max(L, axis=-1, keepdims=True)
    E = jnp.exp(L)
    P = E / jnp.sum(E, axis=-1, keepdims=True)               # exact row normalization

    per_subset = 2 * NUM_QUARTER - 1                         # 7 maps per (sample, subset)
    for b in range(nb):
        for i in range(NUM_SUBSET):
            off = (b * MAPS_PER_SAMPLE + i * per_subset) * V
            s = [P[off + j * V: off + (j + 1) * V, :] for j in range(NUM_QUARTER)]
            c = [P[off + (NUM_QUARTER + j) * V: off + (NUM_QUARTER + j + 1) * V, :]
                 for j in range(NUM_QUARTER - 1)]
            base = i * NUM_QUARTER
            o_ref[b, base + 0] = 0.5 * s[0] + 0.25 * c[0]
            o_ref[b, base + 1] = 0.5 * s[1] + 0.25 * c[0] + 0.25 * c[1]
            o_ref[b, base + 2] = 0.5 * s[2] + 0.25 * c[1] + 0.25 * c[2]
            o_ref[b, base + 3] = 0.5 * s[3] + 0.25 * c[2]


def _mix_kernel(m_ref, att_ref, a0_ref, o_ref, s1_ref, s2_ref, acc_ref):
    # m_ref:   (3, tc, T, V) bf16   conv output tile of one sample
    # att_ref: (3, qpt, V, V) f32   quarter attention maps covered by this tile
    # a0_ref:  (3, tc, V, V) bf16   norm_learn_A tile (batch independent)
    # o_ref:   (tc, T, V)  bf16     m = einsum('kctv,kcvw->ctw') for this tile
    # s1_ref / s2_ref: (tc, 1) f32  per-channel sum / sum-of-squares over (T, V)
    # acc_ref: (tc, T, V)  f32      explicit (budgeted) accumulator scratch
    tc, tt, vv = o_ref.shape
    qpt = att_ref.shape[1]
    cq = tc // qpt                    # channels per quarter inside the tile

    # norm_learn_A term: per-channel batched (T,V)@(V,V) matmuls, f32 accumulation.
    for k in range(NUM_SUBSET):
        contrib = jnp.einsum("ctv,cvw->ctw", m_ref[k], a0_ref[k],
                             preferred_element_type=jnp.float32)
        if k == 0:
            acc_ref[...] = contrib
        else:
            acc_ref[...] += contrib

    # attention term: all channels of a quarter share one (V,V) map, so group the
    # channels: one (cq*T, V)@(V, V) matmul per (subset, quarter) -- no channel-repeated
    # (Cout,V,V) broadcast is ever materialized.
    for k in range(NUM_SUBSET):
        for q in range(qpt):
            lo = q * cq
            hi = lo + cq
            mq = (m_ref[k, lo:hi].astype(jnp.float32)        # f32 for a tile-aligned reshape
                  .reshape(cq * tt, vv).astype(jnp.bfloat16))
            aq = (0.5 * att_ref[k, q]).astype(jnp.bfloat16)
            p = jnp.dot(mq, aq, preferred_element_type=jnp.float32)
            acc_ref[lo:hi] += p.reshape(cq, tt, vv)

    acc = acc_ref[...]
    o_ref[...] = acc.astype(o_ref.dtype)
    # fused (T, V) moments for the ChaRef / BatchNorm epilogue (avoids re-reading m).
    row1 = jnp.sum(acc, axis=1)                # (tc, V)
    row2 = jnp.sum(acc * acc, axis=1)
    s1_ref[...] = jnp.sum(row1, axis=1, keepdims=True)
    s2_ref[...] = jnp.sum(row2, axis=1, keepdims=True)


def _epilogue_kernel(m_ref, res_ref, scale_ref, shift_ref, o_ref):
    # out = relu(scale * m + shift + residual) on a lane-dense (rows, T*V) view.
    # scale folds (1 + sigmoid(CR)) and BN gamma/rstd; shift folds BN mean/beta.
    o_ref[...] = jnp.maximum(
        scale_ref[...] * m_ref[...].astype(jnp.float32) + shift_ref[...] + res_ref[...],
        0.0)


# ----------------------------------------------------------------------------- wrapper
def spatial_mixformer_forward(x0, params):
    N, Cin, T, Vv = x0.shape
    assert Vv == V
    w_conv = params["conv_w"]                      # (3*Cout, Cin) f32, torch conv layout
    Cout = w_conv.shape[0] // NUM_SUBSET
    assert Cin == Cout  # TODO(synk): down-branch (Conv2d+BN) when in_channels != out_channels
    assert Cout % 8 == 0
    K3 = NUM_SUBSET * Cout
    TV = T * V
    f32, bf16 = jnp.float32, jnp.bfloat16

    cap = _vmem_capacity_bytes()
    budget = cap // 2                             # tile-choice budget (headroom for pipelining)

    def cparams(sem, est):
        limit = int(min(cap * 3 // 4, max(2 * int(est) + (2 << 20), 32 << 20)))
        return pltpu.CompilerParams(dimension_semantics=sem, vmem_limit_bytes=limit)

    # ---- 1x1 conv: (3*Cout, Cin) @ (Cin, T*V) per sample, NB samples per grid step.
    #      Output is stored bf16 directly in the (N, 3, Cout, T, V) HBM layout the mix
    #      kernel consumes (the reshape below is metadata-only).
    x_ctv = x0.reshape(N, Cin, TV)
    w_bf = w_conv.astype(bf16)

    def conv_est(nb):
        return 2 * (nb * Cin * TV * 4 + nb * K3 * TV * 2) + K3 * Cin * 2 + K3 * 4

    NB = next((nb for nb in (4, 2) if N % nb == 0 and conv_est(nb) <= budget), 1)
    y = pl.pallas_call(
        _conv1x1_kernel,
        out_shape=jax.ShapeDtypeStruct((N, K3, TV), bf16),
        grid=(N // NB,),
        in_specs=[
            pl.BlockSpec((NB, Cin, TV), lambda n: (n, 0, 0)),
            pl.BlockSpec((K3, Cin), lambda n: (0, 0)),
            pl.BlockSpec((K3, 1), lambda n: (0, 0)),
        ],
        out_specs=pl.BlockSpec((NB, K3, TV), lambda n: (n, 0, 0)),
        compiler_params=cparams(("parallel",), conv_est(NB)),
    )(x_ctv, w_bf, params["conv_b"])
    m5 = y.reshape(N, NUM_SUBSET, Cout, T, V)                       # free reshape (bf16)

    # ---- pooled Q / K for Spa_Atten.  AdaptiveAvgPool2d(1) over (Cout/8 channels, T)
    #      commutes with the 1x1 conv, so the pooled Q/K come from time-pooled x and
    #      channel-group-averaged f32 conv weights (tiny XLA, exact).
    xbar = jnp.mean(x0, axis=2)                                                 # (N, Cin, V)
    w_qk = w_conv.reshape(NUM_SUBSET, NUM_QUARTER, 2, Cout // 8, Cin).mean(axis=3)
    b_qk = params["conv_b"][:, 0].reshape(NUM_SUBSET, NUM_QUARTER, 2, Cout // 8).mean(axis=3)
    pooled = jnp.einsum("ncv,iqhc->niqhv", xbar, w_qk) + b_qk[None, ..., None]  # (N,3,4,2,V)
    pooled_q = pooled[:, :, :, 0, :].reshape(N, NUM_MAPS, V)
    pooled_k = pooled[:, :, :, 1, :].reshape(N, NUM_MAPS, V)

    # ---- Spa_Atten + cross-quarter mixing: a block of samples per grid step, with one
    #      stacked/vectorized softmax over all of that block's 21-per-sample maps.
    NBa = next(nb for nb in (8, 4, 2, 1) if N % nb == 0)
    att = pl.pallas_call(
        _spa_attn_kernel,
        out_shape=jax.ShapeDtypeStruct((N, NUM_MAPS, V, V), f32),
        grid=(N // NBa,),
        in_specs=[
            pl.BlockSpec((NBa, NUM_MAPS, V), lambda n: (n, 0, 0)),
            pl.BlockSpec((NBa, NUM_MAPS, V), lambda n: (n, 0, 0)),
            pl.BlockSpec((V, V), lambda n: (0, 0)),
            pl.BlockSpec((1, V), lambda n: (0, 0)),
            pl.BlockSpec((V, V), lambda n: (0, 0)),
            pl.BlockSpec((1, V), lambda n: (0, 0)),
        ],
        out_specs=pl.BlockSpec((NBa, NUM_MAPS, V, V), lambda n: (n, 0, 0, 0)),
        compiler_params=cparams(("parallel",), 1 << 20),
    )(pooled_q, pooled_k, params["w_spa_T"], params["b_spa"],
      params["w_par_T"], params["b_par"])
    att = att.reshape(N, NUM_SUBSET, NUM_QUARTER, V, V)             # free reshape

    # ---- mix: m = einsum('nkctv,nkcvw->nctw') with A_final fused in-kernel.
    #      Grid = (sample, channel tile); tile = whole quarters, auto-sized to VMEM.
    a0_bf = params["norm_learn_A"].astype(bf16)                     # (3, Cout, V, V)
    cq_full = Cout // NUM_QUARTER

    def mix_est(qpt):
        tc_ = qpt * cq_full
        blocks = (3 * tc_ * T * V * 2          # m tile (bf16)
                  + 3 * qpt * V * V * 4        # att tile (f32)
                  + 3 * tc_ * V * V * 2        # a0 tile (bf16)
                  + tc_ * T * V * 2            # out tile (bf16)
                  + 2 * tc_ * 4)               # moments
        return 2 * blocks + tc_ * T * V * 4    # + f32 accumulator scratch

    QPT = next((q for q in (4, 2) if mix_est(q) <= budget), 1)
    tc = QPT * cq_full
    CT = Cout // tc
    m_out, mom1, mom2 = pl.pallas_call(
        _mix_kernel,
        out_shape=(
            jax.ShapeDtypeStruct((N, Cout, T, V), bf16),
            jax.ShapeDtypeStruct((N, Cout, 1), f32),
            jax.ShapeDtypeStruct((N, Cout, 1), f32),
        ),
        grid=(N, CT),
        in_specs=[
            pl.BlockSpec((None, NUM_SUBSET, tc, T, V), lambda n, c: (n, 0, c, 0, 0)),
            pl.BlockSpec((None, NUM_SUBSET, QPT, V, V), lambda n, c: (n, 0, c, 0, 0)),
            pl.BlockSpec((NUM_SUBSET, tc, V, V), lambda n, c: (0, c, 0, 0)),
        ],
        out_specs=(
            pl.BlockSpec((None, tc, T, V), lambda n, c: (n, c, 0, 0)),
            pl.BlockSpec((None, tc, 1), lambda n, c: (n, c, 0)),
            pl.BlockSpec((None, tc, 1), lambda n, c: (n, c, 0)),
        ),
        scratch_shapes=[pltpu.VMEM((tc, T, V), f32)],
        compiler_params=cparams(("parallel", "parallel"), mix_est(QPT)),
    )(m5, att, a0_bf)

    # ---- channel refinement (Conv1d over channels of the pooled mean) + train-mode
    #      BatchNorm folded into per-(n,c) scale and per-c shift (tiny XLA glue).
    inv_tv = 1.0 / float(TV)
    pooled_m = mom1[:, :, 0] * inv_tv            # (N, Cout)   AdaptiveAvgPool2d(1) of m
    pooled_sq = mom2[:, :, 0] * inv_tv           # (N, Cout)   E[m^2] over (T, V)
    w3 = params["cha_w"]                         # Conv1d(1,1,3,pad=1,bias=False) taps
    pm_pad = jnp.pad(pooled_m, ((0, 0), (1, 1)))
    cr = w3[0] * pm_pad[:, :-2] + w3[1] * pm_pad[:, 1:-1] + w3[2] * pm_pad[:, 2:]
    gate = 1.0 + jax.nn.sigmoid(cr)              # CR_out = m * gate (constant over T,V)
    mu = jnp.mean(gate * pooled_m, axis=0)               # per-channel batch mean of CR_out
    ex2 = jnp.mean(gate * gate * pooled_sq, axis=0)      # per-channel E[CR_out^2]
    var = jnp.maximum(ex2 - mu * mu, 0.0)                # biased variance (torch train BN)
    rstd = lax.rsqrt(var + 1e-5)
    gamma, beta = params["bn_gamma"], params["bn_beta"]
    scale = gate * (gamma * rstd)[None, :]               # (N, Cout)
    shift = beta - gamma * mu * rstd                     # (Cout,)

    # ---- fused elementwise epilogue: BN(CR_out) + residual + ReLU on a lane-dense view.
    rows = N * Cout
    per_row = TV * (2 + 4 + 4) + 8
    rb = min(rows, 4096, max(8, (budget // (2 * per_row)) // 8 * 8))
    m2d = m_out.reshape(rows, TV)                        # free reshape (bf16)
    res2d = x0.reshape(rows, TV)                         # identity residual (Cin == Cout)
    scale2d = scale.reshape(rows, 1)
    shift2d = jnp.broadcast_to(shift[None, :], (N, Cout)).reshape(rows, 1)
    out2d = pl.pallas_call(
        _epilogue_kernel,
        out_shape=jax.ShapeDtypeStruct((rows, TV), f32),
        grid=(pl.cdiv(rows, rb),),
        in_specs=[
            pl.BlockSpec((rb, TV), lambda i: (i, 0)),
            pl.BlockSpec((rb, TV), lambda i: (i, 0)),
            pl.BlockSpec((rb, 1), lambda i: (i, 0)),
            pl.BlockSpec((rb, 1), lambda i: (i, 0)),
        ],
        out_specs=pl.BlockSpec((rb, TV), lambda i: (i, 0)),
        compiler_params=cparams(("parallel",), 2 * rb * per_row),
    )(m2d, res2d, scale2d, shift2d)
    return out2d.reshape(N, Cout, T, V)


# ------------------------------------------------------------------- parameter init
def init_params(key, in_channels, out_channels, groups=8):
    assert out_channels % 8 == 0
    ks = jax.random.split(key, 7)

    # adjacency A: (3, 17, 17) -- deterministic synthetic stand-in for the skeleton graph
    A = jax.random.uniform(ks[0], (NUM_SUBSET, V, V), jnp.float32, 0.0, 0.5)
    A_rep = jnp.tile(A[:, None], (1, groups, 1, 1))          # (3, groups, V, V)
    A_sum = A_rep + A_rep                                    # A_SE + A_GEME (same init)
    norm_learn_A = jnp.tile(A_sum, (1, out_channels // groups, 1, 1))  # (3, Cout, V, V)

    # 1x1 conv: kaiming_normal (fan_out), bias = 0; stored as (3*Cout, Cin) like torch
    kc = NUM_SUBSET * out_channels
    std = (2.0 / kc) ** 0.5
    conv_w = jax.random.normal(ks[1], (kc, in_channels), jnp.float32) * std
    conv_b = jnp.zeros((kc, 1), jnp.float32)

    # Linear(17,17) of Spa_Atten and of the parent module (torch default uniform init),
    # stored transposed so the kernels compute row-vector @ W^T directly.
    bound = 1.0 / (V ** 0.5)
    w_spa = jax.random.uniform(ks[2], (V, V), jnp.float32, -bound, bound)
    b_spa = jax.random.uniform(ks[3], (1, V), jnp.float32, -bound, bound)
    w_par = jax.random.uniform(ks[4], (V, V), jnp.float32, -bound, bound)
    b_par = jax.random.uniform(ks[5], (1, V), jnp.float32, -bound, bound)

    # ChaRef Conv1d(1, 1, kernel_size=3, padding=1, bias=False) taps
    kbound = 1.0 / (3.0 ** 0.5)
    cha_w = jax.random.uniform(ks[6], (3,), jnp.float32, -kbound, kbound)

    bn_gamma = jnp.full((out_channels,), 1e-6, jnp.float32)  # bn_init(self.bn, 1e-6)
    bn_beta = jnp.zeros((out_channels,), jnp.float32)

    return dict(
        conv_w=conv_w, conv_b=conv_b,
        w_spa_T=w_spa.T, b_spa=b_spa,
        w_par_T=w_par.T, b_par=b_par,
        norm_learn_A=norm_learn_A, cha_w=cha_w,
        bn_gamma=bn_gamma, bn_beta=bn_beta,
    )


if __name__ == "__main__":
    key = jax.random.PRNGKey(0)
    kx, kp = jax.random.split(key)

    N, C, T = 2, 16, 8                      # small shapes; V is fixed at 17 by the model
    params = init_params(kp, in_channels=C, out_channels=C)
    x0 = jax.random.normal(kx, (N, C, T, V), jnp.float32)

    fwd = jax.jit(spatial_mixformer_forward)
    out = fwd(x0, params)
    jax.block_until_ready(out)

    assert out.shape == (N, C, T, V)
    assert bool(jnp.all(jnp.isfinite(out)))
    assert bool(jnp.all(out >= 0.0))        # final ReLU
    print("KERNEL_OK")
</pallas_src>

<mosaic_0001>
module attributes {stable_mosaic.version = 11 : i64} {
  func.func @_spa_attn_kernel(%arg0: i32, %arg1: memref<2x12x17xf32, #tpu.memory_space<vmem>>, %arg2: memref<2x12x17xf32, #tpu.memory_space<vmem>>, %arg3: memref<17x17xf32, #tpu.memory_space<vmem>>, %arg4: memref<1x17xf32, #tpu.memory_space<vmem>>, %arg5: memref<17x17xf32, #tpu.memory_space<vmem>>, %arg6: memref<1x17xf32, #tpu.memory_space<vmem>>, %arg7: memref<2x12x17x17xf32, #tpu.memory_space<vmem>>) attributes {dimension_semantics = [#tpu.dimension_semantics<parallel>], iteration_bounds = array<i64: 1>, scalar_prefetch = 0 : i64, scratch_operands = 0 : i64, tpu.core_type = #tpu.core_type<tc>, window_params = [{transform_indices = @transform_0, window_bounds = array<i64: 2, 12, 17>}, {transform_indices = @transform_1, window_bounds = array<i64: 2, 12, 17>}, {pipeline_mode = #tpu.pipeline_mode<synchronous>, transform_indices = @transform_2, window_bounds = array<i64: 17, 17>}, {pipeline_mode = #tpu.pipeline_mode<synchronous>, transform_indices = @transform_3, window_bounds = array<i64: 1, 17>}, {pipeline_mode = #tpu.pipeline_mode<synchronous>, transform_indices = @transform_4, window_bounds = array<i64: 17, 17>}, {pipeline_mode = #tpu.pipeline_mode<synchronous>, transform_indices = @transform_5, window_bounds = array<i64: 1, 17>}, {transform_indices = @transform_6, window_bounds = array<i64: 2, 12, 17, 17>}]} {
    %c0 = arith.constant 0 : index
    %c0_0 = arith.constant 0 : index
    %0 = vector.load %arg3[%c0, %c0_0] : memref<17x17xf32, #tpu.memory_space<vmem>>, vector<17x17xf32>
    %c0_1 = arith.constant 0 : index
    %c0_2 = arith.constant 0 : index
    %1 = vector.load %arg4[%c0_1, %c0_2] : memref<1x17xf32, #tpu.memory_space<vmem>>, vector<1x17xf32>
    %c0_3 = arith.constant 0 : index
    %c0_4 = arith.constant 0 : index
    %2 = vector.load %arg5[%c0_3, %c0_4] : memref<17x17xf32, #tpu.memory_space<vmem>>, vector<17x17xf32>
    %c0_5 = arith.constant 0 : index
    %c0_6 = arith.constant 0 : index
    %3 = vector.load %arg6[%c0_5, %c0_6] : memref<1x17xf32, #tpu.memory_space<vmem>>, vector<1x17xf32>
    %c0_7 = arith.constant 0 : index
    %c0_8 = arith.constant 0 : index
    %c0_9 = arith.constant 0 : index
    %4 = vector.load %arg1[%c0_7, %c0_8, %c0_9] : memref<2x12x17xf32, #tpu.memory_space<vmem>>, vector<1x12x17xf32>
    %5 = vector.shape_cast %4 : vector<1x12x17xf32> to vector<12x17xf32>
    %c0_10 = arith.constant 0 : index
    %c0_11 = arith.constant 0 : index
    %c0_12 = arith.constant 0 : index
    %6 = vector.load %arg2[%c0_10, %c0_11, %c0_12] : memref<2x12x17xf32, #tpu.memory_space<vmem>>, vector<1x12x17xf32>
    %7 = vector.shape_cast %6 : vector<1x12x17xf32> to vector<12x17xf32>
    %cst = arith.constant dense<0.000000e+00> : vector<12x17xf32>
    %8 = tpu.matmul %5, %0, %cst {dimension_numbers = #tpu.dot_dimension_numbers<[1], [0], [0], [1], [0, 0, 1, 1], [], []>} : vector<12x17xf32>, vector<17x17xf32>, vector<12x17xf32> -> vector<12x17xf32>
    %9 = vector.broadcast %1 : vector<1x17xf32> to vector<12x17xf32>
    %10 = arith.addf %8, %9 : vector<12x17xf32>
    %cst_13 = arith.constant 0.000000e+00 : f32
    %11 = vector.broadcast %cst_13 : f32 to vector<12x17xf32>
    %12 = arith.maximumf %10, %11 : vector<12x17xf32>
    %cst_14 = arith.constant dense<0.000000e+00> : vector<12x17xf32>
    %13 = tpu.matmul %7, %0, %cst_14 {dimension_numbers = #tpu.dot_dimension_numbers<[1], [0], [0], [1], [0, 0, 1, 1], [], []>} : vector<12x17xf32>, vector<17x17xf32>, vector<12x17xf32> -> vector<12x17xf32>
    %14 = vector.broadcast %1 : vector<1x17xf32> to vector<12x17xf32>
    %15 = arith.addf %13, %14 : vector<12x17xf32>
    %cst_15 = arith.constant 0.000000e+00 : f32
    %16 = vector.broadcast %cst_15 : f32 to vector<12x17xf32>
    %17 = arith.maximumf %15, %16 : vector<12x17xf32>
    %cst_16 = arith.constant dense<0.000000e+00> : vector<12x17xf32>
    %18 = tpu.matmul %5, %2, %cst_16 {dimension_numbers = #tpu.dot_dimension_numbers<[1], [0], [0], [1], [0, 0, 1, 1], [], []>} : vector<12x17xf32>, vector<17x17xf32>, vector<12x17xf32> -> vector<12x17xf32>
    %19 = vector.broadcast %3 : vector<1x17xf32> to vector<12x17xf32>
    %20 = arith.addf %18, %19 : vector<12x17xf32>
    %cst_17 = arith.constant 0.000000e+00 : f32
    %21 = vector.broadcast %cst_17 : f32 to vector<12x17xf32>
    %22 = arith.maximumf %20, %21 : vector<12x17xf32>
    %cst_18 = arith.constant dense<0.000000e+00> : vector<12x17xf32>
    %23 = tpu.matmul %7, %2, %cst_18 {dimension_numbers = #tpu.dot_dimension_numbers<[1], [0], [0], [1], [0, 0, 1, 1], [], []>} : vector<12x17xf32>, vector<17x17xf32>, vector<12x17xf32> -> vector<12x17xf32>
    %24 = vector.broadcast %3 : vector<1x17xf32> to vector<12x17xf32>
    %25 = arith.addf %23, %24 : vector<12x17xf32>
    %cst_19 = arith.constant 0.000000e+00 : f32
    %26 = vector.broadcast %cst_19 : f32 to vector<12x17xf32>
    %27 = arith.maximumf %25, %26 : vector<12x17xf32>
    %28 = tpu.transpose %12, [1, 0] : vector<12x17xf32> -> vector<17x12xf32>
    %29 = tpu.transpose %27, [1, 0] : vector<12x17xf32> -> vector<17x12xf32>
    %30 = vector.extract_strided_slice %28 {offsets = [0, 0], sizes = [17, 1], strides = [1, 1]} : vector<17x12xf32> to vector<17x1xf32>
    %31 = vector.extract_strided_slice %17 {offsets = [0, 0], sizes = [1, 17], strides = [1, 1]} : vector<12x17xf32> to vector<1x17xf32>
    %32 = vector.broadcast %30 : vector<17x1xf32> to vector<17x17xf32>
    %33 = vector.broadcast %31 : vector<1x17xf32> to vector<17x17xf32>
    %34 = arith.mulf %32, %33 : vector<17x17xf32>
    %35 = vector.extract_strided_slice %28 {offsets = [0, 1], sizes = [17, 1], strides = [1, 1]} : vector<17x12xf32> to vector<17x1xf32>
    %36 = vector.extract_strided_slice %17 {offsets = [1, 0], sizes = [1, 17], strides = [1, 1]} : vector<12x17xf32> to vector<1x17xf32>
    %37 = vector.broadcast %35 : vector<17x1xf32> to vector<17x17xf32>
    %38 = vector.broadcast %36 : vector<1x17xf32> to vector<17x17xf32>
    %39 = arith.mulf %37, %38 : vector<17x17xf32>
    %40 = vector.extract_strided_slice %28 {offsets = [0, 2], sizes = [17, 1], strides = [1, 1]} : vector<17x12xf32> to vector<17x1xf32>
    %41 = vector.extract_strided_slice %17 {offsets = [2, 0], sizes = [1, 17], strides = [1, 1]} : vector<12x17xf32> to vector<1x17xf32>
    %42 = vector.broadcast %40 : vector<17x1xf32> to vector<17x17xf32>
    %43 = vector.broadcast %41 : vector<1x17xf32> to vector<17x17xf32>
    %44 = arith.mulf %42, %43 : vector<17x17xf32>
    %45 = vector.extract_strided_slice %28 {offsets = [0, 3], sizes = [17, 1], strides = [1, 1]} : vector<17x12xf32> to vector<17x1xf32>
    %46 = vector.extract_strided_slice %17 {offsets = [3, 0], sizes = [1, 17], strides = [1, 1]} : vector<12x17xf32> to vector<1x17xf32>
    %47 = vector.broadcast %45 : vector<17x1xf32> to vector<17x17xf32>
    %48 = vector.broadcast %46 : vector<1x17xf32> to vector<17x17xf32>
    %49 = arith.mulf %47, %48 : vector<17x17xf32>
    %50 = vector.extract_strided_slice %29 {offsets = [0, 0], sizes = [17, 1], strides = [1, 1]} : vector<17x12xf32> to vector<17x1xf32>
    %51 = vector.extract_strided_slice %22 {offsets = [1, 0], sizes = [1, 17], strides = [1, 1]} : vector<12x17xf32> to vector<1x17xf32>
    %52 = vector.broadcast %50 : vector<17x1xf32> to vector<17x17xf32>
    %53 = vector.broadcast %51 : vector<1x17xf32> to vector<17x17xf32>
    %54 = arith.mulf %52, %53 : vector<17x17xf32>
    %55 = vector.extract_strided_slice %29 {offsets = [0, 1], sizes = [17, 1], strides = [1, 1]} : vector<17x12xf32> to vector<17x1xf32>
    %56 = vector.extract_strided_slice %22 {offsets = [2, 0], sizes = [1, 17], strides = [1, 1]} : vector<12x17xf32> to vector<1x17xf32>
    %57 = vector.broadcast %55 : vector<17x1xf32> to vector<17x17xf32>
    %58 = vector.broadcast %56 : vector<1x17xf32> to vector<17x17xf32>
    %59 = arith.mulf %57, %58 : vector<17x17xf32>
    %60 = vector.extract_strided_slice %29 {offsets = [0, 2], sizes = [17, 1], strides = [1, 1]} : vector<17x12xf32> to vector<17x1xf32>
    %61 = vector.extract_strided_slice %22 {offsets = [3, 0], sizes = [1, 17], strides = [1, 1]} : vector<12x17xf32> to vector<1x17xf32>
    %62 = vector.broadcast %60 : vector<17x1xf32> to vector<17x17xf32>
    %63 = vector.broadcast %61 : vector<1x17xf32> to vector<17x17xf32>
    %64 = arith.mulf %62, %63 : vector<17x17xf32>
    %65 = vector.extract_strided_slice %28 {offsets = [0, 4], sizes = [17, 1], strides = [1, 1]} : vector<17x12xf32> to vector<17x1xf32>
    %66 = vector.extract_strided_slice %17 {offsets = [4, 0], sizes = [1, 17], strides = [1, 1]} : vector<12x17xf32> to vector<1x17xf32>
    %67 = vector.broadcast %65 : vector<17x1xf32> to vector<17x17xf32>
    %68 = vector.broadcast %66 : vector<1x17xf32> to vector<17x17xf32>
    %69 = arith.mulf %67, %68 : vector<17x17xf32>
    %70 = vector.extract_strided_slice %28 {offsets = [0, 5], sizes = [17, 1], strides = [1, 1]} : vector<17x12xf32> to vector<17x1xf32>
    %71 = vector.extract_strided_slice %17 {offsets = [5, 0], sizes = [1, 17], strides = [1, 1]} : vector<12x17xf32> to vector<1x17xf32>
    %72 = vector.broadcast %70 : vector<17x1xf32> to vector<17x17xf32>
    %73 = vector.broadcast %71 : vector<1x17xf32> to vector<17x17xf32>
    %74 = arith.mulf %72, %73 : vector<17x17xf32>
    %75 = vector.extract_strided_slice %28 {offsets = [0, 6], sizes = [17, 1], strides = [1, 1]} : vector<17x12xf32> to vector<17x1xf32>
    %76 = vector.extract_strided_slice %17 {offsets = [6, 0], sizes = [1, 17], strides = [1, 1]} : vector<12x17xf32> to vector<1x17xf32>
    %77 = vector.broadcast %75 : vector<17x1xf32> to vector<17x17xf32>
    %78 = vector.broadcast %76 : vector<1x17xf32> to vector<17x17xf32>
    %79 = arith.mulf %77, %78 : vector<17x17xf32>
    %80 = vector.extract_strided_slice %28 {offsets = [0, 7], sizes = [17, 1], strides = [1, 1]} : vector<17x12xf32> to vector<17x1xf32>
    %81 = vector.extract_strided_slice %17 {offsets = [7, 0], sizes = [1, 17], strides = [1, 1]} : vector<12x17xf32> to vector<1x17xf32>
    %82 = vector.broadcast %80 : vector<17x1xf32> to vector<17x17xf32>
    %83 = vector.broadcast %81 : vector<1x17xf32> to vector<17x17xf32>
    %84 = arith.mulf %82, %83 : vector<17x17xf32>
    %85 = vector.extract_strided_slice %29 {offsets = [0, 4], sizes = [17, 1], strides = [1, 1]} : vector<17x12xf32> to vector<17x1xf32>
    %86 = vector.extract_strided_slice %22 {offsets = [5, 0], sizes = [1, 17], strides = [1, 1]} : vector<12x17xf32> to vector<1x17xf32>
    %87 = vector.broadcast %85 : vector<17x1xf32> to vector<17x17xf32>
    %88 = vector.broadcast %86 : vector<1x17xf32> to vector<17x17xf32>
    %89 = arith.mulf %87, %88 : vector<17x17xf32>
    %90 = vector.extract_strided_slice %29 {offsets = [0, 5], sizes = [17, 1], strides = [1, 1]} : vector<17x12xf32> to vector<17x1xf32>
    %91 = vector.extract_strided_slice %22 {offsets = [6, 0], sizes = [1, 17], strides = [1, 1]} : vector<12x17xf32> to vector<1x17xf32>
    %92 = vector.broadcast %90 : vector<17x1xf32> to vector<17x17xf32>
    %93 = vector.broadcast %91 : vector<1x17xf32> to vector<17x17xf32>
    %94 = arith.mulf %92, %93 : vector<17x17xf32>
    %95 = vector.extract_strided_slice %29 {offsets = [0, 6], sizes = [17, 1], strides = [1, 1]} : vector<17x12xf32> to vector<17x1xf32>
    %96 = vector.extract_strided_slice %22 {offsets = [7, 0], sizes = [1, 17], strides = [1, 1]} : vector<12x17xf32> to vector<1x17xf32>
    %97 = vector.broadcast %95 : vector<17x1xf32> to vector<17x17xf32>
    %98 = vector.broadcast %96 : vector<1x17xf32> to vector<17x17xf32>
    %99 = arith.mulf %97, %98 : vector<17x17xf32>
    %100 = vector.extract_strided_slice %28 {offsets = [0, 8], sizes = [17, 1], strides = [1, 1]} : vector<17x12xf32> to vector<17x1xf32>
    %101 = vector.extract_strided_slice %17 {offsets = [8, 0], sizes = [1, 17], strides = [1, 1]} : vector<12x17xf32> to vector<1x17xf32>
    %102 = vector.broadcast %100 : vector<17x1xf32> to vector<17x17xf32>
    %103 = vector.broadcast %101 : vector<1x17xf32> to vector<17x17xf32>
    %104 = arith.mulf %102, %103 : vector<17x17xf32>
    %105 = vector.extract_strided_slice %28 {offsets = [0, 9], sizes = [17, 1], strides = [1, 1]} : vector<17x12xf32> to vector<17x1xf32>
    %106 = vector.extract_strided_slice %17 {offsets = [9, 0], sizes = [1, 17], strides = [1, 1]} : vector<12x17xf32> to vector<1x17xf32>
    %107 = vector.broadcast %105 : vector<17x1xf32> to vector<17x17xf32>
    %108 = vector.broadcast %106 : vector<1x17xf32> to vector<17x17xf32>
    %109 = arith.mulf %107, %108 : vector<17x17xf32>
    %110 = vector.extract_strided_slice %28 {offsets = [0, 10], sizes = [17, 1], strides = [1, 1]} : vector<17x12xf32> to vector<17x1xf32>
    %111 = vector.extract_strided_slice %17 {offsets = [10, 0], sizes = [1, 17], strides = [1, 1]} : vector<12x17xf32> to vector<1x17xf32>
    %112 = vector.broadcast %110 : vector<17x1xf32> to vector<17x17xf32>
    %113 = vector.broadcast %111 : vector<1x17xf32> to vector<17x17xf32>
    %114 = arith.mulf %112, %113 : vector<17x17xf32>
    %115 = vector.extract_strided_slice %28 {offsets = [0, 11], sizes = [17, 1], strides = [1, 1]} : vector<17x12xf32> to vector<17x1xf32>
    %116 = vector.extract_strided_slice %17 {offsets = [11, 0], sizes = [1, 17], strides = [1, 1]} : vector<12x17xf32> to vector<1x17xf32>
    %117 = vector.broadcast %115 : vector<17x1xf32> to vector<17x17xf32>
    %118 = vector.broadcast %116 : vector<1x17xf32> to vector<17x17xf32>
    %119 = arith.mulf %117, %118 : vector<17x17xf32>
    %120 = vector.extract_strided_slice %29 {offsets = [0, 8], sizes = [17, 1], strides = [1, 1]} : vector<17x12xf32> to vector<17x1xf32>
    %121 = vector.extract_strided_slice %22 {offsets = [9, 0], sizes = [1, 17], strides = [1, 1]} : vector<12x17xf32> to vector<1x17xf32>
    %122 = vector.broadcast %120 : vector<17x1xf32> to vector<17x17xf32>
    %123 = vector.broadcast %121 : vector<1x17xf32> to vector<17x17xf32>
    %124 = arith.mulf %122, %123 : vector<17x17xf32>
    %125 = vector.extract_strided_slice %29 {offsets = [0, 9], sizes = [17, 1], strides = [1, 1]} : vector<17x12xf32> to vector<17x1xf32>
    %126 = vector.extract_strided_slice %22 {offsets = [10, 0], sizes = [1, 17], strides = [1, 1]} : vector<12x17xf32> to vector<1x17xf32>
    %127 = vector.broadcast %125 : vector<17x1xf32> to vector<17x17xf32>
    %128 = vector.broadcast %126 : vector<1x17xf32> to vector<17x17xf32>
    %129 = arith.mulf %127, %128 : vector<17x17xf32>
    %130 = vector.extract_strided_slice %29 {offsets = [0, 10], sizes = [17, 1], strides = [1, 1]} : vector<17x12xf32> to vector<17x1xf32>
    %131 = vector.extract_strided_slice %22 {offsets = [11, 0], sizes = [1, 17], strides = [1, 1]} : vector<12x17xf32> to vector<1x17xf32>
    %132 = vector.broadcast %130 : vector<17x1xf32> to vector<17x17xf32>
    %133 = vector.broadcast %131 : vector<1x17xf32> to vector<17x17xf32>
    %134 = arith.mulf %132, %133 : vector<17x17xf32>
    %c1 = arith.constant 1 : index
    %c0_20 = arith.constant 0 : index
    %c0_21 = arith.constant 0 : index
    %135 = vector.load %arg1[%c1, %c0_20, %c0_21] : memref<2x12x17xf32, #tpu.memory_space<vmem>>, vector<1x12x17xf32>
    %136 = vector.shape_cast %135 : vector<1x12x17xf32> to vector<12x17xf32>
    %c1_22 = arith.constant 1 : index
    %c0_23 = arith.constant 0 : index
    %c0_24 = arith.constant 0 : index
    %137 = vector.load %arg2[%c1_22, %c0_23, %c0_24] : memref<2x12x17xf32, #tpu.memory_space<vmem>>, vector<1x12x17xf32>
    %138 = vector.shape_cast %137 : vector<1x12x17xf32> to vector<12x17xf32>
    %cst_25 = arith.constant dense<0.000000e+00> : vector<12x17xf32>
    %139 = tpu.matmul %136, %0, %cst_25 {dimension_numbers = #tpu.dot_dimension_numbers<[1], [0], [0], [1], [0, 0, 1, 1], [], []>} : vector<12x17xf32>, vector<17x17xf32>, vector<12x17xf32> -> vector<12x17xf32>
    %140 = vector.broadcast %1 : vector<1x17xf32> to vector<12x17xf32>
    %141 = arith.addf %139, %140 : vector<12x17xf32>
    %cst_26 = arith.constant 0.000000e+00 : f32
    %142 = vector.broadcast %cst_26 : f32 to vector<12x17xf32>
    %143 = arith.maximumf %141, %142 : vector<12x17xf32>
    %cst_27 = arith.constant dense<0.000000e+00> : vector<12x17xf32>
    %144 = tpu.matmul %138, %0, %cst_27 {dimension_numbers = #tpu.dot_dimension_numbers<[1], [0], [0], [1], [0, 0, 1, 1], [], []>} : vector<12x17xf32>, vector<17x17xf32>, vector<12x17xf32> -> vector<12x17xf32>
    %145 = vector.broadcast %1 : vector<1x17xf32> to vector<12x17xf32>
    %146 = arith.addf %144, %145 : vector<12x17xf32>
    %cst_28 = arith.constant 0.000000e+00 : f32
    %147 = vector.broadcast %cst_28 : f32 to vector<12x17xf32>
    %148 = arith.maximumf %146, %147 : vector<12x17xf32>
    %cst_29 = arith.constant dense<0.000000e+00> : vector<12x17xf32>
    %149 = tpu.matmul %136, %2, %cst_29 {dimension_numbers = #tpu.dot_dimension_numbers<[1], [0], [0], [1], [0, 0, 1, 1], [], []>} : vector<12x17xf32>, vector<17x17xf32>, vector<12x17xf32> -> vector<12x17xf32>
    %150 = vector.broadcast %3 : vector<1x17xf32> to vector<12x17xf32>
    %151 = arith.addf %149, %150 : vector<12x17xf32>
    %cst_30 = arith.constant 0.000000e+00 : f32
    %152 = vector.broadcast %cst_30 : f32 to vector<12x17xf32>
    %153 = arith.maximumf %151, %152 : vector<12x17xf32>
    %cst_31 = arith.constant dense<0.000000e+00> : vector<12x17xf32>
    %154 = tpu.matmul %138, %2, %cst_31 {dimension_numbers = #tpu.dot_dimension_numbers<[1], [0], [0], [1], [0, 0, 1, 1], [], []>} : vector<12x17xf32>, vector<17x17xf32>, vector<12x17xf32> -> vector<12x17xf32>
    %155 = vector.broadcast %3 : vector<1x17xf32> to vector<12x17xf32>
    %156 = arith.addf %154, %155 : vector<12x17xf32>
    %cst_32 = arith.constant 0.000000e+00 : f32
    %157 = vector.broadcast %cst_32 : f32 to vector<12x17xf32>
    %158 = arith.maximumf %156, %157 : vector<12x17xf32>
    %159 = tpu.transpose %143, [1, 0] : vector<12x17xf32> -> vector<17x12xf32>
    %160 = tpu.transpose %158, [1, 0] : vector<12x17xf32> -> vector<17x12xf32>
    %161 = vector.extract_strided_slice %159 {offsets = [0, 0], sizes = [17, 1], strides = [1, 1]} : vector<17x12xf32> to vector<17x1xf32>
    %162 = vector.extract_strided_slice %148 {offsets = [0, 0], sizes = [1, 17], strides = [1, 1]} : vector<12x17xf32> to vector<1x17xf32>
    %163 = vector.broadcast %161 : vector<17x1xf32> to vector<17x17xf32>
    %164 = vector.broadcast %162 : vector<1x17xf32> to vector<17x17xf32>
    %165 = arith.mulf %163, %164 : vector<17x17xf32>
    %166 = vector.extract_strided_slice %159 {offsets = [0, 1], sizes = [17, 1], strides = [1, 1]} : vector<17x12xf32> to vector<17x1xf32>
    %167 = vector.extract_strided_slice %148 {offsets = [1, 0], sizes = [1, 17], strides = [1, 1]} : vector<12x17xf32> to vector<1x17xf32>
    %168 = vector.broadcast %166 : vector<17x1xf32> to vector<17x17xf32>
    %169 = vector.broadcast %167 : vector<1x17xf32> to vector<17x17xf32>
    %170 = arith.mulf %168, %169 : vector<17x17xf32>
    %171 = vector.extract_strided_slice %159 {offsets = [0, 2], sizes = [17, 1], strides = [1, 1]} : vector<17x12xf32> to vector<17x1xf32>
    %172 = vector.extract_strided_slice %148 {offsets = [2, 0], sizes = [1, 17], strides = [1, 1]} : vector<12x17xf32> to vector<1x17xf32>
    %173 = vector.broadcast %171 : vector<17x1xf32> to vector<17x17xf32>
    %174 = vector.broadcast %172 : vector<1x17xf32> to vector<17x17xf32>
    %175 = arith.mulf %173, %174 : vector<17x17xf32>
    %176 = vector.extract_strided_slice %159 {offsets = [0, 3], sizes = [17, 1], strides = [1, 1]} : vector<17x12xf32> to vector<17x1xf32>
    %177 = vector.extract_strided_slice %148 {offsets = [3, 0], sizes = [1, 17], strides = [1, 1]} : vector<12x17xf32> to vector<1x17xf32>
    %178 = vector.broadcast %176 : vector<17x1xf32> to vector<17x17xf32>
    %179 = vector.broadcast %177 : vector<1x17xf32> to vector<17x17xf32>
    %180 = arith.mulf %178, %179 : vector<17x17xf32>
    %181 = vector.extract_strided_slice %160 {offsets = [0, 0], sizes = [17, 1], strides = [1, 1]} : vector<17x12xf32> to vector<17x1xf32>
    %182 = vector.extract_strided_slice %153 {offsets = [1, 0], sizes = [1, 17], strides = [1, 1]} : vector<12x17xf32> to vector<1x17xf32>
    %183 = vector.broadcast %181 : vector<17x1xf32> to vector<17x17xf32>
    %184 = vector.broadcast %182 : vector<1x17xf32> to vector<17x17xf32>
    %185 = arith.mulf %183, %184 : vector<17x17xf32>
    %186 = vector.extract_strided_slice %160 {offsets = [0, 1], sizes = [17, 1], strides = [1, 1]} : vector<17x12xf32> to vector<17x1xf32>
    %187 = vector.extract_strided_slice %153 {offsets = [2, 0], sizes = [1, 17], strides = [1, 1]} : vector<12x17xf32> to vector<1x17xf32>
    %188 = vector.broadcast %186 : vector<17x1xf32> to vector<17x17xf32>
    %189 = vector.broadcast %187 : vector<1x17xf32> to vector<17x17xf32>
    %190 = arith.mulf %188, %189 : vector<17x17xf32>
    %191 = vector.extract_strided_slice %160 {offsets = [0, 2], sizes = [17, 1], strides = [1, 1]} : vector<17x12xf32> to vector<17x1xf32>
    %192 = vector.extract_strided_slice %153 {offsets = [3, 0], sizes = [1, 17], strides = [1, 1]} : vector<12x17xf32> to vector<1x17xf32>
    %193 = vector.broadcast %191 : vector<17x1xf32> to vector<17x17xf32>
    %194 = vector.broadcast %192 : vector<1x17xf32> to vector<17x17xf32>
    %195 = arith.mulf %193, %194 : vector<17x17xf32>
    %196 = vector.extract_strided_slice %159 {offsets = [0, 4], sizes = [17, 1], strides = [1, 1]} : vector<17x12xf32> to vector<17x1xf32>
    %197 = vector.extract_strided_slice %148 {offsets = [4, 0], sizes = [1, 17], strides = [1, 1]} : vector<12x17xf32> to vector<1x17xf32>
    %198 = vector.broadcast %196 : vector<17x1xf32> to vector<17x17xf32>
    %199 = vector.broadcast %197 : vector<1x17xf32> to vector<17x17xf32>
    %200 = arith.mulf %198, %199 : vector<17x17xf32>
    %201 = vector.extract_strided_slice %159 {offsets = [0, 5], sizes = [17, 1], strides = [1, 1]} : vector<17x12xf32> to vector<17x1xf32>
    %202 = vector.extract_strided_slice %148 {offsets = [5, 0], sizes = [1, 17], strides = [1, 1]} : vector<12x17xf32> to vector<1x17xf32>
    %203 = vector.broadcast %201 : vector<17x1xf32> to vector<17x17xf32>
    %204 = vector.broadcast %202 : vector<1x17xf32> to vector<17x17xf32>
    %205 = arith.mulf %203, %204 : vector<17x17xf32>
    %206 = vector.extract_strided_slice %159 {offsets = [0, 6], sizes = [17, 1], strides = [1, 1]} : vector<17x12xf32> to vector<17x1xf32>
    %207 = vector.extract_strided_slice %148 {offsets = [6, 0], sizes = [1, 17], strides = [1, 1]} : vector<12x17xf32> to vector<1x17xf32>
    %208 = vector.broadcast %206 : vector<17x1xf32> to vector<17x17xf32>
    %209 = vector.broadcast %207 : vector<1x17xf32> to vector<17x17xf32>
    %210 = arith.mulf %208, %209 : vector<17x17xf32>
    %211 = vector.extract_strided_slice %159 {offsets = [0, 7], sizes = [17, 1], strides = [1, 1]} : vector<17x12xf32> to vector<17x1xf32>
    %212 = vector.extract_strided_slice %148 {offsets = [7, 0], sizes = [1, 17], strides = [1, 1]} : vector<12x17xf32> to vector<1x17xf32>
    %213 = vector.broadcast %211 : vector<17x1xf32> to vector<17x17xf32>
    %214 = vector.broadcast %212 : vector<1x17xf32> to vector<17x17xf32>
    %215 = arith.mulf %213, %214 : vector<17x17xf32>
    %216 = vector.extract_strided_slice %160 {offsets = [0, 4], sizes = [17, 1], strides = [1, 1]} : vector<17x12xf32> to vector<17x1xf32>
    %217 = vector.extract_strided_slice %153 {offsets = [5, 0], sizes = [1, 17], strides = [1, 1]} : vector<12x17xf32> to vector<1x17xf32>
    %218 = vector.broadcast %216 : vector<17x1xf32> to vector<17x17xf32>
    %219 = vector.broadcast %217 : vector<1x17xf32> to vector<17x17xf32>
    %220 = arith.mulf %218, %219 : vector<17x17xf32>
    %221 = vector.extract_strided_slice %160 {offsets = [0, 5], sizes = [17, 1], strides = [1, 1]} : vector<17x12xf32> to vector<17x1xf32>
    %222 = vector.extract_strided_slice %153 {offsets = [6, 0], sizes = [1, 17], strides = [1, 1]} : vector<12x17xf32> to vector<1x17xf32>
    %223 = vector.broadcast %221 : vector<17x1xf32> to vector<17x17xf32>
    %224 = vector.broadcast %222 : vector<1x17xf32> to vector<17x17xf32>
    %225 = arith.mulf %223, %224 : vector<17x17xf32>
    %226 = vector.extract_strided_slice %160 {offsets = [0, 6], sizes = [17, 1], strides = [1, 1]} : vector<17x12xf32> to vector<17x1xf32>
    %227 = vector.extract_strided_slice %153 {offsets = [7, 0], sizes = [1, 17], strides = [1, 1]} : vector<12x17xf32> to vector<1x17xf32>
    %228 = vector.broadcast %226 : vector<17x1xf32> to vector<17x17xf32>
    %229 = vector.broadcast %227 : vector<1x17xf32> to vector<17x17xf32>
    %230 = arith.mulf %228, %229 : vector<17x17xf32>
    %231 = vector.extract_strided_slice %159 {offsets = [0, 8], sizes = [17, 1], strides = [1, 1]} : vector<17x12xf32> to vector<17x1xf32>
    %232 = vector.extract_strided_slice %148 {offsets = [8, 0], sizes = [1, 17], strides = [1, 1]} : vector<12x17xf32> to vector<1x17xf32>
    %233 = vector.broadcast %231 : vector<17x1xf32> to vector<17x17xf32>
    %234 = vector.broadcast %232 : vector<1x17xf32> to vector<17x17xf32>
    %235 = arith.mulf %233, %234 : vector<17x17xf32>
    %236 = vector.extract_strided_slice %159 {offsets = [0, 9], sizes = [17, 1], strides = [1, 1]} : vector<17x12xf32> to vector<17x1xf32>
    %237 = vector.extract_strided_slice %148 {offsets = [9, 0], sizes = [1, 17], strides = [1, 1]} : vector<12x17xf32> to vector<1x17xf32>
    %238 = vector.broadcast %236 : vector<17x1xf32> to vector<17x17xf32>
    %239 = vector.broadcast %237 : vector<1x17xf32> to vector<17x17xf32>
    %240 = arith.mulf %238, %239 : vector<17x17xf32>
    %241 = vector.extract_strided_slice %159 {offsets = [0, 10], sizes = [17, 1], strides = [1, 1]} : vector<17x12xf32> to vector<17x1xf32>
    %242 = vector.extract_strided_slice %148 {offsets = [10, 0], sizes = [1, 17], strides = [1, 1]} : vector<12x17xf32> to vector<1x17xf32>
    %243 = vector.broadcast %241 : vector<17x1xf32> to vector<17x17xf32>
    %244 = vector.broadcast %242 : vector<1x17xf32> to vector<17x17xf32>
    %245 = arith.mulf %243, %244 : vector<17x17xf32>
    %246 = vector.extract_strided_slice %159 {offsets = [0, 11], sizes = [17, 1], strides = [1, 1]} : vector<17x12xf32> to vector<17x1xf32>
    %247 = vector.extract_strided_slice %148 {offsets = [11, 0], sizes = [1, 17], strides = [1, 1]} : vector<12x17xf32> to vector<1x17xf32>
    %248 = vector.broadcast %246 : vector<17x1xf32> to vector<17x17xf32>
    %249 = vector.broadcast %247 : vector<1x17xf32> to vector<17x17xf32>
    %250 = arith.mulf %248, %249 : vector<17x17xf32>
    %251 = vector.extract_strided_slice %160 {offsets = [0, 8], sizes = [17, 1], strides = [1, 1]} : vector<17x12xf32> to vector<17x1xf32>
    %252 = vector.extract_strided_slice %153 {offsets = [9, 0], sizes = [1, 17], strides = [1, 1]} : vector<12x17xf32> to vector<1x17xf32>
    %253 = vector.broadcast %251 : vector<17x1xf32> to vector<17x17xf32>
    %254 = vector.broadcast %252 : vector<1x17xf32> to vector<17x17xf32>
    %255 = arith.mulf %253, %254 : vector<17x17xf32>
    %256 = vector.extract_strided_slice %160 {offsets = [0, 9], sizes = [17, 1], strides = [1, 1]} : vector<17x12xf32> to vector<17x1xf32>
    %257 = vector.extract_strided_slice %153 {offsets = [10, 0], sizes = [1, 17], strides = [1, 1]} : vector<12x17xf32> to vector<1x17xf32>
    %258 = vector.broadcast %256 : vector<17x1xf32> to vector<17x17xf32>
    %259 = vector.broadcast %257 : vector<1x17xf32> to vector<17x17xf32>
    %260 = arith.mulf %258, %259 : vector<17x17xf32>
    %261 = vector.extract_strided_slice %160 {offsets = [0, 10], sizes = [17, 1], strides = [1, 1]} : vector<17x12xf32> to vector<17x1xf32>
    %262 = vector.extract_strided_slice %153 {offsets = [11, 0], sizes = [1, 17], strides = [1, 1]} : vector<12x17xf32> to vector<1x17xf32>
    %263 = vector.broadcast %261 : vector<17x1xf32> to vector<17x17xf32>
    %264 = vector.broadcast %262 : vector<1x17xf32> to vector<17x17xf32>
    %265 = arith.mulf %263, %264 : vector<17x17xf32>
    %266 = tpu.concatenate %34, %39, %44, %49, %54, %59, %64, %69, %74, %79, %84, %89, %94, %99, %104, %109 in 0 : vector<17x17xf32>, vector<17x17xf32>, vector<17x17xf32>, vector<17x17xf32>, vector<17x17xf32>, vector<17x17xf32>, vector<17x17xf32>, vector<17x17xf32>, vector<17x17xf32>, vector<17x17xf32>, vector<17x17xf32>, vector<17x17xf32>, vector<17x17xf32>, vector<17x17xf32>, vector<17x17xf32>, vector<17x17xf32> -> vector<272x17xf32>
    %267 = tpu.concatenate %114, %119, %124, %129, %134, %165, %170, %175, %180, %185, %190, %195, %200, %205, %210, %215 in 0 : vector<17x17xf32>, vector<17x17xf32>, vector<17x17xf32>, vector<17x17xf32>, vector<17x17xf32>, vector<17x17xf32>, vector<17x17xf32>, vector<17x17xf32>, vector<17x17xf32>, vector<17x17xf32>, vector<17x17xf32>, vector<17x17xf32>, vector<17x17xf32>, vector<17x17xf32>, vector<17x17xf32>, vector<17x17xf32> -> vector<272x17xf32>
    %268 = tpu.concatenate %220, %225, %230, %235, %240, %245, %250, %255, %260, %265 in 0 : vector<17x17xf32>, vector<17x17xf32>, vector<17x17xf32>, vector<17x17xf32>, vector<17x17xf32>, vector<17x17xf32>, vector<17x17xf32>, vector<17x17xf32>, vector<17x17xf32>, vector<17x17xf32> -> vector<170x17xf32>
    %269 = tpu.concatenate %266, %267, %268 in 0 : vector<272x17xf32>, vector<272x17xf32>, vector<170x17xf32> -> vector<714x17xf32>
    %cst_33 = arith.constant dense<0xFF800000> : vector<714xf32>
    %270 = vector.multi_reduction <maximumf>, %269, %cst_33 [1] : vector<714x17xf32> to vector<714xf32>
    %271 = vector.shape_cast %270 : vector<714xf32> to vector<714x1xf32>
    %272 = vector.broadcast %271 : vector<714x1xf32> to vector<714x17xf32>
    %273 = arith.subf %269, %272 : vector<714x17xf32>
    %274 = math.exp %273 : vector<714x17xf32>
    %cst_34 = arith.constant dense<0.000000e+00> : vector<714xf32>
    %275 = vector.multi_reduction <add>, %274, %cst_34 [1] : vector<714x17xf32> to vector<714xf32>
    %276 = vector.shape_cast %275 : vector<714xf32> to vector<714x1xf32>
    %277 = vector.broadcast %276 : vector<714x1xf32> to vector<714x17xf32>
    %278 = arith.divf %274, %277 : vector<714x17xf32>
    %279 = vector.extract_strided_slice %278 {offsets = [0, 0], sizes = [17, 17], strides = [1, 1]} : vector<714x17xf32> to vector<17x17xf32>
    %280 = vector.extract_strided_slice %278 {offsets = [17, 0], sizes = [17, 17], strides = [1, 1]} : vector<714x17xf32> to vector<17x17xf32>
    %281 = vector.extract_strided_slice %278 {offsets = [34, 0], sizes = [17, 17], strides = [1, 1]} : vector<714x17xf32> to vector<17x17xf32>
    %282 = vector.extract_strided_slice %278 {offsets = [51, 0], sizes = [17, 17], strides = [1, 1]} : vector<714x17xf32> to vector<17x17xf32>
    %283 = vector.extract_strided_slice %278 {offsets = [68, 0], sizes = [17, 17], strides = [1, 1]} : vector<714x17xf32> to vector<17x17xf32>
    %284 = vector.extract_strided_slice %278 {offsets = [85, 0], sizes = [17, 17], strides = [1, 1]} : vector<714x17xf32> to vector<17x17xf32>
    %285 = vector.extract_strided_slice %278 {offsets = [102, 0], sizes = [17, 17], strides = [1, 1]} : vector<714x17xf32> to vector<17x17xf32>
    %cst_35 = arith.constant 5.000000e-01 : f32
    %286 = vector.broadcast %cst_35 : f32 to vector<17x17xf32>
    %287 = arith.mulf %286, %279 : vector<17x17xf32>
    %cst_36 = arith.constant 2.500000e-01 : f32
    %288 = vector.broadcast %cst_36 : f32 to vector<17x17xf32>
    %289 = arith.mulf %288, %283 : vector<17x17xf32>
    %290 = arith.addf %287, %289 : vector<17x17xf32>
    %c0_37 = arith.constant 0 : index
    %c0_38 = arith.constant 0 : index
    %c0_39 = arith.constant 0 : index
    %c0_40 = arith.constant 0 : index
    %291 = vector.load %arg7[%c0_37, %c0_38, %c0_39, %c0_40] : memref<2x12x17x17xf32, #tpu.memory_space<vmem>>, vector<1x1x17x17xf32>
    %292 = vector.shape_cast %291 : vector<1x1x17x17xf32> to vector<17x17xf32>
    %293 = vector.shape_cast %290 : vector<17x17xf32> to vector<1x1x17x17xf32>
    tpu.vector_store %arg7[%c0_37, %c0_38, %c0_39, %c0_40], %293 {strides = array<i32>} : memref<2x12x17x17xf32, #tpu.memory_space<vmem>>, vector<1x1x17x17xf32>,
    %cst_41 = arith.constant 5.000000e-01 : f32
    %294 = vector.broadcast %cst_41 : f32 to vector<17x17xf32>
    %295 = arith.mulf %294, %280 : vector<17x17xf32>
    %cst_42 = arith.constant 2.500000e-01 : f32
    %296 = vector.broadcast %cst_42 : f32 to vector<17x17xf32>
    %297 = arith.mulf %296, %283 : vector<17x17xf32>
    %298 = arith.addf %295, %297 : vector<17x17xf32>
    %cst_43 = arith.constant 2.500000e-01 : f32
    %299 = vector.broadcast %cst_43 : f32 to vector<17x17xf32>
    %300 = arith.mulf %299, %284 : vector<17x17xf32>
    %301 = arith.addf %298, %300 : vector<17x17xf32>
    %c0_44 = arith.constant 0 : index
    %c1_45 = arith.constant 1 : index
    %c0_46 = arith.constant 0 : index
    %c0_47 = arith.constant 0 : index
    %302 = vector.load %arg7[%c0_44, %c1_45, %c0_46, %c0_47] : memref<2x12x17x17xf32, #tpu.memory_space<vmem>>, vector<1x1x17x17xf32>
    %303 = vector.shape_cast %302 : vector<1x1x17x17xf32> to vector<17x17xf32>
    %304 = vector.shape_cast %301 : vector<17x17xf32> to vector<1x1x17x17xf32>
    tpu.vector_store %arg7[%c0_44, %c1_45, %c0_46, %c0_47], %304 {strides = array<i32>} : memref<2x12x17x17xf32, #tpu.memory_space<vmem>>, vector<1x1x17x17xf32>,
    %cst_48 = arith.constant 5.000000e-01 : f32
    %305 = vector.broadcast %cst_48 : f32 to vector<17x17xf32>
    %306 = arith.mulf %305, %281 : vector<17x17xf32>
    %cst_49 = arith.constant 2.500000e-01 : f32
    %307 = vector.broadcast %cst_49 : f32 to vector<17x17xf32>
    %308 = arith.mulf %307, %284 : vector<17x17xf32>
    %309 = arith.addf %306, %308 : vector<17x17xf32>
    %cst_50 = arith.constant 2.500000e-01 : f32
    %310 = vector.broadcast %cst_50 : f32 to vector<17x17xf32>
    %311 = arith.mulf %310, %285 : vector<17x17xf32>
    %312 = arith.addf %309, %311 : vector<17x17xf32>
    %c0_51 = arith.constant 0 : index
    %c2 = arith.constant 2 : index
    %c0_52 = arith.constant 0 : index
    %c0_53 = arith.constant 0 : index
    %313 = vector.load %arg7[%c0_51, %c2, %c0_52, %c0_53] : memref<2x12x17x17xf32, #tpu.memory_space<vmem>>, vector<1x1x17x17xf32>
    %314 = vector.shape_cast %313 : vector<1x1x17x17xf32> to vector<17x17xf32>
    %315 = vector.shape_cast %312 : vector<17x17xf32> to vector<1x1x17x17xf32>
    tpu.vector_store %arg7[%c0_51, %c2, %c0_52, %c0_53], %315 {strides = array<i32>} : memref<2x12x17x17xf32, #tpu.memory_space<vmem>>, vector<1x1x17x17xf32>,
    %cst_54 = arith.constant 5.000000e-01 : f32
    %316 = vector.broadcast %cst_54 : f32 to vector<17x17xf32>
    %317 = arith.mulf %316, %282 : vector<17x17xf32>
    %cst_55 = arith.constant 2.500000e-01 : f32
    %318 = vector.broadcast %cst_55 : f32 to vector<17x17xf32>
    %319 = arith.mulf %318, %285 : vector<17x17xf32>
    %320 = arith.addf %317, %319 : vector<17x17xf32>
    %c0_56 = arith.constant 0 : index
    %c3 = arith.constant 3 : index
    %c0_57 = arith.constant 0 : index
    %c0_58 = arith.constant 0 : index
    %321 = vector.load %arg7[%c0_56, %c3, %c0_57, %c0_58] : memref<2x12x17x17xf32, #tpu.memory_space<vmem>>, vector<1x1x17x17xf32>
    %322 = vector.shape_cast %321 : vector<1x1x17x17xf32> to vector<17x17xf32>
    %323 = vector.shape_cast %320 : vector<17x17xf32> to vector<1x1x17x17xf32>
    tpu.vector_store %arg7[%c0_56, %c3, %c0_57, %c0_58], %323 {strides = array<i32>} : memref<2x12x17x17xf32, #tpu.memory_space<vmem>>, vector<1x1x17x17xf32>,
    %324 = vector.extract_strided_slice %278 {offsets = [119, 0], sizes = [17, 17], strides = [1, 1]} : vector<714x17xf32> to vector<17x17xf32>
    %325 = vector.extract_strided_slice %278 {offsets = [136, 0], sizes = [17, 17], strides = [1, 1]} : vector<714x17xf32> to vector<17x17xf32>
    %326 = vector.extract_strided_slice %278 {offsets = [153, 0], sizes = [17, 17], strides = [1, 1]} : vector<714x17xf32> to vector<17x17xf32>
    %327 = vector.extract_strided_slice %278 {offsets = [170, 0], sizes = [17, 17], strides = [1, 1]} : vector<714x17xf32> to vector<17x17xf32>
    %328 = vector.extract_strided_slice %278 {offsets = [187, 0], sizes = [17, 17], strides = [1, 1]} : vector<714x17xf32> to vector<17x17xf32>
    %329 = vector.extract_strided_slice %278 {offsets = [204, 0], sizes = [17, 17], strides = [1, 1]} : vector<714x17xf32> to vector<17x17xf32>
    %330 = vector.extract_strided_slice %278 {offsets = [221, 0], sizes = [17, 17], strides = [1, 1]} : vector<714x17xf32> to vector<17x17xf32>
    %cst_59 = arith.constant 5.000000e-01 : f32
    %331 = vector.broadcast %cst_59 : f32 to vector<17x17xf32>
    %332 = arith.mulf %331, %324 : vector<17x17xf32>
    %cst_60 = arith.constant 2.500000e-01 : f32
    %333 = vector.broadcast %cst_60 : f32 to vector<17x17xf32>
    %334 = arith.mulf %333, %328 : vector<17x17xf32>
    %335 = arith.addf %332, %334 : vector<17x17xf32>
    %c0_61 = arith.constant 0 : index
    %c4 = arith.constant 4 : index
    %c0_62 = arith.constant 0 : index
    %c0_63 = arith.constant 0 : index
    %336 = vector.load %arg7[%c0_61, %c4, %c0_62, %c0_63] : memref<2x12x17x17xf32, #tpu.memory_space<vmem>>, vector<1x1x17x17xf32>
    %337 = vector.shape_cast %336 : vector<1x1x17x17xf32> to vector<17x17xf32>
    %338 = vector.shape_cast %335 : vector<17x17xf32> to vector<1x1x17x17xf32>
    tpu.vector_store %arg7[%c0_61, %c4, %c0_62, %c0_63], %338 {strides = array<i32>} : memref<2x12x17x17xf32, #tpu.memory_space<vmem>>, vector<1x1x17x17xf32>,
    %cst_64 = arith.constant 5.000000e-01 : f32
    %339 = vector.broadcast %cst_64 : f32 to vector<17x17xf32>
    %340 = arith.mulf %339, %325 : vector<17x17xf32>
    %cst_65 = arith.constant 2.500000e-01 : f32
    %341 = vector.broadcast %cst_65 : f32 to vector<17x17xf32>
    %342 = arith.mulf %341, %328 : vector<17x17xf32>
    %343 = arith.addf %340, %342 : vector<17x17xf32>
    %cst_66 = arith.constant 2.500000e-01 : f32
    %344 = vector.broadcast %cst_66 : f32 to vector<17x17xf32>
    %345 = arith.mulf %344, %329 : vector<17x17xf32>
    %346 = arith.addf %343, %345 : vector<17x17xf32>
    %c0_67 = arith.constant 0 : index
    %c5 = arith.constant 5 : index
    %c0_68 = arith.constant 0 : index
    %c0_69 = arith.constant 0 : index
    %347 = vector.load %arg7[%c0_67, %c5, %c0_68, %c0_69] : memref<2x12x17x17xf32, #tpu.memory_space<vmem>>, vector<1x1x17x17xf32>
    %348 = vector.shape_cast %347 : vector<1x1x17x17xf32> to vector<17x17xf32>
    %349 = vector.shape_cast %346 : vector<17x17xf32> to vector<1x1x17x17xf32>
    tpu.vector_store %arg7[%c0_67, %c5, %c0_68, %c0_69], %349 {strides = array<i32>} : memref<2x12x17x17xf32, #tpu.memory_space<vmem>>, vector<1x1x17x17xf32>,
    %cst_70 = arith.constant 5.000000e-01 : f32
    %350 = vector.broadcast %cst_70 : f32 to vector<17x17xf32>
    %351 = arith.mulf %350, %326 : vector<17x17xf32>
    %cst_71 = arith.constant 2.500000e-01 : f32
    %352 = vector.broadcast %cst_71 : f32 to vector<17x17xf32>
    %353 = arith.mulf %352, %329 : vector<17x17xf32>
    %354 = arith.addf %351, %353 : vector<17x17xf32>
    %cst_72 = arith.constant 2.500000e-01 : f32
    %355 = vector.broadcast %cst_72 : f32 to vector<17x17xf32>
    %356 = arith.mulf %355, %330 : vector<17x17xf32>
    %357 = arith.addf %354, %356 : vector<17x17xf32>
    %c0_73 = arith.constant 0 : index
    %c6 = arith.constant 6 : index
    %c0_74 = arith.constant 0 : index
    %c0_75 = arith.constant 0 : index
    %358 = vector.load %arg7[%c0_73, %c6, %c0_74, %c0_75] : memref<2x12x17x17xf32, #tpu.memory_space<vmem>>, vector<1x1x17x17xf32>
    %359 = vector.shape_cast %358 : vector<1x1x17x17xf32> to vector<17x17xf32>
    %360 = vector.shape_cast %357 : vector<17x17xf32> to vector<1x1x17x17xf32>
    tpu.vector_store %arg7[%c0_73, %c6, %c0_74, %c0_75], %360 {strides = array<i32>} : memref<2x12x17x17xf32, #tpu.memory_space<vmem>>, vector<1x1x17x17xf32>,
    %cst_76 = arith.constant 5.000000e-01 : f32
    %361 = vector.broadcast %cst_76 : f32 to vector<17x17xf32>
    %362 = arith.mulf %361, %327 : vector<17x17xf32>
    %cst_77 = arith.constant 2.500000e-01 : f32
    %363 = vector.broadcast %cst_77 : f32 to vector<17x17xf32>
    %364 = arith.mulf %363, %330 : vector<17x17xf32>
    %365 = arith.addf %362, %364 : vector<17x17xf32>
    %c0_78 = arith.constant 0 : index
    %c7 = arith.constant 7 : index
    %c0_79 = arith.constant 0 : index
    %c0_80 = arith.constant 0 : index
    %366 = vector.load %arg7[%c0_78, %c7, %c0_79, %c0_80] : memref<2x12x17x17xf32, #tpu.memory_space<vmem>>, vector<1x1x17x17xf32>
    %367 = vector.shape_cast %366 : vector<1x1x17x17xf32> to vector<17x17xf32>
    %368 = vector.shape_cast %365 : vector<17x17xf32> to vector<1x1x17x17xf32>
    tpu.vector_store %arg7[%c0_78, %c7, %c0_79, %c0_80], %368 {strides = array<i32>} : memref<2x12x17x17xf32, #tpu.memory_space<vmem>>, vector<1x1x17x17xf32>,
    %369 = vector.extract_strided_slice %278 {offsets = [238, 0], sizes = [17, 17], strides = [1, 1]} : vector<714x17xf32> to vector<17x17xf32>
    %370 = vector.extract_strided_slice %278 {offsets = [255, 0], sizes = [17, 17], strides = [1, 1]} : vector<714x17xf32> to vector<17x17xf32>
    %371 = vector.extract_strided_slice %278 {offsets = [272, 0], sizes = [17, 17], strides = [1, 1]} : vector<714x17xf32> to vector<17x17xf32>
    %372 = vector.extract_strided_slice %278 {offsets = [289, 0], sizes = [17, 17], strides = [1, 1]} : vector<714x17xf32> to vector<17x17xf32>
    %373 = vector.extract_strided_slice %278 {offsets = [306, 0], sizes = [17, 17], strides = [1, 1]} : vector<714x17xf32> to vector<17x17xf32>
    %374 = vector.extract_strided_slice %278 {offsets = [323, 0], sizes = [17, 17], strides = [1, 1]} : vector<714x17xf32> to vector<17x17xf32>
    %375 = vector.extract_strided_slice %278 {offsets = [340, 0], sizes = [17, 17], strides = [1, 1]} : vector<714x17xf32> to vector<17x17xf32>
    %cst_81 = arith.constant 5.000000e-01 : f32
    %376 = vector.broadcast %cst_81 : f32 to vector<17x17xf32>
    %377 = arith.mulf %376, %369 : vector<17x17xf32>
    %cst_82 = arith.constant 2.500000e-01 : f32
    %378 = vector.broadcast %cst_82 : f32 to vector<17x17xf32>
    %379 = arith.mulf %378, %373 : vector<17x17xf32>
    %380 = arith.addf %377, %379 : vector<17x17xf32>
    %c0_83 = arith.constant 0 : index
    %c8 = arith.constant 8 : index
    %c0_84 = arith.constant 0 : index
    %c0_85 = arith.constant 0 : index
    %381 = vector.load %arg7[%c0_83, %c8, %c0_84, %c0_85] : memref<2x12x17x17xf32, #tpu.memory_space<vmem>>, vector<1x1x17x17xf32>
    %382 = vector.shape_cast %381 : vector<1x1x17x17xf32> to vector<17x17xf32>
    %383 = vector.shape_cast %380 : vector<17x17xf32> to vector<1x1x17x17xf32>
    tpu.vector_store %arg7[%c0_83, %c8, %c0_84, %c0_85], %383 {strides = array<i32>} : memref<2x12x17x17xf32, #tpu.memory_space<vmem>>, vector<1x1x17x17xf32>,
    %cst_86 = arith.constant 5.000000e-01 : f32
    %384 = vector.broadcast %cst_86 : f32 to vector<17x17xf32>
    %385 = arith.mulf %384, %370 : vector<17x17xf32>
    %cst_87 = arith.constant 2.500000e-01 : f32
    %386 = vector.broadcast %cst_87 : f32 to vector<17x17xf32>
    %387 = arith.mulf %386, %373 : vector<17x17xf32>
    %388 = arith.addf %385, %387 : vector<17x17xf32>
    %cst_88 = arith.constant 2.500000e-01 : f32
    %389 = vector.broadcast %cst_88 : f32 to vector<17x17xf32>
    %390 = arith.mulf %389, %374 : vector<17x17xf32>
    %391 = arith.addf %388, %390 : vector<17x17xf32>
    %c0_89 = arith.constant 0 : index
    %c9 = arith.constant 9 : index
    %c0_90 = arith.constant 0 : index
    %c0_91 = arith.constant 0 : index
    %392 = vector.load %arg7[%c0_89, %c9, %c0_90, %c0_91] : memref<2x12x17x17xf32, #tpu.memory_space<vmem>>, vector<1x1x17x17xf32>
    %393 = vector.shape_cast %392 : vector<1x1x17x17xf32> to vector<17x17xf32>
    %394 = vector.shape_cast %391 : vector<17x17xf32> to vector<1x1x17x17xf32>
    tpu.vector_store %arg7[%c0_89, %c9, %c0_90, %c0_91], %394 {strides = array<i32>} : memref<2x12x17x17xf32, #tpu.memory_space<vmem>>, vector<1x1x17x17xf32>,
    %cst_92 = arith.constant 5.000000e-01 : f32
    %395 = vector.broadcast %cst_92 : f32 to vector<17x17xf32>
    %396 = arith.mulf %395, %371 : vector<17x17xf32>
    %cst_93 = arith.constant 2.500000e-01 : f32
    %397 = vector.broadcast %cst_93 : f32 to vector<17x17xf32>
    %398 = arith.mulf %397, %374 : vector<17x17xf32>
    %399 = arith.addf %396, %398 : vector<17x17xf32>
    %cst_94 = arith.constant 2.500000e-01 : f32
    %400 = vector.broadcast %cst_94 : f32 to vector<17x17xf32>
    %401 = arith.mulf %400, %375 : vector<17x17xf32>
    %402 = arith.addf %399, %401 : vector<17x17xf32>
    %c0_95 = arith.constant 0 : index
    %c10 = arith.constant 10 : index
    %c0_96 = arith.constant 0 : index
    %c0_97 = arith.constant 0 : index
    %403 = vector.load %arg7[%c0_95, %c10, %c0_96, %c0_97] : memref<2x12x17x17xf32, #tpu.memory_space<vmem>>, vector<1x1x17x17xf32>
    %404 = vector.shape_cast %403 : vector<1x1x17x17xf32> to vector<17x17xf32>
    %405 = vector.shape_cast %402 : vector<17x17xf32> to vector<1x1x17x17xf32>
    tpu.vector_store %arg7[%c0_95, %c10, %c0_96, %c0_97], %405 {strides = array<i32>} : memref<2x12x17x17xf32, #tpu.memory_space<vmem>>, vector<1x1x17x17xf32>,
    %cst_98 = arith.constant 5.000000e-01 : f32
    %406 = vector.broadcast %cst_98 : f32 to vector<17x17xf32>
    %407 = arith.mulf %406, %372 : vector<17x17xf32>
    %cst_99 = arith.constant 2.500000e-01 : f32
    %408 = vector.broadcast %cst_99 : f32 to vector<17x17xf32>
    %409 = arith.mulf %408, %375 : vector<17x17xf32>
    %410 = arith.addf %407, %409 : vector<17x17xf32>
    %c0_100 = arith.constant 0 : index
    %c11 = arith.constant 11 : index
    %c0_101 = arith.constant 0 : index
    %c0_102 = arith.constant 0 : index
    %411 = vector.load %arg7[%c0_100, %c11, %c0_101, %c0_102] : memref<2x12x17x17xf32, #tpu.memory_space<vmem>>, vector<1x1x17x17xf32>
    %412 = vector.shape_cast %411 : vector<1x1x17x17xf32> to vector<17x17xf32>
    %413 = vector.shape_cast %410 : vector<17x17xf32> to vector<1x1x17x17xf32>
    tpu.vector_store %arg7[%c0_100, %c11, %c0_101, %c0_102], %413 {strides = array<i32>} : memref<2x12x17x17xf32, #tpu.memory_space<vmem>>, vector<1x1x17x17xf32>,
    %414 = vector.extract_strided_slice %278 {offsets = [357, 0], sizes = [17, 17], strides = [1, 1]} : vector<714x17xf32> to vector<17x17xf32>
    %415 = vector.extract_strided_slice %278 {offsets = [374, 0], sizes = [17, 17], strides = [1, 1]} : vector<714x17xf32> to vector<17x17xf32>
    %416 = vector.extract_strided_slice %278 {offsets = [391, 0], sizes = [17, 17], strides = [1, 1]} : vector<714x17xf32> to vector<17x17xf32>
    %417 = vector.extract_strided_slice %278 {offsets = [408, 0], sizes = [17, 17], strides = [1, 1]} : vector<714x17xf32> to vector<17x17xf32>
    %418 = vector.extract_strided_slice %278 {offsets = [425, 0], sizes = [17, 17], strides = [1, 1]} : vector<714x17xf32> to vector<17x17xf32>
    %419 = vector.extract_strided_slice %278 {offsets = [442, 0], sizes = [17, 17], strides = [1, 1]} : vector<714x17xf32> to vector<17x17xf32>
    %420 = vector.extract_strided_slice %278 {offsets = [459, 0], sizes = [17, 17], strides = [1, 1]} : vector<714x17xf32> to vector<17x17xf32>
    %cst_103 = arith.constant 5.000000e-01 : f32
    %421 = vector.broadcast %cst_103 : f32 to vector<17x17xf32>
    %422 = arith.mulf %421, %414 : vector<17x17xf32>
    %cst_104 = arith.constant 2.500000e-01 : f32
    %423 = vector.broadcast %cst_104 : f32 to vector<17x17xf32>
    %424 = arith.mulf %423, %418 : vector<17x17xf32>
    %425 = arith.addf %422, %424 : vector<17x17xf32>
    %c1_105 = arith.constant 1 : index
    %c0_106 = arith.constant 0 : index
    %c0_107 = arith.constant 0 : index
    %c0_108 = arith.constant 0 : index
    %426 = vector.load %arg7[%c1_105, %c0_106, %c0_107, %c0_108] : memref<2x12x17x17xf32, #tpu.memory_space<vmem>>, vector<1x1x17x17xf32>
    %427 = vector.shape_cast %426 : vector<1x1x17x17xf32> to vector<17x17xf32>
    %428 = vector.shape_cast %425 : vector<17x17xf32> to vector<1x1x17x17xf32>
    tpu.vector_store %arg7[%c1_105, %c0_106, %c0_107, %c0_108], %428 {strides = array<i32>} : memref<2x12x17x17xf32, #tpu.memory_space<vmem>>, vector<1x1x17x17xf32>,
    %cst_109 = arith.constant 5.000000e-01 : f32
    %429 = vector.broadcast %cst_109 : f32 to vector<17x17xf32>
    %430 = arith.mulf %429, %415 : vector<17x17xf32>
    %cst_110 = arith.constant 2.500000e-01 : f32
    %431 = vector.broadcast %cst_110 : f32 to vector<17x17xf32>
    %432 = arith.mulf %431, %418 : vector<17x17xf32>
    %433 = arith.addf %430, %432 : vector<17x17xf32>
    %cst_111 = arith.constant 2.500000e-01 : f32
    %434 = vector.broadcast %cst_111 : f32 to vector<17x17xf32>
    %435 = arith.mulf %434, %419 : vector<17x17xf32>
    %436 = arith.addf %433, %435 : vector<17x17xf32>
    %c1_112 = arith.constant 1 : index
    %c1_113 = arith.constant 1 : index
    %c0_114 = arith.constant 0 : index
    %c0_115 = arith.constant 0 : index
    %437 = vector.load %arg7[%c1_112, %c1_113, %c0_114, %c0_115] : memref<2x12x17x17xf32, #tpu.memory_space<vmem>>, vector<1x1x17x17xf32>
    %438 = vector.shape_cast %437 : vector<1x1x17x17xf32> to vector<17x17xf32>
    %439 = vector.shape_cast %436 : vector<17x17xf32> to vector<1x1x17x17xf32>
    tpu.vector_store %arg7[%c1_112, %c1_113, %c0_114, %c0_115], %439 {strides = array<i32>} : memref<2x12x17x17xf32, #tpu.memory_space<vmem>>, vector<1x1x17x17xf32>,
    %cst_116 = arith.constant 5.000000e-01 : f32
    %440 = vector.broadcast %cst_116 : f32 to vector<17x17xf32>
    %441 = arith.mulf %440, %416 : vector<17x17xf32>
    %cst_117 = arith.constant 2.500000e-01 : f32
    %442 = vector.broadcast %cst_117 : f32 to vector<17x17xf32>
    %443 = arith.mulf %442, %419 : vector<17x17xf32>
    %444 = arith.addf %441, %443 : vector<17x17xf32>
    %cst_118 = arith.constant 2.500000e-01 : f32
    %445 = vector.broadcast %cst_118 : f32 to vector<17x17xf32>
    %446 = arith.mulf %445, %420 : vector<17x17xf32>
    %447 = arith.addf %444, %446 : vector<17x17xf32>
    %c1_119 = arith.constant 1 : index
    %c2_120 = arith.constant 2 : index
    %c0_121 = arith.constant 0 : index
    %c0_122 = arith.constant 0 : index
    %448 = vector.load %arg7[%c1_119, %c2_120, %c0_121, %c0_122] : memref<2x12x17x17xf32, #tpu.memory_space<vmem>>, vector<1x1x17x17xf32>
    %449 = vector.shape_cast %448 : vector<1x1x17x17xf32> to vector<17x17xf32>
    %450 = vector.shape_cast %447 : vector<17x17xf32> to vector<1x1x17x17xf32>
    tpu.vector_store %arg7[%c1_119, %c2_120, %c0_121, %c0_122], %450 {strides = array<i32>} : memref<2x12x17x17xf32, #tpu.memory_space<vmem>>, vector<1x1x17x17xf32>,
    %cst_123 = arith.constant 5.000000e-01 : f32
    %451 = vector.broadcast %cst_123 : f32 to vector<17x17xf32>
    %452 = arith.mulf %451, %417 : vector<17x17xf32>
    %cst_124 = arith.constant 2.500000e-01 : f32
    %453 = vector.broadcast %cst_124 : f32 to vector<17x17xf32>
    %454 = arith.mulf %453, %420 : vector<17x17xf32>
    %455 = arith.addf %452, %454 : vector<17x17xf32>
    %c1_125 = arith.constant 1 : index
    %c3_126 = arith.constant 3 : index
    %c0_127 = arith.constant 0 : index
    %c0_128 = arith.constant 0 : index
    %456 = vector.load %arg7[%c1_125, %c3_126, %c0_127, %c0_128] : memref<2x12x17x17xf32, #tpu.memory_space<vmem>>, vector<1x1x17x17xf32>
    %457 = vector.shape_cast %456 : vector<1x1x17x17xf32> to vector<17x17xf32>
    %458 = vector.shape_cast %455 : vector<17x17xf32> to vector<1x1x17x17xf32>
    tpu.vector_store %arg7[%c1_125, %c3_126, %c0_127, %c0_128], %458 {strides = array<i32>} : memref<2x12x17x17xf32, #tpu.memory_space<vmem>>, vector<1x1x17x17xf32>,
    %459 = vector.extract_strided_slice %278 {offsets = [476, 0], sizes = [17, 17], strides = [1, 1]} : vector<714x17xf32> to vector<17x17xf32>
    %460 = vector.extract_strided_slice %278 {offsets = [493, 0], sizes = [17, 17], strides = [1, 1]} : vector<714x17xf32> to vector<17x17xf32>
    %461 = vector.extract_strided_slice %278 {offsets = [510, 0], sizes = [17, 17], strides = [1, 1]} : vector<714x17xf32> to vector<17x17xf32>
    %462 = vector.extract_strided_slice %278 {offsets = [527, 0], sizes = [17, 17], strides = [1, 1]} : vector<714x17xf32> to vector<17x17xf32>
    %463 = vector.extract_strided_slice %278 {offsets = [544, 0], sizes = [17, 17], strides = [1, 1]} : vector<714x17xf32> to vector<17x17xf32>
    %464 = vector.extract_strided_slice %278 {offsets = [561, 0], sizes = [17, 17], strides = [1, 1]} : vector<714x17xf32> to vector<17x17xf32>
    %465 = vector.extract_strided_slice %278 {offsets = [578, 0], sizes = [17, 17], strides = [1, 1]} : vector<714x17xf32> to vector<17x17xf32>
    %cst_129 = arith.constant 5.000000e-01 : f32
    %466 = vector.broadcast %cst_129 : f32 to vector<17x17xf32>
    %467 = arith.mulf %466, %459 : vector<17x17xf32>
    %cst_130 = arith.constant 2.500000e-01 : f32
    %468 = vector.broadcast %cst_130 : f32 to vector<17x17xf32>
    %469 = arith.mulf %468, %463 : vector<17x17xf32>
    %470 = arith.addf %467, %469 : vector<17x17xf32>
    %c1_131 = arith.constant 1 : index
    %c4_132 = arith.constant 4 : index
    %c0_133 = arith.constant 0 : index
    %c0_134 = arith.constant 0 : index
    %471 = vector.load %arg7[%c1_131, %c4_132, %c0_133, %c0_134] : memref<2x12x17x17xf32, #tpu.memory_space<vmem>>, vector<1x1x17x17xf32>
    %472 = vector.shape_cast %471 : vector<1x1x17x17xf32> to vector<17x17xf32>
    %473 = vector.shape_cast %470 : vector<17x17xf32> to vector<1x1x17x17xf32>
    tpu.vector_store %arg7[%c1_131, %c4_132, %c0_133, %c0_134], %473 {strides = array<i32>} : memref<2x12x17x17xf32, #tpu.memory_space<vmem>>, vector<1x1x17x17xf32>,
    %cst_135 = arith.constant 5.000000e-01 : f32
    %474 = vector.broadcast %cst_135 : f32 to vector<17x17xf32>
    %475 = arith.mulf %474, %460 : vector<17x17xf32>
    %cst_136 = arith.constant 2.500000e-01 : f32
    %476 = vector.broadcast %cst_136 : f32 to vector<17x17xf32>
    %477 = arith.mulf %476, %463 : vector<17x17xf32>
    %478 = arith.addf %475, %477 : vector<17x17xf32>
    %cst_137 = arith.constant 2.500000e-01 : f32
    %479 = vector.broadcast %cst_137 : f32 to vector<17x17xf32>
    %480 = arith.mulf %479, %464 : vector<17x17xf32>
    %481 = arith.addf %478, %480 : vector<17x17xf32>
    %c1_138 = arith.constant 1 : index
    %c5_139 = arith.constant 5 : index
    %c0_140 = arith.constant 0 : index
    %c0_141 = arith.constant 0 : index
    %482 = vector.load %arg7[%c1_138, %c5_139, %c0_140, %c0_141] : memref<2x12x17x17xf32, #tpu.memory_space<vmem>>, vector<1x1x17x17xf32>
    %483 = vector.shape_cast %482 : vector<1x1x17x17xf32> to vector<17x17xf32>
    %484 = vector.shape_cast %481 : vector<17x17xf32> to vector<1x1x17x17xf32>
    tpu.vector_store %arg7[%c1_138, %c5_139, %c0_140, %c0_141], %484 {strides = array<i32>} : memref<2x12x17x17xf32, #tpu.memory_space<vmem>>, vector<1x1x17x17xf32>,
    %cst_142 = arith.constant 5.000000e-01 : f32
    %485 = vector.broadcast %cst_142 : f32 to vector<17x17xf32>
    %486 = arith.mulf %485, %461 : vector<17x17xf32>
    %cst_143 = arith.constant 2.500000e-01 : f32
    %487 = vector.broadcast %cst_143 : f32 to vector<17x17xf32>
    %488 = arith.mulf %487, %464 : vector<17x17xf32>
    %489 = arith.addf %486, %488 : vector<17x17xf32>
    %cst_144 = arith.constant 2.500000e-01 : f32
    %490 = vector.broadcast %cst_144 : f32 to vector<17x17xf32>
    %491 = arith.mulf %490, %465 : vector<17x17xf32>
    %492 = arith.addf %489, %491 : vector<17x17xf32>
    %c1_145 = arith.constant 1 : index
    %c6_146 = arith.constant 6 : index
    %c0_147 = arith.constant 0 : index
    %c0_148 = arith.constant 0 : index
    %493 = vector.load %arg7[%c1_145, %c6_146, %c0_147, %c0_148] : memref<2x12x17x17xf32, #tpu.memory_space<vmem>>, vector<1x1x17x17xf32>
    %494 = vector.shape_cast %493 : vector<1x1x17x17xf32> to vector<17x17xf32>
    %495 = vector.shape_cast %492 : vector<17x17xf32> to vector<1x1x17x17xf32>
    tpu.vector_store %arg7[%c1_145, %c6_146, %c0_147, %c0_148], %495 {strides = array<i32>} : memref<2x12x17x17xf32, #tpu.memory_space<vmem>>, vector<1x1x17x17xf32>,
    %cst_149 = arith.constant 5.000000e-01 : f32
    %496 = vector.broadcast %cst_149 : f32 to vector<17x17xf32>
    %497 = arith.mulf %496, %462 : vector<17x17xf32>
    %cst_150 = arith.constant 2.500000e-01 : f32
    %498 = vector.broadcast %cst_150 : f32 to vector<17x17xf32>
    %499 = arith.mulf %498, %465 : vector<17x17xf32>
    %500 = arith.addf %497, %499 : vector<17x17xf32>
    %c1_151 = arith.constant 1 : index
    %c7_152 = arith.constant 7 : index
    %c0_153 = arith.constant 0 : index
    %c0_154 = arith.constant 0 : index
    %501 = vector.load %arg7[%c1_151, %c7_152, %c0_153, %c0_154] : memref<2x12x17x17xf32, #tpu.memory_space<vmem>>, vector<1x1x17x17xf32>
    %502 = vector.shape_cast %501 : vector<1x1x17x17xf32> to vector<17x17xf32>
    %503 = vector.shape_cast %500 : vector<17x17xf32> to vector<1x1x17x17xf32>
    tpu.vector_store %arg7[%c1_151, %c7_152, %c0_153, %c0_154], %503 {strides = array<i32>} : memref<2x12x17x17xf32, #tpu.memory_space<vmem>>, vector<1x1x17x17xf32>,
    %504 = vector.extract_strided_slice %278 {offsets = [595, 0], sizes = [17, 17], strides = [1, 1]} : vector<714x17xf32> to vector<17x17xf32>
    %505 = vector.extract_strided_slice %278 {offsets = [612, 0], sizes = [17, 17], strides = [1, 1]} : vector<714x17xf32> to vector<17x17xf32>
    %506 = vector.extract_strided_slice %278 {offsets = [629, 0], sizes = [17, 17], strides = [1, 1]} : vector<714x17xf32> to vector<17x17xf32>
    %507 = vector.extract_strided_slice %278 {offsets = [646, 0], sizes = [17, 17], strides = [1, 1]} : vector<714x17xf32> to vector<17x17xf32>
    %508 = vector.extract_strided_slice %278 {offsets = [663, 0], sizes = [17, 17], strides = [1, 1]} : vector<714x17xf32> to vector<17x17xf32>
    %509 = vector.extract_strided_slice %278 {offsets = [680, 0], sizes = [17, 17], strides = [1, 1]} : vector<714x17xf32> to vector<17x17xf32>
    %510 = vector.extract_strided_slice %278 {offsets = [697, 0], sizes = [17, 17], strides = [1, 1]} : vector<714x17xf32> to vector<17x17xf32>
    %cst_155 = arith.constant 5.000000e-01 : f32
    %511 = vector.broadcast %cst_155 : f32 to vector<17x17xf32>
    %512 = arith.mulf %511, %504 : vector<17x17xf32>
    %cst_156 = arith.constant 2.500000e-01 : f32
    %513 = vector.broadcast %cst_156 : f32 to vector<17x17xf32>
    %514 = arith.mulf %513, %508 : vector<17x17xf32>
    %515 = arith.addf %512, %514 : vector<17x17xf32>
    %c1_157 = arith.constant 1 : index
    %c8_158 = arith.constant 8 : index
    %c0_159 = arith.constant 0 : index
    %c0_160 = arith.constant 0 : index
    %516 = vector.load %arg7[%c1_157, %c8_158, %c0_159, %c0_160] : memref<2x12x17x17xf32, #tpu.memory_space<vmem>>, vector<1x1x17x17xf32>
    %517 = vector.shape_cast %516 : vector<1x1x17x17xf32> to vector<17x17xf32>
    %518 = vector.shape_cast %515 : vector<17x17xf32> to vector<1x1x17x17xf32>
    tpu.vector_store %arg7[%c1_157, %c8_158, %c0_159, %c0_160], %518 {strides = array<i32>} : memref<2x12x17x17xf32, #tpu.memory_space<vmem>>, vector<1x1x17x17xf32>,
    %cst_161 = arith.constant 5.000000e-01 : f32
    %519 = vector.broadcast %cst_161 : f32 to vector<17x17xf32>
    %520 = arith.mulf %519, %505 : vector<17x17xf32>
    %cst_162 = arith.constant 2.500000e-01 : f32
    %521 = vector.broadcast %cst_162 : f32 to vector<17x17xf32>
    %522 = arith.mulf %521, %508 : vector<17x17xf32>
    %523 = arith.addf %520, %522 : vector<17x17xf32>
    %cst_163 = arith.constant 2.500000e-01 : f32
    %524 = vector.broadcast %cst_163 : f32 to vector<17x17xf32>
    %525 = arith.mulf %524, %509 : vector<17x17xf32>
    %526 = arith.addf %523, %525 : vector<17x17xf32>
    %c1_164 = arith.constant 1 : index
    %c9_165 = arith.constant 9 : index
    %c0_166 = arith.constant 0 : index
    %c0_167 = arith.constant 0 : index
    %527 = vector.load %arg7[%c1_164, %c9_165, %c0_166, %c0_167] : memref<2x12x17x17xf32, #tpu.memory_space<vmem>>, vector<1x1x17x17xf32>
    %528 = vector.shape_cast %527 : vector<1x1x17x17xf32> to vector<17x17xf32>
    %529 = vector.shape_cast %526 : vector<17x17xf32> to vector<1x1x17x17xf32>
    tpu.vector_store %arg7[%c1_164, %c9_165, %c0_166, %c0_167], %529 {strides = array<i32>} : memref<2x12x17x17xf32, #tpu.memory_space<vmem>>, vector<1x1x17x17xf32>,
    %cst_168 = arith.constant 5.000000e-01 : f32
    %530 = vector.broadcast %cst_168 : f32 to vector<17x17xf32>
    %531 = arith.mulf %530, %506 : vector<17x17xf32>
    %cst_169 = arith.constant 2.500000e-01 : f32
    %532 = vector.broadcast %cst_169 : f32 to vector<17x17xf32>
    %533 = arith.mulf %532, %509 : vector<17x17xf32>
    %534 = arith.addf %531, %533 : vector<17x17xf32>
    %cst_170 = arith.constant 2.500000e-01 : f32
    %535 = vector.broadcast %cst_170 : f32 to vector<17x17xf32>
    %536 = arith.mulf %535, %510 : vector<17x17xf32>
    %537 = arith.addf %534, %536 : vector<17x17xf32>
    %c1_171 = arith.constant 1 : index
    %c10_172 = arith.constant 10 : index
    %c0_173 = arith.constant 0 : index
    %c0_174 = arith.constant 0 : index
    %538 = vector.load %arg7[%c1_171, %c10_172, %c0_173, %c0_174] : memref<2x12x17x17xf32, #tpu.memory_space<vmem>>, vector<1x1x17x17xf32>
    %539 = vector.shape_cast %538 : vector<1x1x17x17xf32> to vector<17x17xf32>
    %540 = vector.shape_cast %537 : vector<17x17xf32> to vector<1x1x17x17xf32>
    tpu.vector_store %arg7[%c1_171, %c10_172, %c0_173, %c0_174], %540 {strides = array<i32>} : memref<2x12x17x17xf32, #tpu.memory_space<vmem>>, vector<1x1x17x17xf32>,
    %cst_175 = arith.constant 5.000000e-01 : f32
    %541 = vector.broadcast %cst_175 : f32 to vector<17x17xf32>
    %542 = arith.mulf %541, %507 : vector<17x17xf32>
    %cst_176 = arith.constant 2.500000e-01 : f32
    %543 = vector.broadcast %cst_176 : f32 to vector<17x17xf32>
    %544 = arith.mulf %543, %510 : vector<17x17xf32>
    %545 = arith.addf %542, %544 : vector<17x17xf32>
    %c1_177 = arith.constant 1 : index
    %c11_178 = arith.constant 11 : index
    %c0_179 = arith.constant 0 : index
    %c0_180 = arith.constant 0 : index
    %546 = vector.load %arg7[%c1_177, %c11_178, %c0_179, %c0_180] : memref<2x12x17x17xf32, #tpu.memory_space<vmem>>, vector<1x1x17x17xf32>
    %547 = vector.shape_cast %546 : vector<1x1x17x17xf32> to vector<17x17xf32>
    %548 = vector.shape_cast %545 : vector<17x17xf32> to vector<1x1x17x17xf32>
    tpu.vector_store %arg7[%c1_177, %c11_178, %c0_179, %c0_180], %548 {strides = array<i32>} : memref<2x12x17x17xf32, #tpu.memory_space<vmem>>, vector<1x1x17x17xf32>,
    return
  }
  func.func @transform_0(%arg0: i32) -> (i32, i32, i32) {
    %c0_i32 = arith.constant 0 : i32
    %c0_i32_0 = arith.constant 0 : i32
    %c0_i32_1 = arith.constant 0 : i32
    return %arg0, %c0_i32, %c0_i32_0 : i32, i32, i32
  }
  func.func @transform_1(%arg0: i32) -> (i32, i32, i32) {
    %c0_i32 = arith.constant 0 : i32
    %c0_i32_0 = arith.constant 0 : i32
    %c0_i32_1 = arith.constant 0 : i32
    return %arg0, %c0_i32, %c0_i32_0 : i32, i32, i32
  }
  func.func @transform_2(%arg0: i32) -> (i32, i32) {
    %c0_i32 = arith.constant 0 : i32
    %c0_i32_0 = arith.constant 0 : i32
    %c0_i32_1 = arith.constant 0 : i32
    return %c0_i32, %c0_i32_0 : i32, i32
  }
  func.func @transform_3(%arg0: i32) -> (i32, i32) {
    %c0_i32 = arith.constant 0 : i32
    %c0_i32_0 = arith.constant 0 : i32
    %c0_i32_1 = arith.constant 0 : i32
    return %c0_i32, %c0_i32_0 : i32, i32
  }
  func.func @transform_4(%arg0: i32) -> (i32, i32) {
    %c0_i32 = arith.constant 0 : i32
    %c0_i32_0 = arith.constant 0 : i32
    %c0_i32_1 = arith.constant 0 : i32
    return %c0_i32, %c0_i32_0 : i32, i32
  }
  func.func @transform_5(%arg0: i32) -> (i32, i32) {
    %c0_i32 = arith.constant 0 : i32
    %c0_i32_0 = arith.constant 0 : i32
    %c0_i32_1 = arith.constant 0 : i32
    return %c0_i32, %c0_i32_0 : i32, i32
  }
  func.func @transform_6(%arg0: i32) -> (i32, i32, i32, i32) {
    %c0_i32 = arith.constant 0 : i32
    %c0_i32_0 = arith.constant 0 : i32
    %c0_i32_1 = arith.constant 0 : i32
    %c0_i32_2 = arith.constant 0 : i32
    return %arg0, %c0_i32, %c0_i32_0, %c0_i32_1 : i32, i32, i32, i32
  }
}

module attributes {stable_mosaic.version = 11 : i64} {
  func.func @_conv1x1_kernel(%arg0: i32, %arg1: memref<2x16x136xf32, #tpu.memory_space<vmem>>, %arg2: memref<48x16xbf16, #tpu.memory_space<vmem>>, %arg3: memref<48x1xf32, #tpu.memory_space<vmem>>, %arg4: memref<2x48x136xbf16, #tpu.memory_space<vmem>>) attributes {dimension_semantics = [#tpu.dimension_semantics<parallel>], iteration_bounds = array<i64: 1>, scalar_prefetch = 0 : i64, scratch_operands = 0 : i64, tpu.core_type = #tpu.core_type<tc>, window_params = [{transform_indices = @transform_0, window_bounds = array<i64: 2, 16, 136>}, {pipeline_mode = #tpu.pipeline_mode<synchronous>, transform_indices = @transform_1, window_bounds = array<i64: 48, 16>}, {pipeline_mode = #tpu.pipeline_mode<synchronous>, transform_indices = @transform_2, window_bounds = array<i64: 48, 1>}, {transform_indices = @transform_3, window_bounds = array<i64: 2, 48, 136>}]} {
    %c0 = arith.constant 0 : index
    %c0_0 = arith.constant 0 : index
    %0 = vector.load %arg2[%c0, %c0_0] : memref<48x16xbf16, #tpu.memory_space<vmem>>, vector<48x16xbf16>
    %c0_1 = arith.constant 0 : index
    %c0_2 = arith.constant 0 : index
    %1 = vector.load %arg3[%c0_1, %c0_2] : memref<48x1xf32, #tpu.memory_space<vmem>>, vector<48x1xf32>
    %c0_3 = arith.constant 0 : index
    %c0_4 = arith.constant 0 : index
    %c0_5 = arith.constant 0 : index
    %2 = vector.load %arg1[%c0_3, %c0_4, %c0_5] : memref<2x16x136xf32, #tpu.memory_space<vmem>>, vector<1x16x136xf32>
    %3 = vector.shape_cast %2 : vector<1x16x136xf32> to vector<16x136xf32>
    %4 = arith.truncf %3 : vector<16x136xf32> to vector<16x136xbf16>
    %cst = arith.constant dense<0.000000e+00> : vector<48x136xf32>
    %5 = tpu.matmul %0, %4, %cst {dimension_numbers = #tpu.dot_dimension_numbers<[1], [0], [0], [1], [0, 0, 1, 1], [], []>} : vector<48x16xbf16>, vector<16x136xbf16>, vector<48x136xf32> -> vector<48x136xf32>
    %6 = vector.broadcast %1 : vector<48x1xf32> to vector<48x136xf32>
    %7 = arith.addf %5, %6 : vector<48x136xf32>
    %8 = arith.truncf %7 : vector<48x136xf32> to vector<48x136xbf16>
    %c0_6 = arith.constant 0 : index
    %c0_7 = arith.constant 0 : index
    %c0_8 = arith.constant 0 : index
    %9 = vector.load %arg4[%c0_6, %c0_7, %c0_8] : memref<2x48x136xbf16, #tpu.memory_space<vmem>>, vector<1x48x136xbf16>
    %10 = vector.shape_cast %9 : vector<1x48x136xbf16> to vector<48x136xbf16>
    %11 = vector.shape_cast %8 : vector<48x136xbf16> to vector<1x48x136xbf16>
    tpu.vector_store %arg4[%c0_6, %c0_7, %c0_8], %11 {strides = array<i32>} : memref<2x48x136xbf16, #tpu.memory_space<vmem>>, vector<1x48x136xbf16>,
    %c1 = arith.constant 1 : index
    %c0_9 = arith.constant 0 : index
    %c0_10 = arith.constant 0 : index
    %12 = vector.load %arg1[%c1, %c0_9, %c0_10] : memref<2x16x136xf32, #tpu.memory_space<vmem>>, vector<1x16x136xf32>
    %13 = vector.shape_cast %12 : vector<1x16x136xf32> to vector<16x136xf32>
    %14 = arith.truncf %13 : vector<16x136xf32> to vector<16x136xbf16>
    %cst_11 = arith.constant dense<0.000000e+00> : vector<48x136xf32>
    %15 = tpu.matmul %0, %14, %cst_11 {dimension_numbers = #tpu.dot_dimension_numbers<[1], [0], [0], [1], [0, 0, 1, 1], [], []>} : vector<48x16xbf16>, vector<16x136xbf16>, vector<48x136xf32> -> vector<48x136xf32>
    %16 = vector.broadcast %1 : vector<48x1xf32> to vector<48x136xf32>
    %17 = arith.addf %15, %16 : vector<48x136xf32>
    %18 = arith.truncf %17 : vector<48x136xf32> to vector<48x136xbf16>
    %c1_12 = arith.constant 1 : index
    %c0_13 = arith.constant 0 : index
    %c0_14 = arith.constant 0 : index
    %19 = vector.load %arg4[%c1_12, %c0_13, %c0_14] : memref<2x48x136xbf16, #tpu.memory_space<vmem>>, vector<1x48x136xbf16>
    %20 = vector.shape_cast %19 : vector<1x48x136xbf16> to vector<48x136xbf16>
    %21 = vector.shape_cast %18 : vector<48x136xbf16> to vector<1x48x136xbf16>
    tpu.vector_store %arg4[%c1_12, %c0_13, %c0_14], %21 {strides = array<i32>} : memref<2x48x136xbf16, #tpu.memory_space<vmem>>, vector<1x48x136xbf16>,
    return
  }
  func.func @transform_0(%arg0: i32) -> (i32, i32, i32) {
    %c0_i32 = arith.constant 0 : i32
    %c0_i32_0 = arith.constant 0 : i32
    %c0_i32_1 = arith.constant 0 : i32
    return %arg0, %c0_i32, %c0_i32_0 : i32, i32, i32
  }
  func.func @transform_1(%arg0: i32) -> (i32, i32) {
    %c0_i32 = arith.constant 0 : i32
    %c0_i32_0 = arith.constant 0 : i32
    %c0_i32_1 = arith.constant 0 : i32
    return %c0_i32, %c0_i32_0 : i32, i32
  }
  func.func @transform_2(%arg0: i32) -> (i32, i32) {
    %c0_i32 = arith.constant 0 : i32
    %c0_i32_0 = arith.constant 0 : i32
    %c0_i32_1 = arith.constant 0 : i32
    return %c0_i32, %c0_i32_0 : i32, i32
  }
  func.func @transform_3(%arg0: i32) -> (i32, i32, i32) {
    %c0_i32 = arith.constant 0 : i32
    %c0_i32_0 = arith.constant 0 : i32
    %c0_i32_1 = arith.constant 0 : i32
    return %arg0, %c0_i32, %c0_i32_0 : i32, i32, i32
  }
}

module attributes {stable_mosaic.version = 11 : i64} {
  func.func @_mix_kernel(%arg0: i32, %arg1: i32, %arg2: memref<1x3x16x8x17xbf16, #tpu.memory_space<vmem>>, %arg3: memref<1x3x4x17x17xf32, #tpu.memory_space<vmem>>, %arg4: memref<3x16x17x17xbf16, #tpu.memory_space<vmem>>, %arg5: memref<1x16x8x17xbf16, #tpu.memory_space<vmem>>, %arg6: memref<1x16x1xf32, #tpu.memory_space<vmem>>, %arg7: memref<1x16x1xf32, #tpu.memory_space<vmem>>, %arg8: memref<16x8x17xf32, #tpu.memory_space<vmem>>) attributes {dimension_semantics = [#tpu.dimension_semantics<parallel>, #tpu.dimension_semantics<parallel>], iteration_bounds = array<i64: 2, 1>, scalar_prefetch = 0 : i64, scratch_operands = 1 : i64, tpu.core_type = #tpu.core_type<tc>, window_params = [{transform_indices = @transform_0, window_bounds = array<i64: 1, 3, 16, 8, 17>}, {transform_indices = @transform_1, window_bounds = array<i64: 1, 3, 4, 17, 17>}, {transform_indices = @transform_2, window_bounds = array<i64: 3, 16, 17, 17>}, {transform_indices = @transform_3, window_bounds = array<i64: 1, 16, 8, 17>}, {transform_indices = @transform_4, window_bounds = array<i64: 1, 16, 1>}, {transform_indices = @transform_5, window_bounds = array<i64: 1, 16, 1>}]} {
    %c0 = arith.constant 0 : index
    %c0_0 = arith.constant 0 : index
    %c0_1 = arith.constant 0 : index
    %c0_2 = arith.constant 0 : index
    %c0_3 = arith.constant 0 : index
    %0 = vector.load %arg2[%c0, %c0_0, %c0_1, %c0_2, %c0_3] : memref<1x3x16x8x17xbf16, #tpu.memory_space<vmem>>, vector<1x1x16x8x17xbf16>
    %1 = vector.shape_cast %0 : vector<1x1x16x8x17xbf16> to vector<16x8x17xbf16>
    %c0_4 = arith.constant 0 : index
    %c0_5 = arith.constant 0 : index
    %c0_6 = arith.constant 0 : index
    %c0_7 = arith.constant 0 : index
    %2 = vector.load %arg4[%c0_4, %c0_5, %c0_6, %c0_7] : memref<3x16x17x17xbf16, #tpu.memory_space<vmem>>, vector<1x16x17x17xbf16>
    %3 = vector.shape_cast %2 : vector<1x16x17x17xbf16> to vector<16x17x17xbf16>
    "tpu.trace_start"() <{level = 10 : i32, message = "ctv,cvw->ctw"}> : () -> ()
    %cst = arith.constant dense<0.000000e+00> : vector<16x8x17xf32>
    %4 = tpu.matmul %1, %3, %cst {dimension_numbers = #tpu.dot_dimension_numbers<[2], [1], [1], [2], [0, 0, 0, 1, 1, 2], [0], [0]>} : vector<16x8x17xbf16>, vector<16x17x17xbf16>, vector<16x8x17xf32> -> vector<16x8x17xf32>
    "tpu.trace_stop"() : () -> ()
    %c0_8 = arith.constant 0 : index
    %c0_9 = arith.constant 0 : index
    %c0_10 = arith.constant 0 : index
    %5 = vector.load %arg8[%c0_8, %c0_9, %c0_10] : memref<16x8x17xf32, #tpu.memory_space<vmem>>, vector<16x8x17xf32>
    tpu.vector_store %arg8[%c0_8, %c0_9, %c0_10], %4 {strides = array<i32>} : memref<16x8x17xf32, #tpu.memory_space<vmem>>, vector<16x8x17xf32>,
    %c0_11 = arith.constant 0 : index
    %c1 = arith.constant 1 : index
    %c0_12 = arith.constant 0 : index
    %c0_13 = arith.constant 0 : index
    %c0_14 = arith.constant 0 : index
    %6 = vector.load %arg2[%c0_11, %c1, %c0_12, %c0_13, %c0_14] : memref<1x3x16x8x17xbf16, #tpu.memory_space<vmem>>, vector<1x1x16x8x17xbf16>
    %7 = vector.shape_cast %6 : vector<1x1x16x8x17xbf16> to vector<16x8x17xbf16>
    %c1_15 = arith.constant 1 : index
    %c0_16 = arith.constant 0 : index
    %c0_17 = arith.constant 0 : index
    %c0_18 = arith.constant 0 : index
    %8 = vector.load %arg4[%c1_15, %c0_16, %c0_17, %c0_18] : memref<3x16x17x17xbf16, #tpu.memory_space<vmem>>, vector<1x16x17x17xbf16>
    %9 = vector.shape_cast %8 : vector<1x16x17x17xbf16> to vector<16x17x17xbf16>
    "tpu.trace_start"() <{level = 10 : i32, message = "ctv,cvw->ctw"}> : () -> ()
    %cst_19 = arith.constant dense<0.000000e+00> : vector<16x8x17xf32>
    %10 = tpu.matmul %7, %9, %cst_19 {dimension_numbers = #tpu.dot_dimension_numbers<[2], [1], [1], [2], [0, 0, 0, 1, 1, 2], [0], [0]>} : vector<16x8x17xbf16>, vector<16x17x17xbf16>, vector<16x8x17xf32> -> vector<16x8x17xf32>
    "tpu.trace_stop"() : () -> ()
    %c0_20 = arith.constant 0 : index
    %c0_21 = arith.constant 0 : index
    %c0_22 = arith.constant 0 : index
    %11 = vector.load %arg8[%c0_20, %c0_21, %c0_22] : memref<16x8x17xf32, #tpu.memory_space<vmem>>, vector<16x8x17xf32>
    %12 = arith.addf %11, %10 : vector<16x8x17xf32>
    %c0_23 = arith.constant 0 : index
    %c0_24 = arith.constant 0 : index
    %c0_25 = arith.constant 0 : index
    %13 = vector.load %arg8[%c0_23, %c0_24, %c0_25] : memref<16x8x17xf32, #tpu.memory_space<vmem>>, vector<16x8x17xf32>
    tpu.vector_store %arg8[%c0_23, %c0_24, %c0_25], %12 {strides = array<i32>} : memref<16x8x17xf32, #tpu.memory_space<vmem>>, vector<16x8x17xf32>,
    %c0_26 = arith.constant 0 : index
    %c2 = arith.constant 2 : index
    %c0_27 = arith.constant 0 : index
    %c0_28 = arith.constant 0 : index
    %c0_29 = arith.constant 0 : index
    %14 = vector.load %arg2[%c0_26, %c2, %c0_27, %c0_28, %c0_29] : memref<1x3x16x8x17xbf16, #tpu.memory_space<vmem>>, vector<1x1x16x8x17xbf16>
    %15 = vector.shape_cast %14 : vector<1x1x16x8x17xbf16> to vector<16x8x17xbf16>
    %c2_30 = arith.constant 2 : index
    %c0_31 = arith.constant 0 : index
    %c0_32 = arith.constant 0 : index
    %c0_33 = arith.constant 0 : index
    %16 = vector.load %arg4[%c2_30, %c0_31, %c0_32, %c0_33] : memref<3x16x17x17xbf16, #tpu.memory_space<vmem>>, vector<1x16x17x17xbf16>
    %17 = vector.shape_cast %16 : vector<1x16x17x17xbf16> to vector<16x17x17xbf16>
    "tpu.trace_start"() <{level = 10 : i32, message = "ctv,cvw->ctw"}> : () -> ()
    %cst_34 = arith.constant dense<0.000000e+00> : vector<16x8x17xf32>
    %18 = tpu.matmul %15, %17, %cst_34 {dimension_numbers = #tpu.dot_dimension_numbers<[2], [1], [1], [2], [0, 0, 0, 1, 1, 2], [0], [0]>} : vector<16x8x17xbf16>, vector<16x17x17xbf16>, vector<16x8x17xf32> -> vector<16x8x17xf32>
    "tpu.trace_stop"() : () -> ()
    %c0_35 = arith.constant 0 : index
    %c0_36 = arith.constant 0 : index
    %c0_37 = arith.constant 0 : index
    %19 = vector.load %arg8[%c0_35, %c0_36, %c0_37] : memref<16x8x17xf32, #tpu.memory_space<vmem>>, vector<16x8x17xf32>
    %20 = arith.addf %19, %18 : vector<16x8x17xf32>
    %c0_38 = arith.constant 0 : index
    %c0_39 = arith.constant 0 : index
    %c0_40 = arith.constant 0 : index
    %21 = vector.load %arg8[%c0_38, %c0_39, %c0_40] : memref<16x8x17xf32, #tpu.memory_space<vmem>>, vector<16x8x17xf32>
    tpu.vector_store %arg8[%c0_38, %c0_39, %c0_40], %20 {strides = array<i32>} : memref<16x8x17xf32, #tpu.memory_space<vmem>>, vector<16x8x17xf32>,
    %c0_41 = arith.constant 0 : index
    %c0_42 = arith.constant 0 : index
    %c0_43 = arith.constant 0 : index
    %c0_44 = arith.constant 0 : index
    %c0_45 = arith.constant 0 : index
    %22 = vector.load %arg2[%c0_41, %c0_42, %c0_43, %c0_44, %c0_45] : memref<1x3x16x8x17xbf16, #tpu.memory_space<vmem>>, vector<1x1x4x8x17xbf16>
    %23 = vector.shape_cast %22 : vector<1x1x4x8x17xbf16> to vector<4x8x17xbf16>
    %24 = arith.extf %23 : vector<4x8x17xbf16> to vector<4x8x17xf32>
    %25 = vector.shape_cast %24 : vector<4x8x17xf32> to vector<32x17xf32>
    %26 = arith.truncf %25 : vector<32x17xf32> to vector<32x17xbf16>
    %c0_46 = arith.constant 0 : index
    %c0_47 = arith.constant 0 : index
    %c0_48 = arith.constant 0 : index
    %c0_49 = arith.constant 0 : index
    %c0_50 = arith.constant 0 : index
    %27 = vector.load %arg3[%c0_46, %c0_47, %c0_48, %c0_49, %c0_50] : memref<1x3x4x17x17xf32, #tpu.memory_space<vmem>>, vector<1x1x1x17x17xf32>
    %28 = vector.shape_cast %27 : vector<1x1x1x17x17xf32> to vector<17x17xf32>
    %cst_51 = arith.constant 5.000000e-01 : f32
    %29 = vector.broadcast %cst_51 : f32 to vector<17x17xf32>
    %30 = arith.mulf %29, %28 : vector<17x17xf32>
    %31 = arith.truncf %30 : vector<17x17xf32> to vector<17x17xbf16>
    %cst_52 = arith.constant dense<0.000000e+00> : vector<32x17xf32>
    %32 = tpu.matmul %26, %31, %cst_52 {dimension_numbers = #tpu.dot_dimension_numbers<[1], [0], [0], [1], [0, 0, 1, 1], [], []>} : vector<32x17xbf16>, vector<17x17xbf16>, vector<32x17xf32> -> vector<32x17xf32>
    %c0_53 = arith.constant 0 : index
    %c0_54 = arith.constant 0 : index
    %c0_55 = arith.constant 0 : index
    %33 = vector.load %arg8[%c0_53, %c0_54, %c0_55] : memref<16x8x17xf32, #tpu.memory_space<vmem>>, vector<4x8x17xf32>
    %34 = vector.shape_cast %32 : vector<32x17xf32> to vector<4x8x17xf32>
    %35 = arith.addf %33, %34 : vector<4x8x17xf32>
    %c0_56 = arith.constant 0 : index
    %c0_57 = arith.constant 0 : index
    %c0_58 = arith.constant 0 : index
    %36 = vector.load %arg8[%c0_56, %c0_57, %c0_58] : memref<16x8x17xf32, #tpu.memory_space<vmem>>, vector<4x8x17xf32>
    tpu.vector_store %arg8[%c0_56, %c0_57, %c0_58], %35 {strides = array<i32>} : memref<16x8x17xf32, #tpu.memory_space<vmem>>, vector<4x8x17xf32>,
    %c0_59 = arith.constant 0 : index
    %c0_60 = arith.constant 0 : index
    %c4 = arith.constant 4 : index
    %c0_61 = arith.constant 0 : index
    %c0_62 = arith.constant 0 : index
    %37 = vector.load %arg2[%c0_59, %c0_60, %c4, %c0_61, %c0_62] : memref<1x3x16x8x17xbf16, #tpu.memory_space<vmem>>, vector<1x1x4x8x17xbf16>
    %38 = vector.shape_cast %37 : vector<1x1x4x8x17xbf16> to vector<4x8x17xbf16>
    %39 = arith.extf %38 : vector<4x8x17xbf16> to vector<4x8x17xf32>
    %40 = vector.shape_cast %39 : vector<4x8x17xf32> to vector<32x17xf32>
    %41 = arith.truncf %40 : vector<32x17xf32> to vector<32x17xbf16>
    %c0_63 = arith.constant 0 : index
    %c0_64 = arith.constant 0 : index
    %c1_65 = arith.constant 1 : index
    %c0_66 = arith.constant 0 : index
    %c0_67 = arith.constant 0 : index
    %42 = vector.load %arg3[%c0_63, %c0_64, %c1_65, %c0_66, %c0_67] : memref<1x3x4x17x17xf32, #tpu.memory_space<vmem>>, vector<1x1x1x17x17xf32>
    %43 = vector.shape_cast %42 : vector<1x1x1x17x17xf32> to vector<17x17xf32>
    %cst_68 = arith.constant 5.000000e-01 : f32
    %44 = vector.broadcast %cst_68 : f32 to vector<17x17xf32>
    %45 = arith.mulf %44, %43 : vector<17x17xf32>
    %46 = arith.truncf %45 : vector<17x17xf32> to vector<17x17xbf16>
    %cst_69 = arith.constant dense<0.000000e+00> : vector<32x17xf32>
    %47 = tpu.matmul %41, %46, %cst_69 {dimension_numbers = #tpu.dot_dimension_numbers<[1], [0], [0], [1], [0, 0, 1, 1], [], []>} : vector<32x17xbf16>, vector<17x17xbf16>, vector<32x17xf32> -> vector<32x17xf32>
    %c4_70 = arith.constant 4 : index
    %c0_71 = arith.constant 0 : index
    %c0_72 = arith.constant 0 : index
    %48 = vector.load %arg8[%c4_70, %c0_71, %c0_72] : memref<16x8x17xf32, #tpu.memory_space<vmem>>, vector<4x8x17xf32>
    %49 = vector.shape_cast %47 : vector<32x17xf32> to vector<4x8x17xf32>
    %50 = arith.addf %48, %49 : vector<4x8x17xf32>
    %c4_73 = arith.constant 4 : index
    %c0_74 = arith.constant 0 : index
    %c0_75 = arith.constant 0 : index
    %51 = vector.load %arg8[%c4_73, %c0_74, %c0_75] : memref<16x8x17xf32, #tpu.memory_space<vmem>>, vector<4x8x17xf32>
    tpu.vector_store %arg8[%c4_73, %c0_74, %c0_75], %50 {strides = array<i32>} : memref<16x8x17xf32, #tpu.memory_space<vmem>>, vector<4x8x17xf32>,
    %c0_76 = arith.constant 0 : index
    %c0_77 = arith.constant 0 : index
    %c8 = arith.constant 8 : index
    %c0_78 = arith.constant 0 : index
    %c0_79 = arith.constant 0 : index
    %52 = vector.load %arg2[%c0_76, %c0_77, %c8, %c0_78, %c0_79] : memref<1x3x16x8x17xbf16, #tpu.memory_space<vmem>>, vector<1x1x4x8x17xbf16>
    %53 = vector.shape_cast %52 : vector<1x1x4x8x17xbf16> to vector<4x8x17xbf16>
    %54 = arith.extf %53 : vector<4x8x17xbf16> to vector<4x8x17xf32>
    %55 = vector.shape_cast %54 : vector<4x8x17xf32> to vector<32x17xf32>
    %56 = arith.truncf %55 : vector<32x17xf32> to vector<32x17xbf16>
    %c0_80 = arith.constant 0 : index
    %c0_81 = arith.constant 0 : index
    %c2_82 = arith.constant 2 : index
    %c0_83 = arith.constant 0 : index
    %c0_84 = arith.constant 0 : index
    %57 = vector.load %arg3[%c0_80, %c0_81, %c2_82, %c0_83, %c0_84] : memref<1x3x4x17x17xf32, #tpu.memory_space<vmem>>, vector<1x1x1x17x17xf32>
    %58 = vector.shape_cast %57 : vector<1x1x1x17x17xf32> to vector<17x17xf32>
    %cst_85 = arith.constant 5.000000e-01 : f32
    %59 = vector.broadcast %cst_85 : f32 to vector<17x17xf32>
    %60 = arith.mulf %59, %58 : vector<17x17xf32>
    %61 = arith.truncf %60 : vector<17x17xf32> to vector<17x17xbf16>
    %cst_86 = arith.constant dense<0.000000e+00> : vector<32x17xf32>
    %62 = tpu.matmul %56, %61, %cst_86 {dimension_numbers = #tpu.dot_dimension_numbers<[1], [0], [0], [1], [0, 0, 1, 1], [], []>} : vector<32x17xbf16>, vector<17x17xbf16>, vector<32x17xf32> -> vector<32x17xf32>
    %c8_87 = arith.constant 8 : index
    %c0_88 = arith.constant 0 : index
    %c0_89 = arith.constant 0 : index
    %63 = vector.load %arg8[%c8_87, %c0_88, %c0_89] : memref<16x8x17xf32, #tpu.memory_space<vmem>>, vector<4x8x17xf32>
    %64 = vector.shape_cast %62 : vector<32x17xf32> to vector<4x8x17xf32>
    %65 = arith.addf %63, %64 : vector<4x8x17xf32>
    %c8_90 = arith.constant 8 : index
    %c0_91 = arith.constant 0 : index
    %c0_92 = arith.constant 0 : index
    %66 = vector.load %arg8[%c8_90, %c0_91, %c0_92] : memref<16x8x17xf32, #tpu.memory_space<vmem>>, vector<4x8x17xf32>
    tpu.vector_store %arg8[%c8_90, %c0_91, %c0_92], %65 {strides = array<i32>} : memref<16x8x17xf32, #tpu.memory_space<vmem>>, vector<4x8x17xf32>,
    %c0_93 = arith.constant 0 : index
    %c0_94 = arith.constant 0 : index
    %c12 = arith.constant 12 : index
    %c0_95 = arith.constant 0 : index
    %c0_96 = arith.constant 0 : index
    %67 = vector.load %arg2[%c0_93, %c0_94, %c12, %c0_95, %c0_96] : memref<1x3x16x8x17xbf16, #tpu.memory_space<vmem>>, vector<1x1x4x8x17xbf16>
    %68 = vector.shape_cast %67 : vector<1x1x4x8x17xbf16> to vector<4x8x17xbf16>
    %69 = arith.extf %68 : vector<4x8x17xbf16> to vector<4x8x17xf32>
    %70 = vector.shape_cast %69 : vector<4x8x17xf32> to vector<32x17xf32>
    %71 = arith.truncf %70 : vector<32x17xf32> to vector<32x17xbf16>
    %c0_97 = arith.constant 0 : index
    %c0_98 = arith.constant 0 : index
    %c3 = arith.constant 3 : index
    %c0_99 = arith.constant 0 : index
    %c0_100 = arith.constant 0 : index
    %72 = vector.load %arg3[%c0_97, %c0_98, %c3, %c0_99, %c0_100] : memref<1x3x4x17x17xf32, #tpu.memory_space<vmem>>, vector<1x1x1x17x17xf32>
    %73 = vector.shape_cast %72 : vector<1x1x1x17x17xf32> to vector<17x17xf32>
    %cst_101 = arith.constant 5.000000e-01 : f32
    %74 = vector.broadcast %cst_101 : f32 to vector<17x17xf32>
    %75 = arith.mulf %74, %73 : vector<17x17xf32>
    %76 = arith.truncf %75 : vector<17x17xf32> to vector<17x17xbf16>
    %cst_102 = arith.constant dense<0.000000e+00> : vector<32x17xf32>
    %77 = tpu.matmul %71, %76, %cst_102 {dimension_numbers = #tpu.dot_dimension_numbers<[1], [0], [0], [1], [0, 0, 1, 1], [], []>} : vector<32x17xbf16>, vector<17x17xbf16>, vector<32x17xf32> -> vector<32x17xf32>
    %c12_103 = arith.constant 12 : index
    %c0_104 = arith.constant 0 : index
    %c0_105 = arith.constant 0 : index
    %78 = vector.load %arg8[%c12_103, %c0_104, %c0_105] : memref<16x8x17xf32, #tpu.memory_space<vmem>>, vector<4x8x17xf32>
    %79 = vector.shape_cast %77 : vector<32x17xf32> to vector<4x8x17xf32>
    %80 = arith.addf %78, %79 : vector<4x8x17xf32>
    %c12_106 = arith.constant 12 : index
    %c0_107 = arith.constant 0 : index
    %c0_108 = arith.constant 0 : index
    %81 = vector.load %arg8[%c12_106, %c0_107, %c0_108] : memref<16x8x17xf32, #tpu.memory_space<vmem>>, vector<4x8x17xf32>
    tpu.vector_store %arg8[%c12_106, %c0_107, %c0_108], %80 {strides = array<i32>} : memref<16x8x17xf32, #tpu.memory_space<vmem>>, vector<4x8x17xf32>,
    %c0_109 = arith.constant 0 : index
    %c1_110 = arith.constant 1 : index
    %c0_111 = arith.constant 0 : index
    %c0_112 = arith.constant 0 : index
    %c0_113 = arith.constant 0 : index
    %82 = vector.load %arg2[%c0_109, %c1_110, %c0_111, %c0_112, %c0_113] : memref<1x3x16x8x17xbf16, #tpu.memory_space<vmem>>, vector<1x1x4x8x17xbf16>
    %83 = vector.shape_cast %82 : vector<1x1x4x8x17xbf16> to vector<4x8x17xbf16>
    %84 = arith.extf %83 : vector<4x8x17xbf16> to vector<4x8x17xf32>
    %85 = vector.shape_cast %84 : vector<4x8x17xf32> to vector<32x17xf32>
    %86 = arith.truncf %85 : vector<32x17xf32> to vector<32x17xbf16>
    %c0_114 = arith.constant 0 : index
    %c1_115 = arith.constant 1 : index
    %c0_116 = arith.constant 0 : index
    %c0_117 = arith.constant 0 : index
    %c0_118 = arith.constant 0 : index
    %87 = vector.load %arg3[%c0_114, %c1_115, %c0_116, %c0_117, %c0_118] : memref<1x3x4x17x17xf32, #tpu.memory_space<vmem>>, vector<1x1x1x17x17xf32>
    %88 = vector.shape_cast %87 : vector<1x1x1x17x17xf32> to vector<17x17xf32>
    %cst_119 = arith.constant 5.000000e-01 : f32
    %89 = vector.broadcast %cst_119 : f32 to vector<17x17xf32>
    %90 = arith.mulf %89, %88 : vector<17x17xf32>
    %91 = arith.truncf %90 : vector<17x17xf32> to vector<17x17xbf16>
    %cst_120 = arith.constant dense<0.000000e+00> : vector<32x17xf32>
    %92 = tpu.matmul %86, %91, %cst_120 {dimension_numbers = #tpu.dot_dimension_numbers<[1], [0], [0], [1], [0, 0, 1, 1], [], []>} : vector<32x17xbf16>, vector<17x17xbf16>, vector<32x17xf32> -> vector<32x17xf32>
    %c0_121 = arith.constant 0 : index
    %c0_122 = arith.constant 0 : index
    %c0_123 = arith.constant 0 : index
    %93 = vector.load %arg8[%c0_121, %c0_122, %c0_123] : memref<16x8x17xf32, #tpu.memory_space<vmem>>, vector<4x8x17xf32>
    %94 = vector.shape_cast %92 : vector<32x17xf32> to vector<4x8x17xf32>
    %95 = arith.addf %93, %94 : vector<4x8x17xf32>
    %c0_124 = arith.constant 0 : index
    %c0_125 = arith.constant 0 : index
    %c0_126 = arith.constant 0 : index
    %96 = vector.load %arg8[%c0_124, %c0_125, %c0_126] : memref<16x8x17xf32, #tpu.memory_space<vmem>>, vector<4x8x17xf32>
    tpu.vector_store %arg8[%c0_124, %c0_125, %c0_126], %95 {strides = array<i32>} : memref<16x8x17xf32, #tpu.memory_space<vmem>>, vector<4x8x17xf32>,
    %c0_127 = arith.constant 0 : index
    %c1_128 = arith.constant 1 : index
    %c4_129 = arith.constant 4 : index
    %c0_130 = arith.constant 0 : index
    %c0_131 = arith.constant 0 : index
    %97 = vector.load %arg2[%c0_127, %c1_128, %c4_129, %c0_130, %c0_131] : memref<1x3x16x8x17xbf16, #tpu.memory_space<vmem>>, vector<1x1x4x8x17xbf16>
    %98 = vector.shape_cast %97 : vector<1x1x4x8x17xbf16> to vector<4x8x17xbf16>
    %99 = arith.extf %98 : vector<4x8x17xbf16> to vector<4x8x17xf32>
    %100 = vector.shape_cast %99 : vector<4x8x17xf32> to vector<32x17xf32>
    %101 = arith.truncf %100 : vector<32x17xf32> to vector<32x17xbf16>
    %c0_132 = arith.constant 0 : index
    %c1_133 = arith.constant 1 : index
    %c1_134 = arith.constant 1 : index
    %c0_135 = arith.constant 0 : index
    %c0_136 = arith.constant 0 : index
    %102 = vector.load %arg3[%c0_132, %c1_133, %c1_134, %c0_135, %c0_136] : memref<1x3x4x17x17xf32, #tpu.memory_space<vmem>>, vector<1x1x1x17x17xf32>
    %103 = vector.shape_cast %102 : vector<1x1x1x17x17xf32> to vector<17x17xf32>
    %cst_137 = arith.constant 5.000000e-01 : f32
    %104 = vector.broadcast %cst_137 : f32 to vector<17x17xf32>
    %105 = arith.mulf %104, %103 : vector<17x17xf32>
    %106 = arith.truncf %105 : vector<17x17xf32> to vector<17x17xbf16>
    %cst_138 = arith.constant dense<0.000000e+00> : vector<32x17xf32>
    %107 = tpu.matmul %101, %106, %cst_138 {dimension_numbers = #tpu.dot_dimension_numbers<[1], [0], [0], [1], [0, 0, 1, 1], [], []>} : vector<32x17xbf16>, vector<17x17xbf16>, vector<32x17xf32> -> vector<32x17xf32>
    %c4_139 = arith.constant 4 : index
    %c0_140 = arith.constant 0 : index
    %c0_141 = arith.constant 0 : index
    %108 = vector.load %arg8[%c4_139, %c0_140, %c0_141] : memref<16x8x17xf32, #tpu.memory_space<vmem>>, vector<4x8x17xf32>
    %109 = vector.shape_cast %107 : vector<32x17xf32> to vector<4x8x17xf32>
    %110 = arith.addf %108, %109 : vector<4x8x17xf32>
    %c4_142 = arith.constant 4 : index
    %c0_143 = arith.constant 0 : index
    %c0_144 = arith.constant 0 : index
    %111 = vector.load %arg8[%c4_142, %c0_143, %c0_144] : memref<16x8x17xf32, #tpu.memory_space<vmem>>, vector<4x8x17xf32>
    tpu.vector_store %arg8[%c4_142, %c0_143, %c0_144], %110 {strides = array<i32>} : memref<16x8x17xf32, #tpu.memory_space<vmem>>, vector<4x8x17xf32>,
    %c0_145 = arith.constant 0 : index
    %c1_146 = arith.constant 1 : index
    %c8_147 = arith.constant 8 : index
    %c0_148 = arith.constant 0 : index
    %c0_149 = arith.constant 0 : index
    %112 = vector.load %arg2[%c0_145, %c1_146, %c8_147, %c0_148, %c0_149] : memref<1x3x16x8x17xbf16, #tpu.memory_space<vmem>>, vector<1x1x4x8x17xbf16>
    %113 = vector.shape_cast %112 : vector<1x1x4x8x17xbf16> to vector<4x8x17xbf16>
    %114 = arith.extf %113 : vector<4x8x17xbf16> to vector<4x8x17xf32>
    %115 = vector.shape_cast %114 : vector<4x8x17xf32> to vector<32x17xf32>
    %116 = arith.truncf %115 : vector<32x17xf32> to vector<32x17xbf16>
    %c0_150 = arith.constant 0 : index
    %c1_151 = arith.constant 1 : index
    %c2_152 = arith.constant 2 : index
    %c0_153 = arith.constant 0 : index
    %c0_154 = arith.constant 0 : index
    %117 = vector.load %arg3[%c0_150, %c1_151, %c2_152, %c0_153, %c0_154] : memref<1x3x4x17x17xf32, #tpu.memory_space<vmem>>, vector<1x1x1x17x17xf32>
    %118 = vector.shape_cast %117 : vector<1x1x1x17x17xf32> to vector<17x17xf32>
    %cst_155 = arith.constant 5.000000e-01 : f32
    %119 = vector.broadcast %cst_155 : f32 to vector<17x17xf32>
    %120 = arith.mulf %119, %118 : vector<17x17xf32>
    %121 = arith.truncf %120 : vector<17x17xf32> to vector<17x17xbf16>
    %cst_156 = arith.constant dense<0.000000e+00> : vector<32x17xf32>
    %122 = tpu.matmul %116, %121, %cst_156 {dimension_numbers = #tpu.dot_dimension_numbers<[1], [0], [0], [1], [0, 0, 1, 1], [], []>} : vector<32x17xbf16>, vector<17x17xbf16>, vector<32x17xf32> -> vector<32x17xf32>
    %c8_157 = arith.constant 8 : index
    %c0_158 = arith.constant 0 : index
    %c0_159 = arith.constant 0 : index
    %123 = vector.load %arg8[%c8_157, %c0_158, %c0_159] : memref<16x8x17xf32, #tpu.memory_space<vmem>>, vector<4x8x17xf32>
    %124 = vector.shape_cast %122 : vector<32x17xf32> to vector<4x8x17xf32>
    %125 = arith.addf %123, %124 : vector<4x8x17xf32>
    %c8_160 = arith.constant 8 : index
    %c0_161 = arith.constant 0 : index
    %c0_162 = arith.constant 0 : index
    %126 = vector.load %arg8[%c8_160, %c0_161, %c0_162] : memref<16x8x17xf32, #tpu.memory_space<vmem>>, vector<4x8x17xf32>
    tpu.vector_store %arg8[%c8_160, %c0_161, %c0_162], %125 {strides = array<i32>} : memref<16x8x17xf32, #tpu.memory_space<vmem>>, vector<4x8x17xf32>,
    %c0_163 = arith.constant 0 : index
    %c1_164 = arith.constant 1 : index
    %c12_165 = arith.constant 12 : index
    %c0_166 = arith.constant 0 : index
    %c0_167 = arith.constant 0 : index
    %127 = vector.load %arg2[%c0_163, %c1_164, %c12_165, %c0_166, %c0_167] : memref<1x3x16x8x17xbf16, #tpu.memory_space<vmem>>, vector<1x1x4x8x17xbf16>
    %128 = vector.shape_cast %127 : vector<1x1x4x8x17xbf16> to vector<4x8x17xbf16>
    %129 = arith.extf %128 : vector<4x8x17xbf16> to vector<4x8x17xf32>
    %130 = vector.shape_cast %129 : vector<4x8x17xf32> to vector<32x17xf32>
    %131 = arith.truncf %130 : vector<32x17xf32> to vector<32x17xbf16>
    %c0_168 = arith.constant 0 : index
    %c1_169 = arith.constant 1 : index
    %c3_170 = arith.constant 3 : index
    %c0_171 = arith.constant 0 : index
    %c0_172 = arith.constant 0 : index
    %132 = vector.load %arg3[%c0_168, %c1_169, %c3_170, %c0_171, %c0_172] : memref<1x3x4x17x17xf32, #tpu.memory_space<vmem>>, vector<1x1x1x17x17xf32>
    %133 = vector.shape_cast %132 : vector<1x1x1x17x17xf32> to vector<17x17xf32>
    %cst_173 = arith.constant 5.000000e-01 : f32
    %134 = vector.broadcast %cst_173 : f32 to vector<17x17xf32>
    %135 = arith.mulf %134, %133 : vector<17x17xf32>
    %136 = arith.truncf %135 : vector<17x17xf32> to vector<17x17xbf16>
    %cst_174 = arith.constant dense<0.000000e+00> : vector<32x17xf32>
    %137 = tpu.matmul %131, %136, %cst_174 {dimension_numbers = #tpu.dot_dimension_numbers<[1], [0], [0], [1], [0, 0, 1, 1], [], []>} : vector<32x17xbf16>, vector<17x17xbf16>, vector<32x17xf32> -> vector<32x17xf32>
    %c12_175 = arith.constant 12 : index
    %c0_176 = arith.constant 0 : index
    %c0_177 = arith.constant 0 : index
    %138 = vector.load %arg8[%c12_175, %c0_176, %c0_177] : memref<16x8x17xf32, #tpu.memory_space<vmem>>, vector<4x8x17xf32>
    %139 = vector.shape_cast %137 : vector<32x17xf32> to vector<4x8x17xf32>
    %140 = arith.addf %138, %139 : vector<4x8x17xf32>
    %c12_178 = arith.constant 12 : index
    %c0_179 = arith.constant 0 : index
    %c0_180 = arith.constant 0 : index
    %141 = vector.load %arg8[%c12_178, %c0_179, %c0_180] : memref<16x8x17xf32, #tpu.memory_space<vmem>>, vector<4x8x17xf32>
    tpu.vector_store %arg8[%c12_178, %c0_179, %c0_180], %140 {strides = array<i32>} : memref<16x8x17xf32, #tpu.memory_space<vmem>>, vector<4x8x17xf32>,
    %c0_181 = arith.constant 0 : index
    %c2_182 = arith.constant 2 : index
    %c0_183 = arith.constant 0 : index
    %c0_184 = arith.constant 0 : index
    %c0_185 = arith.constant 0 : index
    %142 = vector.load %arg2[%c0_181, %c2_182, %c0_183, %c0_184, %c0_185] : memref<1x3x16x8x17xbf16, #tpu.memory_space<vmem>>, vector<1x1x4x8x17xbf16>
    %143 = vector.shape_cast %142 : vector<1x1x4x8x17xbf16> to vector<4x8x17xbf16>
    %144 = arith.extf %143 : vector<4x8x17xbf16> to vector<4x8x17xf32>
    %145 = vector.shape_cast %144 : vector<4x8x17xf32> to vector<32x17xf32>
    %146 = arith.truncf %145 : vector<32x17xf32> to vector<32x17xbf16>
    %c0_186 = arith.constant 0 : index
    %c2_187 = arith.constant 2 : index
    %c0_188 = arith.constant 0 : index
    %c0_189 = arith.constant 0 : index
    %c0_190 = arith.constant 0 : index
    %147 = vector.load %arg3[%c0_186, %c2_187, %c0_188, %c0_189, %c0_190] : memref<1x3x4x17x17xf32, #tpu.memory_space<vmem>>, vector<1x1x1x17x17xf32>
    %148 = vector.shape_cast %147 : vector<1x1x1x17x17xf32> to vector<17x17xf32>
    %cst_191 = arith.constant 5.000000e-01 : f32
    %149 = vector.broadcast %cst_191 : f32 to vector<17x17xf32>
    %150 = arith.mulf %149, %148 : vector<17x17xf32>
    %151 = arith.truncf %150 : vector<17x17xf32> to vector<17x17xbf16>
    %cst_192 = arith.constant dense<0.000000e+00> : vector<32x17xf32>
    %152 = tpu.matmul %146, %151, %cst_192 {dimension_numbers = #tpu.dot_dimension_numbers<[1], [0], [0], [1], [0, 0, 1, 1], [], []>} : vector<32x17xbf16>, vector<17x17xbf16>, vector<32x17xf32> -> vector<32x17xf32>
    %c0_193 = arith.constant 0 : index
    %c0_194 = arith.constant 0 : index
    %c0_195 = arith.constant 0 : index
    %153 = vector.load %arg8[%c0_193, %c0_194, %c0_195] : memref<16x8x17xf32, #tpu.memory_space<vmem>>, vector<4x8x17xf32>
    %154 = vector.shape_cast %152 : vector<32x17xf32> to vector<4x8x17xf32>
    %155 = arith.addf %153, %154 : vector<4x8x17xf32>
    %c0_196 = arith.constant 0 : index
    %c0_197 = arith.constant 0 : index
    %c0_198 = arith.constant 0 : index
    %156 = vector.load %arg8[%c0_196, %c0_197, %c0_198] : memref<16x8x17xf32, #tpu.memory_space<vmem>>, vector<4x8x17xf32>
    tpu.vector_store %arg8[%c0_196, %c0_197, %c0_198], %155 {strides = array<i32>} : memref<16x8x17xf32, #tpu.memory_space<vmem>>, vector<4x8x17xf32>,
    %c0_199 = arith.constant 0 : index
    %c2_200 = arith.constant 2 : index
    %c4_201 = arith.constant 4 : index
    %c0_202 = arith.constant 0 : index
    %c0_203 = arith.constant 0 : index
    %157 = vector.load %arg2[%c0_199, %c2_200, %c4_201, %c0_202, %c0_203] : memref<1x3x16x8x17xbf16, #tpu.memory_space<vmem>>, vector<1x1x4x8x17xbf16>
    %158 = vector.shape_cast %157 : vector<1x1x4x8x17xbf16> to vector<4x8x17xbf16>
    %159 = arith.extf %158 : vector<4x8x17xbf16> to vector<4x8x17xf32>
    %160 = vector.shape_cast %159 : vector<4x8x17xf32> to vector<32x17xf32>
    %161 = arith.truncf %160 : vector<32x17xf32> to vector<32x17xbf16>
    %c0_204 = arith.constant 0 : index
    %c2_205 = arith.constant 2 : index
    %c1_206 = arith.constant 1 : index
    %c0_207 = arith.constant 0 : index
    %c0_208 = arith.constant 0 : index
    %162 = vector.load %arg3[%c0_204, %c2_205, %c1_206, %c0_207, %c0_208] : memref<1x3x4x17x17xf32, #tpu.memory_space<vmem>>, vector<1x1x1x17x17xf32>
    %163 = vector.shape_cast %162 : vector<1x1x1x17x17xf32> to vector<17x17xf32>
    %cst_209 = arith.constant 5.000000e-01 : f32
    %164 = vector.broadcast %cst_209 : f32 to vector<17x17xf32>
    %165 = arith.mulf %164, %163 : vector<17x17xf32>
    %166 = arith.truncf %165 : vector<17x17xf32> to vector<17x17xbf16>
    %cst_210 = arith.constant dense<0.000000e+00> : vector<32x17xf32>
    %167 = tpu.matmul %161, %166, %cst_210 {dimension_numbers = #tpu.dot_dimension_numbers<[1], [0], [0], [1], [0, 0, 1, 1], [], []>} : vector<32x17xbf16>, vector<17x17xbf16>, vector<32x17xf32> -> vector<32x17xf32>
    %c4_211 = arith.constant 4 : index
    %c0_212 = arith.constant 0 : index
    %c0_213 = arith.constant 0 : index
    %168 = vector.load %arg8[%c4_211, %c0_212, %c0_213] : memref<16x8x17xf32, #tpu.memory_space<vmem>>, vector<4x8x17xf32>
    %169 = vector.shape_cast %167 : vector<32x17xf32> to vector<4x8x17xf32>
    %170 = arith.addf %168, %169 : vector<4x8x17xf32>
    %c4_214 = arith.constant 4 : index
    %c0_215 = arith.constant 0 : index
    %c0_216 = arith.constant 0 : index
    %171 = vector.load %arg8[%c4_214, %c0_215, %c0_216] : memref<16x8x17xf32, #tpu.memory_space<vmem>>, vector<4x8x17xf32>
    tpu.vector_store %arg8[%c4_214, %c0_215, %c0_216], %170 {strides = array<i32>} : memref<16x8x17xf32, #tpu.memory_space<vmem>>, vector<4x8x17xf32>,
    %c0_217 = arith.constant 0 : index
    %c2_218 = arith.constant 2 : index
    %c8_219 = arith.constant 8 : index
    %c0_220 = arith.constant 0 : index
    %c0_221 = arith.constant 0 : index
    %172 = vector.load %arg2[%c0_217, %c2_218, %c8_219, %c0_220, %c0_221] : memref<1x3x16x8x17xbf16, #tpu.memory_space<vmem>>, vector<1x1x4x8x17xbf16>
    %173 = vector.shape_cast %172 : vector<1x1x4x8x17xbf16> to vector<4x8x17xbf16>
    %174 = arith.extf %173 : vector<4x8x17xbf16> to vector<4x8x17xf32>
    %175 = vector.shape_cast %174 : vector<4x8x17xf32> to vector<32x17xf32>
    %176 = arith.truncf %175 : vector<32x17xf32> to vector<32x17xbf16>
    %c0_222 = arith.constant 0 : index
    %c2_223 = arith.constant 2 : index
    %c2_224 = arith.constant 2 : index
    %c0_225 = arith.constant 0 : index
    %c0_226 = arith.constant 0 : index
    %177 = vector.load %arg3[%c0_222, %c2_223, %c2_224, %c0_225, %c0_226] : memref<1x3x4x17x17xf32, #tpu.memory_space<vmem>>, vector<1x1x1x17x17xf32>
    %178 = vector.shape_cast %177 : vector<1x1x1x17x17xf32> to vector<17x17xf32>
    %cst_227 = arith.constant 5.000000e-01 : f32
    %179 = vector.broadcast %cst_227 : f32 to vector<17x17xf32>
    %180 = arith.mulf %179, %178 : vector<17x17xf32>
    %181 = arith.truncf %180 : vector<17x17xf32> to vector<17x17xbf16>
    %cst_228 = arith.constant dense<0.000000e+00> : vector<32x17xf32>
    %182 = tpu.matmul %176, %181, %cst_228 {dimension_numbers = #tpu.dot_dimension_numbers<[1], [0], [0], [1], [0, 0, 1, 1], [], []>} : vector<32x17xbf16>, vector<17x17xbf16>, vector<32x17xf32> -> vector<32x17xf32>
    %c8_229 = arith.constant 8 : index
    %c0_230 = arith.constant 0 : index
    %c0_231 = arith.constant 0 : index
    %183 = vector.load %arg8[%c8_229, %c0_230, %c0_231] : memref<16x8x17xf32, #tpu.memory_space<vmem>>, vector<4x8x17xf32>
    %184 = vector.shape_cast %182 : vector<32x17xf32> to vector<4x8x17xf32>
    %185 = arith.addf %183, %184 : vector<4x8x17xf32>
    %c8_232 = arith.constant 8 : index
    %c0_233 = arith.constant 0 : index
    %c0_234 = arith.constant 0 : index
    %186 = vector.load %arg8[%c8_232, %c0_233, %c0_234] : memref<16x8x17xf32, #tpu.memory_space<vmem>>, vector<4x8x17xf32>
    tpu.vector_store %arg8[%c8_232, %c0_233, %c0_234], %185 {strides = array<i32>} : memref<16x8x17xf32, #tpu.memory_space<vmem>>, vector<4x8x17xf32>,
    %c0_235 = arith.constant 0 : index
    %c2_236 = arith.constant 2 : index
    %c12_237 = arith.constant 12 : index
    %c0_238 = arith.constant 0 : index
    %c0_239 = arith.constant 0 : index
    %187 = vector.load %arg2[%c0_235, %c2_236, %c12_237, %c0_238, %c0_239] : memref<1x3x16x8x17xbf16, #tpu.memory_space<vmem>>, vector<1x1x4x8x17xbf16>
    %188 = vector.shape_cast %187 : vector<1x1x4x8x17xbf16> to vector<4x8x17xbf16>
    %189 = arith.extf %188 : vector<4x8x17xbf16> to vector<4x8x17xf32>
    %190 = vector.shape_cast %189 : vector<4x8x17xf32> to vector<32x17xf32>
    %191 = arith.truncf %190 : vector<32x17xf32> to vector<32x17xbf16>
    %c0_240 = arith.constant 0 : index
    %c2_241 = arith.constant 2 : index
    %c3_242 = arith.constant 3 : index
    %c0_243 = arith.constant 0 : index
    %c0_244 = arith.constant 0 : index
    %192 = vector.load %arg3[%c0_240, %c2_241, %c3_242, %c0_243, %c0_244] : memref<1x3x4x17x17xf32, #tpu.memory_space<vmem>>, vector<1x1x1x17x17xf32>
    %193 = vector.shape_cast %192 : vector<1x1x1x17x17xf32> to vector<17x17xf32>
    %cst_245 = arith.constant 5.000000e-01 : f32
    %194 = vector.broadcast %cst_245 : f32 to vector<17x17xf32>
    %195 = arith.mulf %194, %193 : vector<17x17xf32>
    %196 = arith.truncf %195 : vector<17x17xf32> to vector<17x17xbf16>
    %cst_246 = arith.constant dense<0.000000e+00> : vector<32x17xf32>
    %197 = tpu.matmul %191, %196, %cst_246 {dimension_numbers = #tpu.dot_dimension_numbers<[1], [0], [0], [1], [0, 0, 1, 1], [], []>} : vector<32x17xbf16>, vector<17x17xbf16>, vector<32x17xf32> -> vector<32x17xf32>
    %c12_247 = arith.constant 12 : index
    %c0_248 = arith.constant 0 : index
    %c0_249 = arith.constant 0 : index
    %198 = vector.load %arg8[%c12_247, %c0_248, %c0_249] : memref<16x8x17xf32, #tpu.memory_space<vmem>>, vector<4x8x17xf32>
    %199 = vector.shape_cast %197 : vector<32x17xf32> to vector<4x8x17xf32>
    %200 = arith.addf %198, %199 : vector<4x8x17xf32>
    %c12_250 = arith.constant 12 : index
    %c0_251 = arith.constant 0 : index
    %c0_252 = arith.constant 0 : index
    %201 = vector.load %arg8[%c12_250, %c0_251, %c0_252] : memref<16x8x17xf32, #tpu.memory_space<vmem>>, vector<4x8x17xf32>
    tpu.vector_store %arg8[%c12_250, %c0_251, %c0_252], %200 {strides = array<i32>} : memref<16x8x17xf32, #tpu.memory_space<vmem>>, vector<4x8x17xf32>,
    %c0_253 = arith.constant 0 : index
    %c0_254 = arith.constant 0 : index
    %c0_255 = arith.constant 0 : index
    %202 = vector.load %arg8[%c0_253, %c0_254, %c0_255] : memref<16x8x17xf32, #tpu.memory_space<vmem>>, vector<16x8x17xf32>
    %203 = arith.truncf %202 : vector<16x8x17xf32> to vector<16x8x17xbf16>
    %c0_256 = arith.constant 0 : index
    %c0_257 = arith.constant 0 : index
    %c0_258 = arith.constant 0 : index
    %c0_259 = arith.constant 0 : index
    %204 = vector.load %arg5[%c0_256, %c0_257, %c0_258, %c0_259] : memref<1x16x8x17xbf16, #tpu.memory_space<vmem>>, vector<1x16x8x17xbf16>
    %205 = vector.shape_cast %204 : vector<1x16x8x17xbf16> to vector<16x8x17xbf16>
    %206 = vector.shape_cast %203 : vector<16x8x17xbf16> to vector<1x16x8x17xbf16>
    tpu.vector_store %arg5[%c0_256, %c0_257, %c0_258, %c0_259], %206 {strides = array<i32>} : memref<1x16x8x17xbf16, #tpu.memory_space<vmem>>, vector<1x16x8x17xbf16>,
    %cst_260 = arith.constant dense<0.000000e+00> : vector<16x17xf32>
    %207 = vector.multi_reduction <add>, %202, %cst_260 [1] : vector<16x8x17xf32> to vector<16x17xf32>
    %208 = arith.mulf %202, %202 : vector<16x8x17xf32>
    %cst_261 = arith.constant dense<0.000000e+00> : vector<16x17xf32>
    %209 = vector.multi_reduction <add>, %208, %cst_261 [1] : vector<16x8x17xf32> to vector<16x17xf32>
    %cst_262 = arith.constant dense<0.000000e+00> : vector<16xf32>
    %210 = vector.multi_reduction <add>, %207, %cst_262 [1] : vector<16x17xf32> to vector<16xf32>
    %211 = vector.shape_cast %210 : vector<16xf32> to vector<16x1xf32>
    %c0_263 = arith.constant 0 : index
    %c0_264 = arith.constant 0 : index
    %c0_265 = arith.constant 0 : index
    %212 = vector.load %arg6[%c0_263, %c0_264, %c0_265] : memref<1x16x1xf32, #tpu.memory_space<vmem>>, vector<1x16x1xf32>
    %213 = vector.shape_cast %212 : vector<1x16x1xf32> to vector<16x1xf32>
    %214 = vector.shape_cast %211 : vector<16x1xf32> to vector<1x16x1xf32>
    tpu.vector_store %arg6[%c0_263, %c0_264, %c0_265], %214 {strides = array<i32>} : memref<1x16x1xf32, #tpu.memory_space<vmem>>, vector<1x16x1xf32>,
    %cst_266 = arith.constant dense<0.000000e+00> : vector<16xf32>
    %215 = vector.multi_reduction <add>, %209, %cst_266 [1] : vector<16x17xf32> to vector<16xf32>
    %216 = vector.shape_cast %215 : vector<16xf32> to vector<16x1xf32>
    %c0_267 = arith.constant 0 : index
    %c0_268 = arith.constant 0 : index
    %c0_269 = arith.constant 0 : index
    %217 = vector.load %arg7[%c0_267, %c0_268, %c0_269] : memref<1x16x1xf32, #tpu.memory_space<vmem>>, vector<1x16x1xf32>
    %218 = vector.shape_cast %217 : vector<1x16x1xf32> to vector<16x1xf32>
    %219 = vector.shape_cast %216 : vector<16x1xf32> to vector<1x16x1xf32>
    tpu.vector_store %arg7[%c0_267, %c0_268, %c0_269], %219 {strides = array<i32>} : memref<1x16x1xf32, #tpu.memory_space<vmem>>, vector<1x16x1xf32>,
    return
  }
  func.func @transform_0(%arg0: i32, %arg1: i32) -> (i32, i32, i32, i32, i32) {
    %c0_i32 = arith.constant 0 : i32
    %c0_i32_0 = arith.constant 0 : i32
    %c0_i32_1 = arith.constant 0 : i32
    %c0_i32_2 = arith.constant 0 : i32
    return %arg0, %c0_i32, %arg1, %c0_i32_0, %c0_i32_1 : i32, i32, i32, i32, i32
  }
  func.func @transform_1(%arg0: i32, %arg1: i32) -> (i32, i32, i32, i32, i32) {
    %c0_i32 = arith.constant 0 : i32
    %c0_i32_0 = arith.constant 0 : i32
    %c0_i32_1 = arith.constant 0 : i32
    %c0_i32_2 = arith.constant 0 : i32
    return %arg0, %c0_i32, %arg1, %c0_i32_0, %c0_i32_1 : i32, i32, i32, i32, i32
  }
  func.func @transform_2(%arg0: i32, %arg1: i32) -> (i32, i32, i32, i32) {
    %c0_i32 = arith.constant 0 : i32
    %c0_i32_0 = arith.constant 0 : i32
    %c0_i32_1 = arith.constant 0 : i32
    %c0_i32_2 = arith.constant 0 : i32
    return %c0_i32, %arg1, %c0_i32_0, %c0_i32_1 : i32, i32, i32, i32
  }
  func.func @transform_3(%arg0: i32, %arg1: i32) -> (i32, i32, i32, i32) {
    %c0_i32 = arith.constant 0 : i32
    %c0_i32_0 = arith.constant 0 : i32
    %c0_i32_1 = arith.constant 0 : i32
    return %arg0, %arg1, %c0_i32, %c0_i32_0 : i32, i32, i32, i32
  }
  func.func @transform_4(%arg0: i32, %arg1: i32) -> (i32, i32, i32) {
    %c0_i32 = arith.constant 0 : i32
    %c0_i32_0 = arith.constant 0 : i32
    return %arg0, %arg1, %c0_i32 : i32, i32, i32
  }
  func.func @transform_5(%arg0: i32, %arg1: i32) -> (i32, i32, i32) {
    %c0_i32 = arith.constant 0 : i32
    %c0_i32_0 = arith.constant 0 : i32
    return %arg0, %arg1, %c0_i32 : i32, i32, i32
  }
}

module attributes {stable_mosaic.version = 11 : i64} {
  func.func @_epilogue_kernel(%arg0: i32, %arg1: memref<32x136xbf16, #tpu.memory_space<vmem>>, %arg2: memref<32x136xf32, #tpu.memory_space<vmem>>, %arg3: memref<32x1xf32, #tpu.memory_space<vmem>>, %arg4: memref<32x1xf32, #tpu.memory_space<vmem>>, %arg5: memref<32x136xf32, #tpu.memory_space<vmem>>) attributes {dimension_semantics = [#tpu.dimension_semantics<parallel>], iteration_bounds = array<i64: 1>, scalar_prefetch = 0 : i64, scratch_operands = 0 : i64, tpu.core_type = #tpu.core_type<tc>, window_params = [{transform_indices = @transform_0, window_bounds = array<i64: 32, 136>}, {transform_indices = @transform_1, window_bounds = array<i64: 32, 136>}, {transform_indices = @transform_2, window_bounds = array<i64: 32, 1>}, {transform_indices = @transform_3, window_bounds = array<i64: 32, 1>}, {transform_indices = @transform_4, window_bounds = array<i64: 32, 136>}]} {
    %c0 = arith.constant 0 : index
    %c0_0 = arith.constant 0 : index
    %0 = vector.load %arg3[%c0, %c0_0] : memref<32x1xf32, #tpu.memory_space<vmem>>, vector<32x1xf32>
    %c0_1 = arith.constant 0 : index
    %c0_2 = arith.constant 0 : index
    %1 = vector.load %arg1[%c0_1, %c0_2] : memref<32x136xbf16, #tpu.memory_space<vmem>>, vector<32x136xbf16>
    %2 = arith.extf %1 : vector<32x136xbf16> to vector<32x136xf32>
    %3 = vector.broadcast %0 : vector<32x1xf32> to vector<32x136xf32>
    %4 = arith.mulf %3, %2 : vector<32x136xf32>
    %c0_3 = arith.constant 0 : index
    %c0_4 = arith.constant 0 : index
    %5 = vector.load %arg4[%c0_3, %c0_4] : memref<32x1xf32, #tpu.memory_space<vmem>>, vector<32x1xf32>
    %6 = vector.broadcast %5 : vector<32x1xf32> to vector<32x136xf32>
    %7 = arith.addf %4, %6 : vector<32x136xf32>
    %c0_5 = arith.constant 0 : index
    %c0_6 = arith.constant 0 : index
    %8 = vector.load %arg2[%c0_5, %c0_6] : memref<32x136xf32, #tpu.memory_space<vmem>>, vector<32x136xf32>
    %9 = arith.addf %7, %8 : vector<32x136xf32>
    %cst = arith.constant 0.000000e+00 : f32
    %10 = vector.broadcast %cst : f32 to vector<32x136xf32>
    %11 = arith.maximumf %9, %10 : vector<32x136xf32>
    %c0_7 = arith.constant 0 : index
    %c0_8 = arith.constant 0 : index
    %12 = vector.load %arg5[%c0_7, %c0_8] : memref<32x136xf32, #tpu.memory_space<vmem>>, vector<32x136xf32>
    tpu.vector_store %arg5[%c0_7, %c0_8], %11 {strides = array<i32>} : memref<32x136xf32, #tpu.memory_space<vmem>>, vector<32x136xf32>,
    return
  }
  func.func @transform_0(%arg0: i32) -> (i32, i32) {
    %c0_i32 = arith.constant 0 : i32
    %c0_i32_0 = arith.constant 0 : i32
    return %arg0, %c0_i32 : i32, i32
  }
  func.func @transform_1(%arg0: i32) -> (i32, i32) {
    %c0_i32 = arith.constant 0 : i32
    %c0_i32_0 = arith.constant 0 : i32
    return %arg0, %c0_i32 : i32, i32
  }
  func.func @transform_2(%arg0: i32) -> (i32, i32) {
    %c0_i32 = arith.constant 0 : i32
    %c0_i32_0 = arith.constant 0 : i32
    return %arg0, %c0_i32 : i32, i32
  }
  func.func @transform_3(%arg0: i32) -> (i32, i32) {
    %c0_i32 = arith.constant 0 : i32
    %c0_i32_0 = arith.constant 0 : i32
    return %arg0, %c0_i32 : i32, i32
  }
  func.func @transform_4(%arg0: i32) -> (i32, i32) {
    %c0_i32 = arith.constant 0 : i32
    %c0_i32_0 = arith.constant 0 : i32
    return %arg0, %c0_i32 : i32, i32
  }
}

</mosaic_0001>

<llo_original>
// kernel: squeeze.8
$region0: #{squeeze.8}
  %s0 = inlined_call_operand.vmem [shape: f32[48], index: 0, kind: input, shape index: {}]
  %s1 = inlined_call_operand.vmem [shape: f32[3,4,2,2], index: 1, kind: output, shape index: {}]
  $region1: #{squeeze.8} parent=0
    #allocation0 [shape = 'u8[49152]{0}', space=vmem, size = 0xc000, scoped, tag = 'scoped mem for output reshape']
    #allocation1 [shape = 'u8[4096]{0}', space=vmem, size = 0x1000, scoped, tag = 'scoped mem for input reshape']
    %s3 = sshllo.u32 0, 1
    %v4 = vld [vmem:[%s0] sm:%s3]
    %5 = vst [vmem:[#allocation1] sm:%s3] %v4
    %v6 = vld [vmem:[#allocation1] sm:$0x1]
    %vm7 = vcmask 15360
    %8 = vst.msk [vmem:[#allocation0] sm:$0x1] %vm7, %v6
    %v9 = vld [vmem:[#allocation1] sm:$0x1]
    %10 = vrot.lane.b32.xlu0 %v9, 126
    %v11 = vpop.permute.xlu0 %10
    %vm12 = vcmask 15360
    %s13 = scalar_lea.vmem [#allocation0], 1
    %14 = vst.msk [vmem:[%s13] sm:$0x1] %vm12, %v11
    %v15 = vld [vmem:[#allocation1] sm:$0x1]
    %16 = vrot.lane.b32.xlu0 %v15, 124
    %v17 = vpop.permute.xlu0 %16
    %vm18 = vcmask 15360
    %s19 = scalar_lea.vmem [#allocation0], 8
    %20 = vst.msk [vmem:[%s19] sm:$0x1] %vm18, %v17
    %v21 = vld [vmem:[#allocation1] sm:$0x1]
    %22 = vrot.lane.b32.xlu0 %v21, 122
    %v23 = vpop.permute.xlu0 %22
    %vm24 = vcmask 15360
    %s25 = scalar_lea.vmem [#allocation0], 9
    %26 = vst.msk [vmem:[%s25] sm:$0x1] %vm24, %v23
    %v27 = vld [vmem:[#allocation1] sm:$0x1]
    %28 = vrot.lane.b32.xlu0 %v27, 120
    %v29 = vpop.permute.xlu0 %28
    %vm30 = vcmask 15360
    %s31 = scalar_lea.vmem [#allocation0], 16
    %32 = vst.msk [vmem:[%s31] sm:$0x1] %vm30, %v29
    %v33 = vld [vmem:[#allocation1] sm:$0x1]
    %34 = vrot.lane.b32.xlu0 %v33, 118
    %v35 = vpop.permute.xlu0 %34
    %vm36 = vcmask 15360
    %s37 = scalar_lea.vmem [#allocation0], 17
    %38 = vst.msk [vmem:[%s37] sm:$0x1] %vm36, %v35
    %v39 = vld [vmem:[#allocation1] sm:$0x1]
    %40 = vrot.lane.b32.xlu0 %v39, 116
    %v41 = vpop.permute.xlu0 %40
    %vm42 = vcmask 15360
    %s43 = scalar_lea.vmem [#allocation0], 24
    %44 = vst.msk [vmem:[%s43] sm:$0x1] %vm42, %v41
    %v45 = vld [vmem:[#allocation1] sm:$0x1]
    %46 = vrot.lane.b32.xlu0 %v45, 114
    %v47 = vpop.permute.xlu0 %46
    %vm48 = vcmask 15360
    %s49 = scalar_lea.vmem [#allocation0], 25
    %50 = vst.msk [vmem:[%s49] sm:$0x1] %vm48, %v47
    %v51 = vld [vmem:[#allocation1] sm:$0x1]
    %52 = vrot.lane.b32.xlu0 %v51, 112
    %v53 = vpop.permute.xlu0 %52
    %vm54 = vcmask 15360
    %s55 = scalar_lea.vmem [#allocation0], 32
    %56 = vst.msk [vmem:[%s55] sm:$0x1] %vm54, %v53
    %v57 = vld [vmem:[#allocation1] sm:$0x1]
    %58 = vrot.lane.b32.xlu0 %v57, 110
    %v59 = vpop.permute.xlu0 %58
    %vm60 = vcmask 15360
    %s61 = scalar_lea.vmem [#allocation0], 33
    %62 = vst.msk [vmem:[%s61] sm:$0x1] %vm60, %v59
    %v63 = vld [vmem:[#allocation1] sm:$0x1]
    %64 = vrot.lane.b32.xlu0 %v63, 108
    %v65 = vpop.permute.xlu0 %64
    %vm66 = vcmask 15360
    %s67 = scalar_lea.vmem [#allocation0], 40
    %68 = vst.msk [vmem:[%s67] sm:$0x1] %vm66, %v65
    %v69 = vld [vmem:[#allocation1] sm:$0x1]
    %70 = vrot.lane.b32.xlu0 %v69, 106
    %v71 = vpop.permute.xlu0 %70
    %vm72 = vcmask 15360
    %s73 = scalar_lea.vmem [#allocation0], 41
    %74 = vst.msk [vmem:[%s73] sm:$0x1] %vm72, %v71
    %v75 = vld [vmem:[#allocation1] sm:$0x1]
    %76 = vrot.lane.b32.xlu0 %v75, 104
    %v77 = vpop.permute.xlu0 %76
    %vm78 = vcmask 15360
    %s79 = scalar_lea.vmem [#allocation0], 48
    %80 = vst.msk [vmem:[%s79] sm:$0x1] %vm78, %v77
    %v81 = vld [vmem:[#allocation1] sm:$0x1]
    %82 = vrot.lane.b32.xlu0 %v81, 102
    %v83 = vpop.permute.xlu0 %82
    %vm84 = vcmask 15360
    %s85 = scalar_lea.vmem [#allocation0], 49
    %86 = vst.msk [vmem:[%s85] sm:$0x1] %vm84, %v83
    %v87 = vld [vmem:[#allocation1] sm:$0x1]
    %88 = vrot.lane.b32.xlu0 %v87, 100
    %v89 = vpop.permute.xlu0 %88
    %vm90 = vcmask 15360
    %s91 = scalar_lea.vmem [#allocation0], 56
    %92 = vst.msk [vmem:[%s91] sm:$0x1] %vm90, %v89
    %v93 = vld [vmem:[#allocation1] sm:$0x1]
    %94 = vrot.lane.b32.xlu0 %v93, 98
    %v95 = vpop.permute.xlu0 %94
    %vm96 = vcmask 15360
    %s97 = scalar_lea.vmem [#allocation0], 57
    %98 = vst.msk [vmem:[%s97] sm:$0x1] %vm96, %v95
    %v99 = vld [vmem:[#allocation1] sm:$0x1]
    %100 = vrot.lane.b32.xlu0 %v99, 96
    %v101 = vpop.permute.xlu0 %100
    %vm102 = vcmask 15360
    %s103 = scalar_lea.vmem [#allocation0], 64
    %104 = vst.msk [vmem:[%s103] sm:$0x1] %vm102, %v101
    %v105 = vld [vmem:[#allocation1] sm:$0x1]
    %106 = vrot.lane.b32.xlu0 %v105, 94
    %v107 = vpop.permute.xlu0 %106
    %vm108 = vcmask 15360
    %s109 = scalar_lea.vmem [#allocation0], 65
    %110 = vst.msk [vmem:[%s109] sm:$0x1] %vm108, %v107
    %v111 = vld [vmem:[#allocation1] sm:$0x1]
    %112 = vrot.lane.b32.xlu0 %v111, 92
    %v113 = vpop.permute.xlu0 %112
    %vm114 = vcmask 15360
    %s115 = scalar_lea.vmem [#allocation0], 72
    %116 = vst.msk [vmem:[%s115] sm:$0x1] %vm114, %v113
    %v117 = vld [vmem:[#allocation1] sm:$0x1]
    %118 = vrot.lane.b32.xlu0 %v117, 90
    %v119 = vpop.permute.xlu0 %118
    %vm120 = vcmask 15360
    %s121 = scalar_lea.vmem [#allocation0], 73
    %122 = vst.msk [vmem:[%s121] sm:$0x1] %vm120, %v119
    %v123 = vld [vmem:[#allocation1] sm:$0x1]
    %124 = vrot.lane.b32.xlu0 %v123, 88
    %v125 = vpop.permute.xlu0 %124
    %vm126 = vcmask 15360
    %s127 = scalar_lea.vmem [#allocation0], 80
    %128 = vst.msk [vmem:[%s127] sm:$0x1] %vm126, %v125
    %v129 = vld [vmem:[#allocation1] sm:$0x1]
    %130 = vrot.lane.b32.xlu0 %v129, 86
    %v131 = vpop.permute.xlu0 %130
    %vm132 = vcmask 15360
    %s133 = scalar_lea.vmem [#allocation0], 81
    %134 = vst.msk [vmem:[%s133] sm:$0x1] %vm132, %v131
    %v135 = vld [vmem:[#allocation1] sm:$0x1]
    %136 = vrot.lane.b32.xlu0 %v135, 84
    %v137 = vpop.permute.xlu0 %136
    %vm138 = vcmask 15360
    %s139 = scalar_lea.vmem [#allocation0], 88
    %140 = vst.msk [vmem:[%s139] sm:$0x1] %vm138, %v137
    %v141 = vld [vmem:[#allocation1] sm:$0x1]
    %142 = vrot.lane.b32.xlu0 %v141, 82
    %v143 = vpop.permute.xlu0 %142
    %vm144 = vcmask 15360
    %s145 = scalar_lea.vmem [#allocation0], 89
    %146 = vst.msk [vmem:[%s145] sm:$0x1] %vm144, %v143
    %s148 = sshllo.u32 0, 2
    %v150 = vld [vmem:[#allocation0] sm:%s148]
    %s151 = sshllo.u32 0, 2
    %152 = vst [vmem:[%s1] sm:%s151] %v150
    %s153 = scalar_lea.vmem [#allocation0], 8
    %v154 = vld [vmem:[%s153] sm:%s148]
    %s155 = sshllo.u32 0, 2
    %s156 = scalar_lea.vmem %s1, 2
    %157 = vst [vmem:[%s156] sm:%s155] %v154
    %s158 = scalar_lea.vmem [#allocation0], 16
    %v159 = vld [vmem:[%s158] sm:%s148]
    %s160 = sshllo.u32 0, 2
    %s161 = smul.addr 2, 2
    %s162 = scalar_lea.vmem %s1, %s161
    %163 = vst [vmem:[%s162] sm:%s160] %v159
    %s164 = scalar_lea.vmem [#allocation0], 24
    %v165 = vld [vmem:[%s164] sm:%s148]
    %s166 = sshllo.u32 0, 2
    %s167 = smul.addr 2, 3
    %s168 = scalar_lea.vmem %s1, %s167
    %169 = vst [vmem:[%s168] sm:%s166] %v165
    %s170 = scalar_lea.vmem [#allocation0], 32
    %v171 = vld [vmem:[%s170] sm:%s148]
    %s172 = sshllo.u32 0, 2
    %s173 = smul.addr 2, 4
    %s174 = scalar_lea.vmem %s1, %s173
    %175 = vst [vmem:[%s174] sm:%s172] %v171
    %s176 = scalar_lea.vmem [#allocation0], 40
    %v177 = vld [vmem:[%s176] sm:%s148]
    %s178 = sshllo.u32 0, 2
    %s179 = smul.addr 2, 5
    %s180 = scalar_lea.vmem %s1, %s179
    %181 = vst [vmem:[%s180] sm:%s178] %v177
    %s182 = scalar_lea.vmem [#allocation0], 48
    %v183 = vld [vmem:[%s182] sm:%s148]
    %s184 = sshllo.u32 0, 2
    %s185 = smul.addr 2, 6
    %s186 = scalar_lea.vmem %s1, %s185
    %187 = vst [vmem:[%s186] sm:%s184] %v183
    %s188 = scalar_lea.vmem [#allocation0], 56
    %v189 = vld [vmem:[%s188] sm:%s148]
    %s190 = sshllo.u32 0, 2
    %s191 = smul.addr 2, 7
    %s192 = scalar_lea.vmem %s1, %s191
    %193 = vst [vmem:[%s192] sm:%s190] %v189
    %s194 = scalar_lea.vmem [#allocation0], 64
    %v195 = vld [vmem:[%s194] sm:%s148]
    %s196 = sshllo.u32 0, 2
    %s197 = smul.addr 2, 8
    %s198 = scalar_lea.vmem %s1, %s197
    %199 = vst [vmem:[%s198] sm:%s196] %v195
    %s200 = scalar_lea.vmem [#allocation0], 72
    %v201 = vld [vmem:[%s200] sm:%s148]
    %s202 = sshllo.u32 0, 2
    %s203 = smul.addr 2, 9
    %s204 = scalar_lea.vmem %s1, %s203
    %205 = vst [vmem:[%s204] sm:%s202] %v201
    %s206 = scalar_lea.vmem [#allocation0], 80
    %v207 = vld [vmem:[%s206] sm:%s148]
    %s208 = sshllo.u32 0, 2
    %s209 = smul.addr 2, 10
    %s210 = scalar_lea.vmem %s1, %s209
    %211 = vst [vmem:[%s210] sm:%s208] %v207
    %s212 = scalar_lea.vmem [#allocation0], 88
    %v213 = vld [vmem:[%s212] sm:%s148]
    %s214 = sshllo.u32 0, 2
    %s215 = smul.addr 2, 11
    %s216 = scalar_lea.vmem %s1, %s215
    %217 = vst [vmem:[%s216] sm:%s214] %v213

// kernel: spatial_mixformer_forward.4
$region0: #{spatial_mixformer_forward.4}
  #allocation0 [shape = 'u32[]', space=smem, size = 0x4, offset = 0x4, fixed_abs, tag = 'smem constant byte address 0x4 - core index']
  #allocation1 [shape = 'u32[144,128]{1,0:T(1,128)}', space=vmem, size = 0x12000, scoped, tag = 'internal scratch']
  %s0 = inlined_call_operand.vmem [shape: f32[2,16,136], index: 0, kind: input, shape index: {}]
  %s1 = inlined_call_operand.vmem [shape: bf16[48,16], index: 1, kind: input, shape index: {}]
  %s2 = inlined_call_operand.vmem [shape: f32[48,1], index: 2, kind: input, shape index: {}]
  %s3 = inlined_call_operand.vmem [shape: bf16[2,48,136], index: 3, kind: output, shape index: {}]
  %s4 = sld [smem:[#allocation0]]
  $region22: #{spatial_mixformer_forward.4} parent=0
    _
  %s6 = ssub.s32 1, %s4
  %s7 = scalar_select 0, %s6, %s4
  // Predicated region
  $region2: #{spatial_mixformer_forward.4} parent=0 // pred_check
    _
  $region3: #{spatial_mixformer_forward.4} parent=0 // pred_check_branch
    %9 = sbr.rel (0) target = $region5
  $region4: #{spatial_mixformer_forward.4} parent=0 // pred_region
    _
  $region5: #{spatial_mixformer_forward.4} parent=0 // pred_fallthru
    _
  // Predicated region
  $region6: #{spatial_mixformer_forward.4} parent=0 // pred_check
    _
  $region7: #{spatial_mixformer_forward.4} parent=0 // pred_check_branch
    %11 = sbr.rel (0) target = $region9
  $region8: #{spatial_mixformer_forward.4} parent=0 // pred_region
    _
  $region9: #{spatial_mixformer_forward.4} parent=0 // pred_fallthru
    _
  // Predicated region
  $region10: #{spatial_mixformer_forward.4} parent=0 // pred_check
    _
  $region11: #{spatial_mixformer_forward.4} parent=0 // pred_check_branch
    %13 = sbr.rel (0) target = $region13
  $region12: #{spatial_mixformer_forward.4} parent=0 // pred_region
    _
  $region13: #{spatial_mixformer_forward.4} parent=0 // pred_fallthru
    _
  %v15 = vld [vmem:[%s1] sm:$0xf]
  %v16 = vld [vmem:[%s1 + $0x4] sm:$0xf]
  %v17 = vld [vmem:[%s1 + $0x8] sm:$0xf]
  %v18 = vld [vmem:[%s1 + $0xc] sm:$0xf]
  %v19 = vld [vmem:[%s1 + $0x10] sm:$0xf]
  %v20 = vld [vmem:[%s1 + $0x14] sm:$0xf]
  %v21 = vld [vmem:[%s2] sm:$0xff]
  %v22 = vld [vmem:[%s2 + $0x8] sm:$0xff]
  %v23 = vld [vmem:[%s2 + $0x10] sm:$0xff]
  %v24 = vld [vmem:[%s2 + $0x18] sm:$0xff]
  %v25 = vld [vmem:[%s2 + $0x20] sm:$0xff]
  %v26 = vld [vmem:[%s2 + $0x28] sm:$0xff]
  %v27 = vld [vmem:[%s0] sm:$0xff]
  %v28 = vld [vmem:[%s0 + $0x8] sm:$0xff]
  %v29 = vld [vmem:[%s0 + $0x10] sm:$0xff]
  %v30 = vld [vmem:[%s0 + $0x18] sm:$0xff]
  %v31 = vpack.c.bf16 %v29, %v27
  %v32 = vpack.c.bf16 %v30, %v28
  %34 = vset.pattern.permute.xlu0 0
  %35 = vperm.xlu0 %34, %v21
  %v36 = vpop.permute.xlu0 %35
  %39 = vset.pattern.permute.xlu0 0
  %40 = vperm.xlu0 %39, %v22
  %v41 = vpop.permute.xlu0 %40
  %44 = vset.pattern.permute.xlu0 0
  %45 = vperm.xlu0 %44, %v23
  %v46 = vpop.permute.xlu0 %45
  %49 = vset.pattern.permute.xlu0 0
  %50 = vperm.xlu0 %49, %v24
  %v51 = vpop.permute.xlu0 %50
  %54 = vset.pattern.permute.xlu0 0
  %55 = vperm.xlu0 %54, %v25
  %v56 = vpop.permute.xlu0 %55
  %59 = vset.pattern.permute.xlu0 0
  %60 = vperm.xlu0 %59, %v26
  %v61 = vpop.permute.xlu0 %60
  %v69 = vunpack.c.l.b16 %v15
  %v70 = vunpack.c.l.b16 %v16
  %v71 = vunpack.c.l.b16 %v17
  %v72 = vunpack.c.l.b16 %v18
  %v73 = vunpack.c.l.b16 %v19
  %v74 = vunpack.c.l.b16 %v20
  %v75 = vpack.c.b16 %v70, %v69
  %v76 = vpack.c.b16 %v72, %v71
  %v77 = vpack.c.b16 %v74, %v73
  %vm78 = vcmask 130048
  %v80 = vsel %vm78, %v75, 0
  %v83 = vsel %vm78, %v76, 0
  %v86 = vsel %vm78, %v77, 0
  %88 = vmatprep.subr.bf16.mxu0 %v32
  %89 = vmatpush1.bf16.msra.mxu0 %v31
  %90 = vmatprep.subr.bf16.mxu0 0
  %91 = vmatpush1.bf16.msra.mxu0 0
  %92 = vmatprep.subr.bf16.mxu0 0
  %93 = vmatpush1.bf16.msra.mxu0 0
  %94 = vmatprep.subr.bf16.mxu0 0
  %95 = vmatpush1.bf16.msra.mxu0 0
  %96 = vmatprep.subr.bf16.mxu0 0
  %97 = vmatpush1.bf16.msra.mxu0 0
  %98 = vmatprep.subr.bf16.mxu0 0
  %99 = vmatpush1.bf16.msra.mxu0 0
  %100 = vmatprep.subr.bf16.mxu0 0
  %101 = vmatpush1.bf16.msra.mxu0 0
  %102 = vmatprep.subr.bf16.mxu0 0
  %103 = vmatpush1.bf16.msra.mxu0 0
  %104 = vmatprep.subr.bf16.mxu0 0
  %105 = vmatpush1.bf16.msra.mxu0 0
  %106 = vmatprep.subr.bf16.mxu0 0
  %107 = vmatpush1.bf16.msra.mxu0 0
  %108 = vmatprep.subr.bf16.mxu0 0
  %109 = vmatpush1.bf16.msra.mxu0 0
  %110 = vmatprep.subr.bf16.mxu0 0
  %111 = vmatpush1.bf16.msra.mxu0 0
  %112 = vmatprep.subr.bf16.mxu0 0
  %113 = vmatpush1.bf16.msra.mxu0 0
  %114 = vmatprep.subr.bf16.mxu0 0
  %115 = vmatpush1.bf16.msra.mxu0 0
  %116 = vmatprep.subr.bf16.mxu0 0
  %117 = vmatpush1.bf16.msra.mxu0 0
  %118 = vmatprep.subr.bf16.mxu0 0
  %119 = vmatpush1.bf16.msra.mxu0 0
  %120 = vmatprep.mubr.bf16.mxu0 0
  %121 = vmatmul.mubr.bf16.gmra.mrb[0].mxu0 %v80
  %v122 = vpop.f32.mrb[0].mxu0
  %v123 = vadd.f32 %v36, %v122
  %v124 = vpop.f32.mrb[0].mxu0
  %v125 = vadd.f32 %v36, %v124
  %v126 = vpop.f32.mrb[0].mxu0
  %v127 = vadd.f32 %v41, %v126
  %v128 = vpop.f32.mrb[0].mxu0
  %v129 = vadd.f32 %v41, %v128
  %130 = vmatprep.mubr.bf16.mxu0 0
  %131 = vmatmul.mubr.bf16.gmra.mrb[0].mxu0 %v83
  %v132 = vpop.f32.mrb[0].mxu0
  %v133 = vadd.f32 %v46, %v132
  %v134 = vpop.f32.mrb[0].mxu0
  %v135 = vadd.f32 %v46, %v134
  %v136 = vpop.f32.mrb[0].mxu0
  %v137 = vadd.f32 %v51, %v136
  %v138 = vpop.f32.mrb[0].mxu0
  %v139 = vadd.f32 %v51, %v138
  %140 = vmatprep.mubr.bf16.mxu0 0
  %141 = vmatmul.mubr.bf16.gmra.mrb[0].mxu0 %v86
  %v142 = vpop.f32.mrb[0].mxu0
  %v143 = vadd.f32 %v56, %v142
  %v144 = vpop.f32.mrb[0].mxu0
  %v145 = vadd.f32 %v56, %v144
  %v146 = vpop.f32.mrb[0].mxu0
  %v147 = vadd.f32 %v61, %v146
  %v148 = vpop.f32.mrb[0].mxu0
  %v149 = vadd.f32 %v61, %v148
  %150 = vdwg.mxu0
  %v151 = vpack.c.bf16 %v127, %v123
  %v152 = vpack.c.bf16 %v129, %v125
  %v153 = vpack.c.bf16 %v137, %v133
  %v154 = vpack.c.bf16 %v139, %v135
  %v155 = vpack.c.bf16 %v147, %v143
  %v156 = vpack.c.bf16 %v149, %v145
  %v163 = vunpack.c.l.b16 %v151
  %v164 = vunpack.c.l.b16 %v152
  %v165 = vunpack.c.h.b16 %v151
  %v166 = vunpack.c.h.b16 %v152
  %v167 = vunpack.c.l.b16 %v153
  %v168 = vunpack.c.l.b16 %v154
  %v169 = vunpack.c.h.b16 %v153
  %v170 = vunpack.c.h.b16 %v154
  %v171 = vunpack.c.l.b16 %v155
  %v172 = vunpack.c.l.b16 %v156
  %v173 = vunpack.c.h.b16 %v155
  %v174 = vunpack.c.h.b16 %v156
  %v175 = vpack.c.b16 %v164, %v163
  %v176 = vpack.c.b16 %v166, %v165
  %v177 = vpack.c.b16 %v168, %v167
  %v178 = vpack.c.b16 %v170, %v169
  %v179 = vpack.c.b16 %v172, %v171
  %v180 = vpack.c.b16 %v174, %v173
  %vm187 = vcmask 1043456
  %vm188 = vcmask 64516
  %vm189 = vmor %vm188, %vm187
  %190 = vst.msk [vmem:[%s3] sm:$0xff] %vm189, %v175
  %191 = vst.msk [vmem:[%s3 + $0x8] sm:$0xff] %vm189, %v176
  %192 = vst.msk [vmem:[%s3 + $0x10] sm:$0xff] %vm189, %v177
  %193 = vst.msk [vmem:[%s3 + $0x18] sm:$0xff] %vm189, %v178
  %194 = vst.msk [vmem:[%s3 + $0x20] sm:$0xff] %vm189, %v179
  %195 = vst.msk [vmem:[%s3 + $0x28] sm:$0xff] %vm189, %v180
  %s196 = scalar_lea.vmem %s0, 32
  %v197 = vld [vmem:[%s196] sm:$0xff]
  %v198 = vld [vmem:[%s196 + $0x8] sm:$0xff]
  %v199 = vld [vmem:[%s196 + $0x10] sm:$0xff]
  %v200 = vld [vmem:[%s196 + $0x18] sm:$0xff]
  %v201 = vpack.c.bf16 %v199, %v197
  %v202 = vpack.c.bf16 %v200, %v198
  %203 = vmatprep.subr.bf16.mxu0 %v202
  %204 = vmatpush1.bf16.msra.mxu0 %v201
  %205 = vmatprep.subr.bf16.mxu0 0
  %206 = vmatpush1.bf16.msra.mxu0 0
  %207 = vmatprep.subr.bf16.mxu0 0
  %208 = vmatpush1.bf16.msra.mxu0 0
  %209 = vmatprep.subr.bf16.mxu0 0
  %210 = vmatpush1.bf16.msra.mxu0 0
  %211 = vmatprep.subr.bf16.mxu0 0
  %212 = vmatpush1.bf16.msra.mxu0 0
  %213 = vmatprep.subr.bf16.mxu0 0
  %214 = vmatpush1.bf16.msra.mxu0 0
  %215 = vmatprep.subr.bf16.mxu0 0
  %216 = vmatpush1.bf16.msra.mxu0 0
  %217 = vmatprep.subr.bf16.mxu0 0
  %218 = vmatpush1.bf16.msra.mxu0 0
  %219 = vmatprep.subr.bf16.mxu0 0
  %220 = vmatpush1.bf16.msra.mxu0 0
  %221 = vmatprep.subr.bf16.mxu0 0
  %222 = vmatpush1.bf16.msra.mxu0 0
  %223 = vmatprep.subr.bf16.mxu0 0
  %224 = vmatpush1.bf16.msra.mxu0 0
  %225 = vmatprep.subr.bf16.mxu0 0
  %226 = vmatpush1.bf16.msra.mxu0 0
  %227 = vmatprep.subr.bf16.mxu0 0
  %228 = vmatpush1.bf16.msra.mxu0 0
  %229 = vmatprep.subr.bf16.mxu0 0
  %230 = vmatpush1.bf16.msra.mxu0 0
  %231 = vmatprep.subr.bf16.mxu0 0
  %232 = vmatpush1.bf16.msra.mxu0 0
  %233 = vmatprep.subr.bf16.mxu0 0
  %234 = vmatpush1.bf16.msra.mxu0 0
  %235 = vmatprep.mubr.bf16.mxu0 0
  %236 = vmatmul.mubr.bf16.gmra.mrb[0].mxu0 %v80
  %v237 = vpop.f32.mrb[0].mxu0
  %v238 = vadd.f32 %v36, %v237
  %v239 = vpop.f32.mrb[0].mxu0
  %v240 = vadd.f32 %v36, %v239
  %v241 = vpop.f32.mrb[0].mxu0
  %v242 = vadd.f32 %v41, %v241
  %v243 = vpop.f32.mrb[0].mxu0
  %v244 = vadd.f32 %v41, %v243
  %245 = vmatprep.mubr.bf16.mxu0 0
  %246 = vmatmul.mubr.bf16.gmra.mrb[0].mxu0 %v83
  %v247 = vpop.f32.mrb[0].mxu0
  %v248 = vadd.f32 %v46, %v247
  %v249 = vpop.f32.mrb[0].mxu0
  %v250 = vadd.f32 %v46, %v249
  %v251 = vpop.f32.mrb[0].mxu0
  %v252 = vadd.f32 %v51, %v251
  %v253 = vpop.f32.mrb[0].mxu0
  %v254 = vadd.f32 %v51, %v253
  %255 = vmatprep.mubr.bf16.mxu0 0
  %256 = vmatmul.mubr.bf16.gmra.mrb[0].mxu0 %v86
  %v257 = vpop.f32.mrb[0].mxu0
  %v258 = vadd.f32 %v56, %v257
  %v259 = vpop.f32.mrb[0].mxu0
  %v260 = vadd.f32 %v56, %v259
  %v261 = vpop.f32.mrb[0].mxu0
  %v262 = vadd.f32 %v61, %v261
  %v263 = vpop.f32.mrb[0].mxu0
  %v264 = vadd.f32 %v61, %v263
  %265 = vdwg.mxu0
  %v266 = vpack.c.bf16 %v242, %v238
  %v267 = vpack.c.bf16 %v244, %v240
  %v268 = vpack.c.bf16 %v252, %v248
  %v269 = vpack.c.bf16 %v254, %v250
  %v270 = vpack.c.bf16 %v262, %v258
  %v271 = vpack.c.bf16 %v264, %v260
  %v278 = vunpack.c.l.b16 %v266
  %v279 = vunpack.c.l.b16 %v267
  %v280 = vunpack.c.h.b16 %v266
  %v281 = vunpack.c.h.b16 %v267
  %v282 = vunpack.c.l.b16 %v268
  %v283 = vunpack.c.l.b16 %v269
  %v284 = vunpack.c.h.b16 %v268
  %v285 = vunpack.c.h.b16 %v269
  %v286 = vunpack.c.l.b16 %v270
  %v287 = vunpack.c.l.b16 %v271
  %v288 = vunpack.c.h.b16 %v270
  %v289 = vunpack.c.h.b16 %v271
  %v290 = vpack.c.b16 %v279, %v278
  %v291 = vpack.c.b16 %v281, %v280
  %v292 = vpack.c.b16 %v283, %v282
  %v293 = vpack.c.b16 %v285, %v284
  %v294 = vpack.c.b16 %v287, %v286
  %v295 = vpack.c.b16 %v289, %v288
  %s302 = scalar_lea.vmem %s3, 48
  %303 = vst.msk [vmem:[%s302] sm:$0xff] %vm189, %v290
  %304 = vst.msk [vmem:[%s302 + $0x8] sm:$0xff] %vm189, %v291
  %305 = vst.msk [vmem:[%s302 + $0x10] sm:$0xff] %vm189, %v292
  %306 = vst.msk [vmem:[%s302 + $0x18] sm:$0xff] %vm189, %v293
  %307 = vst.msk [vmem:[%s302 + $0x20] sm:$0xff] %vm189, %v294
  %308 = vst.msk [vmem:[%s302 + $0x28] sm:$0xff] %vm189, %v295
  // Predicated region
  $region14: #{spatial_mixformer_forward.4} parent=0 // pred_check
    _
  $region15: #{spatial_mixformer_forward.4} parent=0 // pred_check_branch
    %310 = sbr.rel (0) target = $region17
  $region16: #{spatial_mixformer_forward.4} parent=0 // pred_region
    _
  $region17: #{spatial_mixformer_forward.4} parent=0 // pred_fallthru
    _
  // Predicated region
  $region18: #{spatial_mixformer_forward.4} parent=0 // pred_check
    _
  $region19: #{spatial_mixformer_forward.4} parent=0 // pred_check_branch
    %312 = sbr.rel (0) target = $region21
  $region20: #{spatial_mixformer_forward.4} parent=0 // pred_region
    _
  $region21: #{spatial_mixformer_forward.4} parent=0 // pred_fallthru
    _

// kernel: spatial_mixformer_forward.7
$region0: #{spatial_mixformer_forward.7}
  #allocation0 [shape = 'u32[]', space=smem, size = 0x4, offset = 0x4, fixed_abs, tag = 'smem constant byte address 0x4 - core index']
  #allocation1 [shape = 'u32[144,128]{1,0:T(1,128)}', space=vmem, size = 0x12000, scoped, tag = 'internal scratch']
  %s0 = inlined_call_operand.vmem [shape: bf16[32,136], index: 0, kind: input, shape index: {}]
  %s1 = inlined_call_operand.vmem [shape: f32[32,136], index: 1, kind: input, shape index: {}]
  %s2 = inlined_call_operand.vmem [shape: f32[32,1], index: 2, kind: input, shape index: {}]
  %s3 = inlined_call_operand.vmem [shape: f32[32,1], index: 3, kind: input, shape index: {}]
  %s4 = inlined_call_operand.vmem [shape: f32[32,136], index: 4, kind: output, shape index: {}]
  %s5 = sld [smem:[#allocation0]]
  $region26: #{spatial_mixformer_forward.7} parent=0
    _
  %s7 = ssub.s32 1, %s5
  %s8 = scalar_select 0, %s7, %s5
  // Predicated region
  $region2: #{spatial_mixformer_forward.7} parent=0 // pred_check
    _
  $region3: #{spatial_mixformer_forward.7} parent=0 // pred_check_branch
    %10 = sbr.rel (0) target = $region5
  $region4: #{spatial_mixformer_forward.7} parent=0 // pred_region
    _
  $region5: #{spatial_mixformer_forward.7} parent=0 // pred_fallthru
    _
  // Predicated region
  $region6: #{spatial_mixformer_forward.7} parent=0 // pred_check
    _
  $region7: #{spatial_mixformer_forward.7} parent=0 // pred_check_branch
    %12 = sbr.rel (0) target = $region9
  $region8: #{spatial_mixformer_forward.7} parent=0 // pred_region
    _
  $region9: #{spatial_mixformer_forward.7} parent=0 // pred_fallthru
    _
  // Predicated region
  $region10: #{spatial_mixformer_forward.7} parent=0 // pred_check
    _
  $region11: #{spatial_mixformer_forward.7} parent=0 // pred_check_branch
    %14 = sbr.rel (0) target = $region13
  $region12: #{spatial_mixformer_forward.7} parent=0 // pred_region
    _
  $region13: #{spatial_mixformer_forward.7} parent=0 // pred_fallthru
    _
  // Predicated region
  $region14: #{spatial_mixformer_forward.7} parent=0 // pred_check
    _
  $region15: #{spatial_mixformer_forward.7} parent=0 // pred_check_branch
    %16 = sbr.rel (0) target = $region17
  $region16: #{spatial_mixformer_forward.7} parent=0 // pred_region
    _
  $region17: #{spatial_mixformer_forward.7} parent=0 // pred_fallthru
    _
  %v17 = vld [vmem:[%s2] sm:$0xff]
  %v18 = vld [vmem:[%s2 + $0x8] sm:$0xff]
  %v19 = vld [vmem:[%s2 + $0x10] sm:$0xff]
  %v20 = vld [vmem:[%s2 + $0x18] sm:$0xff]
  %v21 = vld [vmem:[%s0] sm:$0xff]
  %v22 = vld [vmem:[%s0 + $0x8] sm:$0xff]
  %v23 = vld [vmem:[%s0 + $0x10] sm:$0xff]
  %v24 = vld [vmem:[%s0 + $0x18] sm:$0xff]
  %v25 = vunpack.c.l.bf16 %v21
  %v26 = vunpack.c.h.bf16 %v21
  %v27 = vunpack.c.l.bf16 %v22
  %v28 = vunpack.c.h.bf16 %v22
  %v29 = vunpack.c.l.bf16 %v23
  %v30 = vunpack.c.h.bf16 %v23
  %v31 = vunpack.c.l.bf16 %v24
  %v32 = vunpack.c.h.bf16 %v24
  %34 = vset.pattern.permute.xlu0 0
  %35 = vperm.xlu0 %34, %v17
  %v36 = vpop.permute.xlu0 %35
  %39 = vset.pattern.permute.xlu0 0
  %40 = vperm.xlu0 %39, %v18
  %v41 = vpop.permute.xlu0 %40
  %44 = vset.pattern.permute.xlu0 0
  %45 = vperm.xlu0 %44, %v19
  %v46 = vpop.permute.xlu0 %45
  %49 = vset.pattern.permute.xlu0 0
  %50 = vperm.xlu0 %49, %v20
  %v51 = vpop.permute.xlu0 %50
  %v53 = vmul.f32 %v36, %v25
  %v54 = vmul.f32 %v36, %v26
  %v55 = vmul.f32 %v41, %v27
  %v56 = vmul.f32 %v41, %v28
  %v57 = vmul.f32 %v46, %v29
  %v58 = vmul.f32 %v46, %v30
  %v59 = vmul.f32 %v51, %v31
  %v60 = vmul.f32 %v51, %v32
  %v61 = vld [vmem:[%s3] sm:$0xff]
  %v62 = vld [vmem:[%s3 + $0x8] sm:$0xff]
  %v63 = vld [vmem:[%s3 + $0x10] sm:$0xff]
  %v64 = vld [vmem:[%s3 + $0x18] sm:$0xff]
  %66 = vset.pattern.permute.xlu0 0
  %67 = vperm.xlu0 %66, %v61
  %v68 = vpop.permute.xlu0 %67
  %71 = vset.pattern.permute.xlu0 0
  %72 = vperm.xlu0 %71, %v62
  %v73 = vpop.permute.xlu0 %72
  %76 = vset.pattern.permute.xlu0 0
  %77 = vperm.xlu0 %76, %v63
  %v78 = vpop.permute.xlu0 %77
  %81 = vset.pattern.permute.xlu0 0
  %82 = vperm.xlu0 %81, %v64
  %v83 = vpop.permute.xlu0 %82
  %v85 = vadd.f32 %v53, %v68
  %v86 = vadd.f32 %v54, %v68
  %v87 = vadd.f32 %v55, %v73
  %v88 = vadd.f32 %v56, %v73
  %v89 = vadd.f32 %v57, %v78
  %v90 = vadd.f32 %v58, %v78
  %v91 = vadd.f32 %v59, %v83
  %v92 = vadd.f32 %v60, %v83
  %v93 = vld [vmem:[%s1] sm:$0xff]
  %v94 = vld [vmem:[%s1 + $0x8] sm:$0xff]
  %v95 = vld [vmem:[%s1 + $0x10] sm:$0xff]
  %v96 = vld [vmem:[%s1 + $0x18] sm:$0xff]
  %v97 = vld [vmem:[%s1 + $0x20] sm:$0xff]
  %v98 = vld [vmem:[%s1 + $0x28] sm:$0xff]
  %v99 = vld [vmem:[%s1 + $0x30] sm:$0xff]
  %v100 = vld [vmem:[%s1 + $0x38] sm:$0xff]
  %v101 = vadd.f32 %v85, %v93
  %v102 = vadd.f32 %v86, %v94
  %v103 = vadd.f32 %v87, %v95
  %v104 = vadd.f32 %v88, %v96
  %v105 = vadd.f32 %v89, %v97
  %v106 = vadd.f32 %v90, %v98
  %v107 = vadd.f32 %v91, %v99
  %v108 = vadd.f32 %v92, %v100
  %v109 = vmax.f32 %v101, 0.0
  %v110 = vmax.f32 %v102, 0.0
  %v111 = vmax.f32 %v103, 0.0
  %v112 = vmax.f32 %v104, 0.0
  %v113 = vmax.f32 %v105, 0.0
  %v114 = vmax.f32 %v106, 0.0
  %v115 = vmax.f32 %v107, 0.0
  %v116 = vmax.f32 %v108, 0.0
  %117 = vst [vmem:[%s4] sm:$0xff] %v109
  %vm118 = vcmask 64512
  %119 = vst.msk [vmem:[%s4 + $0x8] sm:$0xff] %vm118, %v110
  %120 = vst [vmem:[%s4 + $0x10] sm:$0xff] %v111
  %121 = vst.msk [vmem:[%s4 + $0x18] sm:$0xff] %vm118, %v112
  %122 = vst [vmem:[%s4 + $0x20] sm:$0xff] %v113
  %123 = vst.msk [vmem:[%s4 + $0x28] sm:$0xff] %vm118, %v114
  %124 = vst [vmem:[%s4 + $0x30] sm:$0xff] %v115
  %125 = vst.msk [vmem:[%s4 + $0x38] sm:$0xff] %vm118, %v116
  // Predicated region
  $region18: #{spatial_mixformer_forward.7} parent=0 // pred_check
    _
  $region19: #{spatial_mixformer_forward.7} parent=0 // pred_check_branch
    %127 = sbr.rel (0) target = $region21
  $region20: #{spatial_mixformer_forward.7} parent=0 // pred_region
    _
  $region21: #{spatial_mixformer_forward.7} parent=0 // pred_fallthru
    _
  // Predicated region
  $region22: #{spatial_mixformer_forward.7} parent=0 // pred_check
    _
  $region23: #{spatial_mixformer_forward.7} parent=0 // pred_check_branch
    %129 = sbr.rel (0) target = $region25
  $region24: #{spatial_mixformer_forward.7} parent=0 // pred_region
    _
  $region25: #{spatial_mixformer_forward.7} parent=0 // pred_fallthru
    _

// kernel: spatial_mixformer_forward.5
$region0: #{spatial_mixformer_forward.5}
  #allocation0 [shape = 'u32[]', space=smem, size = 0x4, offset = 0x4, fixed_abs, tag = 'smem constant byte address 0x4 - core index']
  #allocation1 [shape = 'u32[144,128]{1,0:T(1,128)}', space=vmem, size = 0x12000, scoped, tag = 'internal scratch']
  %s0 = inlined_call_operand.vmem [shape: f32[2,12,17], index: 0, kind: input, shape index: {}]
  %s1 = inlined_call_operand.vmem [shape: f32[2,12,17], index: 1, kind: input, shape index: {}]
  %s2 = inlined_call_operand.vmem [shape: f32[17,17], index: 2, kind: input, shape index: {}]
  %s3 = inlined_call_operand.vmem [shape: f32[1,17], index: 3, kind: input, shape index: {}]
  %s4 = inlined_call_operand.vmem [shape: f32[17,17], index: 4, kind: input, shape index: {}]
  %s5 = inlined_call_operand.vmem [shape: f32[1,17], index: 5, kind: input, shape index: {}]
  %s6 = inlined_call_operand.vmem [shape: f32[2,12,17,17], index: 6, kind: output, shape index: {}]
  %s7 = sld [smem:[#allocation0]]
  $region34: #{spatial_mixformer_forward.5} parent=0
    _
  %s9 = ssub.s32 1, %s7
  %s10 = scalar_select 0, %s9, %s7
  // Predicated region
  $region2: #{spatial_mixformer_forward.5} parent=0 // pred_check
    _
  $region3: #{spatial_mixformer_forward.5} parent=0 // pred_check_branch
    %12 = sbr.rel (0) target = $region5
  $region4: #{spatial_mixformer_forward.5} parent=0 // pred_region
    _
  $region5: #{spatial_mixformer_forward.5} parent=0 // pred_fallthru
    _
  // Predicated region
  $region6: #{spatial_mixformer_forward.5} parent=0 // pred_check
    _
  $region7: #{spatial_mixformer_forward.5} parent=0 // pred_check_branch
    %14 = sbr.rel (0) target = $region9
  $region8: #{spatial_mixformer_forward.5} parent=0 // pred_region
    _
  $region9: #{spatial_mixformer_forward.5} parent=0 // pred_fallthru
    _
  // Predicated region
  $region10: #{spatial_mixformer_forward.5} parent=0 // pred_check
    _
  $region11: #{spatial_mixformer_forward.5} parent=0 // pred_check_branch
    %16 = sbr.rel (0) target = $region13
  $region12: #{spatial_mixformer_forward.5} parent=0 // pred_region
    _
  $region13: #{spatial_mixformer_forward.5} parent=0 // pred_fallthru
    _
  // Predicated region
  $region14: #{spatial_mixformer_forward.5} parent=0 // pred_check
    _
  $region15: #{spatial_mixformer_forward.5} parent=0 // pred_check_branch
    %18 = sbr.rel (0) target = $region17
  $region16: #{spatial_mixformer_forward.5} parent=0 // pred_region
    _
  $region17: #{spatial_mixformer_forward.5} parent=0 // pred_fallthru
    _
  // Predicated region
  $region18: #{spatial_mixformer_forward.5} parent=0 // pred_check
    _
  $region19: #{spatial_mixformer_forward.5} parent=0 // pred_check_branch
    %20 = sbr.rel (0) target = $region21
  $region20: #{spatial_mixformer_forward.5} parent=0 // pred_region
    _
  $region21: #{spatial_mixformer_forward.5} parent=0 // pred_fallthru
    _
  // Predicated region
  $region22: #{spatial_mixformer_forward.5} parent=0 // pred_check
    _
  $region23: #{spatial_mixformer_forward.5} parent=0 // pred_check_branch
    %22 = sbr.rel (0) target = $region25
  $region24: #{spatial_mixformer_forward.5} parent=0 // pred_region
    _
  $region25: #{spatial_mixformer_forward.5} parent=0 // pred_fallthru
    _
  %v23 = vld [vmem:[%s2] sm:$0xff]
  %v24 = vld [vmem:[%s2 + $0x8] sm:$0xff]
  %v25 = vld [vmem:[%s2 + $0x10] sm:$0x1]
  %v26 = vld [vmem:[%s3] sm:$0x1]
  %v27 = vld [vmem:[%s4] sm:$0xff]
  %v28 = vld [vmem:[%s4 + $0x8] sm:$0xff]
  %v29 = vld [vmem:[%s4 + $0x10] sm:$0x1]
  %v30 = vld [vmem:[%s5] sm:$0x1]
  %v31 = vld [vmem:[%s0] sm:$0xff]
  %v32 = vld [vmem:[%s0 + $0x8] sm:$0xf]
  %v33 = vld [vmem:[%s1] sm:$0xff]
  %v34 = vld [vmem:[%s1 + $0x8] sm:$0xf]
  %v36 = vlaneseq
  %v37 = vshrl.u32 %v36, 7
  %v38 = vsub.s32 0, %v37
  %v39 = vrot.slane %v26, %v38
  %vm41 = vcmask 138240
  %v43 = vsel %vm41, %v31, 0
  %v46 = vsel %vm41, %v32, 0
  %vm48 = vcmask 1040384
  %v50 = vsel %vm48, %v25, 0
  %52 = vmatprep.subr.mxu0 0.0
  %53 = vmatpush1.msra.mxu0 %v23
  %54 = vmatprep.subr.mxu0 0.0
  %55 = vmatpush1.msra.mxu0 %v24
  %56 = vmatprep.subr.mxu0 0.0
  %57 = vmatpush1.msra.mxu0 %v50
  %58 = vmatprep.subr.mxu0 0.0
  %59 = vmatpush1.msra.mxu0 0.0
  %60 = vmatprep.subr.mxu0 0.0
  %61 = vmatpush1.msra.mxu0 0.0
  %62 = vmatprep.subr.mxu0 0.0
  %63 = vmatpush1.msra.mxu0 0.0
  %64 = vmatprep.subr.mxu0 0.0
  %65 = vmatpush1.msra.mxu0 0.0
  %66 = vmatprep.subr.mxu0 0.0
  %67 = vmatpush1.msra.mxu0 0.0
  %68 = vmatprep.subr.mxu0 0.0
  %69 = vmatpush1.msra.mxu0 0.0
  %70 = vmatprep.subr.mxu0 0.0
  %71 = vmatpush1.msra.mxu0 0.0
  %72 = vmatprep.subr.mxu0 0.0
  %73 = vmatpush1.msra.mxu0 0.0
  %74 = vmatprep.subr.mxu0 0.0
  %75 = vmatpush1.msra.mxu0 0.0
  %76 = vmatprep.subr.mxu0 0.0
  %77 = vmatpush1.msra.mxu0 0.0
  %78 = vmatprep.subr.mxu0 0.0
  %79 = vmatpush1.msra.mxu0 0.0
  %80 = vmatprep.subr.mxu0 0.0
  %81 = vmatpush1.msra.mxu0 0.0
  %82 = vmatprep.subr.mxu0 0.0
  %83 = vmatpush1.msra.mxu0 0.0
  %84 = vmatprep.subr.mxu0 0.0
  %85 = vmatpush1.msra.mxu0 0.0
  %86 = vmatprep.subr.mxu0 0.0
  %87 = vmatpush1.msra.mxu0 0.0
  %88 = vmatprep.subr.mxu0 0.0
  %89 = vmatpush1.msra.mxu0 0.0
  %90 = vmatprep.subr.mxu0 0.0
  %91 = vmatpush1.msra.mxu0 0.0
  %92 = vmatprep.subr.mxu0 0.0
  %93 = vmatpush1.msra.mxu0 0.0
  %94 = vmatprep.subr.mxu0 0.0
  %95 = vmatpush1.msra.mxu0 0.0
  %96 = vmatprep.subr.mxu0 0.0
  %97 = vmatpush1.msra.mxu0 0.0
  %98 = vmatprep.subr.mxu0 0.0
  %99 = vmatpush1.msra.mxu0 0.0
  %100 = vmatprep.subr.mxu0 0.0
  %101 = vmatpush1.msra.mxu0 0.0
  %102 = vmatprep.subr.mxu0 0.0
  %103 = vmatpush1.msra.mxu0 0.0
  %104 = vmatprep.subr.mxu0 0.0
  %105 = vmatpush1.msra.mxu0 0.0
  %106 = vmatprep.subr.mxu0 0.0
  %107 = vmatpush1.msra.mxu0 0.0
  %108 = vmatprep.subr.mxu0 0.0
  %109 = vmatpush1.msra.mxu0 0.0
  %110 = vmatprep.subr.mxu0 0.0
  %111 = vmatpush1.msra.mxu0 0.0
  %112 = vmatprep.subr.mxu0 0.0
  %113 = vmatpush1.msra.mxu0 0.0
  %114 = vmatprep.subr.mxu0 0.0
  %115 = vmatpush1.msra.mxu0 0.0
  %116 = vmatprep.mubr.f32.mxu0 0.0
  %117 = vmatmul.mubr.f32.gmra.mrb[0].mxu0 %v43
  %v118 = vpop.f32.mrb[0].mxu0
  %v119 = vadd.f32 %v39, %v118
  %v120 = vpop.f32.mrb[0].mxu0
  %121 = vmatprep.mubr.f32.mxu0 0.0
  %122 = vmatmul.mubr.f32.gmra.mrb[0].mxu0 %v46
  %v123 = vpop.f32.mrb[0].mxu0
  %v124 = vadd.f32 %v39, %v123
  %v125 = vpop.f32.mrb[0].mxu0
  %126 = vdwg.mxu0
  %v127 = vmax.f32 %v119, 0.0
  %v128 = vmax.f32 %v124, 0.0
  %v130 = vsel %vm41, %v33, 0
  %v133 = vsel %vm41, %v34, 0
  %135 = vmatprep.subr.mxu0 0.0
  %136 = vmatpush1.msra.mxu0 %v23
  %137 = vmatprep.subr.mxu0 0.0
  %138 = vmatpush1.msra.mxu0 %v24
  %139 = vmatprep.subr.mxu0 0.0
  %140 = vmatpush1.msra.mxu0 %v50
  %141 = vmatprep.subr.mxu0 0.0
  %142 = vmatpush1.msra.mxu0 0.0
  %143 = vmatprep.subr.mxu0 0.0
  %144 = vmatpush1.msra.mxu0 0.0
  %145 = vmatprep.subr.mxu0 0.0
  %146 = vmatpush1.msra.mxu0 0.0
  %147 = vmatprep.subr.mxu0 0.0
  %148 = vmatpush1.msra.mxu0 0.0
  %149 = vmatprep.subr.mxu0 0.0
  %150 = vmatpush1.msra.mxu0 0.0
  %151 = vmatprep.subr.mxu0 0.0
  %152 = vmatpush1.msra.mxu0 0.0
  %153 = vmatprep.subr.mxu0 0.0
  %154 = vmatpush1.msra.mxu0 0.0
  %155 = vmatprep.subr.mxu0 0.0
  %156 = vmatpush1.msra.mxu0 0.0
  %157 = vmatprep.subr.mxu0 0.0
  %158 = vmatpush1.msra.mxu0 0.0
  %159 = vmatprep.subr.mxu0 0.0
  %160 = vmatpush1.msra.mxu0 0.0
  %161 = vmatprep.subr.mxu0 0.0
  %162 = vmatpush1.msra.mxu0 0.0
  %163 = vmatprep.subr.mxu0 0.0
  %164 = vmatpush1.msra.mxu0 0.0
  %165 = vmatprep.subr.mxu0 0.0
  %166 = vmatpush1.msra.mxu0 0.0
  %167 = vmatprep.subr.mxu0 0.0
  %168 = vmatpush1.msra.mxu0 0.0
  %169 = vmatprep.subr.mxu0 0.0
  %170 = vmatpush1.msra.mxu0 0.0
  %171 = vmatprep.subr.mxu0 0.0
  %172 = vmatpush1.msra.mxu0 0.0
  %173 = vmatprep.subr.mxu0 0.0
  %174 = vmatpush1.msra.mxu0 0.0
  %175 = vmatprep.subr.mxu0 0.0
  %176 = vmatpush1.msra.mxu0 0.0
  %177 = vmatprep.subr.mxu0 0.0
  %178 = vmatpush1.msra.mxu0 0.0
  %179 = vmatprep.subr.mxu0 0.0
  %180 = vmatpush1.msra.mxu0 0.0
  %181 = vmatprep.subr.mxu0 0.0
  %182 = vmatpush1.msra.mxu0 0.0
  %183 = vmatprep.subr.mxu0 0.0
  %184 = vmatpush1.msra.mxu0 0.0
  %185 = vmatprep.subr.mxu0 0.0
  %186 = vmatpush1.msra.mxu0 0.0
  %187 = vmatprep.subr.mxu0 0.0
  %188 = vmatpush1.msra.mxu0 0.0
  %189 = vmatprep.subr.mxu0 0.0
  %190 = vmatpush1.msra.mxu0 0.0
  %191 = vmatprep.subr.mxu0 0.0
  %192 = vmatpush1.msra.mxu0 0.0
  %193 = vmatprep.subr.mxu0 0.0
  %194 = vmatpush1.msra.mxu0 0.0
  %195 = vmatprep.subr.mxu0 0.0
  %196 = vmatpush1.msra.mxu0 0.0
  %197 = vmatprep.subr.mxu0 0.0
  %198 = vmatpush1.msra.mxu0 0.0
  %199 = vmatprep.mubr.f32.mxu0 0.0
  %200 = vmatmul.mubr.f32.gmra.mrb[0].mxu0 %v130
  %v201 = vpop.f32.mrb[0].mxu0
  %v202 = vadd.f32 %v39, %v201
  %v203 = vpop.f32.mrb[0].mxu0
  %204 = vmatprep.mubr.f32.mxu0 0.0
  %205 = vmatmul.mubr.f32.gmra.mrb[0].mxu0 %v133
  %v206 = vpop.f32.mrb[0].mxu0
  %v207 = vadd.f32 %v39, %v206
  %v208 = vpop.f32.mrb[0].mxu0
  %209 = vdwg.mxu0
  %v210 = vmax.f32 %v202, 0.0
  %v211 = vmax.f32 %v207, 0.0
  %v213 = vlaneseq
  %v214 = vshrl.u32 %v213, 7
  %v215 = vsub.s32 0, %v214
  %v216 = vrot.slane %v30, %v215
  %v219 = vsel %vm48, %v29, 0
  %221 = vmatprep.subr.mxu0 0.0
  %222 = vmatpush1.msra.mxu0 %v27
  %223 = vmatprep.subr.mxu0 0.0
  %224 = vmatpush1.msra.mxu0 %v28
  %225 = vmatprep.subr.mxu0 0.0
  %226 = vmatpush1.msra.mxu0 %v219
  %227 = vmatprep.subr.mxu0 0.0
  %228 = vmatpush1.msra.mxu0 0.0
  %229 = vmatprep.subr.mxu0 0.0
  %230 = vmatpush1.msra.mxu0 0.0
  %231 = vmatprep.subr.mxu0 0.0
  %232 = vmatpush1.msra.mxu0 0.0
  %233 = vmatprep.subr.mxu0 0.0
  %234 = vmatpush1.msra.mxu0 0.0
  %235 = vmatprep.subr.mxu0 0.0
  %236 = vmatpush1.msra.mxu0 0.0
  %237 = vmatprep.subr.mxu0 0.0
  %238 = vmatpush1.msra.mxu0 0.0
  %239 = vmatprep.subr.mxu0 0.0
  %240 = vmatpush1.msra.mxu0 0.0
  %241 = vmatprep.subr.mxu0 0.0
  %242 = vmatpush1.msra.mxu0 0.0
  %243 = vmatprep.subr.mxu0 0.0
  %244 = vmatpush1.msra.mxu0 0.0
  %245 = vmatprep.subr.mxu0 0.0
  %246 = vmatpush1.msra.mxu0 0.0
  %247 = vmatprep.subr.mxu0 0.0
  %248 = vmatpush1.msra.mxu0 0.0
  %249 = vmatprep.subr.mxu0 0.0
  %250 = vmatpush1.msra.mxu0 0.0
  %251 = vmatprep.subr.mxu0 0.0
  %252 = vmatpush1.msra.mxu0 0.0
  %253 = vmatprep.subr.mxu0 0.0
  %254 = vmatpush1.msra.mxu0 0.0
  %255 = vmatprep.subr.mxu0 0.0
  %256 = vmatpush1.msra.mxu0 0.0
  %257 = vmatprep.subr.mxu0 0.0
  %258 = vmatpush1.msra.mxu0 0.0
  %259 = vmatprep.subr.mxu0 0.0
  %260 = vmatpush1.msra.mxu0 0.0
  %261 = vmatprep.subr.mxu0 0.0
  %262 = vmatpush1.msra.mxu0 0.0
  %263 = vmatprep.subr.mxu0 0.0
  %264 = vmatpush1.msra.mxu0 0.0
  %265 = vmatprep.subr.mxu0 0.0
  %266 = vmatpush1.msra.mxu0 0.0
  %267 = vmatprep.subr.mxu0 0.0
  %268 = vmatpush1.msra.mxu0 0.0
  %269 = vmatprep.subr.mxu0 0.0
  %270 = vmatpush1.msra.mxu0 0.0
  %271 = vmatprep.subr.mxu0 0.0
  %272 = vmatpush1.msra.mxu0 0.0
  %273 = vmatprep.subr.mxu0 0.0
  %274 = vmatpush1.msra.mxu0 0.0
  %275 = vmatprep.subr.mxu0 0.0
  %276 = vmatpush1.msra.mxu0 0.0
  %277 = vmatprep.subr.mxu0 0.0
  %278 = vmatpush1.msra.mxu0 0.0
  %279 = vmatprep.subr.mxu0 0.0
  %280 = vmatpush1.msra.mxu0 0.0
  %281 = vmatprep.subr.mxu0 0.0
  %282 = vmatpush1.msra.mxu0 0.0
  %283 = vmatprep.subr.mxu0 0.0
  %284 = vmatpush1.msra.mxu0 0.0
  %285 = vmatprep.mubr.f32.mxu0 0.0
  %286 = vmatmul.mubr.f32.gmra.mrb[0].mxu0 %v43
  %v287 = vpop.f32.mrb[0].mxu0
  %v288 = vadd.f32 %v216, %v287
  %v289 = vpop.f32.mrb[0].mxu0
  %290 = vmatprep.mubr.f32.mxu0 0.0
  %291 = vmatmul.mubr.f32.gmra.mrb[0].mxu0 %v46
  %v292 = vpop.f32.mrb[0].mxu0
  %v293 = vadd.f32 %v216, %v292
  %v294 = vpop.f32.mrb[0].mxu0
  %295 = vdwg.mxu0
  %v296 = vmax.f32 %v288, 0.0
  %v297 = vmax.f32 %v293, 0.0
  %298 = vmatprep.subr.mxu0 0.0
  %299 = vmatpush1.msra.mxu0 %v27
  %300 = vmatprep.subr.mxu0 0.0
  %301 = vmatpush1.msra.mxu0 %v28
  %302 = vmatprep.subr.mxu0 0.0
  %303 = vmatpush1.msra.mxu0 %v219
  %304 = vmatprep.subr.mxu0 0.0
  %305 = vmatpush1.msra.mxu0 0.0
  %306 = vmatprep.subr.mxu0 0.0
  %307 = vmatpush1.msra.mxu0 0.0
  %308 = vmatprep.subr.mxu0 0.0
  %309 = vmatpush1.msra.mxu0 0.0
  %310 = vmatprep.subr.mxu0 0.0
  %311 = vmatpush1.msra.mxu0 0.0
  %312 = vmatprep.subr.mxu0 0.0
  %313 = vmatpush1.msra.mxu0 0.0
  %314 = vmatprep.subr.mxu0 0.0
  %315 = vmatpush1.msra.mxu0 0.0
  %316 = vmatprep.subr.mxu0 0.0
  %317 = vmatpush1.msra.mxu0 0.0
  %318 = vmatprep.subr.mxu0 0.0
  %319 = vmatpush1.msra.mxu0 0.0
  %320 = vmatprep.subr.mxu0 0.0
  %321 = vmatpush1.msra.mxu0 0.0
  %322 = vmatprep.subr.mxu0 0.0
  %323 = vmatpush1.msra.mxu0 0.0
  %324 = vmatprep.subr.mxu0 0.0
  %325 = vmatpush1.msra.mxu0 0.0
  %326 = vmatprep.subr.mxu0 0.0
  %327 = vmatpush1.msra.mxu0 0.0
  %328 = vmatprep.subr.mxu0 0.0
  %329 = vmatpush1.msra.mxu0 0.0
  %330 = vmatprep.subr.mxu0 0.0
  %331 = vmatpush1.msra.mxu0 0.0
  %332 = vmatprep.subr.mxu0 0.0
  %333 = vmatpush1.msra.mxu0 0.0
  %334 = vmatprep.subr.mxu0 0.0
  %335 = vmatpush1.msra.mxu0 0.0
  %336 = vmatprep.subr.mxu0 0.0
  %337 = vmatpush1.msra.mxu0 0.0
  %338 = vmatprep.subr.mxu0 0.0
  %339 = vmatpush1.msra.mxu0 0.0
  %340 = vmatprep.subr.mxu0 0.0
  %341 = vmatpush1.msra.mxu0 0.0
  %342 = vmatprep.subr.mxu0 0.0
  %343 = vmatpush1.msra.mxu0 0.0
  %344 = vmatprep.subr.mxu0 0.0
  %345 = vmatpush1.msra.mxu0 0.0
  %346 = vmatprep.subr.mxu0 0.0
  %347 = vmatpush1.msra.mxu0 0.0
  %348 = vmatprep.subr.mxu0 0.0
  %349 = vmatpush1.msra.mxu0 0.0
  %350 = vmatprep.subr.mxu0 0.0
  %351 = vmatpush1.msra.mxu0 0.0
  %352 = vmatprep.subr.mxu0 0.0
  %353 = vmatpush1.msra.mxu0 0.0
  %354 = vmatprep.subr.mxu0 0.0
  %355 = vmatpush1.msra.mxu0 0.0
  %356 = vmatprep.subr.mxu0 0.0
  %357 = vmatpush1.msra.mxu0 0.0
  %358 = vmatprep.subr.mxu0 0.0
  %359 = vmatpush1.msra.mxu0 0.0
  %360 = vmatprep.subr.mxu0 0.0
  %361 = vmatpush1.msra.mxu0 0.0
  %362 = vmatprep.mubr.f32.mxu0 0.0
  %363 = vmatmul.mubr.f32.gmra.mrb[0].mxu0 %v130
  %v364 = vpop.f32.mrb[0].mxu0
  %v365 = vadd.f32 %v216, %v364
  %v366 = vpop.f32.mrb[0].mxu0
  %367 = vmatprep.mubr.f32.mxu0 0.0
  %368 = vmatmul.mubr.f32.gmra.mrb[0].mxu0 %v133
  %v369 = vpop.f32.mrb[0].mxu0
  %v370 = vadd.f32 %v216, %v369
  %v371 = vpop.f32.mrb[0].mxu0
  %372 = vdwg.mxu0
  %v373 = vmax.f32 %v365, 0.0
  %v374 = vmax.f32 %v370, 0.0
  %375 = vxpose.xlu0.b32.start [1/16] %v127, 128
  %376 = vxpose.xlu0.b32.cont [2/16] %v128, 128
  %377 = vxpose.xlu0.b32.cont [3/16] 0.0, 128
  %378 = vxpose.xlu0.b32.cont [4/16] 0.0, 128
  %379 = vxpose.xlu0.b32.cont [5/16] 0.0, 128
  %380 = vxpose.xlu0.b32.cont [6/16] 0.0, 128
  %381 = vxpose.xlu0.b32.cont [7/16] 0.0, 128
  %382 = vxpose.xlu0.b32.cont [8/16] 0.0, 128
  %383 = vxpose.xlu0.b32.cont [9/16] 0.0, 128
  %384 = vxpose.xlu0.b32.cont [10/16] 0.0, 128
  %385 = vxpose.xlu0.b32.cont [11/16] 0.0, 128
  %386 = vxpose.xlu0.b32.cont [12/16] 0.0, 128
  %387 = vxpose.xlu0.b32.cont [13/16] 0.0, 128
  %388 = vxpose.xlu0.b32.cont [14/16] 0.0, 128
  %389 = vxpose.xlu0.b32.cont [15/16] 0.0, 128
  %390 = vxpose.xlu0.b32.end [16/16] 0.0, 128
  %v391 = vpop.trf.xlu0
  %v392 = vpop.trf.xlu0
  %v393 = vpop.trf.xlu0
  %v394 = vpop.trf.xlu0
  %v395 = vpop.trf.xlu0
  %v396 = vpop.trf.xlu0
  %v397 = vpop.trf.xlu0
  %v398 = vpop.trf.xlu0
  %v399 = vpop.trf.xlu0
  %v400 = vpop.trf.xlu0
  %v401 = vpop.trf.xlu0
  %v402 = vpop.trf.xlu0
  %v403 = vpop.trf.xlu0
  %v404 = vpop.trf.xlu0
  %v405 = vpop.trf.xlu0
  %v406 = vpop.trf.xlu0
  %407 = vxpose.xlu0.b32.start [1/16] %v373, 128
  %408 = vxpose.xlu0.b32.cont [2/16] %v374, 128
  %409 = vxpose.xlu0.b32.cont [3/16] 0.0, 128
  %410 = vxpose.xlu0.b32.cont [4/16] 0.0, 128
  %411 = vxpose.xlu0.b32.cont [5/16] 0.0, 128
  %412 = vxpose.xlu0.b32.cont [6/16] 0.0, 128
  %413 = vxpose.xlu0.b32.cont [7/16] 0.0, 128
  %414 = vxpose.xlu0.b32.cont [8/16] 0.0, 128
  %415 = vxpose.xlu0.b32.cont [9/16] 0.0, 128
  %416 = vxpose.xlu0.b32.cont [10/16] 0.0, 128
  %417 = vxpose.xlu0.b32.cont [11/16] 0.0, 128
  %418 = vxpose.xlu0.b32.cont [12/16] 0.0, 128
  %419 = vxpose.xlu0.b32.cont [13/16] 0.0, 128
  %420 = vxpose.xlu0.b32.cont [14/16] 0.0, 128
  %421 = vxpose.xlu0.b32.cont [15/16] 0.0, 128
  %422 = vxpose.xlu0.b32.end [16/16] 0.0, 128
  %v423 = vpop.trf.xlu0
  %v424 = vpop.trf.xlu0
  %v425 = vpop.trf.xlu0
  %v426 = vpop.trf.xlu0
  %v427 = vpop.trf.xlu0
  %v428 = vpop.trf.xlu0
  %v429 = vpop.trf.xlu0
  %v430 = vpop.trf.xlu0
  %v431 = vpop.trf.xlu0
  %v432 = vpop.trf.xlu0
  %v433 = vpop.trf.xlu0
  %v434 = vpop.trf.xlu0
  %v435 = vpop.trf.xlu0
  %v436 = vpop.trf.xlu0
  %v437 = vpop.trf.xlu0
  %v438 = vpop.trf.xlu0
  %440 = vset.pattern.permute.xlu0 0
  %441 = vperm.xlu0 %440, %v391
  %v442 = vpop.permute.xlu0 %441
  %445 = vset.pattern.permute.xlu0 0
  %446 = vperm.xlu0 %445, %v392
  %v447 = vpop.permute.xlu0 %446
  %450 = vset.pattern.permute.xlu0 0
  %451 = vperm.xlu0 %450, %v393
  %v452 = vpop.permute.xlu0 %451
  %v454 = vlaneseq
  %v455 = vshrl.u32 %v454, 7
  %v456 = vsub.s32 0, %v455
  %v457 = vrot.slane %v210, %v456
  %v458 = vmul.f32 %v442, %v457
  %v459 = vmul.f32 %v447, %v457
  %v460 = vmul.f32 %v452, %v457
  %461 = vset.pattern.permute.xlu0 1
  %462 = vperm.xlu0 %461, %v391
  %v463 = vpop.permute.xlu0 %462
  %465 = vset.pattern.permute.xlu0 1
  %466 = vperm.xlu0 %465, %v392
  %v467 = vpop.permute.xlu0 %466
  %469 = vset.pattern.permute.xlu0 1
  %470 = vperm.xlu0 %469, %v393
  %v471 = vpop.permute.xlu0 %470
  %v473 = vlaneseq
  %v474 = vshrl.u32 %v473, 7
  %v475 = vsub.s32 1, %v474
  %v476 = vrot.slane %v210, %v475
  %v477 = vmul.f32 %v463, %v476
  %v478 = vmul.f32 %v467, %v476
  %v479 = vmul.f32 %v471, %v476
  %480 = vset.pattern.permute.xlu0 2
  %481 = vperm.xlu0 %480, %v391
  %v482 = vpop.permute.xlu0 %481
  %484 = vset.pattern.permute.xlu0 2
  %485 = vperm.xlu0 %484, %v392
  %v486 = vpop.permute.xlu0 %485
  %488 = vset.pattern.permute.xlu0 2
  %489 = vperm.xlu0 %488, %v393
  %v490 = vpop.permute.xlu0 %489
  %v492 = vlaneseq
  %v493 = vshrl.u32 %v492, 7
  %v494 = vsub.s32 2, %v493
  %v495 = vrot.slane %v210, %v494
  %v496 = vmul.f32 %v482, %v495
  %v497 = vmul.f32 %v486, %v495
  %v498 = vmul.f32 %v490, %v495
  %499 = vset.pattern.permute.xlu0 3
  %500 = vperm.xlu0 %499, %v391
  %v501 = vpop.permute.xlu0 %500
  %503 = vset.pattern.permute.xlu0 3
  %504 = vperm.xlu0 %503, %v392
  %v505 = vpop.permute.xlu0 %504
  %507 = vset.pattern.permute.xlu0 3
  %508 = vperm.xlu0 %507, %v393
  %v509 = vpop.permute.xlu0 %508
  %v511 = vlaneseq
  %v512 = vshrl.u32 %v511, 7
  %v513 = vsub.s32 3, %v512
  %v514 = vrot.slane %v210, %v513
  %v515 = vmul.f32 %v501, %v514
  %v516 = vmul.f32 %v505, %v514
  %v517 = vmul.f32 %v509, %v514
  %519 = vset.pattern.permute.xlu0 0
  %520 = vperm.xlu0 %519, %v423
  %v521 = vpop.permute.xlu0 %520
  %524 = vset.pattern.permute.xlu0 0
  %525 = vperm.xlu0 %524, %v424
  %v526 = vpop.permute.xlu0 %525
  %529 = vset.pattern.permute.xlu0 0
  %530 = vperm.xlu0 %529, %v425
  %v531 = vpop.permute.xlu0 %530
  %v533 = vlaneseq
  %v534 = vshrl.u32 %v533, 7
  %v535 = vsub.s32 1, %v534
  %v536 = vrot.slane %v296, %v535
  %v537 = vmul.f32 %v521, %v536
  %v538 = vmul.f32 %v526, %v536
  %v539 = vmul.f32 %v531, %v536
  %540 = vset.pattern.permute.xlu0 1
  %541 = vperm.xlu0 %540, %v423
  %v542 = vpop.permute.xlu0 %541
  %544 = vset.pattern.permute.xlu0 1
  %545 = vperm.xlu0 %544, %v424
  %v546 = vpop.permute.xlu0 %545
  %548 = vset.pattern.permute.xlu0 1
  %549 = vperm.xlu0 %548, %v425
  %v550 = vpop.permute.xlu0 %549
  %v552 = vlaneseq
  %v553 = vshrl.u32 %v552, 7
  %v554 = vsub.s32 2, %v553
  %v555 = vrot.slane %v296, %v554
  %v556 = vmul.f32 %v542, %v555
  %v557 = vmul.f32 %v546, %v555
  %v558 = vmul.f32 %v550, %v555
  %559 = vset.pattern.permute.xlu0 2
  %560 = vperm.xlu0 %559, %v423
  %v561 = vpop.permute.xlu0 %560
  %563 = vset.pattern.permute.xlu0 2
  %564 = vperm.xlu0 %563, %v424
  %v565 = vpop.permute.xlu0 %564
  %567 = vset.pattern.permute.xlu0 2
  %568 = vperm.xlu0 %567, %v425
  %v569 = vpop.permute.xlu0 %568
  %v571 = vlaneseq
  %v572 = vshrl.u32 %v571, 7
  %v573 = vsub.s32 3, %v572
  %v574 = vrot.slane %v296, %v573
  %v575 = vmul.f32 %v561, %v574
  %v576 = vmul.f32 %v565, %v574
  %v577 = vmul.f32 %v569, %v574
  %578 = vset.pattern.permute.xlu0 4
  %579 = vperm.xlu0 %578, %v391
  %v580 = vpop.permute.xlu0 %579
  %582 = vset.pattern.permute.xlu0 4
  %583 = vperm.xlu0 %582, %v392
  %v584 = vpop.permute.xlu0 %583
  %586 = vset.pattern.permute.xlu0 4
  %587 = vperm.xlu0 %586, %v393
  %v588 = vpop.permute.xlu0 %587
  %v590 = vlaneseq
  %v591 = vshrl.u32 %v590, 7
  %v592 = vsub.s32 4, %v591
  %v593 = vrot.slane %v210, %v592
  %v594 = vmul.f32 %v580, %v593
  %v595 = vmul.f32 %v584, %v593
  %v596 = vmul.f32 %v588, %v593
  %597 = vset.pattern.permute.xlu0 5
  %598 = vperm.xlu0 %597, %v391
  %v599 = vpop.permute.xlu0 %598
  %601 = vset.pattern.permute.xlu0 5
  %602 = vperm.xlu0 %601, %v392
  %v603 = vpop.permute.xlu0 %602
  %605 = vset.pattern.permute.xlu0 5
  %606 = vperm.xlu0 %605, %v393
  %v607 = vpop.permute.xlu0 %606
  %v609 = vlaneseq
  %v610 = vshrl.u32 %v609, 7
  %v611 = vsub.s32 5, %v610
  %v612 = vrot.slane %v210, %v611
  %v613 = vmul.f32 %v599, %v612
  %v614 = vmul.f32 %v603, %v612
  %v615 = vmul.f32 %v607, %v612
  %616 = vset.pattern.permute.xlu0 6
  %617 = vperm.xlu0 %616, %v391
  %v618 = vpop.permute.xlu0 %617
  %620 = vset.pattern.permute.xlu0 6
  %621 = vperm.xlu0 %620, %v392
  %v622 = vpop.permute.xlu0 %621
  %624 = vset.pattern.permute.xlu0 6
  %625 = vperm.xlu0 %624, %v393
  %v626 = vpop.permute.xlu0 %625
  %v628 = vlaneseq
  %v629 = vshrl.u32 %v628, 7
  %v630 = vsub.s32 6, %v629
  %v631 = vrot.slane %v210, %v630
  %v632 = vmul.f32 %v618, %v631
  %v633 = vmul.f32 %v622, %v631
  %v634 = vmul.f32 %v626, %v631
  %635 = vset.pattern.permute.xlu0 7
  %636 = vperm.xlu0 %635, %v391
  %v637 = vpop.permute.xlu0 %636
  %639 = vset.pattern.permute.xlu0 7
  %640 = vperm.xlu0 %639, %v392
  %v641 = vpop.permute.xlu0 %640
  %643 = vset.pattern.permute.xlu0 7
  %644 = vperm.xlu0 %643, %v393
  %v645 = vpop.permute.xlu0 %644
  %v647 = vlaneseq
  %v648 = vshrl.u32 %v647, 7
  %v649 = vsub.s32 7, %v648
  %v650 = vrot.slane %v210, %v649
  %v651 = vmul.f32 %v637, %v650
  %v652 = vmul.f32 %v641, %v650
  %v653 = vmul.f32 %v645, %v650
  %654 = vset.pattern.permute.xlu0 4
  %655 = vperm.xlu0 %654, %v423
  %v656 = vpop.permute.xlu0 %655
  %658 = vset.pattern.permute.xlu0 4
  %659 = vperm.xlu0 %658, %v424
  %v660 = vpop.permute.xlu0 %659
  %662 = vset.pattern.permute.xlu0 4
  %663 = vperm.xlu0 %662, %v425
  %v664 = vpop.permute.xlu0 %663
  %v666 = vlaneseq
  %v667 = vshrl.u32 %v666, 7
  %v668 = vsub.s32 5, %v667
  %v669 = vrot.slane %v296, %v668
  %v670 = vmul.f32 %v656, %v669
  %v671 = vmul.f32 %v660, %v669
  %v672 = vmul.f32 %v664, %v669
  %673 = vset.pattern.permute.xlu0 5
  %674 = vperm.xlu0 %673, %v423
  %v675 = vpop.permute.xlu0 %674
  %677 = vset.pattern.permute.xlu0 5
  %678 = vperm.xlu0 %677, %v424
  %v679 = vpop.permute.xlu0 %678
  %681 = vset.pattern.permute.xlu0 5
  %682 = vperm.xlu0 %681, %v425
  %v683 = vpop.permute.xlu0 %682
  %v685 = vlaneseq
  %v686 = vshrl.u32 %v685, 7
  %v687 = vsub.s32 6, %v686
  %v688 = vrot.slane %v296, %v687
  %v689 = vmul.f32 %v675, %v688
  %v690 = vmul.f32 %v679, %v688
  %v691 = vmul.f32 %v683, %v688
  %692 = vset.pattern.permute.xlu0 6
  %693 = vperm.xlu0 %692, %v423
  %v694 = vpop.permute.xlu0 %693
  %696 = vset.pattern.permute.xlu0 6
  %697 = vperm.xlu0 %696, %v424
  %v698 = vpop.permute.xlu0 %697
  %700 = vset.pattern.permute.xlu0 6
  %701 = vperm.xlu0 %700, %v425
  %v702 = vpop.permute.xlu0 %701
  %v704 = vlaneseq
  %v705 = vshrl.u32 %v704, 7
  %v706 = vsub.s32 7, %v705
  %v707 = vrot.slane %v296, %v706
  %v708 = vmul.f32 %v694, %v707
  %v709 = vmul.f32 %v698, %v707
  %v710 = vmul.f32 %v702, %v707
  %711 = vset.pattern.permute.xlu0 8
  %712 = vperm.xlu0 %711, %v391
  %v713 = vpop.permute.xlu0 %712
  %715 = vset.pattern.permute.xlu0 8
  %716 = vperm.xlu0 %715, %v392
  %v717 = vpop.permute.xlu0 %716
  %719 = vset.pattern.permute.xlu0 8
  %720 = vperm.xlu0 %719, %v393
  %v721 = vpop.permute.xlu0 %720
  %v723 = vlaneseq
  %v724 = vshrl.u32 %v723, 7
  %v725 = vsub.s32 0, %v724
  %v726 = vrot.slane %v211, %v725
  %v727 = vmul.f32 %v713, %v726
  %v728 = vmul.f32 %v717, %v726
  %v729 = vmul.f32 %v721, %v726
  %730 = vset.pattern.permute.xlu0 9
  %731 = vperm.xlu0 %730, %v391
  %v732 = vpop.permute.xlu0 %731
  %734 = vset.pattern.permute.xlu0 9
  %735 = vperm.xlu0 %734, %v392
  %v736 = vpop.permute.xlu0 %735
  %738 = vset.pattern.permute.xlu0 9
  %739 = vperm.xlu0 %738, %v393
  %v740 = vpop.permute.xlu0 %739
  %v742 = vlaneseq
  %v743 = vshrl.u32 %v742, 7
  %v744 = vsub.s32 1, %v743
  %v745 = vrot.slane %v211, %v744
  %v746 = vmul.f32 %v732, %v745
  %v747 = vmul.f32 %v736, %v745
  %v748 = vmul.f32 %v740, %v745
  %749 = vset.pattern.permute.xlu0 10
  %750 = vperm.xlu0 %749, %v391
  %v751 = vpop.permute.xlu0 %750
  %753 = vset.pattern.permute.xlu0 10
  %754 = vperm.xlu0 %753, %v392
  %v755 = vpop.permute.xlu0 %754
  %757 = vset.pattern.permute.xlu0 10
  %758 = vperm.xlu0 %757, %v393
  %v759 = vpop.permute.xlu0 %758
  %v761 = vlaneseq
  %v762 = vshrl.u32 %v761, 7
  %v763 = vsub.s32 2, %v762
  %v764 = vrot.slane %v211, %v763
  %v765 = vmul.f32 %v751, %v764
  %v766 = vmul.f32 %v755, %v764
  %v767 = vmul.f32 %v759, %v764
  %768 = vset.pattern.permute.xlu0 11
  %769 = vperm.xlu0 %768, %v391
  %v770 = vpop.permute.xlu0 %769
  %772 = vset.pattern.permute.xlu0 11
  %773 = vperm.xlu0 %772, %v392
  %v774 = vpop.permute.xlu0 %773
  %776 = vset.pattern.permute.xlu0 11
  %777 = vperm.xlu0 %776, %v393
  %v778 = vpop.permute.xlu0 %777
  %v780 = vlaneseq
  %v781 = vshrl.u32 %v780, 7
  %v782 = vsub.s32 3, %v781
  %v783 = vrot.slane %v211, %v782
  %v784 = vmul.f32 %v770, %v783
  %v785 = vmul.f32 %v774, %v783
  %v786 = vmul.f32 %v778, %v783
  %787 = vset.pattern.permute.xlu0 8
  %788 = vperm.xlu0 %787, %v423
  %v789 = vpop.permute.xlu0 %788
  %791 = vset.pattern.permute.xlu0 8
  %792 = vperm.xlu0 %791, %v424
  %v793 = vpop.permute.xlu0 %792
  %795 = vset.pattern.permute.xlu0 8
  %796 = vperm.xlu0 %795, %v425
  %v797 = vpop.permute.xlu0 %796
  %v799 = vlaneseq
  %v800 = vshrl.u32 %v799, 7
  %v801 = vsub.s32 1, %v800
  %v802 = vrot.slane %v297, %v801
  %v803 = vmul.f32 %v789, %v802
  %v804 = vmul.f32 %v793, %v802
  %v805 = vmul.f32 %v797, %v802
  %806 = vset.pattern.permute.xlu0 9
  %807 = vperm.xlu0 %806, %v423
  %v808 = vpop.permute.xlu0 %807
  %810 = vset.pattern.permute.xlu0 9
  %811 = vperm.xlu0 %810, %v424
  %v812 = vpop.permute.xlu0 %811
  %814 = vset.pattern.permute.xlu0 9
  %815 = vperm.xlu0 %814, %v425
  %v816 = vpop.permute.xlu0 %815
  %v818 = vlaneseq
  %v819 = vshrl.u32 %v818, 7
  %v820 = vsub.s32 2, %v819
  %v821 = vrot.slane %v297, %v820
  %v822 = vmul.f32 %v808, %v821
  %v823 = vmul.f32 %v812, %v821
  %v824 = vmul.f32 %v816, %v821
  %825 = vset.pattern.permute.xlu0 10
  %826 = vperm.xlu0 %825, %v423
  %v827 = vpop.permute.xlu0 %826
  %829 = vset.pattern.permute.xlu0 10
  %830 = vperm.xlu0 %829, %v424
  %v831 = vpop.permute.xlu0 %830
  %833 = vset.pattern.permute.xlu0 10
  %834 = vperm.xlu0 %833, %v425
  %v835 = vpop.permute.xlu0 %834
  %v837 = vlaneseq
  %v838 = vshrl.u32 %v837, 7
  %v839 = vsub.s32 3, %v838
  %v840 = vrot.slane %v297, %v839
  %v841 = vmul.f32 %v827, %v840
  %v842 = vmul.f32 %v831, %v840
  %v843 = vmul.f32 %v835, %v840
  %s844 = scalar_lea.vmem %s0, 16
  %v845 = vld [vmem:[%s844] sm:$0xff]
  %v846 = vld [vmem:[%s844 + $0x8] sm:$0xf]
  %s847 = scalar_lea.vmem %s1, 16
  %v848 = vld [vmem:[%s847] sm:$0xff]
  %v849 = vld [vmem:[%s847 + $0x8] sm:$0xf]
  %v851 = vsel %vm41, %v845, 0
  %v854 = vsel %vm41, %v846, 0
  %856 = vmatprep.subr.mxu0 0.0
  %857 = vmatpush1.msra.mxu0 %v23
  %858 = vmatprep.subr.mxu0 0.0
  %859 = vmatpush1.msra.mxu0 %v24
  %860 = vmatprep.subr.mxu0 0.0
  %861 = vmatpush1.msra.mxu0 %v50
  %862 = vmatprep.subr.mxu0 0.0
  %863 = vmatpush1.msra.mxu0 0.0
  %864 = vmatprep.subr.mxu0 0.0
  %865 = vmatpush1.msra.mxu0 0.0
  %866 = vmatprep.subr.mxu0 0.0
  %867 = vmatpush1.msra.mxu0 0.0
  %868 = vmatprep.subr.mxu0 0.0
  %869 = vmatpush1.msra.mxu0 0.0
  %870 = vmatprep.subr.mxu0 0.0
  %871 = vmatpush1.msra.mxu0 0.0
  %872 = vmatprep.subr.mxu0 0.0
  %873 = vmatpush1.msra.mxu0 0.0
  %874 = vmatprep.subr.mxu0 0.0
  %875 = vmatpush1.msra.mxu0 0.0
  %876 = vmatprep.subr.mxu0 0.0
  %877 = vmatpush1.msra.mxu0 0.0
  %878 = vmatprep.subr.mxu0 0.0
  %879 = vmatpush1.msra.mxu0 0.0
  %880 = vmatprep.subr.mxu0 0.0
  %881 = vmatpush1.msra.mxu0 0.0
  %882 = vmatprep.subr.mxu0 0.0
  %883 = vmatpush1.msra.mxu0 0.0
  %884 = vmatprep.subr.mxu0 0.0
  %885 = vmatpush1.msra.mxu0 0.0
  %886 = vmatprep.subr.mxu0 0.0
  %887 = vmatpush1.msra.mxu0 0.0
  %888 = vmatprep.subr.mxu0 0.0
  %889 = vmatpush1.msra.mxu0 0.0
  %890 = vmatprep.subr.mxu0 0.0
  %891 = vmatpush1.msra.mxu0 0.0
  %892 = vmatprep.subr.mxu0 0.0
  %893 = vmatpush1.msra.mxu0 0.0
  %894 = vmatprep.subr.mxu0 0.0
  %895 = vmatpush1.msra.mxu0 0.0
  %896 = vmatprep.subr.mxu0 0.0
  %897 = vmatpush1.msra.mxu0 0.0
  %898 = vmatprep.subr.mxu0 0.0
  %899 = vmatpush1.msra.mxu0 0.0
  %900 = vmatprep.subr.mxu0 0.0
  %901 = vmatpush1.msra.mxu0 0.0
  %902 = vmatprep.subr.mxu0 0.0
  %903 = vmatpush1.msra.mxu0 0.0
  %904 = vmatprep.subr.mxu0 0.0
  %905 = vmatpush1.msra.mxu0 0.0
  %906 = vmatprep.subr.mxu0 0.0
  %907 = vmatpush1.msra.mxu0 0.0
  %908 = vmatprep.subr.mxu0 0.0
  %909 = vmatpush1.msra.mxu0 0.0
  %910 = vmatprep.subr.mxu0 0.0
  %911 = vmatpush1.msra.mxu0 0.0
  %912 = vmatprep.subr.mxu0 0.0
  %913 = vmatpush1.msra.mxu0 0.0
  %914 = vmatprep.subr.mxu0 0.0
  %915 = vmatpush1.msra.mxu0 0.0
  %916 = vmatprep.subr.mxu0 0.0
  %917 = vmatpush1.msra.mxu0 0.0
  %918 = vmatprep.subr.mxu0 0.0
  %919 = vmatpush1.msra.mxu0 0.0
  %920 = vmatprep.mubr.f32.mxu0 0.0
  %921 = vmatmul.mubr.f32.gmra.mrb[0].mxu0 %v851
  %v922 = vpop.f32.mrb[0].mxu0
  %v923 = vadd.f32 %v39, %v922
  %v924 = vpop.f32.mrb[0].mxu0
  %925 = vmatprep.mubr.f32.mxu0 0.0
  %926 = vmatmul.mubr.f32.gmra.mrb[0].mxu0 %v854
  %v927 = vpop.f32.mrb[0].mxu0
  %v928 = vadd.f32 %v39, %v927
  %v929 = vpop.f32.mrb[0].mxu0
  %930 = vdwg.mxu0
  %v931 = vmax.f32 %v923, 0.0
  %v932 = vmax.f32 %v928, 0.0
  %v934 = vsel %vm41, %v848, 0
  %v937 = vsel %vm41, %v849, 0
  %939 = vmatprep.subr.mxu0 0.0
  %940 = vmatpush1.msra.mxu0 %v23
  %941 = vmatprep.subr.mxu0 0.0
  %942 = vmatpush1.msra.mxu0 %v24
  %943 = vmatprep.subr.mxu0 0.0
  %944 = vmatpush1.msra.mxu0 %v50
  %945 = vmatprep.subr.mxu0 0.0
  %946 = vmatpush1.msra.mxu0 0.0
  %947 = vmatprep.subr.mxu0 0.0
  %948 = vmatpush1.msra.mxu0 0.0
  %949 = vmatprep.subr.mxu0 0.0
  %950 = vmatpush1.msra.mxu0 0.0
  %951 = vmatprep.subr.mxu0 0.0
  %952 = vmatpush1.msra.mxu0 0.0
  %953 = vmatprep.subr.mxu0 0.0
  %954 = vmatpush1.msra.mxu0 0.0
  %955 = vmatprep.subr.mxu0 0.0
  %956 = vmatpush1.msra.mxu0 0.0
  %957 = vmatprep.subr.mxu0 0.0
  %958 = vmatpush1.msra.mxu0 0.0
  %959 = vmatprep.subr.mxu0 0.0
  %960 = vmatpush1.msra.mxu0 0.0
  %961 = vmatprep.subr.mxu0 0.0
  %962 = vmatpush1.msra.mxu0 0.0
  %963 = vmatprep.subr.mxu0 0.0
  %964 = vmatpush1.msra.mxu0 0.0
  %965 = vmatprep.subr.mxu0 0.0
  %966 = vmatpush1.msra.mxu0 0.0
  %967 = vmatprep.subr.mxu0 0.0
  %968 = vmatpush1.msra.mxu0 0.0
  %969 = vmatprep.subr.mxu0 0.0
  %970 = vmatpush1.msra.mxu0 0.0
  %971 = vmatprep.subr.mxu0 0.0
  %972 = vmatpush1.msra.mxu0 0.0
  %973 = vmatprep.subr.mxu0 0.0
  %974 = vmatpush1.msra.mxu0 0.0
  %975 = vmatprep.subr.mxu0 0.0
  %976 = vmatpush1.msra.mxu0 0.0
  %977 = vmatprep.subr.mxu0 0.0
  %978 = vmatpush1.msra.mxu0 0.0
  %979 = vmatprep.subr.mxu0 0.0
  %980 = vmatpush1.msra.mxu0 0.0
  %981 = vmatprep.subr.mxu0 0.0
  %982 = vmatpush1.msra.mxu0 0.0
  %983 = vmatprep.subr.mxu0 0.0
  %984 = vmatpush1.msra.mxu0 0.0
  %985 = vmatprep.subr.mxu0 0.0
  %986 = vmatpush1.msra.mxu0 0.0
  %987 = vmatprep.subr.mxu0 0.0
  %988 = vmatpush1.msra.mxu0 0.0
  %989 = vmatprep.subr.mxu0 0.0
  %990 = vmatpush1.msra.mxu0 0.0
  %991 = vmatprep.subr.mxu0 0.0
  %992 = vmatpush1.msra.mxu0 0.0
  %993 = vmatprep.subr.mxu0 0.0
  %994 = vmatpush1.msra.mxu0 0.0
  %995 = vmatprep.subr.mxu0 0.0
  %996 = vmatpush1.msra.mxu0 0.0
  %997 = vmatprep.subr.mxu0 0.0
  %998 = vmatpush1.msra.mxu0 0.0
  %999 = vmatprep.subr.mxu0 0.0
  %1000 = vmatpush1.msra.mxu0 0.0
  %1001 = vmatprep.subr.mxu0 0.0
  %1002 = vmatpush1.msra.mxu0 0.0
  %1003 = vmatprep.mubr.f32.mxu0 0.0
  %1004 = vmatmul.mubr.f32.gmra.mrb[0].mxu0 %v934
  %v1005 = vpop.f32.mrb[0].mxu0
  %v1006 = vadd.f32 %v39, %v1005
  %v1007 = vpop.f32.mrb[0].mxu0
  %1008 = vmatprep.mubr.f32.mxu0 0.0
  %1009 = vmatmul.mubr.f32.gmra.mrb[0].mxu0 %v937
  %v1010 = vpop.f32.mrb[0].mxu0
  %v1011 = vadd.f32 %v39, %v1010
  %v1012 = vpop.f32.mrb[0].mxu0
  %1013 = vdwg.mxu0
  %v1014 = vmax.f32 %v1006, 0.0
  %v1015 = vmax.f32 %v1011, 0.0
  %1016 = vmatprep.subr.mxu0 0.0
  %1017 = vmatpush1.msra.mxu0 %v27
  %1018 = vmatprep.subr.mxu0 0.0
  %1019 = vmatpush1.msra.mxu0 %v28
  %1020 = vmatprep.subr.mxu0 0.0
  %1021 = vmatpush1.msra.mxu0 %v219
  %1022 = vmatprep.subr.mxu0 0.0
  %1023 = vmatpush1.msra.mxu0 0.0
  %1024 = vmatprep.subr.mxu0 0.0
  %1025 = vmatpush1.msra.mxu0 0.0
  %1026 = vmatprep.subr.mxu0 0.0
  %1027 = vmatpush1.msra.mxu0 0.0
  %1028 = vmatprep.subr.mxu0 0.0
  %1029 = vmatpush1.msra.mxu0 0.0
  %1030 = vmatprep.subr.mxu0 0.0
  %1031 = vmatpush1.msra.mxu0 0.0
  %1032 = vmatprep.subr.mxu0 0.0
  %1033 = vmatpush1.msra.mxu0 0.0
  %1034 = vmatprep.subr.mxu0 0.0
  %1035 = vmatpush1.msra.mxu0 0.0
  %1036 = vmatprep.subr.mxu0 0.0
  %1037 = vmatpush1.msra.mxu0 0.0
  %1038 = vmatprep.subr.mxu0 0.0
  %1039 = vmatpush1.msra.mxu0 0.0
  %1040 = vmatprep.subr.mxu0 0.0
  %1041 = vmatpush1.msra.mxu0 0.0
  %1042 = vmatprep.subr.mxu0 0.0
  %1043 = vmatpush1.msra.mxu0 0.0
  %1044 = vmatprep.subr.mxu0 0.0
  %1045 = vmatpush1.msra.mxu0 0.0
  %1046 = vmatprep.subr.mxu0 0.0
  %1047 = vmatpush1.msra.mxu0 0.0
  %1048 = vmatprep.subr.mxu0 0.0
  %1049 = vmatpush1.msra.mxu0 0.0
  %1050 = vmatprep.subr.mxu0 0.0
  %1051 = vmatpush1.msra.mxu0 0.0
  %1052 = vmatprep.subr.mxu0 0.0
  %1053 = vmatpush1.msra.mxu0 0.0
  %1054 = vmatprep.subr.mxu0 0.0
  %1055 = vmatpush1.msra.mxu0 0.0
  %1056 = vmatprep.subr.mxu0 0.0
  %1057 = vmatpush1.msra.mxu0 0.0
  %1058 = vmatprep.subr.mxu0 0.0
  %1059 = vmatpush1.msra.mxu0 0.0
  %1060 = vmatprep.subr.mxu0 0.0
  %1061 = vmatpush1.msra.mxu0 0.0
  %1062 = vmatprep.subr.mxu0 0.0
  %1063 = vmatpush1.msra.mxu0 0.0
  %1064 = vmatprep.subr.mxu0 0.0
  %1065 = vmatpush1.msra.mxu0 0.0
  %1066 = vmatprep.subr.mxu0 0.0
  %1067 = vmatpush1.msra.mxu0 0.0
  %1068 = vmatprep.subr.mxu0 0.0
  %1069 = vmatpush1.msra.mxu0 0.0
  %1070 = vmatprep.subr.mxu0 0.0
  %1071 = vmatpush1.msra.mxu0 0.0
  %1072 = vmatprep.subr.mxu0 0.0
  %1073 = vmatpush1.msra.mxu0 0.0
  %1074 = vmatprep.subr.mxu0 0.0
  %1075 = vmatpush1.msra.mxu0 0.0
  %1076 = vmatprep.subr.mxu0 0.0
  %1077 = vmatpush1.msra.mxu0 0.0
  %1078 = vmatprep.subr.mxu0 0.0
  %1079 = vmatpush1.msra.mxu0 0.0
  %1080 = vmatprep.mubr.f32.mxu0 0.0
  %1081 = vmatmul.mubr.f32.gmra.mrb[0].mxu0 %v851
  %v1082 = vpop.f32.mrb[0].mxu0
  %v1083 = vadd.f32 %v216, %v1082
  %v1084 = vpop.f32.mrb[0].mxu0
  %1085 = vmatprep.mubr.f32.mxu0 0.0
  %1086 = vmatmul.mubr.f32.gmra.mrb[0].mxu0 %v854
  %v1087 = vpop.f32.mrb[0].mxu0
  %v1088 = vadd.f32 %v216, %v1087
  %v1089 = vpop.f32.mrb[0].mxu0
  %1090 = vdwg.mxu0
  %v1091 = vmax.f32 %v1083, 0.0
  %v1092 = vmax.f32 %v1088, 0.0
  %1093 = vmatprep.subr.mxu0 0.0
  %1094 = vmatpush1.msra.mxu0 %v27
  %1095 = vmatprep.subr.mxu0 0.0
  %1096 = vmatpush1.msra.mxu0 %v28
  %1097 = vmatprep.subr.mxu0 0.0
  %1098 = vmatpush1.msra.mxu0 %v219
  %1099 = vmatprep.subr.mxu0 0.0
  %1100 = vmatpush1.msra.mxu0 0.0
  %1101 = vmatprep.subr.mxu0 0.0
  %1102 = vmatpush1.msra.mxu0 0.0
  %1103 = vmatprep.subr.mxu0 0.0
  %1104 = vmatpush1.msra.mxu0 0.0
  %1105 = vmatprep.subr.mxu0 0.0
  %1106 = vmatpush1.msra.mxu0 0.0
  %1107 = vmatprep.subr.mxu0 0.0
  %1108 = vmatpush1.msra.mxu0 0.0
  %1109 = vmatprep.subr.mxu0 0.0
  %1110 = vmatpush1.msra.mxu0 0.0
  %1111 = vmatprep.subr.mxu0 0.0
  %1112 = vmatpush1.msra.mxu0 0.0
  %1113 = vmatprep.subr.mxu0 0.0
  %1114 = vmatpush1.msra.mxu0 0.0
  %1115 = vmatprep.subr.mxu0 0.0
  %1116 = vmatpush1.msra.mxu0 0.0
  %1117 = vmatprep.subr.mxu0 0.0
  %1118 = vmatpush1.msra.mxu0 0.0
  %1119 = vmatprep.subr.mxu0 0.0
  %1120 = vmatpush1.msra.mxu0 0.0
  %1121 = vmatprep.subr.mxu0 0.0
  %1122 = vmatpush1.msra.mxu0 0.0
  %1123 = vmatprep.subr.mxu0 0.0
  %1124 = vmatpush1.msra.mxu0 0.0
  %1125 = vmatprep.subr.mxu0 0.0
  %1126 = vmatpush1.msra.mxu0 0.0
  %1127 = vmatprep.subr.mxu0 0.0
  %1128 = vmatpush1.msra.mxu0 0.0
  %1129 = vmatprep.subr.mxu0 0.0
  %1130 = vmatpush1.msra.mxu0 0.0
  %1131 = vmatprep.subr.mxu0 0.0
  %1132 = vmatpush1.msra.mxu0 0.0
  %1133 = vmatprep.subr.mxu0 0.0
  %1134 = vmatpush1.msra.mxu0 0.0
  %1135 = vmatprep.subr.mxu0 0.0
  %1136 = vmatpush1.msra.mxu0 0.0
  %1137 = vmatprep.subr.mxu0 0.0
  %1138 = vmatpush1.msra.mxu0 0.0
  %1139 = vmatprep.subr.mxu0 0.0
  %1140 = vmatpush1.msra.mxu0 0.0
  %1141 = vmatprep.subr.mxu0 0.0
  %1142 = vmatpush1.msra.mxu0 0.0
  %1143 = vmatprep.subr.mxu0 0.0
  %1144 = vmatpush1.msra.mxu0 0.0
  %1145 = vmatprep.subr.mxu0 0.0
  %1146 = vmatpush1.msra.mxu0 0.0
  %1147 = vmatprep.subr.mxu0 0.0
  %1148 = vmatpush1.msra.mxu0 0.0
  %1149 = vmatprep.subr.mxu0 0.0
  %1150 = vmatpush1.msra.mxu0 0.0
  %1151 = vmatprep.subr.mxu0 0.0
  %1152 = vmatpush1.msra.mxu0 0.0
  %1153 = vmatprep.subr.mxu0 0.0
  %1154 = vmatpush1.msra.mxu0 0.0
  %1155 = vmatprep.subr.mxu0 0.0
  %1156 = vmatpush1.msra.mxu0 0.0
  %1157 = vmatprep.mubr.f32.mxu0 0.0
  %1158 = vmatmul.mubr.f32.gmra.mrb[0].mxu0 %v934
  %v1159 = vpop.f32.mrb[0].mxu0
  %v1160 = vadd.f32 %v216, %v1159
  %v1161 = vpop.f32.mrb[0].mxu0
  %1162 = vmatprep.mubr.f32.mxu0 0.0
  %1163 = vmatmul.mubr.f32.gmra.mrb[0].mxu0 %v937
  %v1164 = vpop.f32.mrb[0].mxu0
  %v1165 = vadd.f32 %v216, %v1164
  %v1166 = vpop.f32.mrb[0].mxu0
  %1167 = vdwg.mxu0
  %v1168 = vmax.f32 %v1160, 0.0
  %v1169 = vmax.f32 %v1165, 0.0
  %1170 = vxpose.xlu0.b32.start [1/16] %v931, 128
  %1171 = vxpose.xlu0.b32.cont [2/16] %v932, 128
  %1172 = vxpose.xlu0.b32.cont [3/16] 0.0, 128
  %1173 = vxpose.xlu0.b32.cont [4/16] 0.0, 128
  %1174 = vxpose.xlu0.b32.cont [5/16] 0.0, 128
  %1175 = vxpose.xlu0.b32.cont [6/16] 0.0, 128
  %1176 = vxpose.xlu0.b32.cont [7/16] 0.0, 128
  %1177 = vxpose.xlu0.b32.cont [8/16] 0.0, 128
  %1178 = vxpose.xlu0.b32.cont [9/16] 0.0, 128
  %1179 = vxpose.xlu0.b32.cont [10/16] 0.0, 128
  %1180 = vxpose.xlu0.b32.cont [11/16] 0.0, 128
  %1181 = vxpose.xlu0.b32.cont [12/16] 0.0, 128
  %1182 = vxpose.xlu0.b32.cont [13/16] 0.0, 128
  %1183 = vxpose.xlu0.b32.cont [14/16] 0.0, 128
  %1184 = vxpose.xlu0.b32.cont [15/16] 0.0, 128
  %1185 = vxpose.xlu0.b32.end [16/16] 0.0, 128
  %v1186 = vpop.trf.xlu0
  %v1187 = vpop.trf.xlu0
  %v1188 = vpop.trf.xlu0
  %v1189 = vpop.trf.xlu0
  %v1190 = vpop.trf.xlu0
  %v1191 = vpop.trf.xlu0
  %v1192 = vpop.trf.xlu0
  %v1193 = vpop.trf.xlu0
  %v1194 = vpop.trf.xlu0
  %v1195 = vpop.trf.xlu0
  %v1196 = vpop.trf.xlu0
  %v1197 = vpop.trf.xlu0
  %v1198 = vpop.trf.xlu0
  %v1199 = vpop.trf.xlu0
  %v1200 = vpop.trf.xlu0
  %v1201 = vpop.trf.xlu0
  %1202 = vxpose.xlu0.b32.start [1/16] %v1168, 128
  %1203 = vxpose.xlu0.b32.cont [2/16] %v1169, 128
  %1204 = vxpose.xlu0.b32.cont [3/16] 0.0, 128
  %1205 = vxpose.xlu0.b32.cont [4/16] 0.0, 128
  %1206 = vxpose.xlu0.b32.cont [5/16] 0.0, 128
  %1207 = vxpose.xlu0.b32.cont [6/16] 0.0, 128
  %1208 = vxpose.xlu0.b32.cont [7/16] 0.0, 128
  %1209 = vxpose.xlu0.b32.cont [8/16] 0.0, 128
  %1210 = vxpose.xlu0.b32.cont [9/16] 0.0, 128
  %1211 = vxpose.xlu0.b32.cont [10/16] 0.0, 128
  %1212 = vxpose.xlu0.b32.cont [11/16] 0.0, 128
  %1213 = vxpose.xlu0.b32.cont [12/16] 0.0, 128
  %1214 = vxpose.xlu0.b32.cont [13/16] 0.0, 128
  %1215 = vxpose.xlu0.b32.cont [14/16] 0.0, 128
  %1216 = vxpose.xlu0.b32.cont [15/16] 0.0, 128
  %1217 = vxpose.xlu0.b32.end [16/16] 0.0, 128
  %v1218 = vpop.trf.xlu0
  %v1219 = vpop.trf.xlu0
  %v1220 = vpop.trf.xlu0
  %v1221 = vpop.trf.xlu0
  %v1222 = vpop.trf.xlu0
  %v1223 = vpop.trf.xlu0
  %v1224 = vpop.trf.xlu0
  %v1225 = vpop.trf.xlu0
  %v1226 = vpop.trf.xlu0
  %v1227 = vpop.trf.xlu0
  %v1228 = vpop.trf.xlu0
  %v1229 = vpop.trf.xlu0
  %v1230 = vpop.trf.xlu0
  %v1231 = vpop.trf.xlu0
  %v1232 = vpop.trf.xlu0
  %v1233 = vpop.trf.xlu0
  %1235 = vset.pattern.permute.xlu0 0
  %1236 = vperm.xlu0 %1235, %v1186
  %v1237 = vpop.permute.xlu0 %1236
  %1240 = vset.pattern.permute.xlu0 0
  %1241 = vperm.xlu0 %1240, %v1187
  %v1242 = vpop.permute.xlu0 %1241
  %1245 = vset.pattern.permute.xlu0 0
  %1246 = vperm.xlu0 %1245, %v1188
  %v1247 = vpop.permute.xlu0 %1246
  %v1249 = vlaneseq
  %v1250 = vshrl.u32 %v1249, 7
  %v1251 = vsub.s32 0, %v1250
  %v1252 = vrot.slane %v1014, %v1251
  %v1253 = vmul.f32 %v1237, %v1252
  %v1254 = vmul.f32 %v1242, %v1252
  %v1255 = vmul.f32 %v1247, %v1252
  %1256 = vset.pattern.permute.xlu0 1
  %1257 = vperm.xlu0 %1256, %v1186
  %v1258 = vpop.permute.xlu0 %1257
  %1260 = vset.pattern.permute.xlu0 1
  %1261 = vperm.xlu0 %1260, %v1187
  %v1262 = vpop.permute.xlu0 %1261
  %1264 = vset.pattern.permute.xlu0 1
  %1265 = vperm.xlu0 %1264, %v1188
  %v1266 = vpop.permute.xlu0 %1265
  %v1268 = vlaneseq
  %v1269 = vshrl.u32 %v1268, 7
  %v1270 = vsub.s32 1, %v1269
  %v1271 = vrot.slane %v1014, %v1270
  %v1272 = vmul.f32 %v1258, %v1271
  %v1273 = vmul.f32 %v1262, %v1271
  %v1274 = vmul.f32 %v1266, %v1271
  %1275 = vset.pattern.permute.xlu0 2
  %1276 = vperm.xlu0 %1275, %v1186
  %v1277 = vpop.permute.xlu0 %1276
  %1279 = vset.pattern.permute.xlu0 2
  %1280 = vperm.xlu0 %1279, %v1187
  %v1281 = vpop.permute.xlu0 %1280
  %1283 = vset.pattern.permute.xlu0 2
  %1284 = vperm.xlu0 %1283, %v1188
  %v1285 = vpop.permute.xlu0 %1284
  %v1287 = vlaneseq
  %v1288 = vshrl.u32 %v1287, 7
  %v1289 = vsub.s32 2, %v1288
  %v1290 = vrot.slane %v1014, %v1289
  %v1291 = vmul.f32 %v1277, %v1290
  %v1292 = vmul.f32 %v1281, %v1290
  %v1293 = vmul.f32 %v1285, %v1290
  %1294 = vset.pattern.permute.xlu0 3
  %1295 = vperm.xlu0 %1294, %v1186
  %v1296 = vpop.permute.xlu0 %1295
  %1298 = vset.pattern.permute.xlu0 3
  %1299 = vperm.xlu0 %1298, %v1187
  %v1300 = vpop.permute.xlu0 %1299
  %1302 = vset.pattern.permute.xlu0 3
  %1303 = vperm.xlu0 %1302, %v1188
  %v1304 = vpop.permute.xlu0 %1303
  %v1306 = vlaneseq
  %v1307 = vshrl.u32 %v1306, 7
  %v1308 = vsub.s32 3, %v1307
  %v1309 = vrot.slane %v1014, %v1308
  %v1310 = vmul.f32 %v1296, %v1309
  %v1311 = vmul.f32 %v1300, %v1309
  %v1312 = vmul.f32 %v1304, %v1309
  %1314 = vset.pattern.permute.xlu0 0
  %1315 = vperm.xlu0 %1314, %v1218
  %v1316 = vpop.permute.xlu0 %1315
  %1319 = vset.pattern.permute.xlu0 0
  %1320 = vperm.xlu0 %1319, %v1219
  %v1321 = vpop.permute.xlu0 %1320
  %1324 = vset.pattern.permute.xlu0 0
  %1325 = vperm.xlu0 %1324, %v1220
  %v1326 = vpop.permute.xlu0 %1325
  %v1328 = vlaneseq
  %v1329 = vshrl.u32 %v1328, 7
  %v1330 = vsub.s32 1, %v1329
  %v1331 = vrot.slane %v1091, %v1330
  %v1332 = vmul.f32 %v1316, %v1331
  %v1333 = vmul.f32 %v1321, %v1331
  %v1334 = vmul.f32 %v1326, %v1331
  %1335 = vset.pattern.permute.xlu0 1
  %1336 = vperm.xlu0 %1335, %v1218
  %v1337 = vpop.permute.xlu0 %1336
  %1339 = vset.pattern.permute.xlu0 1
  %1340 = vperm.xlu0 %1339, %v1219
  %v1341 = vpop.permute.xlu0 %1340
  %1343 = vset.pattern.permute.xlu0 1
  %1344 = vperm.xlu0 %1343, %v1220
  %v1345 = vpop.permute.xlu0 %1344
  %v1347 = vlaneseq
  %v1348 = vshrl.u32 %v1347, 7
  %v1349 = vsub.s32 2, %v1348
  %v1350 = vrot.slane %v1091, %v1349
  %v1351 = vmul.f32 %v1337, %v1350
  %v1352 = vmul.f32 %v1341, %v1350
  %v1353 = vmul.f32 %v1345, %v1350
  %1354 = vset.pattern.permute.xlu0 2
  %1355 = vperm.xlu0 %1354, %v1218
  %v1356 = vpop.permute.xlu0 %1355
  %1358 = vset.pattern.permute.xlu0 2
  %1359 = vperm.xlu0 %1358, %v1219
  %v1360 = vpop.permute.xlu0 %1359
  %1362 = vset.pattern.permute.xlu0 2
  %1363 = vperm.xlu0 %1362, %v1220
  %v1364 = vpop.permute.xlu0 %1363
  %v1366 = vlaneseq
  %v1367 = vshrl.u32 %v1366, 7
  %v1368 = vsub.s32 3, %v1367
  %v1369 = vrot.slane %v1091, %v1368
  %v1370 = vmul.f32 %v1356, %v1369
  %v1371 = vmul.f32 %v1360, %v1369
  %v1372 = vmul.f32 %v1364, %v1369
  %1373 = vset.pattern.permute.xlu0 4
  %1374 = vperm.xlu0 %1373, %v1186
  %v1375 = vpop.permute.xlu0 %1374
  %1377 = vset.pattern.permute.xlu0 4
  %1378 = vperm.xlu0 %1377, %v1187
  %v1379 = vpop.permute.xlu0 %1378
  %1381 = vset.pattern.permute.xlu0 4
  %1382 = vperm.xlu0 %1381, %v1188
  %v1383 = vpop.permute.xlu0 %1382
  %v1385 = vlaneseq
  %v1386 = vshrl.u32 %v1385, 7
  %v1387 = vsub.s32 4, %v1386
  %v1388 = vrot.slane %v1014, %v1387
  %v1389 = vmul.f32 %v1375, %v1388
  %v1390 = vmul.f32 %v1379, %v1388
  %v1391 = vmul.f32 %v1383, %v1388
  %1392 = vset.pattern.permute.xlu0 5
  %1393 = vperm.xlu0 %1392, %v1186
  %v1394 = vpop.permute.xlu0 %1393
  %1396 = vset.pattern.permute.xlu0 5
  %1397 = vperm.xlu0 %1396, %v1187
  %v1398 = vpop.permute.xlu0 %1397
  %1400 = vset.pattern.permute.xlu0 5
  %1401 = vperm.xlu0 %1400, %v1188
  %v1402 = vpop.permute.xlu0 %1401
  %v1404 = vlaneseq
  %v1405 = vshrl.u32 %v1404, 7
  %v1406 = vsub.s32 5, %v1405
  %v1407 = vrot.slane %v1014, %v1406
  %v1408 = vmul.f32 %v1394, %v1407
  %v1409 = vmul.f32 %v1398, %v1407
  %v1410 = vmul.f32 %v1402, %v1407
  %1411 = vset.pattern.permute.xlu0 6
  %1412 = vperm.xlu0 %1411, %v1186
  %v1413 = vpop.permute.xlu0 %1412
  %1415 = vset.pattern.permute.xlu0 6
  %1416 = vperm.xlu0 %1415, %v1187
  %v1417 = vpop.permute.xlu0 %1416
  %1419 = vset.pattern.permute.xlu0 6
  %1420 = vperm.xlu0 %1419, %v1188
  %v1421 = vpop.permute.xlu0 %1420
  %v1423 = vlaneseq
  %v1424 = vshrl.u32 %v1423, 7
  %v1425 = vsub.s32 6, %v1424
  %v1426 = vrot.slane %v1014, %v1425
  %v1427 = vmul.f32 %v1413, %v1426
  %v1428 = vmul.f32 %v1417, %v1426
  %v1429 = vmul.f32 %v1421, %v1426
  %1430 = vset.pattern.permute.xlu0 7
  %1431 = vperm.xlu0 %1430, %v1186
  %v1432 = vpop.permute.xlu0 %1431
  %1434 = vset.pattern.permute.xlu0 7
  %1435 = vperm.xlu0 %1434, %v1187
  %v1436 = vpop.permute.xlu0 %1435
  %1438 = vset.pattern.permute.xlu0 7
  %1439 = vperm.xlu0 %1438, %v1188
  %v1440 = vpop.permute.xlu0 %1439
  %v1442 = vlaneseq
  %v1443 = vshrl.u32 %v1442, 7
  %v1444 = vsub.s32 7, %v1443
  %v1445 = vrot.slane %v1014, %v1444
  %v1446 = vmul.f32 %v1432, %v1445
  %v1447 = vmul.f32 %v1436, %v1445
  %v1448 = vmul.f32 %v1440, %v1445
  %1449 = vset.pattern.permute.xlu0 4
  %1450 = vperm.xlu0 %1449, %v1218
  %v1451 = vpop.permute.xlu0 %1450
  %1453 = vset.pattern.permute.xlu0 4
  %1454 = vperm.xlu0 %1453, %v1219
  %v1455 = vpop.permute.xlu0 %1454
  %1457 = vset.pattern.permute.xlu0 4
  %1458 = vperm.xlu0 %1457, %v1220
  %v1459 = vpop.permute.xlu0 %1458
  %v1461 = vlaneseq
  %v1462 = vshrl.u32 %v1461, 7
  %v1463 = vsub.s32 5, %v1462
  %v1464 = vrot.slane %v1091, %v1463
  %v1465 = vmul.f32 %v1451, %v1464
  %v1466 = vmul.f32 %v1455, %v1464
  %v1467 = vmul.f32 %v1459, %v1464
  %1468 = vset.pattern.permute.xlu0 5
  %1469 = vperm.xlu0 %1468, %v1218
  %v1470 = vpop.permute.xlu0 %1469
  %1472 = vset.pattern.permute.xlu0 5
  %1473 = vperm.xlu0 %1472, %v1219
  %v1474 = vpop.permute.xlu0 %1473
  %1476 = vset.pattern.permute.xlu0 5
  %1477 = vperm.xlu0 %1476, %v1220
  %v1478 = vpop.permute.xlu0 %1477
  %v1480 = vlaneseq
  %v1481 = vshrl.u32 %v1480, 7
  %v1482 = vsub.s32 6, %v1481
  %v1483 = vrot.slane %v1091, %v1482
  %v1484 = vmul.f32 %v1470, %v1483
  %v1485 = vmul.f32 %v1474, %v1483
  %v1486 = vmul.f32 %v1478, %v1483
  %1487 = vset.pattern.permute.xlu0 6
  %1488 = vperm.xlu0 %1487, %v1218
  %v1489 = vpop.permute.xlu0 %1488
  %1491 = vset.pattern.permute.xlu0 6
  %1492 = vperm.xlu0 %1491, %v1219
  %v1493 = vpop.permute.xlu0 %1492
  %1495 = vset.pattern.permute.xlu0 6
  %1496 = vperm.xlu0 %1495, %v1220
  %v1497 = vpop.permute.xlu0 %1496
  %v1499 = vlaneseq
  %v1500 = vshrl.u32 %v1499, 7
  %v1501 = vsub.s32 7, %v1500
  %v1502 = vrot.slane %v1091, %v1501
  %v1503 = vmul.f32 %v1489, %v1502
  %v1504 = vmul.f32 %v1493, %v1502
  %v1505 = vmul.f32 %v1497, %v1502
  %1506 = vset.pattern.permute.xlu0 8
  %1507 = vperm.xlu0 %1506, %v1186
  %v1508 = vpop.permute.xlu0 %1507
  %1510 = vset.pattern.permute.xlu0 8
  %1511 = vperm.xlu0 %1510, %v1187
  %v1512 = vpop.permute.xlu0 %1511
  %1514 = vset.pattern.permute.xlu0 8
  %1515 = vperm.xlu0 %1514, %v1188
  %v1516 = vpop.permute.xlu0 %1515
  %v1518 = vlaneseq
  %v1519 = vshrl.u32 %v1518, 7
  %v1520 = vsub.s32 0, %v1519
  %v1521 = vrot.slane %v1015, %v1520
  %v1522 = vmul.f32 %v1508, %v1521
  %v1523 = vmul.f32 %v1512, %v1521
  %v1524 = vmul.f32 %v1516, %v1521
  %1525 = vset.pattern.permute.xlu0 9
  %1526 = vperm.xlu0 %1525, %v1186
  %v1527 = vpop.permute.xlu0 %1526
  %1529 = vset.pattern.permute.xlu0 9
  %1530 = vperm.xlu0 %1529, %v1187
  %v1531 = vpop.permute.xlu0 %1530
  %1533 = vset.pattern.permute.xlu0 9
  %1534 = vperm.xlu0 %1533, %v1188
  %v1535 = vpop.permute.xlu0 %1534
  %v1537 = vlaneseq
  %v1538 = vshrl.u32 %v1537, 7
  %v1539 = vsub.s32 1, %v1538
  %v1540 = vrot.slane %v1015, %v1539
  %v1541 = vmul.f32 %v1527, %v1540
  %v1542 = vmul.f32 %v1531, %v1540
  %v1543 = vmul.f32 %v1535, %v1540
  %1544 = vset.pattern.permute.xlu0 10
  %1545 = vperm.xlu0 %1544, %v1186
  %v1546 = vpop.permute.xlu0 %1545
  %1548 = vset.pattern.permute.xlu0 10
  %1549 = vperm.xlu0 %1548, %v1187
  %v1550 = vpop.permute.xlu0 %1549
  %1552 = vset.pattern.permute.xlu0 10
  %1553 = vperm.xlu0 %1552, %v1188
  %v1554 = vpop.permute.xlu0 %1553
  %v1556 = vlaneseq
  %v1557 = vshrl.u32 %v1556, 7
  %v1558 = vsub.s32 2, %v1557
  %v1559 = vrot.slane %v1015, %v1558
  %v1560 = vmul.f32 %v1546, %v1559
  %v1561 = vmul.f32 %v1550, %v1559
  %v1562 = vmul.f32 %v1554, %v1559
  %1563 = vset.pattern.permute.xlu0 11
  %1564 = vperm.xlu0 %1563, %v1186
  %v1565 = vpop.permute.xlu0 %1564
  %1567 = vset.pattern.permute.xlu0 11
  %1568 = vperm.xlu0 %1567, %v1187
  %v1569 = vpop.permute.xlu0 %1568
  %1571 = vset.pattern.permute.xlu0 11
  %1572 = vperm.xlu0 %1571, %v1188
  %v1573 = vpop.permute.xlu0 %1572
  %v1575 = vlaneseq
  %v1576 = vshrl.u32 %v1575, 7
  %v1577 = vsub.s32 3, %v1576
  %v1578 = vrot.slane %v1015, %v1577
  %v1579 = vmul.f32 %v1565, %v1578
  %v1580 = vmul.f32 %v1569, %v1578
  %v1581 = vmul.f32 %v1573, %v1578
  %1582 = vset.pattern.permute.xlu0 8
  %1583 = vperm.xlu0 %1582, %v1218
  %v1584 = vpop.permute.xlu0 %1583
  %1586 = vset.pattern.permute.xlu0 8
  %1587 = vperm.xlu0 %1586, %v1219
  %v1588 = vpop.permute.xlu0 %1587
  %1590 = vset.pattern.permute.xlu0 8
  %1591 = vperm.xlu0 %1590, %v1220
  %v1592 = vpop.permute.xlu0 %1591
  %v1594 = vlaneseq
  %v1595 = vshrl.u32 %v1594, 7
  %v1596 = vsub.s32 1, %v1595
  %v1597 = vrot.slane %v1092, %v1596
  %v1598 = vmul.f32 %v1584, %v1597
  %v1599 = vmul.f32 %v1588, %v1597
  %v1600 = vmul.f32 %v1592, %v1597
  %1601 = vset.pattern.permute.xlu0 9
  %1602 = vperm.xlu0 %1601, %v1218
  %v1603 = vpop.permute.xlu0 %1602
  %1605 = vset.pattern.permute.xlu0 9
  %1606 = vperm.xlu0 %1605, %v1219
  %v1607 = vpop.permute.xlu0 %1606
  %1609 = vset.pattern.permute.xlu0 9
  %1610 = vperm.xlu0 %1609, %v1220
  %v1611 = vpop.permute.xlu0 %1610
  %v1613 = vlaneseq
  %v1614 = vshrl.u32 %v1613, 7
  %v1615 = vsub.s32 2, %v1614
  %v1616 = vrot.slane %v1092, %v1615
  %v1617 = vmul.f32 %v1603, %v1616
  %v1618 = vmul.f32 %v1607, %v1616
  %v1619 = vmul.f32 %v1611, %v1616
  %1620 = vset.pattern.permute.xlu0 10
  %1621 = vperm.xlu0 %1620, %v1218
  %v1622 = vpop.permute.xlu0 %1621
  %1624 = vset.pattern.permute.xlu0 10
  %1625 = vperm.xlu0 %1624, %v1219
  %v1626 = vpop.permute.xlu0 %1625
  %1628 = vset.pattern.permute.xlu0 10
  %1629 = vperm.xlu0 %1628, %v1220
  %v1630 = vpop.permute.xlu0 %1629
  %v1632 = vlaneseq
  %v1633 = vshrl.u32 %v1632, 7
  %v1634 = vsub.s32 3, %v1633
  %v1635 = vrot.slane %v1092, %v1634
  %v1636 = vmul.f32 %v1622, %v1635
  %v1637 = vmul.f32 %v1626, %v1635
  %v1638 = vmul.f32 %v1630, %v1635
  %v1642 = vrot.slane %v477, 7
  %v1643 = vrot.slane %v478, 7
  %v1644 = vsel %vm48, %v1642, %v1643
  %v1645 = vrot.slane %v479, 7
  %v1646 = vsel %vm48, %v1643, %v1645
  %vm1653 = vcmask 1041408
  %v1654 = vrot.slane %v496, 6
  %v1655 = vrot.slane %v497, 6
  %v1656 = vsel %vm1653, %v1654, %v1655
  %v1657 = vrot.slane %v498, 6
  %v1658 = vsel %vm1653, %v1655, %v1657
  %vm1665 = vcmask 1042432
  %v1666 = vrot.slane %v515, 5
  %v1667 = vrot.slane %v516, 5
  %v1668 = vsel %vm1665, %v1666, %v1667
  %v1669 = vrot.slane %v517, 5
  %v1670 = vsel %vm1665, %v1667, %v1669
  %vm1677 = vcmask 1043456
  %v1678 = vrot.slane %v537, 4
  %v1679 = vrot.slane %v538, 4
  %v1680 = vsel %vm1677, %v1678, %v1679
  %v1681 = vrot.slane %v539, 4
  %v1682 = vsel %vm1677, %v1679, %v1681
  %vm1689 = vcmask 1044480
  %v1690 = vrot.slane %v556, 3
  %v1691 = vrot.slane %v557, 3
  %v1692 = vsel %vm1689, %v1690, %v1691
  %v1693 = vrot.slane %v558, 3
  %v1694 = vsel %vm1689, %v1691, %v1693
  %vm1701 = vcmask 1045504
  %v1702 = vrot.slane %v575, 2
  %v1703 = vrot.slane %v576, 2
  %v1704 = vsel %vm1701, %v1702, %v1703
  %v1705 = vrot.slane %v577, 2
  %v1706 = vsel %vm1701, %v1703, %v1705
  %vm1713 = vcmask 1046528
  %v1714 = vrot.slane %v594, 1
  %v1715 = vrot.slane %v595, 1
  %v1716 = vsel %vm1713, %v1714, %v1715
  %v1717 = vrot.slane %v596, 1
  %v1718 = vsel %vm1713, %v1715, %v1717
  %v1725 = vrot.slane %v632, 7
  %v1726 = vrot.slane %v633, 7
  %v1727 = vsel %vm48, %v1725, %v1726
  %v1728 = vrot.slane %v634, 7
  %v1729 = vsel %vm48, %v1726, %v1728
  %v1736 = vrot.slane %v651, 6
  %v1737 = vrot.slane %v652, 6
  %v1738 = vsel %vm1653, %v1736, %v1737
  %v1739 = vrot.slane %v653, 6
  %v1740 = vsel %vm1653, %v1737, %v1739
  %v1747 = vrot.slane %v670, 5
  %v1748 = vrot.slane %v671, 5
  %v1749 = vsel %vm1665, %v1747, %v1748
  %v1750 = vrot.slane %v672, 5
  %v1751 = vsel %vm1665, %v1748, %v1750
  %v1758 = vrot.slane %v689, 4
  %v1759 = vrot.slane %v690, 4
  %v1760 = vsel %vm1677, %v1758, %v1759
  %v1761 = vrot.slane %v691, 4
  %v1762 = vsel %vm1677, %v1759, %v1761
  %v1769 = vrot.slane %v708, 3
  %v1770 = vrot.slane %v709, 3
  %v1771 = vsel %vm1689, %v1769, %v1770
  %v1772 = vrot.slane %v710, 3
  %v1773 = vsel %vm1689, %v1770, %v1772
  %v1780 = vrot.slane %v727, 2
  %v1781 = vrot.slane %v728, 2
  %v1782 = vsel %vm1701, %v1780, %v1781
  %v1783 = vrot.slane %v729, 2
  %v1784 = vsel %vm1701, %v1781, %v1783
  %v1791 = vrot.slane %v746, 1
  %v1792 = vrot.slane %v747, 1
  %v1793 = vsel %vm1713, %v1791, %v1792
  %v1794 = vrot.slane %v748, 1
  %v1795 = vsel %vm1713, %v1792, %v1794
  %v1799 = vsel %vm48, %v460, %v1642
  %v1800 = vsel %vm1653, %v1646, %v1654
  %v1801 = vsel %vm1665, %v1658, %v1666
  %v1802 = vsel %vm1677, %v1670, %v1678
  %v1803 = vsel %vm1689, %v1682, %v1690
  %v1804 = vsel %vm1701, %v1694, %v1702
  %v1805 = vsel %vm1713, %v1706, %v1714
  %v1806 = vsel %vm48, %v615, %v1725
  %v1807 = vsel %vm1653, %v1729, %v1736
  %v1808 = vsel %vm1665, %v1740, %v1747
  %v1809 = vsel %vm1677, %v1751, %v1758
  %v1810 = vsel %vm1689, %v1762, %v1769
  %v1811 = vsel %vm1701, %v1773, %v1780
  %v1812 = vsel %vm1713, %v1784, %v1791
  %v1816 = vrot.slane %v784, 7
  %v1817 = vrot.slane %v785, 7
  %v1818 = vsel %vm48, %v1816, %v1817
  %v1819 = vrot.slane %v786, 7
  %v1820 = vsel %vm48, %v1817, %v1819
  %v1827 = vrot.slane %v803, 6
  %v1828 = vrot.slane %v804, 6
  %v1829 = vsel %vm1653, %v1827, %v1828
  %v1830 = vrot.slane %v805, 6
  %v1831 = vsel %vm1653, %v1828, %v1830
  %v1838 = vrot.slane %v822, 5
  %v1839 = vrot.slane %v823, 5
  %v1840 = vsel %vm1665, %v1838, %v1839
  %v1841 = vrot.slane %v824, 5
  %v1842 = vsel %vm1665, %v1839, %v1841
  %v1849 = vrot.slane %v841, 4
  %v1850 = vrot.slane %v842, 4
  %v1851 = vsel %vm1677, %v1849, %v1850
  %v1852 = vrot.slane %v843, 4
  %v1853 = vsel %vm1677, %v1850, %v1852
  %v1860 = vrot.slane %v1253, 3
  %v1861 = vrot.slane %v1254, 3
  %v1862 = vsel %vm1689, %v1860, %v1861
  %v1863 = vrot.slane %v1255, 3
  %v1864 = vsel %vm1689, %v1861, %v1863
  %v1871 = vrot.slane %v1272, 2
  %v1872 = vrot.slane %v1273, 2
  %v1873 = vsel %vm1701, %v1871, %v1872
  %v1874 = vrot.slane %v1274, 2
  %v1875 = vsel %vm1701, %v1872, %v1874
  %v1882 = vrot.slane %v1291, 1
  %v1883 = vrot.slane %v1292, 1
  %v1884 = vsel %vm1713, %v1882, %v1883
  %v1885 = vrot.slane %v1293, 1
  %v1886 = vsel %vm1713, %v1883, %v1885
  %v1893 = vrot.slane %v1332, 7
  %v1894 = vrot.slane %v1333, 7
  %v1895 = vsel %vm48, %v1893, %v1894
  %v1896 = vrot.slane %v1334, 7
  %v1897 = vsel %vm48, %v1894, %v1896
  %v1904 = vrot.slane %v1351, 6
  %v1905 = vrot.slane %v1352, 6
  %v1906 = vsel %vm1653, %v1904, %v1905
  %v1907 = vrot.slane %v1353, 6
  %v1908 = vsel %vm1653, %v1905, %v1907
  %v1915 = vrot.slane %v1370, 5
  %v1916 = vrot.slane %v1371, 5
  %v1917 = vsel %vm1665, %v1915, %v1916
  %v1918 = vrot.slane %v1372, 5
  %v1919 = vsel %vm1665, %v1916, %v1918
  %v1926 = vrot.slane %v1389, 4
  %v1927 = vrot.slane %v1390, 4
  %v1928 = vsel %vm1677, %v1926, %v1927
  %v1929 = vrot.slane %v1391, 4
  %v1930 = vsel %vm1677, %v1927, %v1929
  %v1937 = vrot.slane %v1408, 3
  %v1938 = vrot.slane %v1409, 3
  %v1939 = vsel %vm1689, %v1937, %v1938
  %v1940 = vrot.slane %v1410, 3
  %v1941 = vsel %vm1689, %v1938, %v1940
  %v1948 = vrot.slane %v1427, 2
  %v1949 = vrot.slane %v1428, 2
  %v1950 = vsel %vm1701, %v1948, %v1949
  %v1951 = vrot.slane %v1429, 2
  %v1952 = vsel %vm1701, %v1949, %v1951
  %v1959 = vrot.slane %v1446, 1
  %v1960 = vrot.slane %v1447, 1
  %v1961 = vsel %vm1713, %v1959, %v1960
  %v1962 = vrot.slane %v1448, 1
  %v1963 = vsel %vm1713, %v1960, %v1962
  %v1967 = vsel %vm48, %v767, %v1816
  %v1968 = vsel %vm1653, %v1820, %v1827
  %v1969 = vsel %vm1665, %v1831, %v1838
  %v1970 = vsel %vm1677, %v1842, %v1849
  %v1971 = vsel %vm1689, %v1853, %v1860
  %v1972 = vsel %vm1701, %v1864, %v1871
  %v1973 = vsel %vm1713, %v1875, %v1882
  %v1974 = vsel %vm48, %v1312, %v1893
  %v1975 = vsel %vm1653, %v1897, %v1904
  %v1976 = vsel %vm1665, %v1908, %v1915
  %v1977 = vsel %vm1677, %v1919, %v1926
  %v1978 = vsel %vm1689, %v1930, %v1937
  %v1979 = vsel %vm1701, %v1941, %v1948
  %v1980 = vsel %vm1713, %v1952, %v1959
  %v1984 = vrot.slane %v1484, 7
  %v1985 = vrot.slane %v1485, 7
  %v1986 = vsel %vm48, %v1984, %v1985
  %v1987 = vrot.slane %v1486, 7
  %v1988 = vsel %vm48, %v1985, %v1987
  %v1995 = vrot.slane %v1503, 6
  %v1996 = vrot.slane %v1504, 6
  %v1997 = vsel %vm1653, %v1995, %v1996
  %v1998 = vrot.slane %v1505, 6
  %v1999 = vsel %vm1653, %v1996, %v1998
  %v2006 = vrot.slane %v1522, 5
  %v2007 = vrot.slane %v1523, 5
  %v2008 = vsel %vm1665, %v2006, %v2007
  %v2009 = vrot.slane %v1524, 5
  %v2010 = vsel %vm1665, %v2007, %v2009
  %v2017 = vrot.slane %v1541, 4
  %v2018 = vrot.slane %v1542, 4
  %v2019 = vsel %vm1677, %v2017, %v2018
  %v2020 = vrot.slane %v1543, 4
  %v2021 = vsel %vm1677, %v2018, %v2020
  %v2028 = vrot.slane %v1560, 3
  %v2029 = vrot.slane %v1561, 3
  %v2030 = vsel %vm1689, %v2028, %v2029
  %v2031 = vrot.slane %v1562, 3
  %v2032 = vsel %vm1689, %v2029, %v2031
  %v2039 = vrot.slane %v1579, 2
  %v2040 = vrot.slane %v1580, 2
  %v2041 = vsel %vm1701, %v2039, %v2040
  %v2042 = vrot.slane %v1581, 2
  %v2043 = vsel %vm1701, %v2040, %v2042
  %v2050 = vrot.slane %v1598, 1
  %v2051 = vrot.slane %v1599, 1
  %v2052 = vsel %vm1713, %v2050, %v2051
  %v2053 = vrot.slane %v1600, 1
  %v2054 = vsel %vm1713, %v2051, %v2053
  %v2061 = vrot.slane %v1636, 7
  %v2062 = vrot.slane %v1637, 7
  %v2063 = vsel %vm48, %v2061, %v2062
  %v2064 = vrot.slane %v1638, 7
  %v2065 = vsel %vm48, %v2062, %v2064
  %v2069 = vsel %vm48, %v1467, %v1984
  %v2070 = vsel %vm1653, %v1988, %v1995
  %v2071 = vsel %vm1665, %v1999, %v2006
  %v2072 = vsel %vm1677, %v2010, %v2017
  %v2073 = vsel %vm1689, %v2021, %v2028
  %v2074 = vsel %vm1701, %v2032, %v2039
  %v2075 = vsel %vm1713, %v2043, %v2050
  %v2076 = vsel %vm48, %v1619, %v2061
  %v2077 = vsel %vm41, %v458, -inf
  %2078 = vmax.xlane.f32.xlu0 %v2077
  %v2079 = vpop.xlane.xlu0 %2078
  %v2080 = vsel %vm41, %v459, -inf
  %2081 = vmax.xlane.f32.xlu0 %v2080
  %v2082 = vpop.xlane.xlu0 %2081
  %v2083 = vsel %vm41, %v1799, -inf
  %2084 = vmax.xlane.f32.xlu0 %v2083
  %v2085 = vpop.xlane.xlu0 %2084
  %v2086 = vsel %vm41, %v1644, -inf
  %2087 = vmax.xlane.f32.xlu0 %v2086
  %v2088 = vpop.xlane.xlu0 %2087
  %v2089 = vsel %vm41, %v1800, -inf
  %2090 = vmax.xlane.f32.xlu0 %v2089
  %v2091 = vpop.xlane.xlu0 %2090
  %v2092 = vsel %vm41, %v1656, -inf
  %2093 = vmax.xlane.f32.xlu0 %v2092
  %v2094 = vpop.xlane.xlu0 %2093
  %v2095 = vsel %vm41, %v1801, -inf
  %2096 = vmax.xlane.f32.xlu0 %v2095
  %v2097 = vpop.xlane.xlu0 %2096
  %v2098 = vsel %vm41, %v1668, -inf
  %2099 = vmax.xlane.f32.xlu0 %v2098
  %v2100 = vpop.xlane.xlu0 %2099
  %v2101 = vsel %vm41, %v1802, -inf
  %2102 = vmax.xlane.f32.xlu0 %v2101
  %v2103 = vpop.xlane.xlu0 %2102
  %v2104 = vsel %vm41, %v1680, -inf
  %2105 = vmax.xlane.f32.xlu0 %v2104
  %v2106 = vpop.xlane.xlu0 %2105
  %v2107 = vsel %vm41, %v1803, -inf
  %2108 = vmax.xlane.f32.xlu0 %v2107
  %v2109 = vpop.xlane.xlu0 %2108
  %v2110 = vsel %vm41, %v1692, -inf
  %2111 = vmax.xlane.f32.xlu0 %v2110
  %v2112 = vpop.xlane.xlu0 %2111
  %v2113 = vsel %vm41, %v1804, -inf
  %2114 = vmax.xlane.f32.xlu0 %v2113
  %v2115 = vpop.xlane.xlu0 %2114
  %v2116 = vsel %vm41, %v1704, -inf
  %2117 = vmax.xlane.f32.xlu0 %v2116
  %v2118 = vpop.xlane.xlu0 %2117
  %v2119 = vsel %vm41, %v1805, -inf
  %2120 = vmax.xlane.f32.xlu0 %v2119
  %v2121 = vpop.xlane.xlu0 %2120
  %v2122 = vsel %vm41, %v1716, -inf
  %2123 = vmax.xlane.f32.xlu0 %v2122
  %v2124 = vpop.xlane.xlu0 %2123
  %v2125 = vsel %vm41, %v1718, -inf
  %2126 = vmax.xlane.f32.xlu0 %v2125
  %v2127 = vpop.xlane.xlu0 %2126
  %v2128 = vsel %vm41, %v613, -inf
  %2129 = vmax.xlane.f32.xlu0 %v2128
  %v2130 = vpop.xlane.xlu0 %2129
  %v2131 = vsel %vm41, %v614, -inf
  %2132 = vmax.xlane.f32.xlu0 %v2131
  %v2133 = vpop.xlane.xlu0 %2132
  %v2134 = vsel %vm41, %v1806, -inf
  %2135 = vmax.xlane.f32.xlu0 %v2134
  %v2136 = vpop.xlane.xlu0 %2135
  %v2137 = vsel %vm41, %v1727, -inf
  %2138 = vmax.xlane.f32.xlu0 %v2137
  %v2139 = vpop.xlane.xlu0 %2138
  %v2140 = vsel %vm41, %v1807, -inf
  %2141 = vmax.xlane.f32.xlu0 %v2140
  %v2142 = vpop.xlane.xlu0 %2141
  %v2143 = vsel %vm41, %v1738, -inf
  %2144 = vmax.xlane.f32.xlu0 %v2143
  %v2145 = vpop.xlane.xlu0 %2144
  %v2146 = vsel %vm41, %v1808, -inf
  %2147 = vmax.xlane.f32.xlu0 %v2146
  %v2148 = vpop.xlane.xlu0 %2147
  %v2149 = vsel %vm41, %v1749, -inf
  %2150 = vmax.xlane.f32.xlu0 %v2149
  %v2151 = vpop.xlane.xlu0 %2150
  %v2152 = vsel %vm41, %v1809, -inf
  %2153 = vmax.xlane.f32.xlu0 %v2152
  %v2154 = vpop.xlane.xlu0 %2153
  %v2155 = vsel %vm41, %v1760, -inf
  %2156 = vmax.xlane.f32.xlu0 %v2155
  %v2157 = vpop.xlane.xlu0 %2156
  %v2158 = vsel %vm41, %v1810, -inf
  %2159 = vmax.xlane.f32.xlu0 %v2158
  %v2160 = vpop.xlane.xlu0 %2159
  %v2161 = vsel %vm41, %v1771, -inf
  %2162 = vmax.xlane.f32.xlu0 %v2161
  %v2163 = vpop.xlane.xlu0 %2162
  %v2164 = vsel %vm41, %v1811, -inf
  %2165 = vmax.xlane.f32.xlu0 %v2164
  %v2166 = vpop.xlane.xlu0 %2165
  %v2167 = vsel %vm41, %v1782, -inf
  %2168 = vmax.xlane.f32.xlu0 %v2167
  %v2169 = vpop.xlane.xlu0 %2168
  %v2170 = vsel %vm41, %v1812, -inf
  %2171 = vmax.xlane.f32.xlu0 %v2170
  %v2172 = vpop.xlane.xlu0 %2171
  %v2173 = vsel %vm41, %v1793, -inf
  %2174 = vmax.xlane.f32.xlu0 %v2173
  %v2175 = vpop.xlane.xlu0 %2174
  %v2176 = vsel %vm41, %v1795, -inf
  %2177 = vmax.xlane.f32.xlu0 %v2176
  %v2178 = vpop.xlane.xlu0 %2177
  %v2179 = vsel %vm41, %v765, -inf
  %2180 = vmax.xlane.f32.xlu0 %v2179
  %v2181 = vpop.xlane.xlu0 %2180
  %v2182 = vsel %vm41, %v766, -inf
  %2183 = vmax.xlane.f32.xlu0 %v2182
  %v2184 = vpop.xlane.xlu0 %2183
  %v2185 = vsel %vm41, %v1967, -inf
  %2186 = vmax.xlane.f32.xlu0 %v2185
  %v2187 = vpop.xlane.xlu0 %2186
  %v2188 = vsel %vm41, %v1818, -inf
  %2189 = vmax.xlane.f32.xlu0 %v2188
  %v2190 = vpop.xlane.xlu0 %2189
  %v2191 = vsel %vm41, %v1968, -inf
  %2192 = vmax.xlane.f32.xlu0 %v2191
  %v2193 = vpop.xlane.xlu0 %2192
  %v2194 = vsel %vm41, %v1829, -inf
  %2195 = vmax.xlane.f32.xlu0 %v2194
  %v2196 = vpop.xlane.xlu0 %2195
  %v2197 = vsel %vm41, %v1969, -inf
  %2198 = vmax.xlane.f32.xlu0 %v2197
  %v2199 = vpop.xlane.xlu0 %2198
  %v2200 = vsel %vm41, %v1840, -inf
  %2201 = vmax.xlane.f32.xlu0 %v2200
  %v2202 = vpop.xlane.xlu0 %2201
  %v2203 = vsel %vm41, %v1970, -inf
  %2204 = vmax.xlane.f32.xlu0 %v2203
  %v2205 = vpop.xlane.xlu0 %2204
  %v2206 = vsel %vm41, %v1851, -inf
  %2207 = vmax.xlane.f32.xlu0 %v2206
  %v2208 = vpop.xlane.xlu0 %2207
  %v2209 = vsel %vm41, %v1971, -inf
  %2210 = vmax.xlane.f32.xlu0 %v2209
  %v2211 = vpop.xlane.xlu0 %2210
  %v2212 = vsel %vm41, %v1862, -inf
  %2213 = vmax.xlane.f32.xlu0 %v2212
  %v2214 = vpop.xlane.xlu0 %2213
  %v2215 = vsel %vm41, %v1972, -inf
  %2216 = vmax.xlane.f32.xlu0 %v2215
  %v2217 = vpop.xlane.xlu0 %2216
  %v2218 = vsel %vm41, %v1873, -inf
  %2219 = vmax.xlane.f32.xlu0 %v2218
  %v2220 = vpop.xlane.xlu0 %2219
  %v2221 = vsel %vm41, %v1973, -inf
  %2222 = vmax.xlane.f32.xlu0 %v2221
  %v2223 = vpop.xlane.xlu0 %2222
  %v2224 = vsel %vm41, %v1884, -inf
  %2225 = vmax.xlane.f32.xlu0 %v2224
  %v2226 = vpop.xlane.xlu0 %2225
  %v2227 = vsel %vm41, %v1886, -inf
  %2228 = vmax.xlane.f32.xlu0 %v2227
  %v2229 = vpop.xlane.xlu0 %2228
  %v2230 = vsel %vm41, %v1310, -inf
  %2231 = vmax.xlane.f32.xlu0 %v2230
  %v2232 = vpop.xlane.xlu0 %2231
  %v2233 = vsel %vm41, %v1311, -inf
  %2234 = vmax.xlane.f32.xlu0 %v2233
  %v2235 = vpop.xlane.xlu0 %2234
  %v2236 = vsel %vm41, %v1974, -inf
  %2237 = vmax.xlane.f32.xlu0 %v2236
  %v2238 = vpop.xlane.xlu0 %2237
  %v2239 = vsel %vm41, %v1895, -inf
  %2240 = vmax.xlane.f32.xlu0 %v2239
  %v2241 = vpop.xlane.xlu0 %2240
  %v2242 = vsel %vm41, %v1975, -inf
  %2243 = vmax.xlane.f32.xlu0 %v2242
  %v2244 = vpop.xlane.xlu0 %2243
  %v2245 = vsel %vm41, %v1906, -inf
  %2246 = vmax.xlane.f32.xlu0 %v2245
  %v2247 = vpop.xlane.xlu0 %2246
  %v2248 = vsel %vm41, %v1976, -inf
  %2249 = vmax.xlane.f32.xlu0 %v2248
  %v2250 = vpop.xlane.xlu0 %2249
  %v2251 = vsel %vm41, %v1917, -inf
  %2252 = vmax.xlane.f32.xlu0 %v2251
  %v2253 = vpop.xlane.xlu0 %2252
  %v2254 = vsel %vm41, %v1977, -inf
  %2255 = vmax.xlane.f32.xlu0 %v2254
  %v2256 = vpop.xlane.xlu0 %2255
  %v2257 = vsel %vm41, %v1928, -inf
  %2258 = vmax.xlane.f32.xlu0 %v2257
  %v2259 = vpop.xlane.xlu0 %2258
  %v2260 = vsel %vm41, %v1978, -inf
  %2261 = vmax.xlane.f32.xlu0 %v2260
  %v2262 = vpop.xlane.xlu0 %2261
  %v2263 = vsel %vm41, %v1939, -inf
  %2264 = vmax.xlane.f32.xlu0 %v2263
  %v2265 = vpop.xlane.xlu0 %2264
  %v2266 = vsel %vm41, %v1979, -inf
  %2267 = vmax.xlane.f32.xlu0 %v2266
  %v2268 = vpop.xlane.xlu0 %2267
  %v2269 = vsel %vm41, %v1950, -inf
  %2270 = vmax.xlane.f32.xlu0 %v2269
  %v2271 = vpop.xlane.xlu0 %2270
  %v2272 = vsel %vm41, %v1980, -inf
  %2273 = vmax.xlane.f32.xlu0 %v2272
  %v2274 = vpop.xlane.xlu0 %2273
  %v2275 = vsel %vm41, %v1961, -inf
  %2276 = vmax.xlane.f32.xlu0 %v2275
  %v2277 = vpop.xlane.xlu0 %2276
  %v2278 = vsel %vm41, %v1963, -inf
  %2279 = vmax.xlane.f32.xlu0 %v2278
  %v2280 = vpop.xlane.xlu0 %2279
  %v2281 = vsel %vm41, %v1465, -inf
  %2282 = vmax.xlane.f32.xlu0 %v2281
  %v2283 = vpop.xlane.xlu0 %2282
  %v2284 = vsel %vm41, %v1466, -inf
  %2285 = vmax.xlane.f32.xlu0 %v2284
  %v2286 = vpop.xlane.xlu0 %2285
  %v2287 = vsel %vm41, %v2069, -inf
  %2288 = vmax.xlane.f32.xlu0 %v2287
  %v2289 = vpop.xlane.xlu0 %2288
  %v2290 = vsel %vm41, %v1986, -inf
  %2291 = vmax.xlane.f32.xlu0 %v2290
  %v2292 = vpop.xlane.xlu0 %2291
  %v2293 = vsel %vm41, %v2070, -inf
  %2294 = vmax.xlane.f32.xlu0 %v2293
  %v2295 = vpop.xlane.xlu0 %2294
  %v2296 = vsel %vm41, %v1997, -inf
  %2297 = vmax.xlane.f32.xlu0 %v2296
  %v2298 = vpop.xlane.xlu0 %2297
  %v2299 = vsel %vm41, %v2071, -inf
  %2300 = vmax.xlane.f32.xlu0 %v2299
  %v2301 = vpop.xlane.xlu0 %2300
  %v2302 = vsel %vm41, %v2008, -inf
  %2303 = vmax.xlane.f32.xlu0 %v2302
  %v2304 = vpop.xlane.xlu0 %2303
  %v2305 = vsel %vm41, %v2072, -inf
  %2306 = vmax.xlane.f32.xlu0 %v2305
  %v2307 = vpop.xlane.xlu0 %2306
  %v2308 = vsel %vm41, %v2019, -inf
  %2309 = vmax.xlane.f32.xlu0 %v2308
  %v2310 = vpop.xlane.xlu0 %2309
  %v2311 = vsel %vm41, %v2073, -inf
  %2312 = vmax.xlane.f32.xlu0 %v2311
  %v2313 = vpop.xlane.xlu0 %2312
  %v2314 = vsel %vm41, %v2030, -inf
  %2315 = vmax.xlane.f32.xlu0 %v2314
  %v2316 = vpop.xlane.xlu0 %2315
  %v2317 = vsel %vm41, %v2074, -inf
  %2318 = vmax.xlane.f32.xlu0 %v2317
  %v2319 = vpop.xlane.xlu0 %2318
  %v2320 = vsel %vm41, %v2041, -inf
  %2321 = vmax.xlane.f32.xlu0 %v2320
  %v2322 = vpop.xlane.xlu0 %2321
  %v2323 = vsel %vm41, %v2075, -inf
  %2324 = vmax.xlane.f32.xlu0 %v2323
  %v2325 = vpop.xlane.xlu0 %2324
  %v2326 = vsel %vm41, %v2052, -inf
  %2327 = vmax.xlane.f32.xlu0 %v2326
  %v2328 = vpop.xlane.xlu0 %2327
  %v2329 = vsel %vm41, %v2054, -inf
  %2330 = vmax.xlane.f32.xlu0 %v2329
  %v2331 = vpop.xlane.xlu0 %2330
  %v2332 = vsel %vm41, %v1617, -inf
  %2333 = vmax.xlane.f32.xlu0 %v2332
  %v2334 = vpop.xlane.xlu0 %2333
  %v2335 = vsel %vm41, %v1618, -inf
  %2336 = vmax.xlane.f32.xlu0 %v2335
  %v2337 = vpop.xlane.xlu0 %2336
  %v2338 = vsel %vm41, %v2076, -inf
  %2339 = vmax.xlane.f32.xlu0 %v2338
  %v2340 = vpop.xlane.xlu0 %2339
  %v2341 = vsel %vm41, %v2063, -inf
  %2342 = vmax.xlane.f32.xlu0 %v2341
  %v2343 = vpop.xlane.xlu0 %2342
  %vm2344 = vcmask 132096
  %v2345 = vsel %vm2344, %v2065, -inf
  %2346 = vmax.xlane.f32.xlu0 %v2345
  %v2347 = vpop.xlane.xlu0 %2346
  %v2348 = vsub.f32 %v458, %v2079
  %v2349 = vsub.f32 %v459, %v2082
  %v2350 = vsub.f32 %v1799, %v2085
  %v2351 = vsub.f32 %v1644, %v2088
  %v2352 = vsub.f32 %v1800, %v2091
  %v2353 = vsub.f32 %v1656, %v2094
  %v2354 = vsub.f32 %v1801, %v2097
  %v2355 = vsub.f32 %v1668, %v2100
  %v2356 = vsub.f32 %v1802, %v2103
  %v2357 = vsub.f32 %v1680, %v2106
  %v2358 = vsub.f32 %v1803, %v2109
  %v2359 = vsub.f32 %v1692, %v2112
  %v2360 = vsub.f32 %v1804, %v2115
  %v2361 = vsub.f32 %v1704, %v2118
  %v2362 = vsub.f32 %v1805, %v2121
  %v2363 = vsub.f32 %v1716, %v2124
  %v2364 = vsub.f32 %v1718, %v2127
  %v2365 = vsub.f32 %v613, %v2130
  %v2366 = vsub.f32 %v614, %v2133
  %v2367 = vsub.f32 %v1806, %v2136
  %v2368 = vsub.f32 %v1727, %v2139
  %v2369 = vsub.f32 %v1807, %v2142
  %v2370 = vsub.f32 %v1738, %v2145
  %v2371 = vsub.f32 %v1808, %v2148
  %v2372 = vsub.f32 %v1749, %v2151
  %v2373 = vsub.f32 %v1809, %v2154
  %v2374 = vsub.f32 %v1760, %v2157
  %v2375 = vsub.f32 %v1810, %v2160
  %v2376 = vsub.f32 %v1771, %v2163
  %v2377 = vsub.f32 %v1811, %v2166
  %v2378 = vsub.f32 %v1782, %v2169
  %v2379 = vsub.f32 %v1812, %v2172
  %v2380 = vsub.f32 %v1793, %v2175
  %v2381 = vsub.f32 %v1795, %v2178
  %v2382 = vsub.f32 %v765, %v2181
  %v2383 = vsub.f32 %v766, %v2184
  %v2384 = vsub.f32 %v1967, %v2187
  %v2385 = vsub.f32 %v1818, %v2190
  %v2386 = vsub.f32 %v1968, %v2193
  %v2387 = vsub.f32 %v1829, %v2196
  %v2388 = vsub.f32 %v1969, %v2199
  %v2389 = vsub.f32 %v1840, %v2202
  %v2390 = vsub.f32 %v1970, %v2205
  %v2391 = vsub.f32 %v1851, %v2208
  %v2392 = vsub.f32 %v1971, %v2211
  %v2393 = vsub.f32 %v1862, %v2214
  %v2394 = vsub.f32 %v1972, %v2217
  %v2395 = vsub.f32 %v1873, %v2220
  %v2396 = vsub.f32 %v1973, %v2223
  %v2397 = vsub.f32 %v1884, %v2226
  %v2398 = vsub.f32 %v1886, %v2229
  %v2399 = vsub.f32 %v1310, %v2232
  %v2400 = vsub.f32 %v1311, %v2235
  %v2401 = vsub.f32 %v1974, %v2238
  %v2402 = vsub.f32 %v1895, %v2241
  %v2403 = vsub.f32 %v1975, %v2244
  %v2404 = vsub.f32 %v1906, %v2247
  %v2405 = vsub.f32 %v1976, %v2250
  %v2406 = vsub.f32 %v1917, %v2253
  %v2407 = vsub.f32 %v1977, %v2256
  %v2408 = vsub.f32 %v1928, %v2259
  %v2409 = vsub.f32 %v1978, %v2262
  %v2410 = vsub.f32 %v1939, %v2265
  %v2411 = vsub.f32 %v1979, %v2268
  %v2412 = vsub.f32 %v1950, %v2271
  %v2413 = vsub.f32 %v1980, %v2274
  %v2414 = vsub.f32 %v1961, %v2277
  %v2415 = vsub.f32 %v1963, %v2280
  %v2416 = vsub.f32 %v1465, %v2283
  %v2417 = vsub.f32 %v1466, %v2286
  %v2418 = vsub.f32 %v2069, %v2289
  %v2419 = vsub.f32 %v1986, %v2292
  %v2420 = vsub.f32 %v2070, %v2295
  %v2421 = vsub.f32 %v1997, %v2298
  %v2422 = vsub.f32 %v2071, %v2301
  %v2423 = vsub.f32 %v2008, %v2304
  %v2424 = vsub.f32 %v2072, %v2307
  %v2425 = vsub.f32 %v2019, %v2310
  %v2426 = vsub.f32 %v2073, %v2313
  %v2427 = vsub.f32 %v2030, %v2316
  %v2428 = vsub.f32 %v2074, %v2319
  %v2429 = vsub.f32 %v2041, %v2322
  %v2430 = vsub.f32 %v2075, %v2325
  %v2431 = vsub.f32 %v2052, %v2328
  %v2432 = vsub.f32 %v2054, %v2331
  %v2433 = vsub.f32 %v1617, %v2334
  %v2434 = vsub.f32 %v1618, %v2337
  %v2435 = vsub.f32 %v2076, %v2340
  %v2436 = vsub.f32 %v2063, %v2343
  %v2437 = vsub.f32 %v2065, %v2347
  %v2438 = vmul.f32 %v2348, 1.442695
  %v2439 = vpow.pop %v2438
  %v2440 = vmul.f32 %v2349, 1.442695
  %v2441 = vpow.pop %v2440
  %v2442 = vmul.f32 %v2350, 1.442695
  %v2443 = vpow.pop %v2442
  %v2444 = vmul.f32 %v2351, 1.442695
  %v2445 = vpow.pop %v2444
  %v2446 = vmul.f32 %v2352, 1.442695
  %v2447 = vpow.pop %v2446
  %v2448 = vmul.f32 %v2353, 1.442695
  %v2449 = vpow.pop %v2448
  %v2450 = vmul.f32 %v2354, 1.442695
  %v2451 = vpow.pop %v2450
  %v2452 = vmul.f32 %v2355, 1.442695
  %v2453 = vpow.pop %v2452
  %v2454 = vmul.f32 %v2356, 1.442695
  %v2455 = vpow.pop %v2454
  %v2456 = vmul.f32 %v2357, 1.442695
  %v2457 = vpow.pop %v2456
  %v2458 = vmul.f32 %v2358, 1.442695
  %v2459 = vpow.pop %v2458
  %v2460 = vmul.f32 %v2359, 1.442695
  %v2461 = vpow.pop %v2460
  %v2462 = vmul.f32 %v2360, 1.442695
  %v2463 = vpow.pop %v2462
  %v2464 = vmul.f32 %v2361, 1.442695
  %v2465 = vpow.pop %v2464
  %v2466 = vmul.f32 %v2362, 1.442695
  %v2467 = vpow.pop %v2466
  %v2468 = vmul.f32 %v2363, 1.442695
  %v2469 = vpow.pop %v2468
  %v2470 = vmul.f32 %v2364, 1.442695
  %v2471 = vpow.pop %v2470
  %v2472 = vmul.f32 %v2365, 1.442695
  %v2473 = vpow.pop %v2472
  %v2474 = vmul.f32 %v2366, 1.442695
  %v2475 = vpow.pop %v2474
  %v2476 = vmul.f32 %v2367, 1.442695
  %v2477 = vpow.pop %v2476
  %v2478 = vmul.f32 %v2368, 1.442695
  %v2479 = vpow.pop %v2478
  %v2480 = vmul.f32 %v2369, 1.442695
  %v2481 = vpow.pop %v2480
  %v2482 = vmul.f32 %v2370, 1.442695
  %v2483 = vpow.pop %v2482
  %v2484 = vmul.f32 %v2371, 1.442695
  %v2485 = vpow.pop %v2484
  %v2486 = vmul.f32 %v2372, 1.442695
  %v2487 = vpow.pop %v2486
  %v2488 = vmul.f32 %v2373, 1.442695
  %v2489 = vpow.pop %v2488
  %v2490 = vmul.f32 %v2374, 1.442695
  %v2491 = vpow.pop %v2490
  %v2492 = vmul.f32 %v2375, 1.442695
  %v2493 = vpow.pop %v2492
  %v2494 = vmul.f32 %v2376, 1.442695
  %v2495 = vpow.pop %v2494
  %v2496 = vmul.f32 %v2377, 1.442695
  %v2497 = vpow.pop %v2496
  %v2498 = vmul.f32 %v2378, 1.442695
  %v2499 = vpow.pop %v2498
  %v2500 = vmul.f32 %v2379, 1.442695
  %v2501 = vpow.pop %v2500
  %v2502 = vmul.f32 %v2380, 1.442695
  %v2503 = vpow.pop %v2502
  %v2504 = vmul.f32 %v2381, 1.442695
  %v2505 = vpow.pop %v2504
  %v2506 = vmul.f32 %v2382, 1.442695
  %v2507 = vpow.pop %v2506
  %v2508 = vmul.f32 %v2383, 1.442695
  %v2509 = vpow.pop %v2508
  %v2510 = vmul.f32 %v2384, 1.442695
  %v2511 = vpow.pop %v2510
  %v2512 = vmul.f32 %v2385, 1.442695
  %v2513 = vpow.pop %v2512
  %v2514 = vmul.f32 %v2386, 1.442695
  %v2515 = vpow.pop %v2514
  %v2516 = vmul.f32 %v2387, 1.442695
  %v2517 = vpow.pop %v2516
  %v2518 = vmul.f32 %v2388, 1.442695
  %v2519 = vpow.pop %v2518
  %v2520 = vmul.f32 %v2389, 1.442695
  %v2521 = vpow.pop %v2520
  %v2522 = vmul.f32 %v2390, 1.442695
  %v2523 = vpow.pop %v2522
  %v2524 = vmul.f32 %v2391, 1.442695
  %v2525 = vpow.pop %v2524
  %v2526 = vmul.f32 %v2392, 1.442695
  %v2527 = vpow.pop %v2526
  %v2528 = vmul.f32 %v2393, 1.442695
  %v2529 = vpow.pop %v2528
  %v2530 = vmul.f32 %v2394, 1.442695
  %v2531 = vpow.pop %v2530
  %v2532 = vmul.f32 %v2395, 1.442695
  %v2533 = vpow.pop %v2532
  %v2534 = vmul.f32 %v2396, 1.442695
  %v2535 = vpow.pop %v2534
  %v2536 = vmul.f32 %v2397, 1.442695
  %v2537 = vpow.pop %v2536
  %v2538 = vmul.f32 %v2398, 1.442695
  %v2539 = vpow.pop %v2538
  %v2540 = vmul.f32 %v2399, 1.442695
  %v2541 = vpow.pop %v2540
  %v2542 = vmul.f32 %v2400, 1.442695
  %v2543 = vpow.pop %v2542
  %v2544 = vmul.f32 %v2401, 1.442695
  %v2545 = vpow.pop %v2544
  %v2546 = vmul.f32 %v2402, 1.442695
  %v2547 = vpow.pop %v2546
  %v2548 = vmul.f32 %v2403, 1.442695
  %v2549 = vpow.pop %v2548
  %v2550 = vmul.f32 %v2404, 1.442695
  %v2551 = vpow.pop %v2550
  %v2552 = vmul.f32 %v2405, 1.442695
  %v2553 = vpow.pop %v2552
  %v2554 = vmul.f32 %v2406, 1.442695
  %v2555 = vpow.pop %v2554
  %v2556 = vmul.f32 %v2407, 1.442695
  %v2557 = vpow.pop %v2556
  %v2558 = vmul.f32 %v2408, 1.442695
  %v2559 = vpow.pop %v2558
  %v2560 = vmul.f32 %v2409, 1.442695
  %v2561 = vpow.pop %v2560
  %v2562 = vmul.f32 %v2410, 1.442695
  %v2563 = vpow.pop %v2562
  %v2564 = vmul.f32 %v2411, 1.442695
  %v2565 = vpow.pop %v2564
  %v2566 = vmul.f32 %v2412, 1.442695
  %v2567 = vpow.pop %v2566
  %v2568 = vmul.f32 %v2413, 1.442695
  %v2569 = vpow.pop %v2568
  %v2570 = vmul.f32 %v2414, 1.442695
  %v2571 = vpow.pop %v2570
  %v2572 = vmul.f32 %v2415, 1.442695
  %v2573 = vpow.pop %v2572
  %v2574 = vmul.f32 %v2416, 1.442695
  %v2575 = vpow.pop %v2574
  %v2576 = vmul.f32 %v2417, 1.442695
  %v2577 = vpow.pop %v2576
  %v2578 = vmul.f32 %v2418, 1.442695
  %v2579 = vpow.pop %v2578
  %v2580 = vmul.f32 %v2419, 1.442695
  %v2581 = vpow.pop %v2580
  %v2582 = vmul.f32 %v2420, 1.442695
  %v2583 = vpow.pop %v2582
  %v2584 = vmul.f32 %v2421, 1.442695
  %v2585 = vpow.pop %v2584
  %v2586 = vmul.f32 %v2422, 1.442695
  %v2587 = vpow.pop %v2586
  %v2588 = vmul.f32 %v2423, 1.442695
  %v2589 = vpow.pop %v2588
  %v2590 = vmul.f32 %v2424, 1.442695
  %v2591 = vpow.pop %v2590
  %v2592 = vmul.f32 %v2425, 1.442695
  %v2593 = vpow.pop %v2592
  %v2594 = vmul.f32 %v2426, 1.442695
  %v2595 = vpow.pop %v2594
  %v2596 = vmul.f32 %v2427, 1.442695
  %v2597 = vpow.pop %v2596
  %v2598 = vmul.f32 %v2428, 1.442695
  %v2599 = vpow.pop %v2598
  %v2600 = vmul.f32 %v2429, 1.442695
  %v2601 = vpow.pop %v2600
  %v2602 = vmul.f32 %v2430, 1.442695
  %v2603 = vpow.pop %v2602
  %v2604 = vmul.f32 %v2431, 1.442695
  %v2605 = vpow.pop %v2604
  %v2606 = vmul.f32 %v2432, 1.442695
  %v2607 = vpow.pop %v2606
  %v2608 = vmul.f32 %v2433, 1.442695
  %v2609 = vpow.pop %v2608
  %v2610 = vmul.f32 %v2434, 1.442695
  %v2611 = vpow.pop %v2610
  %v2612 = vmul.f32 %v2435, 1.442695
  %v2613 = vpow.pop %v2612
  %v2614 = vmul.f32 %v2436, 1.442695
  %v2615 = vpow.pop %v2614
  %v2616 = vmul.f32 %v2437, 1.442695
  %v2617 = vpow.pop %v2616
  %v2618 = vsel %vm41, %v2439, 0.0
  %2619 = vadd.xlane.f32.xlu0 %v2618
  %v2620 = vpop.xlane.xlu0 %2619
  %v2621 = vsel %vm41, %v2441, 0.0
  %2622 = vadd.xlane.f32.xlu0 %v2621
  %v2623 = vpop.xlane.xlu0 %2622
  %v2624 = vsel %vm41, %v2443, 0.0
  %2625 = vadd.xlane.f32.xlu0 %v2624
  %v2626 = vpop.xlane.xlu0 %2625
  %v2627 = vsel %vm41, %v2445, 0.0
  %2628 = vadd.xlane.f32.xlu0 %v2627
  %v2629 = vpop.xlane.xlu0 %2628
  %v2630 = vsel %vm41, %v2447, 0.0
  %2631 = vadd.xlane.f32.xlu0 %v2630
  %v2632 = vpop.xlane.xlu0 %2631
  %v2633 = vsel %vm41, %v2449, 0.0
  %2634 = vadd.xlane.f32.xlu0 %v2633
  %v2635 = vpop.xlane.xlu0 %2634
  %v2636 = vsel %vm41, %v2451, 0.0
  %2637 = vadd.xlane.f32.xlu0 %v2636
  %v2638 = vpop.xlane.xlu0 %2637
  %v2639 = vsel %vm41, %v2453, 0.0
  %2640 = vadd.xlane.f32.xlu0 %v2639
  %v2641 = vpop.xlane.xlu0 %2640
  %v2642 = vsel %vm41, %v2455, 0.0
  %2643 = vadd.xlane.f32.xlu0 %v2642
  %v2644 = vpop.xlane.xlu0 %2643
  %v2645 = vsel %vm41, %v2457, 0.0
  %2646 = vadd.xlane.f32.xlu0 %v2645
  %v2647 = vpop.xlane.xlu0 %2646
  %v2648 = vsel %vm41, %v2459, 0.0
  %2649 = vadd.xlane.f32.xlu0 %v2648
  %v2650 = vpop.xlane.xlu0 %2649
  %v2651 = vsel %vm41, %v2461, 0.0
  %2652 = vadd.xlane.f32.xlu0 %v2651
  %v2653 = vpop.xlane.xlu0 %2652
  %v2654 = vsel %vm41, %v2463, 0.0
  %2655 = vadd.xlane.f32.xlu0 %v2654
  %v2656 = vpop.xlane.xlu0 %2655
  %v2657 = vsel %vm41, %v2465, 0.0
  %2658 = vadd.xlane.f32.xlu0 %v2657
  %v2659 = vpop.xlane.xlu0 %2658
  %v2660 = vsel %vm41, %v2467, 0.0
  %2661 = vadd.xlane.f32.xlu0 %v2660
  %v2662 = vpop.xlane.xlu0 %2661
  %v2663 = vsel %vm41, %v2469, 0.0
  %2664 = vadd.xlane.f32.xlu0 %v2663
  %v2665 = vpop.xlane.xlu0 %2664
  %v2666 = vsel %vm41, %v2471, 0.0
  %2667 = vadd.xlane.f32.xlu0 %v2666
  %v2668 = vpop.xlane.xlu0 %2667
  %v2669 = vsel %vm41, %v2473, 0.0
  %2670 = vadd.xlane.f32.xlu0 %v2669
  %v2671 = vpop.xlane.xlu0 %2670
  %v2672 = vsel %vm41, %v2475, 0.0
  %2673 = vadd.xlane.f32.xlu0 %v2672
  %v2674 = vpop.xlane.xlu0 %2673
  %v2675 = vsel %vm41, %v2477, 0.0
  %2676 = vadd.xlane.f32.xlu0 %v2675
  %v2677 = vpop.xlane.xlu0 %2676
  %v2678 = vsel %vm41, %v2479, 0.0
  %2679 = vadd.xlane.f32.xlu0 %v2678
  %v2680 = vpop.xlane.xlu0 %2679
  %v2681 = vsel %vm41, %v2481, 0.0
  %2682 = vadd.xlane.f32.xlu0 %v2681
  %v2683 = vpop.xlane.xlu0 %2682
  %v2684 = vsel %vm41, %v2483, 0.0
  %2685 = vadd.xlane.f32.xlu0 %v2684
  %v2686 = vpop.xlane.xlu0 %2685
  %v2687 = vsel %vm41, %v2485, 0.0
  %2688 = vadd.xlane.f32.xlu0 %v2687
  %v2689 = vpop.xlane.xlu0 %2688
  %v2690 = vsel %vm41, %v2487, 0.0
  %2691 = vadd.xlane.f32.xlu0 %v2690
  %v2692 = vpop.xlane.xlu0 %2691
  %v2693 = vsel %vm41, %v2489, 0.0
  %2694 = vadd.xlane.f32.xlu0 %v2693
  %v2695 = vpop.xlane.xlu0 %2694
  %v2696 = vsel %vm41, %v2491, 0.0
  %2697 = vadd.xlane.f32.xlu0 %v2696
  %v2698 = vpop.xlane.xlu0 %2697
  %v2699 = vsel %vm41, %v2493, 0.0
  %2700 = vadd.xlane.f32.xlu0 %v2699
  %v2701 = vpop.xlane.xlu0 %2700
  %v2702 = vsel %vm41, %v2495, 0.0
  %2703 = vadd.xlane.f32.xlu0 %v2702
  %v2704 = vpop.xlane.xlu0 %2703
  %v2705 = vsel %vm41, %v2497, 0.0
  %2706 = vadd.xlane.f32.xlu0 %v2705
  %v2707 = vpop.xlane.xlu0 %2706
  %v2708 = vsel %vm41, %v2499, 0.0
  %2709 = vadd.xlane.f32.xlu0 %v2708
  %v2710 = vpop.xlane.xlu0 %2709
  %v2711 = vsel %vm41, %v2501, 0.0
  %2712 = vadd.xlane.f32.xlu0 %v2711
  %v2713 = vpop.xlane.xlu0 %2712
  %v2714 = vsel %vm41, %v2503, 0.0
  %2715 = vadd.xlane.f32.xlu0 %v2714
  %v2716 = vpop.xlane.xlu0 %2715
  %v2717 = vsel %vm41, %v2505, 0.0
  %2718 = vadd.xlane.f32.xlu0 %v2717
  %v2719 = vpop.xlane.xlu0 %2718
  %v2720 = vsel %vm41, %v2507, 0.0
  %2721 = vadd.xlane.f32.xlu0 %v2720
  %v2722 = vpop.xlane.xlu0 %2721
  %v2723 = vsel %vm41, %v2509, 0.0
  %2724 = vadd.xlane.f32.xlu0 %v2723
  %v2725 = vpop.xlane.xlu0 %2724
  %v2726 = vsel %vm41, %v2511, 0.0
  %2727 = vadd.xlane.f32.xlu0 %v2726
  %v2728 = vpop.xlane.xlu0 %2727
  %v2729 = vsel %vm41, %v2513, 0.0
  %2730 = vadd.xlane.f32.xlu0 %v2729
  %v2731 = vpop.xlane.xlu0 %2730
  %v2732 = vsel %vm41, %v2515, 0.0
  %2733 = vadd.xlane.f32.xlu0 %v2732
  %v2734 = vpop.xlane.xlu0 %2733
  %v2735 = vsel %vm41, %v2517, 0.0
  %2736 = vadd.xlane.f32.xlu0 %v2735
  %v2737 = vpop.xlane.xlu0 %2736
  %v2738 = vsel %vm41, %v2519, 0.0
  %2739 = vadd.xlane.f32.xlu0 %v2738
  %v2740 = vpop.xlane.xlu0 %2739
  %v2741 = vsel %vm41, %v2521, 0.0
  %2742 = vadd.xlane.f32.xlu0 %v2741
  %v2743 = vpop.xlane.xlu0 %2742
  %v2744 = vsel %vm41, %v2523, 0.0
  %2745 = vadd.xlane.f32.xlu0 %v2744
  %v2746 = vpop.xlane.xlu0 %2745
  %v2747 = vsel %vm41, %v2525, 0.0
  %2748 = vadd.xlane.f32.xlu0 %v2747
  %v2749 = vpop.xlane.xlu0 %2748
  %v2750 = vsel %vm41, %v2527, 0.0
  %2751 = vadd.xlane.f32.xlu0 %v2750
  %v2752 = vpop.xlane.xlu0 %2751
  %v2753 = vsel %vm41, %v2529, 0.0
  %2754 = vadd.xlane.f32.xlu0 %v2753
  %v2755 = vpop.xlane.xlu0 %2754
  %v2756 = vsel %vm41, %v2531, 0.0
  %2757 = vadd.xlane.f32.xlu0 %v2756
  %v2758 = vpop.xlane.xlu0 %2757
  %v2759 = vsel %vm41, %v2533, 0.0
  %2760 = vadd.xlane.f32.xlu0 %v2759
  %v2761 = vpop.xlane.xlu0 %2760
  %v2762 = vsel %vm41, %v2535, 0.0
  %2763 = vadd.xlane.f32.xlu0 %v2762
  %v2764 = vpop.xlane.xlu0 %2763
  %v2765 = vsel %vm41, %v2537, 0.0
  %2766 = vadd.xlane.f32.xlu0 %v2765
  %v2767 = vpop.xlane.xlu0 %2766
  %v2768 = vsel %vm41, %v2539, 0.0
  %2769 = vadd.xlane.f32.xlu0 %v2768
  %v2770 = vpop.xlane.xlu0 %2769
  %v2771 = vsel %vm41, %v2541, 0.0
  %2772 = vadd.xlane.f32.xlu0 %v2771
  %v2773 = vpop.xlane.xlu0 %2772
  %v2774 = vsel %vm41, %v2543, 0.0
  %2775 = vadd.xlane.f32.xlu0 %v2774
  %v2776 = vpop.xlane.xlu0 %2775
  %v2777 = vsel %vm41, %v2545, 0.0
  %2778 = vadd.xlane.f32.xlu0 %v2777
  %v2779 = vpop.xlane.xlu0 %2778
  %v2780 = vsel %vm41, %v2547, 0.0
  %2781 = vadd.xlane.f32.xlu0 %v2780
  %v2782 = vpop.xlane.xlu0 %2781
  %v2783 = vsel %vm41, %v2549, 0.0
  %2784 = vadd.xlane.f32.xlu0 %v2783
  %v2785 = vpop.xlane.xlu0 %2784
  %v2786 = vsel %vm41, %v2551, 0.0
  %2787 = vadd.xlane.f32.xlu0 %v2786
  %v2788 = vpop.xlane.xlu0 %2787
  %v2789 = vsel %vm41, %v2553, 0.0
  %2790 = vadd.xlane.f32.xlu0 %v2789
  %v2791 = vpop.xlane.xlu0 %2790
  %v2792 = vsel %vm41, %v2555, 0.0
  %2793 = vadd.xlane.f32.xlu0 %v2792
  %v2794 = vpop.xlane.xlu0 %2793
  %v2795 = vsel %vm41, %v2557, 0.0
  %2796 = vadd.xlane.f32.xlu0 %v2795
  %v2797 = vpop.xlane.xlu0 %2796
  %v2798 = vsel %vm41, %v2559, 0.0
  %2799 = vadd.xlane.f32.xlu0 %v2798
  %v2800 = vpop.xlane.xlu0 %2799
  %v2801 = vsel %vm41, %v2561, 0.0
  %2802 = vadd.xlane.f32.xlu0 %v2801
  %v2803 = vpop.xlane.xlu0 %2802
  %v2804 = vsel %vm41, %v2563, 0.0
  %2805 = vadd.xlane.f32.xlu0 %v2804
  %v2806 = vpop.xlane.xlu0 %2805
  %v2807 = vsel %vm41, %v2565, 0.0
  %2808 = vadd.xlane.f32.xlu0 %v2807
  %v2809 = vpop.xlane.xlu0 %2808
  %v2810 = vsel %vm41, %v2567, 0.0
  %2811 = vadd.xlane.f32.xlu0 %v2810
  %v2812 = vpop.xlane.xlu0 %2811
  %v2813 = vsel %vm41, %v2569, 0.0
  %2814 = vadd.xlane.f32.xlu0 %v2813
  %v2815 = vpop.xlane.xlu0 %2814
  %v2816 = vsel %vm41, %v2571, 0.0
  %2817 = vadd.xlane.f32.xlu0 %v2816
  %v2818 = vpop.xlane.xlu0 %2817
  %v2819 = vsel %vm41, %v2573, 0.0
  %2820 = vadd.xlane.f32.xlu0 %v2819
  %v2821 = vpop.xlane.xlu0 %2820
  %v2822 = vsel %vm41, %v2575, 0.0
  %2823 = vadd.xlane.f32.xlu0 %v2822
  %v2824 = vpop.xlane.xlu0 %2823
  %v2825 = vsel %vm41, %v2577, 0.0
  %2826 = vadd.xlane.f32.xlu0 %v2825
  %v2827 = vpop.xlane.xlu0 %2826
  %v2828 = vsel %vm41, %v2579, 0.0
  %2829 = vadd.xlane.f32.xlu0 %v2828
  %v2830 = vpop.xlane.xlu0 %2829
  %v2831 = vsel %vm41, %v2581, 0.0
  %2832 = vadd.xlane.f32.xlu0 %v2831
  %v2833 = vpop.xlane.xlu0 %2832
  %v2834 = vsel %vm41, %v2583, 0.0
  %2835 = vadd.xlane.f32.xlu0 %v2834
  %v2836 = vpop.xlane.xlu0 %2835
  %v2837 = vsel %vm41, %v2585, 0.0
  %2838 = vadd.xlane.f32.xlu0 %v2837
  %v2839 = vpop.xlane.xlu0 %2838
  %v2840 = vsel %vm41, %v2587, 0.0
  %2841 = vadd.xlane.f32.xlu0 %v2840
  %v2842 = vpop.xlane.xlu0 %2841
  %v2843 = vsel %vm41, %v2589, 0.0
  %2844 = vadd.xlane.f32.xlu0 %v2843
  %v2845 = vpop.xlane.xlu0 %2844
  %v2846 = vsel %vm41, %v2591, 0.0
  %2847 = vadd.xlane.f32.xlu0 %v2846
  %v2848 = vpop.xlane.xlu0 %2847
  %v2849 = vsel %vm41, %v2593, 0.0
  %2850 = vadd.xlane.f32.xlu0 %v2849
  %v2851 = vpop.xlane.xlu0 %2850
  %v2852 = vsel %vm41, %v2595, 0.0
  %2853 = vadd.xlane.f32.xlu0 %v2852
  %v2854 = vpop.xlane.xlu0 %2853
  %v2855 = vsel %vm41, %v2597, 0.0
  %2856 = vadd.xlane.f32.xlu0 %v2855
  %v2857 = vpop.xlane.xlu0 %2856
  %v2858 = vsel %vm41, %v2599, 0.0
  %2859 = vadd.xlane.f32.xlu0 %v2858
  %v2860 = vpop.xlane.xlu0 %2859
  %v2861 = vsel %vm41, %v2601, 0.0
  %2862 = vadd.xlane.f32.xlu0 %v2861
  %v2863 = vpop.xlane.xlu0 %2862
  %v2864 = vsel %vm41, %v2603, 0.0
  %2865 = vadd.xlane.f32.xlu0 %v2864
  %v2866 = vpop.xlane.xlu0 %2865
  %v2867 = vsel %vm41, %v2605, 0.0
  %2868 = vadd.xlane.f32.xlu0 %v2867
  %v2869 = vpop.xlane.xlu0 %2868
  %v2870 = vsel %vm41, %v2607, 0.0
  %2871 = vadd.xlane.f32.xlu0 %v2870
  %v2872 = vpop.xlane.xlu0 %2871
  %v2873 = vsel %vm41, %v2609, 0.0
  %2874 = vadd.xlane.f32.xlu0 %v2873
  %v2875 = vpop.xlane.xlu0 %2874
  %v2876 = vsel %vm41, %v2611, 0.0
  %2877 = vadd.xlane.f32.xlu0 %v2876
  %v2878 = vpop.xlane.xlu0 %2877
  %v2879 = vsel %vm41, %v2613, 0.0
  %2880 = vadd.xlane.f32.xlu0 %v2879
  %v2881 = vpop.xlane.xlu0 %2880
  %v2882 = vsel %vm41, %v2615, 0.0
  %2883 = vadd.xlane.f32.xlu0 %v2882
  %v2884 = vpop.xlane.xlu0 %2883
  %v2885 = vsel %vm2344, %v2617, 0.0
  %2886 = vadd.xlane.f32.xlu0 %v2885
  %v2887 = vpop.xlane.xlu0 %2886
  %v2888 = vrcp.pop %v2620
  %v2889 = vmul.f32 %v2439, %v2888
  %v2890 = vrcp.pop %v2623
  %v2891 = vmul.f32 %v2441, %v2890
  %v2892 = vrcp.pop %v2626
  %v2893 = vmul.f32 %v2443, %v2892
  %v2894 = vrcp.pop %v2629
  %v2895 = vmul.f32 %v2445, %v2894
  %v2896 = vrcp.pop %v2632
  %v2897 = vmul.f32 %v2447, %v2896
  %v2898 = vrcp.pop %v2635
  %v2899 = vmul.f32 %v2449, %v2898
  %v2900 = vrcp.pop %v2638
  %v2901 = vmul.f32 %v2451, %v2900
  %v2902 = vrcp.pop %v2641
  %v2903 = vmul.f32 %v2453, %v2902
  %v2904 = vrcp.pop %v2644
  %v2905 = vmul.f32 %v2455, %v2904
  %v2906 = vrcp.pop %v2647
  %v2907 = vmul.f32 %v2457, %v2906
  %v2908 = vrcp.pop %v2650
  %v2909 = vmul.f32 %v2459, %v2908
  %v2910 = vrcp.pop %v2653
  %v2911 = vmul.f32 %v2461, %v2910
  %v2912 = vrcp.pop %v2656
  %v2913 = vmul.f32 %v2463, %v2912
  %v2914 = vrcp.pop %v2659
  %v2915 = vmul.f32 %v2465, %v2914
  %v2916 = vrcp.pop %v2662
  %v2917 = vmul.f32 %v2467, %v2916
  %v2918 = vrcp.pop %v2665
  %v2919 = vmul.f32 %v2469, %v2918
  %v2920 = vrcp.pop %v2668
  %v2921 = vmul.f32 %v2471, %v2920
  %v2922 = vrcp.pop %v2671
  %v2923 = vmul.f32 %v2473, %v2922
  %v2924 = vrcp.pop %v2674
  %v2925 = vmul.f32 %v2475, %v2924
  %v2926 = vrcp.pop %v2677
  %v2927 = vmul.f32 %v2477, %v2926
  %v2928 = vrcp.pop %v2680
  %v2929 = vmul.f32 %v2479, %v2928
  %v2930 = vrcp.pop %v2683
  %v2931 = vmul.f32 %v2481, %v2930
  %v2932 = vrcp.pop %v2686
  %v2933 = vmul.f32 %v2483, %v2932
  %v2934 = vrcp.pop %v2689
  %v2935 = vmul.f32 %v2485, %v2934
  %v2936 = vrcp.pop %v2692
  %v2937 = vmul.f32 %v2487, %v2936
  %v2938 = vrcp.pop %v2695
  %v2939 = vmul.f32 %v2489, %v2938
  %v2940 = vrcp.pop %v2698
  %v2941 = vmul.f32 %v2491, %v2940
  %v2942 = vrcp.pop %v2701
  %v2943 = vmul.f32 %v2493, %v2942
  %v2944 = vrcp.pop %v2704
  %v2945 = vmul.f32 %v2495, %v2944
  %v2946 = vrcp.pop %v2707
  %v2947 = vmul.f32 %v2497, %v2946
  %v2948 = vrcp.pop %v2710
  %v2949 = vmul.f32 %v2499, %v2948
  %v2950 = vrcp.pop %v2713
  %v2951 = vmul.f32 %v2501, %v2950
  %v2952 = vrcp.pop %v2716
  %v2953 = vmul.f32 %v2503, %v2952
  %v2954 = vrcp.pop %v2719
  %v2955 = vmul.f32 %v2505, %v2954
  %v2956 = vrcp.pop %v2722
  %v2957 = vmul.f32 %v2507, %v2956
  %v2958 = vrcp.pop %v2725
  %v2959 = vmul.f32 %v2509, %v2958
  %v2960 = vrcp.pop %v2728
  %v2961 = vmul.f32 %v2511, %v2960
  %v2962 = vrcp.pop %v2731
  %v2963 = vmul.f32 %v2513, %v2962
  %v2964 = vrcp.pop %v2734
  %v2965 = vmul.f32 %v2515, %v2964
  %v2966 = vrcp.pop %v2737
  %v2967 = vmul.f32 %v2517, %v2966
  %v2968 = vrcp.pop %v2740
  %v2969 = vmul.f32 %v2519, %v2968
  %v2970 = vrcp.pop %v2743
  %v2971 = vmul.f32 %v2521, %v2970
  %v2972 = vrcp.pop %v2746
  %v2973 = vmul.f32 %v2523, %v2972
  %v2974 = vrcp.pop %v2749
  %v2975 = vmul.f32 %v2525, %v2974
  %v2976 = vrcp.pop %v2752
  %v2977 = vmul.f32 %v2527, %v2976
  %v2978 = vrcp.pop %v2755
  %v2979 = vmul.f32 %v2529, %v2978
  %v2980 = vrcp.pop %v2758
  %v2981 = vmul.f32 %v2531, %v2980
  %v2982 = vrcp.pop %v2761
  %v2983 = vmul.f32 %v2533, %v2982
  %v2984 = vrcp.pop %v2764
  %v2985 = vmul.f32 %v2535, %v2984
  %v2986 = vrcp.pop %v2767
  %v2987 = vmul.f32 %v2537, %v2986
  %v2988 = vrcp.pop %v2770
  %v2989 = vmul.f32 %v2539, %v2988
  %v2990 = vrcp.pop %v2773
  %v2991 = vmul.f32 %v2541, %v2990
  %v2992 = vrcp.pop %v2776
  %v2993 = vmul.f32 %v2543, %v2992
  %v2994 = vrcp.pop %v2779
  %v2995 = vmul.f32 %v2545, %v2994
  %v2996 = vrcp.pop %v2782
  %v2997 = vmul.f32 %v2547, %v2996
  %v2998 = vrcp.pop %v2785
  %v2999 = vmul.f32 %v2549, %v2998
  %v3000 = vrcp.pop %v2788
  %v3001 = vmul.f32 %v2551, %v3000
  %v3002 = vrcp.pop %v2791
  %v3003 = vmul.f32 %v2553, %v3002
  %v3004 = vrcp.pop %v2794
  %v3005 = vmul.f32 %v2555, %v3004
  %v3006 = vrcp.pop %v2797
  %v3007 = vmul.f32 %v2557, %v3006
  %v3008 = vrcp.pop %v2800
  %v3009 = vmul.f32 %v2559, %v3008
  %v3010 = vrcp.pop %v2803
  %v3011 = vmul.f32 %v2561, %v3010
  %v3012 = vrcp.pop %v2806
  %v3013 = vmul.f32 %v2563, %v3012
  %v3014 = vrcp.pop %v2809
  %v3015 = vmul.f32 %v2565, %v3014
  %v3016 = vrcp.pop %v2812
  %v3017 = vmul.f32 %v2567, %v3016
  %v3018 = vrcp.pop %v2815
  %v3019 = vmul.f32 %v2569, %v3018
  %v3020 = vrcp.pop %v2818
  %v3021 = vmul.f32 %v2571, %v3020
  %v3022 = vrcp.pop %v2821
  %v3023 = vmul.f32 %v2573, %v3022
  %v3024 = vrcp.pop %v2824
  %v3025 = vmul.f32 %v2575, %v3024
  %v3026 = vrcp.pop %v2827
  %v3027 = vmul.f32 %v2577, %v3026
  %v3028 = vrcp.pop %v2830
  %v3029 = vmul.f32 %v2579, %v3028
  %v3030 = vrcp.pop %v2833
  %v3031 = vmul.f32 %v2581, %v3030
  %v3032 = vrcp.pop %v2836
  %v3033 = vmul.f32 %v2583, %v3032
  %v3034 = vrcp.pop %v2839
  %v3035 = vmul.f32 %v2585, %v3034
  %v3036 = vrcp.pop %v2842
  %v3037 = vmul.f32 %v2587, %v3036
  %v3038 = vrcp.pop %v2845
  %v3039 = vmul.f32 %v2589, %v3038
  %v3040 = vrcp.pop %v2848
  %v3041 = vmul.f32 %v2591, %v3040
  %v3042 = vrcp.pop %v2851
  %v3043 = vmul.f32 %v2593, %v3042
  %v3044 = vrcp.pop %v2854
  %v3045 = vmul.f32 %v2595, %v3044
  %v3046 = vrcp.pop %v2857
  %v3047 = vmul.f32 %v2597, %v3046
  %v3048 = vrcp.pop %v2860
  %v3049 = vmul.f32 %v2599, %v3048
  %v3050 = vrcp.pop %v2863
  %v3051 = vmul.f32 %v2601, %v3050
  %v3052 = vrcp.pop %v2866
  %v3053 = vmul.f32 %v2603, %v3052
  %v3054 = vrcp.pop %v2869
  %v3055 = vmul.f32 %v2605, %v3054
  %v3056 = vrcp.pop %v2872
  %v3057 = vmul.f32 %v2607, %v3056
  %v3058 = vrcp.pop %v2875
  %v3059 = vmul.f32 %v2609, %v3058
  %v3060 = vrcp.pop %v2878
  %v3061 = vmul.f32 %v2611, %v3060
  %v3062 = vrcp.pop %v2881
  %v3063 = vmul.f32 %v2613, %v3062
  %v3064 = vrcp.pop %v2884
  %v3065 = vmul.f32 %v2615, %v3064
  %v3066 = vrcp.pop %v2887
  %v3067 = vmul.f32 %v2617, %v3066
  %v3068 = vmul.f32 %v2889, 0.5
  %v3069 = vmul.f32 %v2891, 0.5
  %v3070 = vmul.f32 %v2893, 0.5
  %v3071 = vmul.f32 %v2905, 0.25
  %v3072 = vmul.f32 %v2907, 0.25
  %v3073 = vmul.f32 %v2909, 0.25
  %v3077 = vrot.slane %v3071, 4
  %v3078 = vrot.slane %v3072, 4
  %v3079 = vsel %vm1677, %v3077, %v3078
  %v3080 = vrot.slane %v3073, 4
  %v3081 = vsel %vm1677, %v3078, %v3080
  %v3085 = vadd.f32 %v3068, %v3079
  %v3086 = vadd.f32 %v3069, %v3081
  %v3087 = vadd.f32 %v3070, %v3080
  %3088 = vst.msk [vmem:[%s6] sm:$0xff] %vm41, %v3085
  %3089 = vst.msk [vmem:[%s6 + $0x8] sm:$0xff] %vm41, %v3086
  %vm3090 = vcmask 131072
  %3091 = vst.msk [vmem:[%s6 + $0x10] sm:$0x1] %vm3090, %v3087
  %v3092 = vmul.f32 %v2895, 0.5
  %v3093 = vmul.f32 %v2897, 0.5
  %v3094 = vrot.slane %v3071, 3
  %v3095 = vrot.slane %v3072, 3
  %v3096 = vsel %vm1689, %v3094, %v3095
  %v3097 = vrot.slane %v3073, 3
  %v3098 = vsel %vm1689, %v3095, %v3097
  %v3102 = vadd.f32 %v3070, %v3096
  %v3103 = vadd.f32 %v3092, %v3098
  %v3104 = vadd.f32 %v3093, %v3097
  %v3105 = vmul.f32 %v2911, 0.25
  %v3106 = vmul.f32 %v2913, 0.25
  %v3109 = vrot.slane %v3105, 4
  %v3110 = vsel %vm1677, %v3080, %v3109
  %v3111 = vrot.slane %v3106, 4
  %v3112 = vsel %vm1677, %v3109, %v3111
  %v3116 = vadd.f32 %v3102, %v3110
  %v3117 = vadd.f32 %v3103, %v3112
  %v3118 = vadd.f32 %v3104, %v3111
  %s3119 = scalar_lea.vmem %s6, 24
  %vm3120 = vcmask 138241
  %3121 = vst.msk [vmem:[%s3119 - $0x1] sm:$0xfe] %vm3120, %v3116
  %3122 = vst.msk [vmem:[%s3119 + $0x7] sm:$0xff] %vm41, %v3117
  %3123 = vst.msk [vmem:[%s3119 + $0xf] sm:$0x3] %vm2344, %v3118
  %v3124 = vmul.f32 %v2899, 0.5
  %v3125 = vmul.f32 %v2901, 0.5
  %v3126 = vrot.slane %v3105, 3
  %v3127 = vsel %vm1689, %v3097, %v3126
  %v3128 = vrot.slane %v3106, 3
  %v3129 = vsel %vm1689, %v3126, %v3128
  %v3133 = vadd.f32 %v3093, %v3127
  %v3134 = vadd.f32 %v3124, %v3129
  %v3135 = vadd.f32 %v3125, %v3128
  %v3136 = vmul.f32 %v2915, 0.25
  %v3137 = vmul.f32 %v2917, 0.25
  %v3140 = vrot.slane %v3136, 4
  %v3141 = vsel %vm1677, %v3111, %v3140
  %v3142 = vrot.slane %v3137, 4
  %v3143 = vsel %vm1677, %v3140, %v3142
  %v3147 = vadd.f32 %v3133, %v3141
  %v3148 = vadd.f32 %v3134, %v3143
  %v3149 = vadd.f32 %v3135, %v3142
  %s3150 = scalar_lea.vmem %s6, 48
  %vm3151 = vcmask 138242
  %3152 = vst.msk [vmem:[%s3150 - $0x2] sm:$0xfc] %vm3151, %v3147
  %3153 = vst.msk [vmem:[%s3150 + $0x6] sm:$0xff] %vm41, %v3148
  %vm3154 = vcmask 133120
  %3155 = vst.msk [vmem:[%s3150 + $0xe] sm:$0x7] %vm3154, %v3149
  %v3156 = vmul.f32 %v2903, 0.5
  %v3157 = vmul.f32 %v2905, 0.5
  %v3158 = vrot.slane %v3136, 3
  %v3159 = vsel %vm1689, %v3128, %v3158
  %v3160 = vrot.slane %v3137, 3
  %v3161 = vsel %vm1689, %v3158, %v3160
  %v3165 = vadd.f32 %v3125, %v3159
  %v3166 = vadd.f32 %v3156, %v3161
  %v3167 = vadd.f32 %v3157, %v3160
  %s3168 = scalar_lea.vmem %s6, 72
  %vm3169 = vcmask 138243
  %3170 = vst.msk [vmem:[%s3168 - $0x3] sm:$0xf8] %vm3169, %v3165
  %3171 = vst.msk [vmem:[%s3168 + $0x5] sm:$0xff] %vm41, %v3166
  %vm3172 = vcmask 134144
  %3173 = vst.msk [vmem:[%s3168 + $0xd] sm:$0xf] %vm3172, %v3167
  %v3174 = vmul.f32 %v2917, 0.5
  %v3175 = vmul.f32 %v2919, 0.5
  %v3176 = vmul.f32 %v2921, 0.5
  %v3177 = vmul.f32 %v2935, 0.25
  %v3178 = vmul.f32 %v2937, 0.25
  %v3179 = vmul.f32 %v2939, 0.25
  %v3183 = vrot.slane %v3177, 4
  %v3184 = vrot.slane %v3178, 4
  %v3185 = vsel %vm1677, %v3183, %v3184
  %v3186 = vrot.slane %v3179, 4
  %v3187 = vsel %vm1677, %v3184, %v3186
  %v3191 = vadd.f32 %v3174, %v3183
  %v3192 = vadd.f32 %v3175, %v3185
  %v3193 = vadd.f32 %v3176, %v3187
  %s3194 = scalar_lea.vmem %s6, 96
  %vm3195 = vcmask 138247
  %3196 = vst.msk [vmem:[%s3194 - $0x7] sm:$0x80] %vm3195, %v3191
  %3197 = vst.msk [vmem:[%s3194 + $0x1] sm:$0xff] %vm41, %v3192
  %3198 = vst.msk [vmem:[%s3194 + $0x9] sm:$0xff] %vm41, %v3193
  %v3199 = vmul.f32 %v2923, 0.5
  %v3200 = vmul.f32 %v2925, 0.5
  %v3201 = vmul.f32 %v2927, 0.5
  %v3202 = vrot.slane %v3177, 3
  %v3203 = vrot.slane %v3178, 3
  %v3204 = vsel %vm1689, %v3202, %v3203
  %v3205 = vrot.slane %v3179, 3
  %v3206 = vsel %vm1689, %v3203, %v3205
  %v3210 = vadd.f32 %v3199, %v3204
  %v3211 = vadd.f32 %v3200, %v3206
  %v3212 = vadd.f32 %v3201, %v3205
  %v3213 = vmul.f32 %v2941, 0.25
  %v3214 = vmul.f32 %v2943, 0.25
  %v3217 = vrot.slane %v3213, 4
  %v3218 = vsel %vm1677, %v3186, %v3217
  %v3219 = vrot.slane %v3214, 4
  %v3220 = vsel %vm1677, %v3217, %v3219
  %v3224 = vadd.f32 %v3210, %v3218
  %v3225 = vadd.f32 %v3211, %v3220
  %v3226 = vadd.f32 %v3212, %v3219
  %s3227 = scalar_lea.vmem %s6, 120
  %3228 = vst.msk [vmem:[%s3227] sm:$0xff] %vm41, %v3224
  %3229 = vst.msk [vmem:[%s3227 + $0x8] sm:$0xff] %vm41, %v3225
  %3230 = vst.msk [vmem:[%s3227 + $0x10] sm:$0x1] %vm3090, %v3226
  %v3231 = vmul.f32 %v2929, 0.5
  %v3232 = vmul.f32 %v2931, 0.5
  %v3233 = vrot.slane %v3213, 3
  %v3234 = vsel %vm1689, %v3205, %v3233
  %v3235 = vrot.slane %v3214, 3
  %v3236 = vsel %vm1689, %v3233, %v3235
  %v3240 = vadd.f32 %v3201, %v3234
  %v3241 = vadd.f32 %v3231, %v3236
  %v3242 = vadd.f32 %v3232, %v3235
  %v3243 = vmul.f32 %v2945, 0.25
  %v3244 = vmul.f32 %v2947, 0.25
  %v3247 = vrot.slane %v3243, 4
  %v3248 = vsel %vm1677, %v3219, %v3247
  %v3249 = vrot.slane %v3244, 4
  %v3250 = vsel %vm1677, %v3247, %v3249
  %v3254 = vadd.f32 %v3240, %v3248
  %v3255 = vadd.f32 %v3241, %v3250
  %v3256 = vadd.f32 %v3242, %v3249
  %s3257 = scalar_lea.vmem %s6, 144
  %3258 = vst.msk [vmem:[%s3257 - $0x1] sm:$0xfe] %vm3120, %v3254
  %3259 = vst.msk [vmem:[%s3257 + $0x7] sm:$0xff] %vm41, %v3255
  %3260 = vst.msk [vmem:[%s3257 + $0xf] sm:$0x3] %vm2344, %v3256
  %v3261 = vmul.f32 %v2933, 0.5
  %v3262 = vmul.f32 %v2935, 0.5
  %v3263 = vrot.slane %v3243, 3
  %v3264 = vsel %vm1689, %v3235, %v3263
  %v3265 = vrot.slane %v3244, 3
  %v3266 = vsel %vm1689, %v3263, %v3265
  %v3270 = vadd.f32 %v3232, %v3264
  %v3271 = vadd.f32 %v3261, %v3266
  %v3272 = vadd.f32 %v3262, %v3265
  %s3273 = scalar_lea.vmem %s6, 168
  %3274 = vst.msk [vmem:[%s3273 - $0x2] sm:$0xfc] %vm3151, %v3270
  %3275 = vst.msk [vmem:[%s3273 + $0x6] sm:$0xff] %vm41, %v3271
  %3276 = vst.msk [vmem:[%s3273 + $0xe] sm:$0x7] %vm3154, %v3272
  %v3277 = vmul.f32 %v2947, 0.5
  %v3278 = vmul.f32 %v2949, 0.5
  %v3279 = vmul.f32 %v2951, 0.5
  %v3280 = vmul.f32 %v2965, 0.25
  %v3281 = vmul.f32 %v2967, 0.25
  %v3282 = vmul.f32 %v2969, 0.25
  %v3286 = vrot.slane %v3280, 4
  %v3287 = vrot.slane %v3281, 4
  %v3288 = vsel %vm1677, %v3286, %v3287
  %v3289 = vrot.slane %v3282, 4
  %v3290 = vsel %vm1677, %v3287, %v3289
  %v3294 = vadd.f32 %v3277, %v3286
  %v3295 = vadd.f32 %v3278, %v3288
  %v3296 = vadd.f32 %v3279, %v3290
  %s3297 = scalar_lea.vmem %s6, 192
  %vm3298 = vcmask 138246
  %3299 = vst.msk [vmem:[%s3297 - $0x6] sm:$0xc0] %vm3298, %v3294
  %3300 = vst.msk [vmem:[%s3297 + $0x2] sm:$0xff] %vm41, %v3295
  %vm3301 = vcmask 137216
  %3302 = vst.msk [vmem:[%s3297 + $0xa] sm:$0x7f] %vm3301, %v3296
  %v3303 = vmul.f32 %v2953, 0.5
  %v3304 = vmul.f32 %v2955, 0.5
  %v3305 = vrot.slane %v3280, 3
  %v3306 = vrot.slane %v3281, 3
  %v3307 = vsel %vm1689, %v3305, %v3306
  %v3308 = vrot.slane %v3282, 3
  %v3309 = vsel %vm1689, %v3306, %v3308
  %v3313 = vadd.f32 %v3279, %v3305
  %v3314 = vadd.f32 %v3303, %v3307
  %v3315 = vadd.f32 %v3304, %v3309
  %v3316 = vmul.f32 %v2971, 0.25
  %v3317 = vmul.f32 %v2973, 0.25
  %v3320 = vrot.slane %v3316, 4
  %v3321 = vsel %vm1677, %v3289, %v3320
  %v3322 = vrot.slane %v3317, 4
  %v3323 = vsel %vm1677, %v3320, %v3322
  %v3327 = vadd.f32 %v3313, %v3289
  %v3328 = vadd.f32 %v3314, %v3321
  %v3329 = vadd.f32 %v3315, %v3323
  %s3330 = scalar_lea.vmem %s6, 216
  %3331 = vst.msk [vmem:[%s3330 - $0x7] sm:$0x80] %vm3195, %v3327
  %3332 = vst.msk [vmem:[%s3330 + $0x1] sm:$0xff] %vm41, %v3328
  %3333 = vst.msk [vmem:[%s3330 + $0x9] sm:$0xff] %vm41, %v3329
  %v3334 = vmul.f32 %v2957, 0.5
  %v3335 = vmul.f32 %v2959, 0.5
  %v3336 = vmul.f32 %v2961, 0.5
  %v3337 = vrot.slane %v3316, 3
  %v3338 = vsel %vm1689, %v3308, %v3337
  %v3339 = vrot.slane %v3317, 3
  %v3340 = vsel %vm1689, %v3337, %v3339
  %v3344 = vadd.f32 %v3334, %v3338
  %v3345 = vadd.f32 %v3335, %v3340
  %v3346 = vadd.f32 %v3336, %v3339
  %v3347 = vmul.f32 %v2975, 0.25
  %v3348 = vmul.f32 %v2977, 0.25
  %v3351 = vrot.slane %v3347, 4
  %v3352 = vsel %vm1677, %v3322, %v3351
  %v3353 = vrot.slane %v3348, 4
  %v3354 = vsel %vm1677, %v3351, %v3353
  %v3358 = vadd.f32 %v3344, %v3352
  %v3359 = vadd.f32 %v3345, %v3354
  %v3360 = vadd.f32 %v3346, %v3353
  %s3361 = scalar_lea.vmem %s6, 240
  %3362 = vst.msk [vmem:[%s3361] sm:$0xff] %vm41, %v3358
  %3363 = vst.msk [vmem:[%s3361 + $0x8] sm:$0xff] %vm41, %v3359
  %3364 = vst.msk [vmem:[%s3361 + $0x10] sm:$0x1] %vm3090, %v3360
  %v3365 = vmul.f32 %v2963, 0.5
  %v3366 = vmul.f32 %v2965, 0.5
  %v3367 = vrot.slane %v3347, 3
  %v3368 = vsel %vm1689, %v3339, %v3367
  %v3369 = vrot.slane %v3348, 3
  %v3370 = vsel %vm1689, %v3367, %v3369
  %v3374 = vadd.f32 %v3336, %v3368
  %v3375 = vadd.f32 %v3365, %v3370
  %v3376 = vadd.f32 %v3366, %v3369
  %s3377 = scalar_lea.vmem %s6, 264
  %3378 = vst.msk [vmem:[%s3377 - $0x1] sm:$0xfe] %vm3120, %v3374
  %3379 = vst.msk [vmem:[%s3377 + $0x7] sm:$0xff] %vm41, %v3375
  %3380 = vst.msk [vmem:[%s3377 + $0xf] sm:$0x3] %vm2344, %v3376
  %v3381 = vmul.f32 %v2977, 0.5
  %v3382 = vmul.f32 %v2979, 0.5
  %v3383 = vmul.f32 %v2981, 0.5
  %v3384 = vmul.f32 %v2995, 0.25
  %v3385 = vmul.f32 %v2997, 0.25
  %v3386 = vmul.f32 %v2999, 0.25
  %v3390 = vrot.slane %v3384, 4
  %v3391 = vrot.slane %v3385, 4
  %v3392 = vsel %vm1677, %v3390, %v3391
  %v3393 = vrot.slane %v3386, 4
  %v3394 = vsel %vm1677, %v3391, %v3393
  %v3398 = vadd.f32 %v3381, %v3390
  %v3399 = vadd.f32 %v3382, %v3392
  %v3400 = vadd.f32 %v3383, %v3394
  %s3401 = scalar_lea.vmem %s6, 288
  %vm3402 = vcmask 138245
  %3403 = vst.msk [vmem:[%s3401 - $0x5] sm:$0xe0] %vm3402, %v3398
  %3404 = vst.msk [vmem:[%s3401 + $0x3] sm:$0xff] %vm41, %v3399
  %vm3405 = vcmask 136192
  %3406 = vst.msk [vmem:[%s3401 + $0xb] sm:$0x3f] %vm3405, %v3400
  %v3407 = vmul.f32 %v2983, 0.5
  %v3408 = vmul.f32 %v2985, 0.5
  %v3409 = vrot.slane %v3384, 3
  %v3410 = vrot.slane %v3385, 3
  %v3411 = vsel %vm1689, %v3409, %v3410
  %v3412 = vrot.slane %v3386, 3
  %v3413 = vsel %vm1689, %v3410, %v3412
  %v3417 = vadd.f32 %v3383, %v3409
  %v3418 = vadd.f32 %v3407, %v3411
  %v3419 = vadd.f32 %v3408, %v3413
  %v3420 = vmul.f32 %v3001, 0.25
  %v3421 = vmul.f32 %v3003, 0.25
  %v3424 = vrot.slane %v3420, 4
  %v3425 = vsel %vm1677, %v3393, %v3424
  %v3426 = vrot.slane %v3421, 4
  %v3427 = vsel %vm1677, %v3424, %v3426
  %v3431 = vadd.f32 %v3417, %v3393
  %v3432 = vadd.f32 %v3418, %v3425
  %v3433 = vadd.f32 %v3419, %v3427
  %s3434 = scalar_lea.vmem %s6, 312
  %3435 = vst.msk [vmem:[%s3434 - $0x6] sm:$0xc0] %vm3298, %v3431
  %3436 = vst.msk [vmem:[%s3434 + $0x2] sm:$0xff] %vm41, %v3432
  %3437 = vst.msk [vmem:[%s3434 + $0xa] sm:$0x7f] %vm3301, %v3433
  %v3438 = vmul.f32 %v2987, 0.5
  %v3439 = vmul.f32 %v2989, 0.5
  %v3440 = vrot.slane %v3420, 3
  %v3441 = vsel %vm1689, %v3412, %v3440
  %v3442 = vrot.slane %v3421, 3
  %v3443 = vsel %vm1689, %v3440, %v3442
  %v3447 = vadd.f32 %v3408, %v3412
  %v3448 = vadd.f32 %v3438, %v3441
  %v3449 = vadd.f32 %v3439, %v3443
  %v3450 = vmul.f32 %v3005, 0.25
  %v3451 = vmul.f32 %v3007, 0.25
  %v3454 = vrot.slane %v3450, 4
  %v3455 = vsel %vm1677, %v3426, %v3454
  %v3456 = vrot.slane %v3451, 4
  %v3457 = vsel %vm1677, %v3454, %v3456
  %v3461 = vadd.f32 %v3447, %v3426
  %v3462 = vadd.f32 %v3448, %v3455
  %v3463 = vadd.f32 %v3449, %v3457
  %s3464 = scalar_lea.vmem %s6, 336
  %3465 = vst.msk [vmem:[%s3464 - $0x7] sm:$0x80] %vm3195, %v3461
  %3466 = vst.msk [vmem:[%s3464 + $0x1] sm:$0xff] %vm41, %v3462
  %3467 = vst.msk [vmem:[%s3464 + $0x9] sm:$0xff] %vm41, %v3463
  %v3468 = vmul.f32 %v2991, 0.5
  %v3469 = vmul.f32 %v2993, 0.5
  %v3470 = vmul.f32 %v2995, 0.5
  %v3471 = vrot.slane %v3450, 3
  %v3472 = vsel %vm1689, %v3442, %v3471
  %v3473 = vrot.slane %v3451, 3
  %v3474 = vsel %vm1689, %v3471, %v3473
  %v3478 = vadd.f32 %v3468, %v3472
  %v3479 = vadd.f32 %v3469, %v3474
  %v3480 = vadd.f32 %v3470, %v3473
  %s3481 = scalar_lea.vmem %s6, 360
  %3482 = vst.msk [vmem:[%s3481] sm:$0xff] %vm41, %v3478
  %3483 = vst.msk [vmem:[%s3481 + $0x8] sm:$0xff] %vm41, %v3479
  %3484 = vst.msk [vmem:[%s3481 + $0x10] sm:$0x1] %vm3090, %v3480
  %v3485 = vmul.f32 %v3007, 0.5
  %v3486 = vmul.f32 %v3009, 0.5
  %v3487 = vmul.f32 %v3011, 0.5
  %v3488 = vmul.f32 %v3025, 0.25
  %v3489 = vmul.f32 %v3027, 0.25
  %v3490 = vmul.f32 %v3029, 0.25
  %v3494 = vrot.slane %v3488, 4
  %v3495 = vrot.slane %v3489, 4
  %v3496 = vsel %vm1677, %v3494, %v3495
  %v3497 = vrot.slane %v3490, 4
  %v3498 = vsel %vm1677, %v3495, %v3497
  %v3502 = vadd.f32 %v3485, %v3494
  %v3503 = vadd.f32 %v3486, %v3496
  %v3504 = vadd.f32 %v3487, %v3498
  %s3505 = scalar_lea.vmem %s6, 384
  %vm3506 = vcmask 138244
  %3507 = vst.msk [vmem:[%s3505 - $0x4] sm:$0xf0] %vm3506, %v3502
  %3508 = vst.msk [vmem:[%s3505 + $0x4] sm:$0xff] %vm41, %v3503
  %vm3509 = vcmask 135168
  %3510 = vst.msk [vmem:[%s3505 + $0xc] sm:$0x1f] %vm3509, %v3504
  %v3511 = vmul.f32 %v3013, 0.5
  %v3512 = vmul.f32 %v3015, 0.5
  %v3513 = vrot.slane %v3488, 3
  %v3514 = vrot.slane %v3489, 3
  %v3515 = vsel %vm1689, %v3513, %v3514
  %v3516 = vrot.slane %v3490, 3
  %v3517 = vsel %vm1689, %v3514, %v3516
  %v3521 = vadd.f32 %v3487, %v3513
  %v3522 = vadd.f32 %v3511, %v3515
  %v3523 = vadd.f32 %v3512, %v3517
  %v3524 = vmul.f32 %v3031, 0.25
  %v3525 = vmul.f32 %v3033, 0.25
  %v3528 = vrot.slane %v3524, 4
  %v3529 = vsel %vm1677, %v3497, %v3528
  %v3530 = vrot.slane %v3525, 4
  %v3531 = vsel %vm1677, %v3528, %v3530
  %v3535 = vadd.f32 %v3521, %v3497
  %v3536 = vadd.f32 %v3522, %v3529
  %v3537 = vadd.f32 %v3523, %v3531
  %s3538 = scalar_lea.vmem %s6, 408
  %3539 = vst.msk [vmem:[%s3538 - $0x5] sm:$0xe0] %vm3402, %v3535
  %3540 = vst.msk [vmem:[%s3538 + $0x3] sm:$0xff] %vm41, %v3536
  %3541 = vst.msk [vmem:[%s3538 + $0xb] sm:$0x3f] %vm3405, %v3537
  %v3542 = vmul.f32 %v3017, 0.5
  %v3543 = vmul.f32 %v3019, 0.5
  %v3544 = vrot.slane %v3524, 3
  %v3545 = vsel %vm1689, %v3516, %v3544
  %v3546 = vrot.slane %v3525, 3
  %v3547 = vsel %vm1689, %v3544, %v3546
  %v3551 = vadd.f32 %v3512, %v3516
  %v3552 = vadd.f32 %v3542, %v3545
  %v3553 = vadd.f32 %v3543, %v3547
  %v3554 = vmul.f32 %v3035, 0.25
  %v3555 = vmul.f32 %v3037, 0.25
  %v3558 = vrot.slane %v3554, 4
  %v3559 = vsel %vm1677, %v3530, %v3558
  %v3560 = vrot.slane %v3555, 4
  %v3561 = vsel %vm1677, %v3558, %v3560
  %v3565 = vadd.f32 %v3551, %v3530
  %v3566 = vadd.f32 %v3552, %v3559
  %v3567 = vadd.f32 %v3553, %v3561
  %s3568 = scalar_lea.vmem %s6, 432
  %3569 = vst.msk [vmem:[%s3568 - $0x6] sm:$0xc0] %vm3298, %v3565
  %3570 = vst.msk [vmem:[%s3568 + $0x2] sm:$0xff] %vm41, %v3566
  %3571 = vst.msk [vmem:[%s3568 + $0xa] sm:$0x7f] %vm3301, %v3567
  %v3572 = vmul.f32 %v3021, 0.5
  %v3573 = vmul.f32 %v3023, 0.5
  %v3574 = vrot.slane %v3554, 3
  %v3575 = vsel %vm1689, %v3546, %v3574
  %v3576 = vrot.slane %v3555, 3
  %v3577 = vsel %vm1689, %v3574, %v3576
  %v3581 = vadd.f32 %v3543, %v3546
  %v3582 = vadd.f32 %v3572, %v3575
  %v3583 = vadd.f32 %v3573, %v3577
  %s3584 = scalar_lea.vmem %s6, 456
  %3585 = vst.msk [vmem:[%s3584 - $0x7] sm:$0x80] %vm3195, %v3581
  %3586 = vst.msk [vmem:[%s3584 + $0x1] sm:$0xff] %vm41, %v3582
  %3587 = vst.msk [vmem:[%s3584 + $0x9] sm:$0xff] %vm41, %v3583
  %v3588 = vmul.f32 %v3037, 0.5
  %v3589 = vmul.f32 %v3039, 0.5
  %v3590 = vmul.f32 %v3041, 0.5
  %v3591 = vmul.f32 %v3053, 0.25
  %v3592 = vmul.f32 %v3055, 0.25
  %v3593 = vmul.f32 %v3057, 0.25
  %v3597 = vrot.slane %v3591, 4
  %v3598 = vrot.slane %v3592, 4
  %v3599 = vsel %vm1677, %v3597, %v3598
  %v3600 = vrot.slane %v3593, 4
  %v3601 = vsel %vm1677, %v3598, %v3600
  %v3605 = vadd.f32 %v3588, %v3599
  %v3606 = vadd.f32 %v3589, %v3601
  %v3607 = vadd.f32 %v3590, %v3600
  %s3608 = scalar_lea.vmem %s6, 480
  %3609 = vst.msk [vmem:[%s3608 - $0x3] sm:$0xf8] %vm3169, %v3605
  %3610 = vst.msk [vmem:[%s3608 + $0x5] sm:$0xff] %vm41, %v3606
  %3611 = vst.msk [vmem:[%s3608 + $0xd] sm:$0xf] %vm3172, %v3607
  %v3612 = vmul.f32 %v3043, 0.5
  %v3613 = vmul.f32 %v3045, 0.5
  %v3614 = vrot.slane %v3591, 3
  %v3615 = vrot.slane %v3592, 3
  %v3616 = vsel %vm1689, %v3614, %v3615
  %v3617 = vrot.slane %v3593, 3
  %v3618 = vsel %vm1689, %v3615, %v3617
  %v3622 = vadd.f32 %v3590, %v3616
  %v3623 = vadd.f32 %v3612, %v3618
  %v3624 = vadd.f32 %v3613, %v3617
  %v3625 = vmul.f32 %v3059, 0.25
  %v3626 = vmul.f32 %v3061, 0.25
  %v3627 = vmul.f32 %v3063, 0.25
  %v3631 = vrot.slane %v3625, 4
  %v3632 = vrot.slane %v3626, 4
  %v3633 = vsel %vm1677, %v3631, %v3632
  %v3634 = vrot.slane %v3627, 4
  %v3635 = vsel %vm1677, %v3632, %v3634
  %v3639 = vadd.f32 %v3622, %v3631
  %v3640 = vadd.f32 %v3623, %v3633
  %v3641 = vadd.f32 %v3624, %v3635
  %s3642 = scalar_lea.vmem %s6, 504
  %3643 = vst.msk [vmem:[%s3642 - $0x4] sm:$0xf0] %vm3506, %v3639
  %3644 = vst.msk [vmem:[%s3642 + $0x4] sm:$0xff] %vm41, %v3640
  %3645 = vst.msk [vmem:[%s3642 + $0xc] sm:$0x1f] %vm3509, %v3641
  %v3646 = vmul.f32 %v3047, 0.5
  %v3647 = vmul.f32 %v3049, 0.5
  %v3648 = vrot.slane %v3625, 3
  %v3649 = vrot.slane %v3626, 3
  %v3650 = vsel %vm1689, %v3648, %v3649
  %v3651 = vrot.slane %v3627, 3
  %v3652 = vsel %vm1689, %v3649, %v3651
  %v3656 = vadd.f32 %v3613, %v3648
  %v3657 = vadd.f32 %v3646, %v3650
  %v3658 = vadd.f32 %v3647, %v3652
  %v3659 = vmul.f32 %v3065, 0.25
  %v3660 = vmul.f32 %v3067, 0.25
  %v3663 = vrot.slane %v3659, 4
  %v3664 = vsel %vm1677, %v3634, %v3663
  %v3665 = vrot.slane %v3660, 4
  %v3666 = vsel %vm1677, %v3663, %v3665
  %v3670 = vadd.f32 %v3656, %v3634
  %v3671 = vadd.f32 %v3657, %v3664
  %v3672 = vadd.f32 %v3658, %v3666
  %s3673 = scalar_lea.vmem %s6, 528
  %3674 = vst.msk [vmem:[%s3673 - $0x5] sm:$0xe0] %vm3402, %v3670
  %3675 = vst.msk [vmem:[%s3673 + $0x3] sm:$0xff] %vm41, %v3671
  %3676 = vst.msk [vmem:[%s3673 + $0xb] sm:$0x3f] %vm3405, %v3672
  %v3677 = vmul.f32 %v3051, 0.5
  %v3678 = vmul.f32 %v3053, 0.5
  %v3679 = vrot.slane %v3659, 3
  %v3680 = vsel %vm1689, %v3651, %v3679
  %v3681 = vrot.slane %v3660, 3
  %v3682 = vsel %vm1689, %v3679, %v3681
  %v3686 = vadd.f32 %v3647, %v3651
  %v3687 = vadd.f32 %v3677, %v3680
  %v3688 = vadd.f32 %v3678, %v3682
  %s3689 = scalar_lea.vmem %s6, 552
  %3690 = vst.msk [vmem:[%s3689 - $0x6] sm:$0xc0] %vm3298, %v3686
  %3691 = vst.msk [vmem:[%s3689 + $0x2] sm:$0xff] %vm41, %v3687
  %3692 = vst.msk [vmem:[%s3689 + $0xa] sm:$0x7f] %vm3301, %v3688
  // Predicated region
  $region26: #{spatial_mixformer_forward.5} parent=0 // pred_check
    _
  $region27: #{spatial_mixformer_forward.5} parent=0 // pred_check_branch
    %3694 = sbr.rel (0) target = $region29
  $region28: #{spatial_mixformer_forward.5} parent=0 // pred_region
    _
  $region29: #{spatial_mixformer_forward.5} parent=0 // pred_fallthru
    _
  // Predicated region
  $region30: #{spatial_mixformer_forward.5} parent=0 // pred_check
    _
  $region31: #{spatial_mixformer_forward.5} parent=0 // pred_check_branch
    %3696 = sbr.rel (0) target = $region33
  $region32: #{spatial_mixformer_forward.5} parent=0 // pred_region
    _
  $region33: #{spatial_mixformer_forward.5} parent=0 // pred_fallthru
    _

// kernel: spatial_mixformer_forward.6
$region0: #{spatial_mixformer_forward.6}
  #allocation0 [shape = 'u32[]', space=smem, size = 0x4, offset = 0x4, fixed_abs, tag = 'smem constant byte address 0x4 - core index']
  #allocation1 [shape = 'u32[144,128]{1,0:T(1,128)}', space=vmem, size = 0x12000, scoped, tag = 'internal scratch']
  #allocation2 [shape = 'f32[16,8,17]{2,1,0:T(8,128)}', space=vmem, size = 0x10000, scoped, tag = 'scratch operand']
  %s0 = inlined_call_operand.vmem [shape: bf16[2,3,16,8,17], index: 0, kind: input, shape index: {}]
  %s1 = inlined_call_operand.vmem [shape: f32[2,3,4,17,17], index: 1, kind: input, shape index: {}]
  %s2 = inlined_call_operand.vmem [shape: bf16[3,16,17,17], index: 2, kind: input, shape index: {}]
  %s3 = inlined_call_operand.vmem [shape: bf16[2,16,8,17], index: 3, kind: output, shape index: {0}]
  %s4 = inlined_call_operand.vmem [shape: f32[2,16,1], index: 4, kind: output, shape index: {1}]
  %s5 = inlined_call_operand.vmem [shape: f32[2,16,1], index: 5, kind: output, shape index: {2}]
  %6 = xla_tuple %s3, %s4, %s5
  %s7 = sld [smem:[#allocation0]]
  $region61: #{spatial_mixformer_forward.6} parent=0
    _
  %s9 = ssub.s32 1, %s7
  %s10 = scalar_select 0, %s9, %s7
  loop: start=0, step=1, limit=4
  $region2: #{spatial_mixformer_forward.6} parent=0 // loop_pre_header
    _
  $region3: #{spatial_mixformer_forward.6} parent=0 // loop_header
    %s12 = sphi 0, %s16
    %p13 = scmp.ge.s32.totalorder %s12, 4
    %s19 = sphi 0, %s31
    %s20 = sphi 0, %s27
    %s21 = sphi 0, %s19
    %s22 = sphi 0, %s20
    %s23 = sphi 0, %s21
    %s24 = sphi 0, %s22
    %s36 = sphi 0, %s38
    %s39 = sphi 0, %s36
    %s40 = sphi 0, %s39
    %s56 = sphi 0, %s40
    %s64 = sphi 0, %s66
    %s67 = sphi 0, %s64
    %s68 = sphi 0, %s67
    %s84 = sphi 0, %s68
    %s90 = sphi 0, %s92
    %s93 = sphi 0, %s90
    %s94 = sphi 0, %s93
    %s110 = sphi 0, %s94
    %s118 = sphi 0, %s120
    %s121 = sphi 0, %s118
    %s122 = sphi 0, %s121
    %s138 = sphi 0, %s122
    %s146 = sphi 0, %s148
    %s149 = sphi 0, %s146
    %s150 = sphi 0, %s149
    %s166 = sphi 0, %s150
    %s174 = sphi 0, %s176
    %s177 = sphi 0, %s174
    %s178 = sphi 0, %s177
    %s194 = sphi 0, %s178
  $region4: #{spatial_mixformer_forward.6} parent=0 // loop_header_branch
    %15 = sbr.rel (%p13) target = $region8
  $region5: #{spatial_mixformer_forward.6} parent=0 // loop_body
    %s17 = ssub.s32 %s12, 1
    %s18 = ssub.s32 %s12, 2
    %s25 = sadd.s32 1, %s20
    %p26 = scmp.ge.s32.totalorder %s25, 1
    %s27 = scalar_select %p26, 0, %s25
    %s28 = sadd.s32 1, %s19
    %s29 = scalar_select %p26, %s28, %s19
    %p30 = scmp.ge.s32.totalorder %s29, 2
    %s31 = scalar_select %p30, 0, %s29
    %s32 = ssub.s32 %s19, %s31
    %s33 = ssub.s32 %s20, %s27
    %s34 = sor.u32 %s32, %s33
    %p35 = scmp.eq.s32.totalorder %s34, 0
    %s37 = sadd.s32 %s36, 1
    %s38 = scalar_select %p35, %s36, %s37
    %p41 = pneg %p35
    %p42 = scmp.eq.s32.totalorder %s12, 1
    %p43 = por %p41, %p42
    %p44 = scmp.ne.s32.totalorder %s36, %s39
    %p45 = scmp.eq.s32.totalorder %s12, 0
    %p46 = por %p44, %p45
    %p47 = scmp.ne.s32.totalorder %s36, %s39
    %p48 = scmp.eq.s32.totalorder %s17, 1
    %p49 = por %p47, %p48
    %p50 = scmp.ne.s32.totalorder %s39, %s40
    %p51 = scmp.eq.s32.totalorder %s17, 0
    %p52 = por %p50, %p51
    %p53 = scmp.ne.s32.totalorder %s39, %s40
    %p54 = scmp.eq.s32.totalorder %s18, 1
    %p55 = por %p53, %p54
    %p57 = scmp.ne.s32.totalorder %s40, %s56
    %p58 = scmp.eq.s32.totalorder %s18, 0
    %p59 = por %p57, %p58
    %s60 = ssub.s32 %s19, %s31
    %s61 = ssub.s32 %s20, %s27
    %s62 = sor.u32 %s60, %s61
    %p63 = scmp.eq.s32.totalorder %s62, 0
    %s65 = sadd.s32 %s64, 1
    %s66 = scalar_select %p63, %s64, %s65
    %p69 = pneg %p63
    %p70 = scmp.eq.s32.totalorder %s12, 1
    %p71 = por %p69, %p70
    %p72 = scmp.ne.s32.totalorder %s64, %s67
    %p73 = scmp.eq.s32.totalorder %s12, 0
    %p74 = por %p72, %p73
    %p75 = scmp.ne.s32.totalorder %s64, %s67
    %p76 = scmp.eq.s32.totalorder %s17, 1
    %p77 = por %p75, %p76
    %p78 = scmp.ne.s32.totalorder %s67, %s68
    %p79 = scmp.eq.s32.totalorder %s17, 0
    %p80 = por %p78, %p79
    %p81 = scmp.ne.s32.totalorder %s67, %s68
    %p82 = scmp.eq.s32.totalorder %s18, 1
    %p83 = por %p81, %p82
    %p85 = scmp.ne.s32.totalorder %s68, %s84
    %p86 = scmp.eq.s32.totalorder %s18, 0
    %p87 = por %p85, %p86
    %s88 = ssub.s32 %s20, %s27
    %p89 = scmp.eq.s32.totalorder %s88, 0
    %s91 = sadd.s32 %s90, 1
    %s92 = scalar_select %p89, %s90, %s91
    %p95 = pneg %p89
    %p96 = scmp.eq.s32.totalorder %s12, 1
    %p97 = por %p95, %p96
    %p98 = scmp.ne.s32.totalorder %s90, %s93
    %p99 = scmp.eq.s32.totalorder %s12, 0
    %p100 = por %p98, %p99
    %p101 = scmp.ne.s32.totalorder %s90, %s93
    %p102 = scmp.eq.s32.totalorder %s17, 1
    %p103 = por %p101, %p102
    %p104 = scmp.ne.s32.totalorder %s93, %s94
    %p105 = scmp.eq.s32.totalorder %s17, 0
    %p106 = por %p104, %p105
    %p107 = scmp.ne.s32.totalorder %s93, %s94
    %p108 = scmp.eq.s32.totalorder %s18, 1
    %p109 = por %p107, %p108
    %p111 = scmp.ne.s32.totalorder %s94, %s110
    %p112 = scmp.eq.s32.totalorder %s18, 0
    %p113 = por %p111, %p112
    %s114 = ssub.s32 %s19, %s31
    %s115 = ssub.s32 %s20, %s27
    %s116 = sor.u32 %s114, %s115
    %p117 = scmp.eq.s32.totalorder %s116, 0
    %s119 = sadd.s32 %s118, 1
    %s120 = scalar_select %p117, %s118, %s119
    %p123 = pneg %p117
    %p124 = scmp.eq.s32.totalorder %s12, 1
    %p125 = por %p123, %p124
    %p126 = scmp.ne.s32.totalorder %s118, %s121
    %p127 = scmp.eq.s32.totalorder %s12, 0
    %p128 = por %p126, %p127
    %p129 = scmp.ne.s32.totalorder %s118, %s121
    %p130 = scmp.eq.s32.totalorder %s17, 1
    %p131 = por %p129, %p130
    %p132 = scmp.ne.s32.totalorder %s121, %s122
    %p133 = scmp.eq.s32.totalorder %s17, 0
    %p134 = por %p132, %p133
    %p135 = scmp.ne.s32.totalorder %s121, %s122
    %p136 = scmp.eq.s32.totalorder %s18, 1
    %p137 = por %p135, %p136
    %p139 = scmp.ne.s32.totalorder %s122, %s138
    %p140 = scmp.eq.s32.totalorder %s18, 0
    %p141 = por %p139, %p140
    %s142 = ssub.s32 %s19, %s31
    %s143 = ssub.s32 %s20, %s27
    %s144 = sor.u32 %s142, %s143
    %p145 = scmp.eq.s32.totalorder %s144, 0
    %s147 = sadd.s32 %s146, 1
    %s148 = scalar_select %p145, %s146, %s147
    %p151 = pneg %p145
    %p152 = scmp.eq.s32.totalorder %s12, 1
    %p153 = por %p151, %p152
    %p154 = scmp.ne.s32.totalorder %s146, %s149
    %p155 = scmp.eq.s32.totalorder %s12, 0
    %p156 = por %p154, %p155
    %p157 = scmp.ne.s32.totalorder %s146, %s149
    %p158 = scmp.eq.s32.totalorder %s17, 1
    %p159 = por %p157, %p158
    %p160 = scmp.ne.s32.totalorder %s149, %s150
    %p161 = scmp.eq.s32.totalorder %s17, 0
    %p162 = por %p160, %p161
    %p163 = scmp.ne.s32.totalorder %s149, %s150
    %p164 = scmp.eq.s32.totalorder %s18, 1
    %p165 = por %p163, %p164
    %p167 = scmp.ne.s32.totalorder %s150, %s166
    %p168 = scmp.eq.s32.totalorder %s18, 0
    %p169 = por %p167, %p168
    %s170 = ssub.s32 %s19, %s31
    %s171 = ssub.s32 %s20, %s27
    %s172 = sor.u32 %s170, %s171
    %p173 = scmp.eq.s32.totalorder %s172, 0
    %s175 = sadd.s32 %s174, 1
    %s176 = scalar_select %p173, %s174, %s175
    %p179 = pneg %p173
    %p180 = scmp.eq.s32.totalorder %s12, 1
    %p181 = por %p179, %p180
    %p182 = scmp.ne.s32.totalorder %s174, %s177
    %p183 = scmp.eq.s32.totalorder %s12, 0
    %p184 = por %p182, %p183
    %p185 = scmp.ne.s32.totalorder %s174, %s177
    %p186 = scmp.eq.s32.totalorder %s17, 1
    %p187 = por %p185, %p186
    %p188 = scmp.ne.s32.totalorder %s177, %s178
    %p189 = scmp.eq.s32.totalorder %s17, 0
    %p190 = por %p188, %p189
    %p191 = scmp.ne.s32.totalorder %s177, %s178
    %p192 = scmp.eq.s32.totalorder %s18, 1
    %p193 = por %p191, %p192
    %p195 = scmp.ne.s32.totalorder %s178, %s194
    %p196 = scmp.eq.s32.totalorder %s18, 0
    %p197 = por %p195, %p196
    %p198 = scmp.le.s32.totalorder 1, %s12
    %p199 = scmp.lt.s32.totalorder %s12, 3
    %p200 = pnand %p198, %p199
    %p201 = pneg %p200
    // Predicated region
    $region9: #{spatial_mixformer_forward.6} parent=5 // pred_check
      _
    $region10: #{spatial_mixformer_forward.6} parent=5 // pred_check_branch
      %203 = sbr.rel (%p200) target = $region12
    $region11: #{spatial_mixformer_forward.6} parent=5 // pred_region
      %s204 = ssub.s32 %s12, 1
      // Predicated region
      $region13: #{spatial_mixformer_forward.6} parent=11 // pred_check
        %p205 = pneg %p106
      $region14: #{spatial_mixformer_forward.6} parent=11 // pred_check_branch
        %207 = sbr.rel (%p205) target = $region16
      $region15: #{spatial_mixformer_forward.6} parent=11 // pred_region
        %s208 = smul.u32 16, %s22
        %p209 = scmp.lt.s32.totalorder %s208, 15
        %s210 = scalar_select %p209, %s208, 15
        %s211 = smul.addr %s210, 3
        %s212 = smul.addr %s211, 4
        %s213 = scalar_lea.vmem %s2, %s212
        %s214 = smul.u32 16, %s22
      $region16: #{spatial_mixformer_forward.6} parent=11 // pred_fallthru
        _
    $region12: #{spatial_mixformer_forward.6} parent=5 // pred_fallthru
      _
    %p215 = scmp.lt.s32.totalorder %s12, 2
    // Predicated region
    $region17: #{spatial_mixformer_forward.6} parent=5 // pred_check
      %p216 = pneg %p215
    $region18: #{spatial_mixformer_forward.6} parent=5 // pred_check_branch
      %218 = sbr.rel (%p216) target = $region20
    $region19: #{spatial_mixformer_forward.6} parent=5 // pred_region
      // Predicated region
      $region21: #{spatial_mixformer_forward.6} parent=19 // pred_check
        %p219 = pneg %p46
      $region22: #{spatial_mixformer_forward.6} parent=19 // pred_check_branch
        %221 = sbr.rel (%p219) target = $region24
      $region23: #{spatial_mixformer_forward.6} parent=19 // pred_region
        %s222 = smul.u32 16, %s20
        %p223 = scmp.lt.s32.totalorder %s19, 1
        %s224 = scalar_select %p223, %s19, 1
        %p225 = scmp.lt.s32.totalorder %s222, 15
        %s226 = scalar_select %p225, %s222, 15
        %s227 = smul.addr %s224, 48
        %s228 = sadd.s32 %s226, %s227
        %s229 = smul.addr %s228, 4
        %s230 = scalar_lea.vmem %s0, %s229
        %s231 = smul.u32 16, %s20
      $region24: #{spatial_mixformer_forward.6} parent=19 // pred_fallthru
        _
      // Predicated region
      $region25: #{spatial_mixformer_forward.6} parent=19 // pred_check
        %p232 = pneg %p74
      $region26: #{spatial_mixformer_forward.6} parent=19 // pred_check_branch
        %234 = sbr.rel (%p232) target = $region28
      $region27: #{spatial_mixformer_forward.6} parent=19 // pred_region
        %s235 = smul.u32 4, %s20
        %p236 = scmp.lt.s32.totalorder %s19, 1
        %s237 = scalar_select %p236, %s19, 1
        %p238 = scmp.lt.s32.totalorder %s235, 3
        %s239 = scalar_select %p238, %s235, 3
        %s240 = smul.addr %s239, 3
        %s241 = smul.addr %s237, 36
        %s242 = sadd.s32 %s240, %s241
        %s243 = smul.addr %s242, 8
        %s244 = scalar_lea.vmem %s1, %s243
        %s245 = smul.u32 4, %s20
      $region28: #{spatial_mixformer_forward.6} parent=19 // pred_fallthru
        _
    $region20: #{spatial_mixformer_forward.6} parent=5 // pred_fallthru
      _
    %p246 = scmp.le.s32.totalorder 1, %s12
    %p247 = scmp.lt.s32.totalorder %s12, 3
    %p248 = pnand %p246, %p247
    %p249 = pneg %p248
    // Predicated region
    $region29: #{spatial_mixformer_forward.6} parent=5 // pred_check
      _
    $region30: #{spatial_mixformer_forward.6} parent=5 // pred_check_branch
      %251 = sbr.rel (%p248) target = $region32
    $region31: #{spatial_mixformer_forward.6} parent=5 // pred_region
      %s252 = ssub.s32 %s12, 1
      %s253 = smul.u32 16, %s22
      %p254 = scmp.lt.s32.totalorder %s21, 1
      %s255 = scalar_select %p254, %s21, 1
      %p256 = scmp.lt.s32.totalorder %s253, 15
      %s257 = scalar_select %p256, %s253, 15
      %s258 = smul.addr %s255, 48
      %s259 = sadd.s32 %s257, %s258
      %s260 = smul.addr %s259, 4
      %s261 = scalar_lea.vmem %s0, %s260
      %p262 = pneg %p52
      %p263 = pneg %p49
      %s264 = smul.u32 4, %s22
      %p265 = scmp.lt.s32.totalorder %s21, 1
      %s266 = scalar_select %p265, %s21, 1
      %p267 = scmp.lt.s32.totalorder %s264, 3
      %s268 = scalar_select %p267, %s264, 3
      %s269 = smul.addr %s268, 3
      %s270 = smul.addr %s266, 36
      %s271 = sadd.s32 %s269, %s270
      %s272 = smul.addr %s271, 8
      %s273 = scalar_lea.vmem %s1, %s272
      %p274 = pneg %p80
      %p275 = pneg %p77
      %s276 = smul.u32 16, %s22
      %p277 = scmp.lt.s32.totalorder %s276, 15
      %s278 = scalar_select %p277, %s276, 15
      %s279 = smul.addr %s278, 3
      %s280 = smul.addr %s279, 4
      %s281 = scalar_lea.vmem %s2, %s280
      %p282 = pneg %p106
      %p283 = pneg %p103
      %p284 = pneg %p134
      %p285 = pneg %p131
      %s286 = smul.u32 16, %s22
      %p287 = scmp.lt.s32.totalorder %s21, 1
      %s288 = scalar_select %p287, %s21, 1
      %p289 = scmp.lt.s32.totalorder %s286, 15
      %s290 = scalar_select %p289, %s286, 15
      %s291 = smul.addr %s288, 16
      %s292 = sadd.s32 %s290, %s291
      %s293 = smul.addr %s292, 4
      %s294 = scalar_lea.vmem %s3, %s293
      %p295 = pneg %p162
      %p296 = pneg %p159
      %s297 = smul.u32 2, %s22
      %p298 = scmp.lt.s32.totalorder %s21, 1
      %s299 = scalar_select %p298, %s21, 1
      %p300 = scmp.lt.s32.totalorder %s297, 1
      %s301 = scalar_select %p300, %s297, 1
      %s302 = smul.addr %s299, 2
      %s303 = sadd.s32 %s301, %s302
      %s304 = smul.addr %s303, 8
      %s305 = scalar_lea.vmem %s4, %s304
      %p306 = pneg %p190
      %p307 = pneg %p187
      %s308 = smul.u32 2, %s22
      %p309 = scmp.lt.s32.totalorder %s21, 1
      %s310 = scalar_select %p309, %s21, 1
      %p311 = scmp.lt.s32.totalorder %s308, 1
      %s312 = scalar_select %p311, %s308, 1
      %s313 = smul.addr %s310, 2
      %s314 = sadd.s32 %s312, %s313
      %s315 = smul.addr %s314, 8
      %s316 = scalar_lea.vmem %s5, %s315
      %s317 = smul.u32 16, %s22
      %p318 = scmp.lt.s32.totalorder %s21, 1
      %s319 = scalar_select %p318, %s21, 1
      %p320 = scmp.lt.s32.totalorder %s317, 15
      %s321 = scalar_select %p320, %s317, 15
      %s322 = smul.addr %s319, 48
      %s323 = sadd.s32 %s321, %s322
      %s324 = smul.addr %s323, 4
      %s325 = scalar_lea.vmem %s0, %s324
      %s326 = smul.u32 16, %s22
      %s327 = smul.u32 4, %s22
      %p328 = scmp.lt.s32.totalorder %s21, 1
      %s329 = scalar_select %p328, %s21, 1
      %p330 = scmp.lt.s32.totalorder %s327, 3
      %s331 = scalar_select %p330, %s327, 3
      %s332 = smul.addr %s331, 3
      %s333 = smul.addr %s329, 36
      %s334 = sadd.s32 %s332, %s333
      %s335 = smul.addr %s334, 8
      %s336 = scalar_lea.vmem %s1, %s335
      %s337 = smul.u32 4, %s22
      %s338 = smul.u32 16, %s22
      %p339 = scmp.lt.s32.totalorder %s338, 15
      %s340 = scalar_select %p339, %s338, 15
      %s341 = smul.addr %s340, 3
      %s342 = smul.addr %s341, 4
      %s343 = scalar_lea.vmem %s2, %s342
      %s344 = smul.u32 16, %s22
      %s345 = smul.u32 16, %s22
      %p346 = scmp.lt.s32.totalorder %s21, 1
      %s347 = scalar_select %p346, %s21, 1
      %p348 = scmp.lt.s32.totalorder %s345, 15
      %s349 = scalar_select %p348, %s345, 15
      %s350 = smul.addr %s347, 16
      %s351 = sadd.s32 %s349, %s350
      %s352 = smul.addr %s351, 4
      %s353 = scalar_lea.vmem %s3, %s352
      %s354 = smul.u32 16, %s22
      %s355 = smul.u32 2, %s22
      %p356 = scmp.lt.s32.totalorder %s21, 1
      %s357 = scalar_select %p356, %s21, 1
      %p358 = scmp.lt.s32.totalorder %s355, 1
      %s359 = scalar_select %p358, %s355, 1
      %s360 = smul.addr %s357, 2
      %s361 = sadd.s32 %s359, %s360
      %s362 = smul.addr %s361, 8
      %s363 = scalar_lea.vmem %s4, %s362
      %s364 = smul.u32 2, %s22
      %s365 = smul.u32 2, %s22
      %p366 = scmp.lt.s32.totalorder %s21, 1
      %s367 = scalar_select %p366, %s21, 1
      %p368 = scmp.lt.s32.totalorder %s365, 1
      %s369 = scalar_select %p368, %s365, 1
      %s370 = smul.addr %s367, 2
      %s371 = sadd.s32 %s369, %s370
      %s372 = smul.addr %s371, 8
      %s373 = scalar_lea.vmem %s5, %s372
      %s374 = smul.u32 2, %s22
      %v376 = vld [vmem:[%s325] sm:$0xf]
      %v377 = vld [vmem:[%s325 + $0x4] sm:$0xf]
      %v378 = vld [vmem:[%s325 + $0x8] sm:$0xf]
      %v379 = vld [vmem:[%s325 + $0xc] sm:$0xf]
      %v380 = vld [vmem:[%s325 + $0x10] sm:$0xf]
      %v381 = vld [vmem:[%s325 + $0x14] sm:$0xf]
      %v382 = vld [vmem:[%s325 + $0x18] sm:$0xf]
      %v383 = vld [vmem:[%s325 + $0x1c] sm:$0xf]
      %v384 = vld [vmem:[%s325 + $0x20] sm:$0xf]
      %v385 = vld [vmem:[%s325 + $0x24] sm:$0xf]
      %v386 = vld [vmem:[%s325 + $0x28] sm:$0xf]
      %v387 = vld [vmem:[%s325 + $0x2c] sm:$0xf]
      %v388 = vld [vmem:[%s325 + $0x30] sm:$0xf]
      %v389 = vld [vmem:[%s325 + $0x34] sm:$0xf]
      %v390 = vld [vmem:[%s325 + $0x38] sm:$0xf]
      %v391 = vld [vmem:[%s325 + $0x3c] sm:$0xf]
      %v392 = vld [vmem:[%s343] sm:$0xf]
      %v393 = vld [vmem:[%s343 + $0x4] sm:$0xf]
      %v394 = vld [vmem:[%s343 + $0x8] sm:$0x1]
      %v395 = vld [vmem:[%s343 + $0xc] sm:$0xf]
      %v396 = vld [vmem:[%s343 + $0x10] sm:$0xf]
      %v397 = vld [vmem:[%s343 + $0x14] sm:$0x1]
      %v398 = vld [vmem:[%s343 + $0x18] sm:$0xf]
      %v399 = vld [vmem:[%s343 + $0x1c] sm:$0xf]
      %v400 = vld [vmem:[%s343 + $0x20] sm:$0x1]
      %v401 = vld [vmem:[%s343 + $0x24] sm:$0xf]
      %v402 = vld [vmem:[%s343 + $0x28] sm:$0xf]
      %v403 = vld [vmem:[%s343 + $0x2c] sm:$0x1]
      %v404 = vld [vmem:[%s343 + $0x30] sm:$0xf]
      %v405 = vld [vmem:[%s343 + $0x34] sm:$0xf]
      %v406 = vld [vmem:[%s343 + $0x38] sm:$0x1]
      %v407 = vld [vmem:[%s343 + $0x3c] sm:$0xf]
      %v408 = vld [vmem:[%s343 + $0x40] sm:$0xf]
      %v409 = vld [vmem:[%s343 + $0x44] sm:$0x1]
      %v410 = vld [vmem:[%s343 + $0x48] sm:$0xf]
      %v411 = vld [vmem:[%s343 + $0x4c] sm:$0xf]
      %v412 = vld [vmem:[%s343 + $0x50] sm:$0x1]
      %v413 = vld [vmem:[%s343 + $0x54] sm:$0xf]
      %v414 = vld [vmem:[%s343 + $0x58] sm:$0xf]
      %v415 = vld [vmem:[%s343 + $0x5c] sm:$0x1]
      %v416 = vld [vmem:[%s343 + $0x60] sm:$0xf]
      %v417 = vld [vmem:[%s343 + $0x64] sm:$0xf]
      %v418 = vld [vmem:[%s343 + $0x68] sm:$0x1]
      %v419 = vld [vmem:[%s343 + $0x6c] sm:$0xf]
      %v420 = vld [vmem:[%s343 + $0x70] sm:$0xf]
      %v421 = vld [vmem:[%s343 + $0x74] sm:$0x1]
      %v422 = vld [vmem:[%s343 + $0x78] sm:$0xf]
      %v423 = vld [vmem:[%s343 + $0x7c] sm:$0xf]
      %v424 = vld [vmem:[%s343 + $0x80] sm:$0x1]
      %v425 = vld [vmem:[%s343 + $0x84] sm:$0xf]
      %v426 = vld [vmem:[%s343 + $0x88] sm:$0xf]
      %v427 = vld [vmem:[%s343 + $0x8c] sm:$0x1]
      %v428 = vld [vmem:[%s343 + $0x90] sm:$0xf]
      %v429 = vld [vmem:[%s343 + $0x94] sm:$0xf]
      %v430 = vld [vmem:[%s343 + $0x98] sm:$0x1]
      %v431 = vld [vmem:[%s343 + $0x9c] sm:$0xf]
      %v432 = vld [vmem:[%s343 + $0xa0] sm:$0xf]
      %v433 = vld [vmem:[%s343 + $0xa4] sm:$0x1]
      %v434 = vld [vmem:[%s343 + $0xa8] sm:$0xf]
      %v435 = vld [vmem:[%s343 + $0xac] sm:$0xf]
      %v436 = vld [vmem:[%s343 + $0xb0] sm:$0x1]
      %v437 = vld [vmem:[%s343 + $0xb4] sm:$0xf]
      %v438 = vld [vmem:[%s343 + $0xb8] sm:$0xf]
      %v439 = vld [vmem:[%s343 + $0xbc] sm:$0x1]
      %v443 = vunpack.c.l.b16 %v392
      %v444 = vunpack.c.l.b16 %v393
      %v445 = vunpack.c.l.b16 %v394
      %v446 = vpack.c.b16 %v444, %v443
      %v447 = vpack.c.b16 %v445, %v445
      %vm449 = vcmask 138240
      %v451 = vsel %vm449, %v376, 0
      %vm453 = vcmask 1040384
      %v454 = vsel 0, 4294967295, 65535
      %v455 = vsel %vm453, %v454, 0
      %v457 = vand.u32 %v447, %v455
      %459 = vmatprep.subr.bf16.mxu0 0
      %460 = vmatpush1.bf16.msra.mxu0 %v446
      %461 = vmatprep.subr.bf16.mxu0 0
      %462 = vmatpush1.bf16.msra.mxu0 %v457
      %463 = vmatprep.subr.bf16.mxu0 0
      %464 = vmatpush1.bf16.msra.mxu0 0
      %465 = vmatprep.subr.bf16.mxu0 0
      %466 = vmatpush1.bf16.msra.mxu0 0
      %467 = vmatprep.subr.bf16.mxu0 0
      %468 = vmatpush1.bf16.msra.mxu0 0
      %469 = vmatprep.subr.bf16.mxu0 0
      %470 = vmatpush1.bf16.msra.mxu0 0
      %471 = vmatprep.subr.bf16.mxu0 0
      %472 = vmatpush1.bf16.msra.mxu0 0
      %473 = vmatprep.subr.bf16.mxu0 0
      %474 = vmatpush1.bf16.msra.mxu0 0
      %475 = vmatprep.subr.bf16.mxu0 0
      %476 = vmatpush1.bf16.msra.mxu0 0
      %477 = vmatprep.subr.bf16.mxu0 0
      %478 = vmatpush1.bf16.msra.mxu0 0
      %479 = vmatprep.subr.bf16.mxu0 0
      %480 = vmatpush1.bf16.msra.mxu0 0
      %481 = vmatprep.subr.bf16.mxu0 0
      %482 = vmatpush1.bf16.msra.mxu0 0
      %483 = vmatprep.subr.bf16.mxu0 0
      %484 = vmatpush1.bf16.msra.mxu0 0
      %485 = vmatprep.subr.bf16.mxu0 0
      %486 = vmatpush1.bf16.msra.mxu0 0
      %487 = vmatprep.subr.bf16.mxu0 0
      %488 = vmatpush1.bf16.msra.mxu0 0
      %489 = vmatprep.subr.bf16.mxu0 0
      %490 = vmatpush1.bf16.msra.mxu0 0
      %491 = vmatprep.mubr.bf16.mxu0 0
      %492 = vmatmul.mubr.bf16.gmra.mrb[0].mxu0 %v451
      %v493 = vpop.f32.mrb[0].mxu0
      %v494 = vadd.f32 0.0, %v493
      %v495 = vpop.f32.mrb[0].mxu0
      %v496 = vpop.f32.mrb[0].mxu0
      %v497 = vpop.f32.mrb[0].mxu0
      %498 = vdwg.mxu0
      %v502 = vunpack.c.l.b16 %v395
      %v503 = vunpack.c.l.b16 %v396
      %v504 = vunpack.c.l.b16 %v397
      %v505 = vpack.c.b16 %v503, %v502
      %v506 = vpack.c.b16 %v504, %v504
      %v509 = vsel %vm449, %v377, 0
      %v512 = vand.u32 %v506, %v455
      %514 = vmatprep.subr.bf16.mxu0 0
      %515 = vmatpush1.bf16.msra.mxu0 %v505
      %516 = vmatprep.subr.bf16.mxu0 0
      %517 = vmatpush1.bf16.msra.mxu0 %v512
      %518 = vmatprep.subr.bf16.mxu0 0
      %519 = vmatpush1.bf16.msra.mxu0 0
      %520 = vmatprep.subr.bf16.mxu0 0
      %521 = vmatpush1.bf16.msra.mxu0 0
      %522 = vmatprep.subr.bf16.mxu0 0
      %523 = vmatpush1.bf16.msra.mxu0 0
      %524 = vmatprep.subr.bf16.mxu0 0
      %525 = vmatpush1.bf16.msra.mxu0 0
      %526 = vmatprep.subr.bf16.mxu0 0
      %527 = vmatpush1.bf16.msra.mxu0 0
      %528 = vmatprep.subr.bf16.mxu0 0
      %529 = vmatpush1.bf16.msra.mxu0 0
      %530 = vmatprep.subr.bf16.mxu0 0
      %531 = vmatpush1.bf16.msra.mxu0 0
      %532 = vmatprep.subr.bf16.mxu0 0
      %533 = vmatpush1.bf16.msra.mxu0 0
      %534 = vmatprep.subr.bf16.mxu0 0
      %535 = vmatpush1.bf16.msra.mxu0 0
      %536 = vmatprep.subr.bf16.mxu0 0
      %537 = vmatpush1.bf16.msra.mxu0 0
      %538 = vmatprep.subr.bf16.mxu0 0
      %539 = vmatpush1.bf16.msra.mxu0 0
      %540 = vmatprep.subr.bf16.mxu0 0
      %541 = vmatpush1.bf16.msra.mxu0 0
      %542 = vmatprep.subr.bf16.mxu0 0
      %543 = vmatpush1.bf16.msra.mxu0 0
      %544 = vmatprep.subr.bf16.mxu0 0
      %545 = vmatpush1.bf16.msra.mxu0 0
      %546 = vmatprep.mubr.bf16.mxu0 0
      %547 = vmatmul.mubr.bf16.gmra.mrb[0].mxu0 %v509
      %v548 = vpop.f32.mrb[0].mxu0
      %v549 = vadd.f32 0.0, %v548
      %v550 = vpop.f32.mrb[0].mxu0
      %v551 = vpop.f32.mrb[0].mxu0
      %v552 = vpop.f32.mrb[0].mxu0
      %553 = vdwg.mxu0
      %v557 = vunpack.c.l.b16 %v398
      %v558 = vunpack.c.l.b16 %v399
      %v559 = vunpack.c.l.b16 %v400
      %v560 = vpack.c.b16 %v558, %v557
      %v561 = vpack.c.b16 %v559, %v559
      %v564 = vsel %vm449, %v378, 0
      %v567 = vand.u32 %v561, %v455
      %569 = vmatprep.subr.bf16.mxu0 0
      %570 = vmatpush1.bf16.msra.mxu0 %v560
      %571 = vmatprep.subr.bf16.mxu0 0
      %572 = vmatpush1.bf16.msra.mxu0 %v567
      %573 = vmatprep.subr.bf16.mxu0 0
      %574 = vmatpush1.bf16.msra.mxu0 0
      %575 = vmatprep.subr.bf16.mxu0 0
      %576 = vmatpush1.bf16.msra.mxu0 0
      %577 = vmatprep.subr.bf16.mxu0 0
      %578 = vmatpush1.bf16.msra.mxu0 0
      %579 = vmatprep.subr.bf16.mxu0 0
      %580 = vmatpush1.bf16.msra.mxu0 0
      %581 = vmatprep.subr.bf16.mxu0 0
      %582 = vmatpush1.bf16.msra.mxu0 0
      %583 = vmatprep.subr.bf16.mxu0 0
      %584 = vmatpush1.bf16.msra.mxu0 0
      %585 = vmatprep.subr.bf16.mxu0 0
      %586 = vmatpush1.bf16.msra.mxu0 0
      %587 = vmatprep.subr.bf16.mxu0 0
      %588 = vmatpush1.bf16.msra.mxu0 0
      %589 = vmatprep.subr.bf16.mxu0 0
      %590 = vmatpush1.bf16.msra.mxu0 0
      %591 = vmatprep.subr.bf16.mxu0 0
      %592 = vmatpush1.bf16.msra.mxu0 0
      %593 = vmatprep.subr.bf16.mxu0 0
      %594 = vmatpush1.bf16.msra.mxu0 0
      %595 = vmatprep.subr.bf16.mxu0 0
      %596 = vmatpush1.bf16.msra.mxu0 0
      %597 = vmatprep.subr.bf16.mxu0 0
      %598 = vmatpush1.bf16.msra.mxu0 0
      %599 = vmatprep.subr.bf16.mxu0 0
      %600 = vmatpush1.bf16.msra.mxu0 0
      %601 = vmatprep.mubr.bf16.mxu0 0
      %602 = vmatmul.mubr.bf16.gmra.mrb[0].mxu0 %v564
      %v603 = vpop.f32.mrb[0].mxu0
      %v604 = vadd.f32 0.0, %v603
      %v605 = vpop.f32.mrb[0].mxu0
      %v606 = vpop.f32.mrb[0].mxu0
      %v607 = vpop.f32.mrb[0].mxu0
      %608 = vdwg.mxu0
      %v612 = vunpack.c.l.b16 %v401
      %v613 = vunpack.c.l.b16 %v402
      %v614 = vunpack.c.l.b16 %v403
      %v615 = vpack.c.b16 %v613, %v612
      %v616 = vpack.c.b16 %v614, %v614
      %v619 = vsel %vm449, %v379, 0
      %v622 = vand.u32 %v616, %v455
      %624 = vmatprep.subr.bf16.mxu0 0
      %625 = vmatpush1.bf16.msra.mxu0 %v615
      %626 = vmatprep.subr.bf16.mxu0 0
      %627 = vmatpush1.bf16.msra.mxu0 %v622
      %628 = vmatprep.subr.bf16.mxu0 0
      %629 = vmatpush1.bf16.msra.mxu0 0
      %630 = vmatprep.subr.bf16.mxu0 0
      %631 = vmatpush1.bf16.msra.mxu0 0
      %632 = vmatprep.subr.bf16.mxu0 0
      %633 = vmatpush1.bf16.msra.mxu0 0
      %634 = vmatprep.subr.bf16.mxu0 0
      %635 = vmatpush1.bf16.msra.mxu0 0
      %636 = vmatprep.subr.bf16.mxu0 0
      %637 = vmatpush1.bf16.msra.mxu0 0
      %638 = vmatprep.subr.bf16.mxu0 0
      %639 = vmatpush1.bf16.msra.mxu0 0
      %640 = vmatprep.subr.bf16.mxu0 0
      %641 = vmatpush1.bf16.msra.mxu0 0
      %642 = vmatprep.subr.bf16.mxu0 0
      %643 = vmatpush1.bf16.msra.mxu0 0
      %644 = vmatprep.subr.bf16.mxu0 0
      %645 = vmatpush1.bf16.msra.mxu0 0
      %646 = vmatprep.subr.bf16.mxu0 0
      %647 = vmatpush1.bf16.msra.mxu0 0
      %648 = vmatprep.subr.bf16.mxu0 0
      %649 = vmatpush1.bf16.msra.mxu0 0
      %650 = vmatprep.subr.bf16.mxu0 0
      %651 = vmatpush1.bf16.msra.mxu0 0
      %652 = vmatprep.subr.bf16.mxu0 0
      %653 = vmatpush1.bf16.msra.mxu0 0
      %654 = vmatprep.subr.bf16.mxu0 0
      %655 = vmatpush1.bf16.msra.mxu0 0
      %656 = vmatprep.mubr.bf16.mxu0 0
      %657 = vmatmul.mubr.bf16.gmra.mrb[0].mxu0 %v619
      %v658 = vpop.f32.mrb[0].mxu0
      %v659 = vadd.f32 0.0, %v658
      %v660 = vpop.f32.mrb[0].mxu0
      %v661 = vpop.f32.mrb[0].mxu0
      %v662 = vpop.f32.mrb[0].mxu0
      %663 = vdwg.mxu0
      %v667 = vunpack.c.l.b16 %v404
      %v668 = vunpack.c.l.b16 %v405
      %v669 = vunpack.c.l.b16 %v406
      %v670 = vpack.c.b16 %v668, %v667
      %v671 = vpack.c.b16 %v669, %v669
      %v674 = vsel %vm449, %v380, 0
      %v677 = vand.u32 %v671, %v455
      %679 = vmatprep.subr.bf16.mxu0 0
      %680 = vmatpush1.bf16.msra.mxu0 %v670
      %681 = vmatprep.subr.bf16.mxu0 0
      %682 = vmatpush1.bf16.msra.mxu0 %v677
      %683 = vmatprep.subr.bf16.mxu0 0
      %684 = vmatpush1.bf16.msra.mxu0 0
      %685 = vmatprep.subr.bf16.mxu0 0
      %686 = vmatpush1.bf16.msra.mxu0 0
      %687 = vmatprep.subr.bf16.mxu0 0
      %688 = vmatpush1.bf16.msra.mxu0 0
      %689 = vmatprep.subr.bf16.mxu0 0
      %690 = vmatpush1.bf16.msra.mxu0 0
      %691 = vmatprep.subr.bf16.mxu0 0
      %692 = vmatpush1.bf16.msra.mxu0 0
      %693 = vmatprep.subr.bf16.mxu0 0
      %694 = vmatpush1.bf16.msra.mxu0 0
      %695 = vmatprep.subr.bf16.mxu0 0
      %696 = vmatpush1.bf16.msra.mxu0 0
      %697 = vmatprep.subr.bf16.mxu0 0
      %698 = vmatpush1.bf16.msra.mxu0 0
      %699 = vmatprep.subr.bf16.mxu0 0
      %700 = vmatpush1.bf16.msra.mxu0 0
      %701 = vmatprep.subr.bf16.mxu0 0
      %702 = vmatpush1.bf16.msra.mxu0 0
      %703 = vmatprep.subr.bf16.mxu0 0
      %704 = vmatpush1.bf16.msra.mxu0 0
      %705 = vmatprep.subr.bf16.mxu0 0
      %706 = vmatpush1.bf16.msra.mxu0 0
      %707 = vmatprep.subr.bf16.mxu0 0
      %708 = vmatpush1.bf16.msra.mxu0 0
      %709 = vmatprep.subr.bf16.mxu0 0
      %710 = vmatpush1.bf16.msra.mxu0 0
      %711 = vmatprep.mubr.bf16.mxu0 0
      %712 = vmatmul.mubr.bf16.gmra.mrb[0].mxu0 %v674
      %v713 = vpop.f32.mrb[0].mxu0
      %v714 = vadd.f32 0.0, %v713
      %v715 = vpop.f32.mrb[0].mxu0
      %v716 = vpop.f32.mrb[0].mxu0
      %v717 = vpop.f32.mrb[0].mxu0
      %718 = vdwg.mxu0
      %v722 = vunpack.c.l.b16 %v407
      %v723 = vunpack.c.l.b16 %v408
      %v724 = vunpack.c.l.b16 %v409
      %v725 = vpack.c.b16 %v723, %v722
      %v726 = vpack.c.b16 %v724, %v724
      %v729 = vsel %vm449, %v381, 0
      %v732 = vand.u32 %v726, %v455
      %734 = vmatprep.subr.bf16.mxu0 0
      %735 = vmatpush1.bf16.msra.mxu0 %v725
      %736 = vmatprep.subr.bf16.mxu0 0
      %737 = vmatpush1.bf16.msra.mxu0 %v732
      %738 = vmatprep.subr.bf16.mxu0 0
      %739 = vmatpush1.bf16.msra.mxu0 0
      %740 = vmatprep.subr.bf16.mxu0 0
      %741 = vmatpush1.bf16.msra.mxu0 0
      %742 = vmatprep.subr.bf16.mxu0 0
      %743 = vmatpush1.bf16.msra.mxu0 0
      %744 = vmatprep.subr.bf16.mxu0 0
      %745 = vmatpush1.bf16.msra.mxu0 0
      %746 = vmatprep.subr.bf16.mxu0 0
      %747 = vmatpush1.bf16.msra.mxu0 0
      %748 = vmatprep.subr.bf16.mxu0 0
      %749 = vmatpush1.bf16.msra.mxu0 0
      %750 = vmatprep.subr.bf16.mxu0 0
      %751 = vmatpush1.bf16.msra.mxu0 0
      %752 = vmatprep.subr.bf16.mxu0 0
      %753 = vmatpush1.bf16.msra.mxu0 0
      %754 = vmatprep.subr.bf16.mxu0 0
      %755 = vmatpush1.bf16.msra.mxu0 0
      %756 = vmatprep.subr.bf16.mxu0 0
      %757 = vmatpush1.bf16.msra.mxu0 0
      %758 = vmatprep.subr.bf16.mxu0 0
      %759 = vmatpush1.bf16.msra.mxu0 0
      %760 = vmatprep.subr.bf16.mxu0 0
      %761 = vmatpush1.bf16.msra.mxu0 0
      %762 = vmatprep.subr.bf16.mxu0 0
      %763 = vmatpush1.bf16.msra.mxu0 0
      %764 = vmatprep.subr.bf16.mxu0 0
      %765 = vmatpush1.bf16.msra.mxu0 0
      %766 = vmatprep.mubr.bf16.mxu0 0
      %767 = vmatmul.mubr.bf16.gmra.mrb[0].mxu0 %v729
      %v768 = vpop.f32.mrb[0].mxu0
      %v769 = vadd.f32 0.0, %v768
      %v770 = vpop.f32.mrb[0].mxu0
      %v771 = vpop.f32.mrb[0].mxu0
      %v772 = vpop.f32.mrb[0].mxu0
      %773 = vdwg.mxu0
      %v777 = vunpack.c.l.b16 %v410
      %v778 = vunpack.c.l.b16 %v411
      %v779 = vunpack.c.l.b16 %v412
      %v780 = vpack.c.b16 %v778, %v777
      %v781 = vpack.c.b16 %v779, %v779
      %v784 = vsel %vm449, %v382, 0
      %v787 = vand.u32 %v781, %v455
      %789 = vmatprep.subr.bf16.mxu0 0
      %790 = vmatpush1.bf16.msra.mxu0 %v780
      %791 = vmatprep.subr.bf16.mxu0 0
      %792 = vmatpush1.bf16.msra.mxu0 %v787
      %793 = vmatprep.subr.bf16.mxu0 0
      %794 = vmatpush1.bf16.msra.mxu0 0
      %795 = vmatprep.subr.bf16.mxu0 0
      %796 = vmatpush1.bf16.msra.mxu0 0
      %797 = vmatprep.subr.bf16.mxu0 0
      %798 = vmatpush1.bf16.msra.mxu0 0
      %799 = vmatprep.subr.bf16.mxu0 0
      %800 = vmatpush1.bf16.msra.mxu0 0
      %801 = vmatprep.subr.bf16.mxu0 0
      %802 = vmatpush1.bf16.msra.mxu0 0
      %803 = vmatprep.subr.bf16.mxu0 0
      %804 = vmatpush1.bf16.msra.mxu0 0
      %805 = vmatprep.subr.bf16.mxu0 0
      %806 = vmatpush1.bf16.msra.mxu0 0
      %807 = vmatprep.subr.bf16.mxu0 0
      %808 = vmatpush1.bf16.msra.mxu0 0
      %809 = vmatprep.subr.bf16.mxu0 0
      %810 = vmatpush1.bf16.msra.mxu0 0
      %811 = vmatprep.subr.bf16.mxu0 0
      %812 = vmatpush1.bf16.msra.mxu0 0
      %813 = vmatprep.subr.bf16.mxu0 0
      %814 = vmatpush1.bf16.msra.mxu0 0
      %815 = vmatprep.subr.bf16.mxu0 0
      %816 = vmatpush1.bf16.msra.mxu0 0
      %817 = vmatprep.subr.bf16.mxu0 0
      %818 = vmatpush1.bf16.msra.mxu0 0
      %819 = vmatprep.subr.bf16.mxu0 0
      %820 = vmatpush1.bf16.msra.mxu0 0
      %821 = vmatprep.mubr.bf16.mxu0 0
      %822 = vmatmul.mubr.bf16.gmra.mrb[0].mxu0 %v784
      %v823 = vpop.f32.mrb[0].mxu0
      %v824 = vadd.f32 0.0, %v823
      %v825 = vpop.f32.mrb[0].mxu0
      %v826 = vpop.f32.mrb[0].mxu0
      %v827 = vpop.f32.mrb[0].mxu0
      %828 = vdwg.mxu0
      %v832 = vunpack.c.l.b16 %v413
      %v833 = vunpack.c.l.b16 %v414
      %v834 = vunpack.c.l.b16 %v415
      %v835 = vpack.c.b16 %v833, %v832
      %v836 = vpack.c.b16 %v834, %v834
      %v839 = vsel %vm449, %v383, 0
      %v842 = vand.u32 %v836, %v455
      %844 = vmatprep.subr.bf16.mxu0 0
      %845 = vmatpush1.bf16.msra.mxu0 %v835
      %846 = vmatprep.subr.bf16.mxu0 0
      %847 = vmatpush1.bf16.msra.mxu0 %v842
      %848 = vmatprep.subr.bf16.mxu0 0
      %849 = vmatpush1.bf16.msra.mxu0 0
      %850 = vmatprep.subr.bf16.mxu0 0
      %851 = vmatpush1.bf16.msra.mxu0 0
      %852 = vmatprep.subr.bf16.mxu0 0
      %853 = vmatpush1.bf16.msra.mxu0 0
      %854 = vmatprep.subr.bf16.mxu0 0
      %855 = vmatpush1.bf16.msra.mxu0 0
      %856 = vmatprep.subr.bf16.mxu0 0
      %857 = vmatpush1.bf16.msra.mxu0 0
      %858 = vmatprep.subr.bf16.mxu0 0
      %859 = vmatpush1.bf16.msra.mxu0 0
      %860 = vmatprep.subr.bf16.mxu0 0
      %861 = vmatpush1.bf16.msra.mxu0 0
      %862 = vmatprep.subr.bf16.mxu0 0
      %863 = vmatpush1.bf16.msra.mxu0 0
      %864 = vmatprep.subr.bf16.mxu0 0
      %865 = vmatpush1.bf16.msra.mxu0 0
      %866 = vmatprep.subr.bf16.mxu0 0
      %867 = vmatpush1.bf16.msra.mxu0 0
      %868 = vmatprep.subr.bf16.mxu0 0
      %869 = vmatpush1.bf16.msra.mxu0 0
      %870 = vmatprep.subr.bf16.mxu0 0
      %871 = vmatpush1.bf16.msra.mxu0 0
      %872 = vmatprep.subr.bf16.mxu0 0
      %873 = vmatpush1.bf16.msra.mxu0 0
      %874 = vmatprep.subr.bf16.mxu0 0
      %875 = vmatpush1.bf16.msra.mxu0 0
      %876 = vmatprep.mubr.bf16.mxu0 0
      %877 = vmatmul.mubr.bf16.gmra.mrb[0].mxu0 %v839
      %v878 = vpop.f32.mrb[0].mxu0
      %v879 = vadd.f32 0.0, %v878
      %v880 = vpop.f32.mrb[0].mxu0
      %v881 = vpop.f32.mrb[0].mxu0
      %v882 = vpop.f32.mrb[0].mxu0
      %883 = vdwg.mxu0
      %v887 = vunpack.c.l.b16 %v416
      %v888 = vunpack.c.l.b16 %v417
      %v889 = vunpack.c.l.b16 %v418
      %v890 = vpack.c.b16 %v888, %v887
      %v891 = vpack.c.b16 %v889, %v889
      %v894 = vsel %vm449, %v384, 0
      %v897 = vand.u32 %v891, %v455
      %899 = vmatprep.subr.bf16.mxu0 0
      %900 = vmatpush1.bf16.msra.mxu0 %v890
      %901 = vmatprep.subr.bf16.mxu0 0
      %902 = vmatpush1.bf16.msra.mxu0 %v897
      %903 = vmatprep.subr.bf16.mxu0 0
      %904 = vmatpush1.bf16.msra.mxu0 0
      %905 = vmatprep.subr.bf16.mxu0 0
      %906 = vmatpush1.bf16.msra.mxu0 0
      %907 = vmatprep.subr.bf16.mxu0 0
      %908 = vmatpush1.bf16.msra.mxu0 0
      %909 = vmatprep.subr.bf16.mxu0 0
      %910 = vmatpush1.bf16.msra.mxu0 0
      %911 = vmatprep.subr.bf16.mxu0 0
      %912 = vmatpush1.bf16.msra.mxu0 0
      %913 = vmatprep.subr.bf16.mxu0 0
      %914 = vmatpush1.bf16.msra.mxu0 0
      %915 = vmatprep.subr.bf16.mxu0 0
      %916 = vmatpush1.bf16.msra.mxu0 0
      %917 = vmatprep.subr.bf16.mxu0 0
      %918 = vmatpush1.bf16.msra.mxu0 0
      %919 = vmatprep.subr.bf16.mxu0 0
      %920 = vmatpush1.bf16.msra.mxu0 0
      %921 = vmatprep.subr.bf16.mxu0 0
      %922 = vmatpush1.bf16.msra.mxu0 0
      %923 = vmatprep.subr.bf16.mxu0 0
      %924 = vmatpush1.bf16.msra.mxu0 0
      %925 = vmatprep.subr.bf16.mxu0 0
      %926 = vmatpush1.bf16.msra.mxu0 0
      %927 = vmatprep.subr.bf16.mxu0 0
      %928 = vmatpush1.bf16.msra.mxu0 0
      %929 = vmatprep.subr.bf16.mxu0 0
      %930 = vmatpush1.bf16.msra.mxu0 0
      %931 = vmatprep.mubr.bf16.mxu0 0
      %932 = vmatmul.mubr.bf16.gmra.mrb[0].mxu0 %v894
      %v933 = vpop.f32.mrb[0].mxu0
      %v934 = vadd.f32 0.0, %v933
      %v935 = vpop.f32.mrb[0].mxu0
      %v936 = vpop.f32.mrb[0].mxu0
      %v937 = vpop.f32.mrb[0].mxu0
      %938 = vdwg.mxu0
      %v942 = vunpack.c.l.b16 %v419
      %v943 = vunpack.c.l.b16 %v420
      %v944 = vunpack.c.l.b16 %v421
      %v945 = vpack.c.b16 %v943, %v942
      %v946 = vpack.c.b16 %v944, %v944
      %v949 = vsel %vm449, %v385, 0
      %v952 = vand.u32 %v946, %v455
      %954 = vmatprep.subr.bf16.mxu0 0
      %955 = vmatpush1.bf16.msra.mxu0 %v945
      %956 = vmatprep.subr.bf16.mxu0 0
      %957 = vmatpush1.bf16.msra.mxu0 %v952
      %958 = vmatprep.subr.bf16.mxu0 0
      %959 = vmatpush1.bf16.msra.mxu0 0
      %960 = vmatprep.subr.bf16.mxu0 0
      %961 = vmatpush1.bf16.msra.mxu0 0
      %962 = vmatprep.subr.bf16.mxu0 0
      %963 = vmatpush1.bf16.msra.mxu0 0
      %964 = vmatprep.subr.bf16.mxu0 0
      %965 = vmatpush1.bf16.msra.mxu0 0
      %966 = vmatprep.subr.bf16.mxu0 0
      %967 = vmatpush1.bf16.msra.mxu0 0
      %968 = vmatprep.subr.bf16.mxu0 0
      %969 = vmatpush1.bf16.msra.mxu0 0
      %970 = vmatprep.subr.bf16.mxu0 0
      %971 = vmatpush1.bf16.msra.mxu0 0
      %972 = vmatprep.subr.bf16.mxu0 0
      %973 = vmatpush1.bf16.msra.mxu0 0
      %974 = vmatprep.subr.bf16.mxu0 0
      %975 = vmatpush1.bf16.msra.mxu0 0
      %976 = vmatprep.subr.bf16.mxu0 0
      %977 = vmatpush1.bf16.msra.mxu0 0
      %978 = vmatprep.subr.bf16.mxu0 0
      %979 = vmatpush1.bf16.msra.mxu0 0
      %980 = vmatprep.subr.bf16.mxu0 0
      %981 = vmatpush1.bf16.msra.mxu0 0
      %982 = vmatprep.subr.bf16.mxu0 0
      %983 = vmatpush1.bf16.msra.mxu0 0
      %984 = vmatprep.subr.bf16.mxu0 0
      %985 = vmatpush1.bf16.msra.mxu0 0
      %986 = vmatprep.mubr.bf16.mxu0 0
      %987 = vmatmul.mubr.bf16.gmra.mrb[0].mxu0 %v949
      %v988 = vpop.f32.mrb[0].mxu0
      %v989 = vadd.f32 0.0, %v988
      %v990 = vpop.f32.mrb[0].mxu0
      %v991 = vpop.f32.mrb[0].mxu0
      %v992 = vpop.f32.mrb[0].mxu0
      %993 = vdwg.mxu0
      %v997 = vunpack.c.l.b16 %v422
      %v998 = vunpack.c.l.b16 %v423
      %v999 = vunpack.c.l.b16 %v424
      %v1000 = vpack.c.b16 %v998, %v997
      %v1001 = vpack.c.b16 %v999, %v999
      %v1004 = vsel %vm449, %v386, 0
      %v1007 = vand.u32 %v1001, %v455
      %1009 = vmatprep.subr.bf16.mxu0 0
      %1010 = vmatpush1.bf16.msra.mxu0 %v1000
      %1011 = vmatprep.subr.bf16.mxu0 0
      %1012 = vmatpush1.bf16.msra.mxu0 %v1007
      %1013 = vmatprep.subr.bf16.mxu0 0
      %1014 = vmatpush1.bf16.msra.mxu0 0
      %1015 = vmatprep.subr.bf16.mxu0 0
      %1016 = vmatpush1.bf16.msra.mxu0 0
      %1017 = vmatprep.subr.bf16.mxu0 0
      %1018 = vmatpush1.bf16.msra.mxu0 0
      %1019 = vmatprep.subr.bf16.mxu0 0
      %1020 = vmatpush1.bf16.msra.mxu0 0
      %1021 = vmatprep.subr.bf16.mxu0 0
      %1022 = vmatpush1.bf16.msra.mxu0 0
      %1023 = vmatprep.subr.bf16.mxu0 0
      %1024 = vmatpush1.bf16.msra.mxu0 0
      %1025 = vmatprep.subr.bf16.mxu0 0
      %1026 = vmatpush1.bf16.msra.mxu0 0
      %1027 = vmatprep.subr.bf16.mxu0 0
      %1028 = vmatpush1.bf16.msra.mxu0 0
      %1029 = vmatprep.subr.bf16.mxu0 0
      %1030 = vmatpush1.bf16.msra.mxu0 0
      %1031 = vmatprep.subr.bf16.mxu0 0
      %1032 = vmatpush1.bf16.msra.mxu0 0
      %1033 = vmatprep.subr.bf16.mxu0 0
      %1034 = vmatpush1.bf16.msra.mxu0 0
      %1035 = vmatprep.subr.bf16.mxu0 0
      %1036 = vmatpush1.bf16.msra.mxu0 0
      %1037 = vmatprep.subr.bf16.mxu0 0
      %1038 = vmatpush1.bf16.msra.mxu0 0
      %1039 = vmatprep.subr.bf16.mxu0 0
      %1040 = vmatpush1.bf16.msra.mxu0 0
      %1041 = vmatprep.mubr.bf16.mxu0 0
      %1042 = vmatmul.mubr.bf16.gmra.mrb[0].mxu0 %v1004
      %v1043 = vpop.f32.mrb[0].mxu0
      %v1044 = vadd.f32 0.0, %v1043
      %v1045 = vpop.f32.mrb[0].mxu0
      %v1046 = vpop.f32.mrb[0].mxu0
      %v1047 = vpop.f32.mrb[0].mxu0
      %1048 = vdwg.mxu0
      %v1052 = vunpack.c.l.b16 %v425
      %v1053 = vunpack.c.l.b16 %v426
      %v1054 = vunpack.c.l.b16 %v427
      %v1055 = vpack.c.b16 %v1053, %v1052
      %v1056 = vpack.c.b16 %v1054, %v1054
      %v1059 = vsel %vm449, %v387, 0
      %v1062 = vand.u32 %v1056, %v455
      %1064 = vmatprep.subr.bf16.mxu0 0
      %1065 = vmatpush1.bf16.msra.mxu0 %v1055
      %1066 = vmatprep.subr.bf16.mxu0 0
      %1067 = vmatpush1.bf16.msra.mxu0 %v1062
      %1068 = vmatprep.subr.bf16.mxu0 0
      %1069 = vmatpush1.bf16.msra.mxu0 0
      %1070 = vmatprep.subr.bf16.mxu0 0
      %1071 = vmatpush1.bf16.msra.mxu0 0
      %1072 = vmatprep.subr.bf16.mxu0 0
      %1073 = vmatpush1.bf16.msra.mxu0 0
      %1074 = vmatprep.subr.bf16.mxu0 0
      %1075 = vmatpush1.bf16.msra.mxu0 0
      %1076 = vmatprep.subr.bf16.mxu0 0
      %1077 = vmatpush1.bf16.msra.mxu0 0
      %1078 = vmatprep.subr.bf16.mxu0 0
      %1079 = vmatpush1.bf16.msra.mxu0 0
      %1080 = vmatprep.subr.bf16.mxu0 0
      %1081 = vmatpush1.bf16.msra.mxu0 0
      %1082 = vmatprep.subr.bf16.mxu0 0
      %1083 = vmatpush1.bf16.msra.mxu0 0
      %1084 = vmatprep.subr.bf16.mxu0 0
      %1085 = vmatpush1.bf16.msra.mxu0 0
      %1086 = vmatprep.subr.bf16.mxu0 0
      %1087 = vmatpush1.bf16.msra.mxu0 0
      %1088 = vmatprep.subr.bf16.mxu0 0
      %1089 = vmatpush1.bf16.msra.mxu0 0
      %1090 = vmatprep.subr.bf16.mxu0 0
      %1091 = vmatpush1.bf16.msra.mxu0 0
      %1092 = vmatprep.subr.bf16.mxu0 0
      %1093 = vmatpush1.bf16.msra.mxu0 0
      %1094 = vmatprep.subr.bf16.mxu0 0
      %1095 = vmatpush1.bf16.msra.mxu0 0
      %1096 = vmatprep.mubr.bf16.mxu0 0
      %1097 = vmatmul.mubr.bf16.gmra.mrb[0].mxu0 %v1059
      %v1098 = vpop.f32.mrb[0].mxu0
      %v1099 = vadd.f32 0.0, %v1098
      %v1100 = vpop.f32.mrb[0].mxu0
      %v1101 = vpop.f32.mrb[0].mxu0
      %v1102 = vpop.f32.mrb[0].mxu0
      %1103 = vdwg.mxu0
      %v1107 = vunpack.c.l.b16 %v428
      %v1108 = vunpack.c.l.b16 %v429
      %v1109 = vunpack.c.l.b16 %v430
      %v1110 = vpack.c.b16 %v1108, %v1107
      %v1111 = vpack.c.b16 %v1109, %v1109
      %v1114 = vsel %vm449, %v388, 0
      %v1117 = vand.u32 %v1111, %v455
      %1119 = vmatprep.subr.bf16.mxu0 0
      %1120 = vmatpush1.bf16.msra.mxu0 %v1110
      %1121 = vmatprep.subr.bf16.mxu0 0
      %1122 = vmatpush1.bf16.msra.mxu0 %v1117
      %1123 = vmatprep.subr.bf16.mxu0 0
      %1124 = vmatpush1.bf16.msra.mxu0 0
      %1125 = vmatprep.subr.bf16.mxu0 0
      %1126 = vmatpush1.bf16.msra.mxu0 0
      %1127 = vmatprep.subr.bf16.mxu0 0
      %1128 = vmatpush1.bf16.msra.mxu0 0
      %1129 = vmatprep.subr.bf16.mxu0 0
      %1130 = vmatpush1.bf16.msra.mxu0 0
      %1131 = vmatprep.subr.bf16.mxu0 0
      %1132 = vmatpush1.bf16.msra.mxu0 0
      %1133 = vmatprep.subr.bf16.mxu0 0
      %1134 = vmatpush1.bf16.msra.mxu0 0
      %1135 = vmatprep.subr.bf16.mxu0 0
      %1136 = vmatpush1.bf16.msra.mxu0 0
      %1137 = vmatprep.subr.bf16.mxu0 0
      %1138 = vmatpush1.bf16.msra.mxu0 0
      %1139 = vmatprep.subr.bf16.mxu0 0
      %1140 = vmatpush1.bf16.msra.mxu0 0
      %1141 = vmatprep.subr.bf16.mxu0 0
      %1142 = vmatpush1.bf16.msra.mxu0 0
      %1143 = vmatprep.subr.bf16.mxu0 0
      %1144 = vmatpush1.bf16.msra.mxu0 0
      %1145 = vmatprep.subr.bf16.mxu0 0
      %1146 = vmatpush1.bf16.msra.mxu0 0
      %1147 = vmatprep.subr.bf16.mxu0 0
      %1148 = vmatpush1.bf16.msra.mxu0 0
      %1149 = vmatprep.subr.bf16.mxu0 0
      %1150 = vmatpush1.bf16.msra.mxu0 0
      %1151 = vmatprep.mubr.bf16.mxu0 0
      %1152 = vmatmul.mubr.bf16.gmra.mrb[0].mxu0 %v1114
      %v1153 = vpop.f32.mrb[0].mxu0
      %v1154 = vadd.f32 0.0, %v1153
      %v1155 = vpop.f32.mrb[0].mxu0
      %v1156 = vpop.f32.mrb[0].mxu0
      %v1157 = vpop.f32.mrb[0].mxu0
      %1158 = vdwg.mxu0
      %v1162 = vunpack.c.l.b16 %v431
      %v1163 = vunpack.c.l.b16 %v432
      %v1164 = vunpack.c.l.b16 %v433
      %v1165 = vpack.c.b16 %v1163, %v1162
      %v1166 = vpack.c.b16 %v1164, %v1164
      %v1169 = vsel %vm449, %v389, 0
      %v1172 = vand.u32 %v1166, %v455
      %1174 = vmatprep.subr.bf16.mxu0 0
      %1175 = vmatpush1.bf16.msra.mxu0 %v1165
      %1176 = vmatprep.subr.bf16.mxu0 0
      %1177 = vmatpush1.bf16.msra.mxu0 %v1172
      %1178 = vmatprep.subr.bf16.mxu0 0
      %1179 = vmatpush1.bf16.msra.mxu0 0
      %1180 = vmatprep.subr.bf16.mxu0 0
      %1181 = vmatpush1.bf16.msra.mxu0 0
      %1182 = vmatprep.subr.bf16.mxu0 0
      %1183 = vmatpush1.bf16.msra.mxu0 0
      %1184 = vmatprep.subr.bf16.mxu0 0
      %1185 = vmatpush1.bf16.msra.mxu0 0
      %1186 = vmatprep.subr.bf16.mxu0 0
      %1187 = vmatpush1.bf16.msra.mxu0 0
      %1188 = vmatprep.subr.bf16.mxu0 0
      %1189 = vmatpush1.bf16.msra.mxu0 0
      %1190 = vmatprep.subr.bf16.mxu0 0
      %1191 = vmatpush1.bf16.msra.mxu0 0
      %1192 = vmatprep.subr.bf16.mxu0 0
      %1193 = vmatpush1.bf16.msra.mxu0 0
      %1194 = vmatprep.subr.bf16.mxu0 0
      %1195 = vmatpush1.bf16.msra.mxu0 0
      %1196 = vmatprep.subr.bf16.mxu0 0
      %1197 = vmatpush1.bf16.msra.mxu0 0
      %1198 = vmatprep.subr.bf16.mxu0 0
      %1199 = vmatpush1.bf16.msra.mxu0 0
      %1200 = vmatprep.subr.bf16.mxu0 0
      %1201 = vmatpush1.bf16.msra.mxu0 0
      %1202 = vmatprep.subr.bf16.mxu0 0
      %1203 = vmatpush1.bf16.msra.mxu0 0
      %1204 = vmatprep.subr.bf16.mxu0 0
      %1205 = vmatpush1.bf16.msra.mxu0 0
      %1206 = vmatprep.mubr.bf16.mxu0 0
      %1207 = vmatmul.mubr.bf16.gmra.mrb[0].mxu0 %v1169
      %v1208 = vpop.f32.mrb[0].mxu0
      %v1209 = vadd.f32 0.0, %v1208
      %v1210 = vpop.f32.mrb[0].mxu0
      %v1211 = vpop.f32.mrb[0].mxu0
      %v1212 = vpop.f32.mrb[0].mxu0
      %1213 = vdwg.mxu0
      %v1217 = vunpack.c.l.b16 %v434
      %v1218 = vunpack.c.l.b16 %v435
      %v1219 = vunpack.c.l.b16 %v436
      %v1220 = vpack.c.b16 %v1218, %v1217
      %v1221 = vpack.c.b16 %v1219, %v1219
      %v1224 = vsel %vm449, %v390, 0
      %v1227 = vand.u32 %v1221, %v455
      %1229 = vmatprep.subr.bf16.mxu0 0
      %1230 = vmatpush1.bf16.msra.mxu0 %v1220
      %1231 = vmatprep.subr.bf16.mxu0 0
      %1232 = vmatpush1.bf16.msra.mxu0 %v1227
      %1233 = vmatprep.subr.bf16.mxu0 0
      %1234 = vmatpush1.bf16.msra.mxu0 0
      %1235 = vmatprep.subr.bf16.mxu0 0
      %1236 = vmatpush1.bf16.msra.mxu0 0
      %1237 = vmatprep.subr.bf16.mxu0 0
      %1238 = vmatpush1.bf16.msra.mxu0 0
      %1239 = vmatprep.subr.bf16.mxu0 0
      %1240 = vmatpush1.bf16.msra.mxu0 0
      %1241 = vmatprep.subr.bf16.mxu0 0
      %1242 = vmatpush1.bf16.msra.mxu0 0
      %1243 = vmatprep.subr.bf16.mxu0 0
      %1244 = vmatpush1.bf16.msra.mxu0 0
      %1245 = vmatprep.subr.bf16.mxu0 0
      %1246 = vmatpush1.bf16.msra.mxu0 0
      %1247 = vmatprep.subr.bf16.mxu0 0
      %1248 = vmatpush1.bf16.msra.mxu0 0
      %1249 = vmatprep.subr.bf16.mxu0 0
      %1250 = vmatpush1.bf16.msra.mxu0 0
      %1251 = vmatprep.subr.bf16.mxu0 0
      %1252 = vmatpush1.bf16.msra.mxu0 0
      %1253 = vmatprep.subr.bf16.mxu0 0
      %1254 = vmatpush1.bf16.msra.mxu0 0
      %1255 = vmatprep.subr.bf16.mxu0 0
      %1256 = vmatpush1.bf16.msra.mxu0 0
      %1257 = vmatprep.subr.bf16.mxu0 0
      %1258 = vmatpush1.bf16.msra.mxu0 0
      %1259 = vmatprep.subr.bf16.mxu0 0
      %1260 = vmatpush1.bf16.msra.mxu0 0
      %1261 = vmatprep.mubr.bf16.mxu0 0
      %1262 = vmatmul.mubr.bf16.gmra.mrb[0].mxu0 %v1224
      %v1263 = vpop.f32.mrb[0].mxu0
      %v1264 = vadd.f32 0.0, %v1263
      %v1265 = vpop.f32.mrb[0].mxu0
      %v1266 = vpop.f32.mrb[0].mxu0
      %v1267 = vpop.f32.mrb[0].mxu0
      %1268 = vdwg.mxu0
      %v1272 = vunpack.c.l.b16 %v437
      %v1273 = vunpack.c.l.b16 %v438
      %v1274 = vunpack.c.l.b16 %v439
      %v1275 = vpack.c.b16 %v1273, %v1272
      %v1276 = vpack.c.b16 %v1274, %v1274
      %v1279 = vsel %vm449, %v391, 0
      %v1282 = vand.u32 %v1276, %v455
      %1284 = vmatprep.subr.bf16.mxu0 0
      %1285 = vmatpush1.bf16.msra.mxu0 %v1275
      %1286 = vmatprep.subr.bf16.mxu0 0
      %1287 = vmatpush1.bf16.msra.mxu0 %v1282
      %1288 = vmatprep.subr.bf16.mxu0 0
      %1289 = vmatpush1.bf16.msra.mxu0 0
      %1290 = vmatprep.subr.bf16.mxu0 0
      %1291 = vmatpush1.bf16.msra.mxu0 0
      %1292 = vmatprep.subr.bf16.mxu0 0
      %1293 = vmatpush1.bf16.msra.mxu0 0
      %1294 = vmatprep.subr.bf16.mxu0 0
      %1295 = vmatpush1.bf16.msra.mxu0 0
      %1296 = vmatprep.subr.bf16.mxu0 0
      %1297 = vmatpush1.bf16.msra.mxu0 0
      %1298 = vmatprep.subr.bf16.mxu0 0
      %1299 = vmatpush1.bf16.msra.mxu0 0
      %1300 = vmatprep.subr.bf16.mxu0 0
      %1301 = vmatpush1.bf16.msra.mxu0 0
      %1302 = vmatprep.subr.bf16.mxu0 0
      %1303 = vmatpush1.bf16.msra.mxu0 0
      %1304 = vmatprep.subr.bf16.mxu0 0
      %1305 = vmatpush1.bf16.msra.mxu0 0
      %1306 = vmatprep.subr.bf16.mxu0 0
      %1307 = vmatpush1.bf16.msra.mxu0 0
      %1308 = vmatprep.subr.bf16.mxu0 0
      %1309 = vmatpush1.bf16.msra.mxu0 0
      %1310 = vmatprep.subr.bf16.mxu0 0
      %1311 = vmatpush1.bf16.msra.mxu0 0
      %1312 = vmatprep.subr.bf16.mxu0 0
      %1313 = vmatpush1.bf16.msra.mxu0 0
      %1314 = vmatprep.subr.bf16.mxu0 0
      %1315 = vmatpush1.bf16.msra.mxu0 0
      %1316 = vmatprep.mubr.bf16.mxu0 0
      %1317 = vmatmul.mubr.bf16.gmra.mrb[0].mxu0 %v1279
      %v1318 = vpop.f32.mrb[0].mxu0
      %v1319 = vadd.f32 0.0, %v1318
      %v1320 = vpop.f32.mrb[0].mxu0
      %v1321 = vpop.f32.mrb[0].mxu0
      %v1322 = vpop.f32.mrb[0].mxu0
      %1323 = vdwg.mxu0
      %1324 = vst.msk [vmem:[#allocation2] sm:$0xff] %vm449, %v494
      %1325 = vst.msk [vmem:[#allocation2 + $0x8] sm:$0xff] %vm449, %v549
      %1326 = vst.msk [vmem:[#allocation2 + $0x10] sm:$0xff] %vm449, %v604
      %1327 = vst.msk [vmem:[#allocation2 + $0x18] sm:$0xff] %vm449, %v659
      %1328 = vst.msk [vmem:[#allocation2 + $0x20] sm:$0xff] %vm449, %v714
      %1329 = vst.msk [vmem:[#allocation2 + $0x28] sm:$0xff] %vm449, %v769
      %1330 = vst.msk [vmem:[#allocation2 + $0x30] sm:$0xff] %vm449, %v824
      %1331 = vst.msk [vmem:[#allocation2 + $0x38] sm:$0xff] %vm449, %v879
      %1332 = vst.msk [vmem:[#allocation2 + $0x40] sm:$0xff] %vm449, %v934
      %1333 = vst.msk [vmem:[#allocation2 + $0x48] sm:$0xff] %vm449, %v989
      %1334 = vst.msk [vmem:[#allocation2 + $0x50] sm:$0xff] %vm449, %v1044
      %1335 = vst.msk [vmem:[#allocation2 + $0x58] sm:$0xff] %vm449, %v1099
      %1336 = vst.msk [vmem:[#allocation2 + $0x60] sm:$0xff] %vm449, %v1154
      %1337 = vst.msk [vmem:[#allocation2 + $0x68] sm:$0xff] %vm449, %v1209
      %1338 = vst.msk [vmem:[#allocation2 + $0x70] sm:$0xff] %vm449, %v1264
      %1339 = vst.msk [vmem:[#allocation2 + $0x78] sm:$0xff] %vm449, %v1319
      %s1340 = scalar_lea.vmem %s325, 64
      %v1341 = vld [vmem:[%s1340] sm:$0xf]
      %v1342 = vld [vmem:[%s1340 + $0x4] sm:$0xf]
      %v1343 = vld [vmem:[%s1340 + $0x8] sm:$0xf]
      %v1344 = vld [vmem:[%s1340 + $0xc] sm:$0xf]
      %v1345 = vld [vmem:[%s1340 + $0x10] sm:$0xf]
      %v1346 = vld [vmem:[%s1340 + $0x14] sm:$0xf]
      %v1347 = vld [vmem:[%s1340 + $0x18] sm:$0xf]
      %v1348 = vld [vmem:[%s1340 + $0x1c] sm:$0xf]
      %v1349 = vld [vmem:[%s1340 + $0x20] sm:$0xf]
      %v1350 = vld [vmem:[%s1340 + $0x24] sm:$0xf]
      %v1351 = vld [vmem:[%s1340 + $0x28] sm:$0xf]
      %v1352 = vld [vmem:[%s1340 + $0x2c] sm:$0xf]
      %v1353 = vld [vmem:[%s1340 + $0x30] sm:$0xf]
      %v1354 = vld [vmem:[%s1340 + $0x34] sm:$0xf]
      %v1355 = vld [vmem:[%s1340 + $0x38] sm:$0xf]
      %v1356 = vld [vmem:[%s1340 + $0x3c] sm:$0xf]
      %s1357 = scalar_lea.vmem %s343, 192
      %v1358 = vld [vmem:[%s1357] sm:$0xf]
      %v1359 = vld [vmem:[%s1357 + $0x4] sm:$0xf]
      %v1360 = vld [vmem:[%s1357 + $0x8] sm:$0x1]
      %v1361 = vld [vmem:[%s1357 + $0xc] sm:$0xf]
      %v1362 = vld [vmem:[%s1357 + $0x10] sm:$0xf]
      %v1363 = vld [vmem:[%s1357 + $0x14] sm:$0x1]
      %v1364 = vld [vmem:[%s1357 + $0x18] sm:$0xf]
      %v1365 = vld [vmem:[%s1357 + $0x1c] sm:$0xf]
      %v1366 = vld [vmem:[%s1357 + $0x20] sm:$0x1]
      %v1367 = vld [vmem:[%s1357 + $0x24] sm:$0xf]
      %v1368 = vld [vmem:[%s1357 + $0x28] sm:$0xf]
      %v1369 = vld [vmem:[%s1357 + $0x2c] sm:$0x1]
      %v1370 = vld [vmem:[%s1357 + $0x30] sm:$0xf]
      %v1371 = vld [vmem:[%s1357 + $0x34] sm:$0xf]
      %v1372 = vld [vmem:[%s1357 + $0x38] sm:$0x1]
      %v1373 = vld [vmem:[%s1357 + $0x3c] sm:$0xf]
      %v1374 = vld [vmem:[%s1357 + $0x40] sm:$0xf]
      %v1375 = vld [vmem:[%s1357 + $0x44] sm:$0x1]
      %v1376 = vld [vmem:[%s1357 + $0x48] sm:$0xf]
      %v1377 = vld [vmem:[%s1357 + $0x4c] sm:$0xf]
      %v1378 = vld [vmem:[%s1357 + $0x50] sm:$0x1]
      %v1379 = vld [vmem:[%s1357 + $0x54] sm:$0xf]
      %v1380 = vld [vmem:[%s1357 + $0x58] sm:$0xf]
      %v1381 = vld [vmem:[%s1357 + $0x5c] sm:$0x1]
      %v1382 = vld [vmem:[%s1357 + $0x60] sm:$0xf]
      %v1383 = vld [vmem:[%s1357 + $0x64] sm:$0xf]
      %v1384 = vld [vmem:[%s1357 + $0x68] sm:$0x1]
      %v1385 = vld [vmem:[%s1357 + $0x6c] sm:$0xf]
      %v1386 = vld [vmem:[%s1357 + $0x70] sm:$0xf]
      %v1387 = vld [vmem:[%s1357 + $0x74] sm:$0x1]
      %v1388 = vld [vmem:[%s1357 + $0x78] sm:$0xf]
      %v1389 = vld [vmem:[%s1357 + $0x7c] sm:$0xf]
      %v1390 = vld [vmem:[%s1357 + $0x80] sm:$0x1]
      %v1391 = vld [vmem:[%s1357 + $0x84] sm:$0xf]
      %v1392 = vld [vmem:[%s1357 + $0x88] sm:$0xf]
      %v1393 = vld [vmem:[%s1357 + $0x8c] sm:$0x1]
      %v1394 = vld [vmem:[%s1357 + $0x90] sm:$0xf]
      %v1395 = vld [vmem:[%s1357 + $0x94] sm:$0xf]
      %v1396 = vld [vmem:[%s1357 + $0x98] sm:$0x1]
      %v1397 = vld [vmem:[%s1357 + $0x9c] sm:$0xf]
      %v1398 = vld [vmem:[%s1357 + $0xa0] sm:$0xf]
      %v1399 = vld [vmem:[%s1357 + $0xa4] sm:$0x1]
      %v1400 = vld [vmem:[%s1357 + $0xa8] sm:$0xf]
      %v1401 = vld [vmem:[%s1357 + $0xac] sm:$0xf]
      %v1402 = vld [vmem:[%s1357 + $0xb0] sm:$0x1]
      %v1403 = vld [vmem:[%s1357 + $0xb4] sm:$0xf]
      %v1404 = vld [vmem:[%s1357 + $0xb8] sm:$0xf]
      %v1405 = vld [vmem:[%s1357 + $0xbc] sm:$0x1]
      %v1409 = vunpack.c.l.b16 %v1358
      %v1410 = vunpack.c.l.b16 %v1359
      %v1411 = vunpack.c.l.b16 %v1360
      %v1412 = vpack.c.b16 %v1410, %v1409
      %v1413 = vpack.c.b16 %v1411, %v1411
      %v1416 = vsel %vm449, %v1341, 0
      %v1419 = vand.u32 %v1413, %v455
      %1421 = vmatprep.subr.bf16.mxu0 0
      %1422 = vmatpush1.bf16.msra.mxu0 %v1412
      %1423 = vmatprep.subr.bf16.mxu0 0
      %1424 = vmatpush1.bf16.msra.mxu0 %v1419
      %1425 = vmatprep.subr.bf16.mxu0 0
      %1426 = vmatpush1.bf16.msra.mxu0 0
      %1427 = vmatprep.subr.bf16.mxu0 0
      %1428 = vmatpush1.bf16.msra.mxu0 0
      %1429 = vmatprep.subr.bf16.mxu0 0
      %1430 = vmatpush1.bf16.msra.mxu0 0
      %1431 = vmatprep.subr.bf16.mxu0 0
      %1432 = vmatpush1.bf16.msra.mxu0 0
      %1433 = vmatprep.subr.bf16.mxu0 0
      %1434 = vmatpush1.bf16.msra.mxu0 0
      %1435 = vmatprep.subr.bf16.mxu0 0
      %1436 = vmatpush1.bf16.msra.mxu0 0
      %1437 = vmatprep.subr.bf16.mxu0 0
      %1438 = vmatpush1.bf16.msra.mxu0 0
      %1439 = vmatprep.subr.bf16.mxu0 0
      %1440 = vmatpush1.bf16.msra.mxu0 0
      %1441 = vmatprep.subr.bf16.mxu0 0
      %1442 = vmatpush1.bf16.msra.mxu0 0
      %1443 = vmatprep.subr.bf16.mxu0 0
      %1444 = vmatpush1.bf16.msra.mxu0 0
      %1445 = vmatprep.subr.bf16.mxu0 0
      %1446 = vmatpush1.bf16.msra.mxu0 0
      %1447 = vmatprep.subr.bf16.mxu0 0
      %1448 = vmatpush1.bf16.msra.mxu0 0
      %1449 = vmatprep.subr.bf16.mxu0 0
      %1450 = vmatpush1.bf16.msra.mxu0 0
      %1451 = vmatprep.subr.bf16.mxu0 0
      %1452 = vmatpush1.bf16.msra.mxu0 0
      %1453 = vmatprep.mubr.bf16.mxu0 0
      %1454 = vmatmul.mubr.bf16.gmra.mrb[0].mxu0 %v1416
      %v1455 = vpop.f32.mrb[0].mxu0
      %v1456 = vadd.f32 0.0, %v1455
      %v1457 = vpop.f32.mrb[0].mxu0
      %v1458 = vpop.f32.mrb[0].mxu0
      %v1459 = vpop.f32.mrb[0].mxu0
      %1460 = vdwg.mxu0
      %v1464 = vunpack.c.l.b16 %v1361
      %v1465 = vunpack.c.l.b16 %v1362
      %v1466 = vunpack.c.l.b16 %v1363
      %v1467 = vpack.c.b16 %v1465, %v1464
      %v1468 = vpack.c.b16 %v1466, %v1466
      %v1471 = vsel %vm449, %v1342, 0
      %v1474 = vand.u32 %v1468, %v455
      %1476 = vmatprep.subr.bf16.mxu0 0
      %1477 = vmatpush1.bf16.msra.mxu0 %v1467
      %1478 = vmatprep.subr.bf16.mxu0 0
      %1479 = vmatpush1.bf16.msra.mxu0 %v1474
      %1480 = vmatprep.subr.bf16.mxu0 0
      %1481 = vmatpush1.bf16.msra.mxu0 0
      %1482 = vmatprep.subr.bf16.mxu0 0
      %1483 = vmatpush1.bf16.msra.mxu0 0
      %1484 = vmatprep.subr.bf16.mxu0 0
      %1485 = vmatpush1.bf16.msra.mxu0 0
      %1486 = vmatprep.subr.bf16.mxu0 0
      %1487 = vmatpush1.bf16.msra.mxu0 0
      %1488 = vmatprep.subr.bf16.mxu0 0
      %1489 = vmatpush1.bf16.msra.mxu0 0
      %1490 = vmatprep.subr.bf16.mxu0 0
      %1491 = vmatpush1.bf16.msra.mxu0 0
      %1492 = vmatprep.subr.bf16.mxu0 0
      %1493 = vmatpush1.bf16.msra.mxu0 0
      %1494 = vmatprep.subr.bf16.mxu0 0
      %1495 = vmatpush1.bf16.msra.mxu0 0
      %1496 = vmatprep.subr.bf16.mxu0 0
      %1497 = vmatpush1.bf16.msra.mxu0 0
      %1498 = vmatprep.subr.bf16.mxu0 0
      %1499 = vmatpush1.bf16.msra.mxu0 0
      %1500 = vmatprep.subr.bf16.mxu0 0
      %1501 = vmatpush1.bf16.msra.mxu0 0
      %1502 = vmatprep.subr.bf16.mxu0 0
      %1503 = vmatpush1.bf16.msra.mxu0 0
      %1504 = vmatprep.subr.bf16.mxu0 0
      %1505 = vmatpush1.bf16.msra.mxu0 0
      %1506 = vmatprep.subr.bf16.mxu0 0
      %1507 = vmatpush1.bf16.msra.mxu0 0
      %1508 = vmatprep.mubr.bf16.mxu0 0
      %1509 = vmatmul.mubr.bf16.gmra.mrb[0].mxu0 %v1471
      %v1510 = vpop.f32.mrb[0].mxu0
      %v1511 = vadd.f32 0.0, %v1510
      %v1512 = vpop.f32.mrb[0].mxu0
      %v1513 = vpop.f32.mrb[0].mxu0
      %v1514 = vpop.f32.mrb[0].mxu0
      %1515 = vdwg.mxu0
      %v1519 = vunpack.c.l.b16 %v1364
      %v1520 = vunpack.c.l.b16 %v1365
      %v1521 = vunpack.c.l.b16 %v1366
      %v1522 = vpack.c.b16 %v1520, %v1519
      %v1523 = vpack.c.b16 %v1521, %v1521
      %v1526 = vsel %vm449, %v1343, 0
      %v1529 = vand.u32 %v1523, %v455
      %1531 = vmatprep.subr.bf16.mxu0 0
      %1532 = vmatpush1.bf16.msra.mxu0 %v1522
      %1533 = vmatprep.subr.bf16.mxu0 0
      %1534 = vmatpush1.bf16.msra.mxu0 %v1529
      %1535 = vmatprep.subr.bf16.mxu0 0
      %1536 = vmatpush1.bf16.msra.mxu0 0
      %1537 = vmatprep.subr.bf16.mxu0 0
      %1538 = vmatpush1.bf16.msra.mxu0 0
      %1539 = vmatprep.subr.bf16.mxu0 0
      %1540 = vmatpush1.bf16.msra.mxu0 0
      %1541 = vmatprep.subr.bf16.mxu0 0
      %1542 = vmatpush1.bf16.msra.mxu0 0
      %1543 = vmatprep.subr.bf16.mxu0 0
      %1544 = vmatpush1.bf16.msra.mxu0 0
      %1545 = vmatprep.subr.bf16.mxu0 0
      %1546 = vmatpush1.bf16.msra.mxu0 0
      %1547 = vmatprep.subr.bf16.mxu0 0
      %1548 = vmatpush1.bf16.msra.mxu0 0
      %1549 = vmatprep.subr.bf16.mxu0 0
      %1550 = vmatpush1.bf16.msra.mxu0 0
      %1551 = vmatprep.subr.bf16.mxu0 0
      %1552 = vmatpush1.bf16.msra.mxu0 0
      %1553 = vmatprep.subr.bf16.mxu0 0
      %1554 = vmatpush1.bf16.msra.mxu0 0
      %1555 = vmatprep.subr.bf16.mxu0 0
      %1556 = vmatpush1.bf16.msra.mxu0 0
      %1557 = vmatprep.subr.bf16.mxu0 0
      %1558 = vmatpush1.bf16.msra.mxu0 0
      %1559 = vmatprep.subr.bf16.mxu0 0
      %1560 = vmatpush1.bf16.msra.mxu0 0
      %1561 = vmatprep.subr.bf16.mxu0 0
      %1562 = vmatpush1.bf16.msra.mxu0 0
      %1563 = vmatprep.mubr.bf16.mxu0 0
      %1564 = vmatmul.mubr.bf16.gmra.mrb[0].mxu0 %v1526
      %v1565 = vpop.f32.mrb[0].mxu0
      %v1566 = vadd.f32 0.0, %v1565
      %v1567 = vpop.f32.mrb[0].mxu0
      %v1568 = vpop.f32.mrb[0].mxu0
      %v1569 = vpop.f32.mrb[0].mxu0
      %1570 = vdwg.mxu0
      %v1574 = vunpack.c.l.b16 %v1367
      %v1575 = vunpack.c.l.b16 %v1368
      %v1576 = vunpack.c.l.b16 %v1369
      %v1577 = vpack.c.b16 %v1575, %v1574
      %v1578 = vpack.c.b16 %v1576, %v1576
      %v1581 = vsel %vm449, %v1344, 0
      %v1584 = vand.u32 %v1578, %v455
      %1586 = vmatprep.subr.bf16.mxu0 0
      %1587 = vmatpush1.bf16.msra.mxu0 %v1577
      %1588 = vmatprep.subr.bf16.mxu0 0
      %1589 = vmatpush1.bf16.msra.mxu0 %v1584
      %1590 = vmatprep.subr.bf16.mxu0 0
      %1591 = vmatpush1.bf16.msra.mxu0 0
      %1592 = vmatprep.subr.bf16.mxu0 0
      %1593 = vmatpush1.bf16.msra.mxu0 0
      %1594 = vmatprep.subr.bf16.mxu0 0
      %1595 = vmatpush1.bf16.msra.mxu0 0
      %1596 = vmatprep.subr.bf16.mxu0 0
      %1597 = vmatpush1.bf16.msra.mxu0 0
      %1598 = vmatprep.subr.bf16.mxu0 0
      %1599 = vmatpush1.bf16.msra.mxu0 0
      %1600 = vmatprep.subr.bf16.mxu0 0
      %1601 = vmatpush1.bf16.msra.mxu0 0
      %1602 = vmatprep.subr.bf16.mxu0 0
      %1603 = vmatpush1.bf16.msra.mxu0 0
      %1604 = vmatprep.subr.bf16.mxu0 0
      %1605 = vmatpush1.bf16.msra.mxu0 0
      %1606 = vmatprep.subr.bf16.mxu0 0
      %1607 = vmatpush1.bf16.msra.mxu0 0
      %1608 = vmatprep.subr.bf16.mxu0 0
      %1609 = vmatpush1.bf16.msra.mxu0 0
      %1610 = vmatprep.subr.bf16.mxu0 0
      %1611 = vmatpush1.bf16.msra.mxu0 0
      %1612 = vmatprep.subr.bf16.mxu0 0
      %1613 = vmatpush1.bf16.msra.mxu0 0
      %1614 = vmatprep.subr.bf16.mxu0 0
      %1615 = vmatpush1.bf16.msra.mxu0 0
      %1616 = vmatprep.subr.bf16.mxu0 0
      %1617 = vmatpush1.bf16.msra.mxu0 0
      %1618 = vmatprep.mubr.bf16.mxu0 0
      %1619 = vmatmul.mubr.bf16.gmra.mrb[0].mxu0 %v1581
      %v1620 = vpop.f32.mrb[0].mxu0
      %v1621 = vadd.f32 0.0, %v1620
      %v1622 = vpop.f32.mrb[0].mxu0
      %v1623 = vpop.f32.mrb[0].mxu0
      %v1624 = vpop.f32.mrb[0].mxu0
      %1625 = vdwg.mxu0
      %v1629 = vunpack.c.l.b16 %v1370
      %v1630 = vunpack.c.l.b16 %v1371
      %v1631 = vunpack.c.l.b16 %v1372
      %v1632 = vpack.c.b16 %v1630, %v1629
      %v1633 = vpack.c.b16 %v1631, %v1631
      %v1636 = vsel %vm449, %v1345, 0
      %v1639 = vand.u32 %v1633, %v455
      %1641 = vmatprep.subr.bf16.mxu0 0
      %1642 = vmatpush1.bf16.msra.mxu0 %v1632
      %1643 = vmatprep.subr.bf16.mxu0 0
      %1644 = vmatpush1.bf16.msra.mxu0 %v1639
      %1645 = vmatprep.subr.bf16.mxu0 0
      %1646 = vmatpush1.bf16.msra.mxu0 0
      %1647 = vmatprep.subr.bf16.mxu0 0
      %1648 = vmatpush1.bf16.msra.mxu0 0
      %1649 = vmatprep.subr.bf16.mxu0 0
      %1650 = vmatpush1.bf16.msra.mxu0 0
      %1651 = vmatprep.subr.bf16.mxu0 0
      %1652 = vmatpush1.bf16.msra.mxu0 0
      %1653 = vmatprep.subr.bf16.mxu0 0
      %1654 = vmatpush1.bf16.msra.mxu0 0
      %1655 = vmatprep.subr.bf16.mxu0 0
      %1656 = vmatpush1.bf16.msra.mxu0 0
      %1657 = vmatprep.subr.bf16.mxu0 0
      %1658 = vmatpush1.bf16.msra.mxu0 0
      %1659 = vmatprep.subr.bf16.mxu0 0
      %1660 = vmatpush1.bf16.msra.mxu0 0
      %1661 = vmatprep.subr.bf16.mxu0 0
      %1662 = vmatpush1.bf16.msra.mxu0 0
      %1663 = vmatprep.subr.bf16.mxu0 0
      %1664 = vmatpush1.bf16.msra.mxu0 0
      %1665 = vmatprep.subr.bf16.mxu0 0
      %1666 = vmatpush1.bf16.msra.mxu0 0
      %1667 = vmatprep.subr.bf16.mxu0 0
      %1668 = vmatpush1.bf16.msra.mxu0 0
      %1669 = vmatprep.subr.bf16.mxu0 0
      %1670 = vmatpush1.bf16.msra.mxu0 0
      %1671 = vmatprep.subr.bf16.mxu0 0
      %1672 = vmatpush1.bf16.msra.mxu0 0
      %1673 = vmatprep.mubr.bf16.mxu0 0
      %1674 = vmatmul.mubr.bf16.gmra.mrb[0].mxu0 %v1636
      %v1675 = vpop.f32.mrb[0].mxu0
      %v1676 = vadd.f32 0.0, %v1675
      %v1677 = vpop.f32.mrb[0].mxu0
      %v1678 = vpop.f32.mrb[0].mxu0
      %v1679 = vpop.f32.mrb[0].mxu0
      %1680 = vdwg.mxu0
      %v1684 = vunpack.c.l.b16 %v1373
      %v1685 = vunpack.c.l.b16 %v1374
      %v1686 = vunpack.c.l.b16 %v1375
      %v1687 = vpack.c.b16 %v1685, %v1684
      %v1688 = vpack.c.b16 %v1686, %v1686
      %v1691 = vsel %vm449, %v1346, 0
      %v1694 = vand.u32 %v1688, %v455
      %1696 = vmatprep.subr.bf16.mxu0 0
      %1697 = vmatpush1.bf16.msra.mxu0 %v1687
      %1698 = vmatprep.subr.bf16.mxu0 0
      %1699 = vmatpush1.bf16.msra.mxu0 %v1694
      %1700 = vmatprep.subr.bf16.mxu0 0
      %1701 = vmatpush1.bf16.msra.mxu0 0
      %1702 = vmatprep.subr.bf16.mxu0 0
      %1703 = vmatpush1.bf16.msra.mxu0 0
      %1704 = vmatprep.subr.bf16.mxu0 0
      %1705 = vmatpush1.bf16.msra.mxu0 0
      %1706 = vmatprep.subr.bf16.mxu0 0
      %1707 = vmatpush1.bf16.msra.mxu0 0
      %1708 = vmatprep.subr.bf16.mxu0 0
      %1709 = vmatpush1.bf16.msra.mxu0 0
      %1710 = vmatprep.subr.bf16.mxu0 0
      %1711 = vmatpush1.bf16.msra.mxu0 0
      %1712 = vmatprep.subr.bf16.mxu0 0
      %1713 = vmatpush1.bf16.msra.mxu0 0
      %1714 = vmatprep.subr.bf16.mxu0 0
      %1715 = vmatpush1.bf16.msra.mxu0 0
      %1716 = vmatprep.subr.bf16.mxu0 0
      %1717 = vmatpush1.bf16.msra.mxu0 0
      %1718 = vmatprep.subr.bf16.mxu0 0
      %1719 = vmatpush1.bf16.msra.mxu0 0
      %1720 = vmatprep.subr.bf16.mxu0 0
      %1721 = vmatpush1.bf16.msra.mxu0 0
      %1722 = vmatprep.subr.bf16.mxu0 0
      %1723 = vmatpush1.bf16.msra.mxu0 0
      %1724 = vmatprep.subr.bf16.mxu0 0
      %1725 = vmatpush1.bf16.msra.mxu0 0
      %1726 = vmatprep.subr.bf16.mxu0 0
      %1727 = vmatpush1.bf16.msra.mxu0 0
      %1728 = vmatprep.mubr.bf16.mxu0 0
      %1729 = vmatmul.mubr.bf16.gmra.mrb[0].mxu0 %v1691
      %v1730 = vpop.f32.mrb[0].mxu0
      %v1731 = vadd.f32 0.0, %v1730
      %v1732 = vpop.f32.mrb[0].mxu0
      %v1733 = vpop.f32.mrb[0].mxu0
      %v1734 = vpop.f32.mrb[0].mxu0
      %1735 = vdwg.mxu0
      %v1739 = vunpack.c.l.b16 %v1376
      %v1740 = vunpack.c.l.b16 %v1377
      %v1741 = vunpack.c.l.b16 %v1378
      %v1742 = vpack.c.b16 %v1740, %v1739
      %v1743 = vpack.c.b16 %v1741, %v1741
      %v1746 = vsel %vm449, %v1347, 0
      %v1749 = vand.u32 %v1743, %v455
      %1751 = vmatprep.subr.bf16.mxu0 0
      %1752 = vmatpush1.bf16.msra.mxu0 %v1742
      %1753 = vmatprep.subr.bf16.mxu0 0
      %1754 = vmatpush1.bf16.msra.mxu0 %v1749
      %1755 = vmatprep.subr.bf16.mxu0 0
      %1756 = vmatpush1.bf16.msra.mxu0 0
      %1757 = vmatprep.subr.bf16.mxu0 0
      %1758 = vmatpush1.bf16.msra.mxu0 0
      %1759 = vmatprep.subr.bf16.mxu0 0
      %1760 = vmatpush1.bf16.msra.mxu0 0
      %1761 = vmatprep.subr.bf16.mxu0 0
      %1762 = vmatpush1.bf16.msra.mxu0 0
      %1763 = vmatprep.subr.bf16.mxu0 0
      %1764 = vmatpush1.bf16.msra.mxu0 0
      %1765 = vmatprep.subr.bf16.mxu0 0
      %1766 = vmatpush1.bf16.msra.mxu0 0
      %1767 = vmatprep.subr.bf16.mxu0 0
      %1768 = vmatpush1.bf16.msra.mxu0 0
      %1769 = vmatprep.subr.bf16.mxu0 0
      %1770 = vmatpush1.bf16.msra.mxu0 0
      %1771 = vmatprep.subr.bf16.mxu0 0
      %1772 = vmatpush1.bf16.msra.mxu0 0
      %1773 = vmatprep.subr.bf16.mxu0 0
      %1774 = vmatpush1.bf16.msra.mxu0 0
      %1775 = vmatprep.subr.bf16.mxu0 0
      %1776 = vmatpush1.bf16.msra.mxu0 0
      %1777 = vmatprep.subr.bf16.mxu0 0
      %1778 = vmatpush1.bf16.msra.mxu0 0
      %1779 = vmatprep.subr.bf16.mxu0 0
      %1780 = vmatpush1.bf16.msra.mxu0 0
      %1781 = vmatprep.subr.bf16.mxu0 0
      %1782 = vmatpush1.bf16.msra.mxu0 0
      %1783 = vmatprep.mubr.bf16.mxu0 0
      %1784 = vmatmul.mubr.bf16.gmra.mrb[0].mxu0 %v1746
      %v1785 = vpop.f32.mrb[0].mxu0
      %v1786 = vadd.f32 0.0, %v1785
      %v1787 = vpop.f32.mrb[0].mxu0
      %v1788 = vpop.f32.mrb[0].mxu0
      %v1789 = vpop.f32.mrb[0].mxu0
      %1790 = vdwg.mxu0
      %v1794 = vunpack.c.l.b16 %v1379
      %v1795 = vunpack.c.l.b16 %v1380
      %v1796 = vunpack.c.l.b16 %v1381
      %v1797 = vpack.c.b16 %v1795, %v1794
      %v1798 = vpack.c.b16 %v1796, %v1796
      %v1801 = vsel %vm449, %v1348, 0
      %v1804 = vand.u32 %v1798, %v455
      %1806 = vmatprep.subr.bf16.mxu0 0
      %1807 = vmatpush1.bf16.msra.mxu0 %v1797
      %1808 = vmatprep.subr.bf16.mxu0 0
      %1809 = vmatpush1.bf16.msra.mxu0 %v1804
      %1810 = vmatprep.subr.bf16.mxu0 0
      %1811 = vmatpush1.bf16.msra.mxu0 0
      %1812 = vmatprep.subr.bf16.mxu0 0
      %1813 = vmatpush1.bf16.msra.mxu0 0
      %1814 = vmatprep.subr.bf16.mxu0 0
      %1815 = vmatpush1.bf16.msra.mxu0 0
      %1816 = vmatprep.subr.bf16.mxu0 0
      %1817 = vmatpush1.bf16.msra.mxu0 0
      %1818 = vmatprep.subr.bf16.mxu0 0
      %1819 = vmatpush1.bf16.msra.mxu0 0
      %1820 = vmatprep.subr.bf16.mxu0 0
      %1821 = vmatpush1.bf16.msra.mxu0 0
      %1822 = vmatprep.subr.bf16.mxu0 0
      %1823 = vmatpush1.bf16.msra.mxu0 0
      %1824 = vmatprep.subr.bf16.mxu0 0
      %1825 = vmatpush1.bf16.msra.mxu0 0
      %1826 = vmatprep.subr.bf16.mxu0 0
      %1827 = vmatpush1.bf16.msra.mxu0 0
      %1828 = vmatprep.subr.bf16.mxu0 0
      %1829 = vmatpush1.bf16.msra.mxu0 0
      %1830 = vmatprep.subr.bf16.mxu0 0
      %1831 = vmatpush1.bf16.msra.mxu0 0
      %1832 = vmatprep.subr.bf16.mxu0 0
      %1833 = vmatpush1.bf16.msra.mxu0 0
      %1834 = vmatprep.subr.bf16.mxu0 0
      %1835 = vmatpush1.bf16.msra.mxu0 0
      %1836 = vmatprep.subr.bf16.mxu0 0
      %1837 = vmatpush1.bf16.msra.mxu0 0
      %1838 = vmatprep.mubr.bf16.mxu0 0
      %1839 = vmatmul.mubr.bf16.gmra.mrb[0].mxu0 %v1801
      %v1840 = vpop.f32.mrb[0].mxu0
      %v1841 = vadd.f32 0.0, %v1840
      %v1842 = vpop.f32.mrb[0].mxu0
      %v1843 = vpop.f32.mrb[0].mxu0
      %v1844 = vpop.f32.mrb[0].mxu0
      %1845 = vdwg.mxu0
      %v1849 = vunpack.c.l.b16 %v1382
      %v1850 = vunpack.c.l.b16 %v1383
      %v1851 = vunpack.c.l.b16 %v1384
      %v1852 = vpack.c.b16 %v1850, %v1849
      %v1853 = vpack.c.b16 %v1851, %v1851
      %v1856 = vsel %vm449, %v1349, 0
      %v1859 = vand.u32 %v1853, %v455
      %1861 = vmatprep.subr.bf16.mxu0 0
      %1862 = vmatpush1.bf16.msra.mxu0 %v1852
      %1863 = vmatprep.subr.bf16.mxu0 0
      %1864 = vmatpush1.bf16.msra.mxu0 %v1859
      %1865 = vmatprep.subr.bf16.mxu0 0
      %1866 = vmatpush1.bf16.msra.mxu0 0
      %1867 = vmatprep.subr.bf16.mxu0 0
      %1868 = vmatpush1.bf16.msra.mxu0 0
      %1869 = vmatprep.subr.bf16.mxu0 0
      %1870 = vmatpush1.bf16.msra.mxu0 0
      %1871 = vmatprep.subr.bf16.mxu0 0
      %1872 = vmatpush1.bf16.msra.mxu0 0
      %1873 = vmatprep.subr.bf16.mxu0 0
      %1874 = vmatpush1.bf16.msra.mxu0 0
      %1875 = vmatprep.subr.bf16.mxu0 0
      %1876 = vmatpush1.bf16.msra.mxu0 0
      %1877 = vmatprep.subr.bf16.mxu0 0
      %1878 = vmatpush1.bf16.msra.mxu0 0
      %1879 = vmatprep.subr.bf16.mxu0 0
      %1880 = vmatpush1.bf16.msra.mxu0 0
      %1881 = vmatprep.subr.bf16.mxu0 0
      %1882 = vmatpush1.bf16.msra.mxu0 0
      %1883 = vmatprep.subr.bf16.mxu0 0
      %1884 = vmatpush1.bf16.msra.mxu0 0
      %1885 = vmatprep.subr.bf16.mxu0 0
      %1886 = vmatpush1.bf16.msra.mxu0 0
      %1887 = vmatprep.subr.bf16.mxu0 0
      %1888 = vmatpush1.bf16.msra.mxu0 0
      %1889 = vmatprep.subr.bf16.mxu0 0
      %1890 = vmatpush1.bf16.msra.mxu0 0
      %1891 = vmatprep.subr.bf16.mxu0 0
      %1892 = vmatpush1.bf16.msra.mxu0 0
      %1893 = vmatprep.mubr.bf16.mxu0 0
      %1894 = vmatmul.mubr.bf16.gmra.mrb[0].mxu0 %v1856
      %v1895 = vpop.f32.mrb[0].mxu0
      %v1896 = vadd.f32 0.0, %v1895
      %v1897 = vpop.f32.mrb[0].mxu0
      %v1898 = vpop.f32.mrb[0].mxu0
      %v1899 = vpop.f32.mrb[0].mxu0
      %1900 = vdwg.mxu0
      %v1904 = vunpack.c.l.b16 %v1385
      %v1905 = vunpack.c.l.b16 %v1386
      %v1906 = vunpack.c.l.b16 %v1387
      %v1907 = vpack.c.b16 %v1905, %v1904
      %v1908 = vpack.c.b16 %v1906, %v1906
      %v1911 = vsel %vm449, %v1350, 0
      %v1914 = vand.u32 %v1908, %v455
      %1916 = vmatprep.subr.bf16.mxu0 0
      %1917 = vmatpush1.bf16.msra.mxu0 %v1907
      %1918 = vmatprep.subr.bf16.mxu0 0
      %1919 = vmatpush1.bf16.msra.mxu0 %v1914
      %1920 = vmatprep.subr.bf16.mxu0 0
      %1921 = vmatpush1.bf16.msra.mxu0 0
      %1922 = vmatprep.subr.bf16.mxu0 0
      %1923 = vmatpush1.bf16.msra.mxu0 0
      %1924 = vmatprep.subr.bf16.mxu0 0
      %1925 = vmatpush1.bf16.msra.mxu0 0
      %1926 = vmatprep.subr.bf16.mxu0 0
      %1927 = vmatpush1.bf16.msra.mxu0 0
      %1928 = vmatprep.subr.bf16.mxu0 0
      %1929 = vmatpush1.bf16.msra.mxu0 0
      %1930 = vmatprep.subr.bf16.mxu0 0
      %1931 = vmatpush1.bf16.msra.mxu0 0
      %1932 = vmatprep.subr.bf16.mxu0 0
      %1933 = vmatpush1.bf16.msra.mxu0 0
      %1934 = vmatprep.subr.bf16.mxu0 0
      %1935 = vmatpush1.bf16.msra.mxu0 0
      %1936 = vmatprep.subr.bf16.mxu0 0
      %1937 = vmatpush1.bf16.msra.mxu0 0
      %1938 = vmatprep.subr.bf16.mxu0 0
      %1939 = vmatpush1.bf16.msra.mxu0 0
      %1940 = vmatprep.subr.bf16.mxu0 0
      %1941 = vmatpush1.bf16.msra.mxu0 0
      %1942 = vmatprep.subr.bf16.mxu0 0
      %1943 = vmatpush1.bf16.msra.mxu0 0
      %1944 = vmatprep.subr.bf16.mxu0 0
      %1945 = vmatpush1.bf16.msra.mxu0 0
      %1946 = vmatprep.subr.bf16.mxu0 0
      %1947 = vmatpush1.bf16.msra.mxu0 0
      %1948 = vmatprep.mubr.bf16.mxu0 0
      %1949 = vmatmul.mubr.bf16.gmra.mrb[0].mxu0 %v1911
      %v1950 = vpop.f32.mrb[0].mxu0
      %v1951 = vadd.f32 0.0, %v1950
      %v1952 = vpop.f32.mrb[0].mxu0
      %v1953 = vpop.f32.mrb[0].mxu0
      %v1954 = vpop.f32.mrb[0].mxu0
      %1955 = vdwg.mxu0
      %v1959 = vunpack.c.l.b16 %v1388
      %v1960 = vunpack.c.l.b16 %v1389
      %v1961 = vunpack.c.l.b16 %v1390
      %v1962 = vpack.c.b16 %v1960, %v1959
      %v1963 = vpack.c.b16 %v1961, %v1961
      %v1966 = vsel %vm449, %v1351, 0
      %v1969 = vand.u32 %v1963, %v455
      %1971 = vmatprep.subr.bf16.mxu0 0
      %1972 = vmatpush1.bf16.msra.mxu0 %v1962
      %1973 = vmatprep.subr.bf16.mxu0 0
      %1974 = vmatpush1.bf16.msra.mxu0 %v1969
      %1975 = vmatprep.subr.bf16.mxu0 0
      %1976 = vmatpush1.bf16.msra.mxu0 0
      %1977 = vmatprep.subr.bf16.mxu0 0
      %1978 = vmatpush1.bf16.msra.mxu0 0
      %1979 = vmatprep.subr.bf16.mxu0 0
      %1980 = vmatpush1.bf16.msra.mxu0 0
      %1981 = vmatprep.subr.bf16.mxu0 0
      %1982 = vmatpush1.bf16.msra.mxu0 0
      %1983 = vmatprep.subr.bf16.mxu0 0
      %1984 = vmatpush1.bf16.msra.mxu0 0
      %1985 = vmatprep.subr.bf16.mxu0 0
      %1986 = vmatpush1.bf16.msra.mxu0 0
      %1987 = vmatprep.subr.bf16.mxu0 0
      %1988 = vmatpush1.bf16.msra.mxu0 0
      %1989 = vmatprep.subr.bf16.mxu0 0
      %1990 = vmatpush1.bf16.msra.mxu0 0
      %1991 = vmatprep.subr.bf16.mxu0 0
      %1992 = vmatpush1.bf16.msra.mxu0 0
      %1993 = vmatprep.subr.bf16.mxu0 0
      %1994 = vmatpush1.bf16.msra.mxu0 0
      %1995 = vmatprep.subr.bf16.mxu0 0
      %1996 = vmatpush1.bf16.msra.mxu0 0
      %1997 = vmatprep.subr.bf16.mxu0 0
      %1998 = vmatpush1.bf16.msra.mxu0 0
      %1999 = vmatprep.subr.bf16.mxu0 0
      %2000 = vmatpush1.bf16.msra.mxu0 0
      %2001 = vmatprep.subr.bf16.mxu0 0
      %2002 = vmatpush1.bf16.msra.mxu0 0
      %2003 = vmatprep.mubr.bf16.mxu0 0
      %2004 = vmatmul.mubr.bf16.gmra.mrb[0].mxu0 %v1966
      %v2005 = vpop.f32.mrb[0].mxu0
      %v2006 = vadd.f32 0.0, %v2005
      %v2007 = vpop.f32.mrb[0].mxu0
      %v2008 = vpop.f32.mrb[0].mxu0
      %v2009 = vpop.f32.mrb[0].mxu0
      %2010 = vdwg.mxu0
      %v2014 = vunpack.c.l.b16 %v1391
      %v2015 = vunpack.c.l.b16 %v1392
      %v2016 = vunpack.c.l.b16 %v1393
      %v2017 = vpack.c.b16 %v2015, %v2014
      %v2018 = vpack.c.b16 %v2016, %v2016
      %v2021 = vsel %vm449, %v1352, 0
      %v2024 = vand.u32 %v2018, %v455
      %2026 = vmatprep.subr.bf16.mxu0 0
      %2027 = vmatpush1.bf16.msra.mxu0 %v2017
      %2028 = vmatprep.subr.bf16.mxu0 0
      %2029 = vmatpush1.bf16.msra.mxu0 %v2024
      %2030 = vmatprep.subr.bf16.mxu0 0
      %2031 = vmatpush1.bf16.msra.mxu0 0
      %2032 = vmatprep.subr.bf16.mxu0 0
      %2033 = vmatpush1.bf16.msra.mxu0 0
      %2034 = vmatprep.subr.bf16.mxu0 0
      %2035 = vmatpush1.bf16.msra.mxu0 0
      %2036 = vmatprep.subr.bf16.mxu0 0
      %2037 = vmatpush1.bf16.msra.mxu0 0
      %2038 = vmatprep.subr.bf16.mxu0 0
      %2039 = vmatpush1.bf16.msra.mxu0 0
      %2040 = vmatprep.subr.bf16.mxu0 0
      %2041 = vmatpush1.bf16.msra.mxu0 0
      %2042 = vmatprep.subr.bf16.mxu0 0
      %2043 = vmatpush1.bf16.msra.mxu0 0
      %2044 = vmatprep.subr.bf16.mxu0 0
      %2045 = vmatpush1.bf16.msra.mxu0 0
      %2046 = vmatprep.subr.bf16.mxu0 0
      %2047 = vmatpush1.bf16.msra.mxu0 0
      %2048 = vmatprep.subr.bf16.mxu0 0
      %2049 = vmatpush1.bf16.msra.mxu0 0
      %2050 = vmatprep.subr.bf16.mxu0 0
      %2051 = vmatpush1.bf16.msra.mxu0 0
      %2052 = vmatprep.subr.bf16.mxu0 0
      %2053 = vmatpush1.bf16.msra.mxu0 0
      %2054 = vmatprep.subr.bf16.mxu0 0
      %2055 = vmatpush1.bf16.msra.mxu0 0
      %2056 = vmatprep.subr.bf16.mxu0 0
      %2057 = vmatpush1.bf16.msra.mxu0 0
      %2058 = vmatprep.mubr.bf16.mxu0 0
      %2059 = vmatmul.mubr.bf16.gmra.mrb[0].mxu0 %v2021
      %v2060 = vpop.f32.mrb[0].mxu0
      %v2061 = vadd.f32 0.0, %v2060
      %v2062 = vpop.f32.mrb[0].mxu0
      %v2063 = vpop.f32.mrb[0].mxu0
      %v2064 = vpop.f32.mrb[0].mxu0
      %2065 = vdwg.mxu0
      %v2069 = vunpack.c.l.b16 %v1394
      %v2070 = vunpack.c.l.b16 %v1395
      %v2071 = vunpack.c.l.b16 %v1396
      %v2072 = vpack.c.b16 %v2070, %v2069
      %v2073 = vpack.c.b16 %v2071, %v2071
      %v2076 = vsel %vm449, %v1353, 0
      %v2079 = vand.u32 %v2073, %v455
      %2081 = vmatprep.subr.bf16.mxu0 0
      %2082 = vmatpush1.bf16.msra.mxu0 %v2072
      %2083 = vmatprep.subr.bf16.mxu0 0
      %2084 = vmatpush1.bf16.msra.mxu0 %v2079
      %2085 = vmatprep.subr.bf16.mxu0 0
      %2086 = vmatpush1.bf16.msra.mxu0 0
      %2087 = vmatprep.subr.bf16.mxu0 0
      %2088 = vmatpush1.bf16.msra.mxu0 0
      %2089 = vmatprep.subr.bf16.mxu0 0
      %2090 = vmatpush1.bf16.msra.mxu0 0
      %2091 = vmatprep.subr.bf16.mxu0 0
      %2092 = vmatpush1.bf16.msra.mxu0 0
      %2093 = vmatprep.subr.bf16.mxu0 0
      %2094 = vmatpush1.bf16.msra.mxu0 0
      %2095 = vmatprep.subr.bf16.mxu0 0
      %2096 = vmatpush1.bf16.msra.mxu0 0
      %2097 = vmatprep.subr.bf16.mxu0 0
      %2098 = vmatpush1.bf16.msra.mxu0 0
      %2099 = vmatprep.subr.bf16.mxu0 0
      %2100 = vmatpush1.bf16.msra.mxu0 0
      %2101 = vmatprep.subr.bf16.mxu0 0
      %2102 = vmatpush1.bf16.msra.mxu0 0
      %2103 = vmatprep.subr.bf16.mxu0 0
      %2104 = vmatpush1.bf16.msra.mxu0 0
      %2105 = vmatprep.subr.bf16.mxu0 0
      %2106 = vmatpush1.bf16.msra.mxu0 0
      %2107 = vmatprep.subr.bf16.mxu0 0
      %2108 = vmatpush1.bf16.msra.mxu0 0
      %2109 = vmatprep.subr.bf16.mxu0 0
      %2110 = vmatpush1.bf16.msra.mxu0 0
      %2111 = vmatprep.subr.bf16.mxu0 0
      %2112 = vmatpush1.bf16.msra.mxu0 0
      %2113 = vmatprep.mubr.bf16.mxu0 0
      %2114 = vmatmul.mubr.bf16.gmra.mrb[0].mxu0 %v2076
      %v2115 = vpop.f32.mrb[0].mxu0
      %v2116 = vadd.f32 0.0, %v2115
      %v2117 = vpop.f32.mrb[0].mxu0
      %v2118 = vpop.f32.mrb[0].mxu0
      %v2119 = vpop.f32.mrb[0].mxu0
      %2120 = vdwg.mxu0
      %v2124 = vunpack.c.l.b16 %v1397
      %v2125 = vunpack.c.l.b16 %v1398
      %v2126 = vunpack.c.l.b16 %v1399
      %v2127 = vpack.c.b16 %v2125, %v2124
      %v2128 = vpack.c.b16 %v2126, %v2126
      %v2131 = vsel %vm449, %v1354, 0
      %v2134 = vand.u32 %v2128, %v455
      %2136 = vmatprep.subr.bf16.mxu0 0
      %2137 = vmatpush1.bf16.msra.mxu0 %v2127
      %2138 = vmatprep.subr.bf16.mxu0 0
      %2139 = vmatpush1.bf16.msra.mxu0 %v2134
      %2140 = vmatprep.subr.bf16.mxu0 0
      %2141 = vmatpush1.bf16.msra.mxu0 0
      %2142 = vmatprep.subr.bf16.mxu0 0
      %2143 = vmatpush1.bf16.msra.mxu0 0
      %2144 = vmatprep.subr.bf16.mxu0 0
      %2145 = vmatpush1.bf16.msra.mxu0 0
      %2146 = vmatprep.subr.bf16.mxu0 0
      %2147 = vmatpush1.bf16.msra.mxu0 0
      %2148 = vmatprep.subr.bf16.mxu0 0
      %2149 = vmatpush1.bf16.msra.mxu0 0
      %2150 = vmatprep.subr.bf16.mxu0 0
      %2151 = vmatpush1.bf16.msra.mxu0 0
      %2152 = vmatprep.subr.bf16.mxu0 0
      %2153 = vmatpush1.bf16.msra.mxu0 0
      %2154 = vmatprep.subr.bf16.mxu0 0
      %2155 = vmatpush1.bf16.msra.mxu0 0
      %2156 = vmatprep.subr.bf16.mxu0 0
      %2157 = vmatpush1.bf16.msra.mxu0 0
      %2158 = vmatprep.subr.bf16.mxu0 0
      %2159 = vmatpush1.bf16.msra.mxu0 0
      %2160 = vmatprep.subr.bf16.mxu0 0
      %2161 = vmatpush1.bf16.msra.mxu0 0
      %2162 = vmatprep.subr.bf16.mxu0 0
      %2163 = vmatpush1.bf16.msra.mxu0 0
      %2164 = vmatprep.subr.bf16.mxu0 0
      %2165 = vmatpush1.bf16.msra.mxu0 0
      %2166 = vmatprep.subr.bf16.mxu0 0
      %2167 = vmatpush1.bf16.msra.mxu0 0
      %2168 = vmatprep.mubr.bf16.mxu0 0
      %2169 = vmatmul.mubr.bf16.gmra.mrb[0].mxu0 %v2131
      %v2170 = vpop.f32.mrb[0].mxu0
      %v2171 = vadd.f32 0.0, %v2170
      %v2172 = vpop.f32.mrb[0].mxu0
      %v2173 = vpop.f32.mrb[0].mxu0
      %v2174 = vpop.f32.mrb[0].mxu0
      %2175 = vdwg.mxu0
      %v2179 = vunpack.c.l.b16 %v1400
      %v2180 = vunpack.c.l.b16 %v1401
      %v2181 = vunpack.c.l.b16 %v1402
      %v2182 = vpack.c.b16 %v2180, %v2179
      %v2183 = vpack.c.b16 %v2181, %v2181
      %v2186 = vsel %vm449, %v1355, 0
      %v2189 = vand.u32 %v2183, %v455
      %2191 = vmatprep.subr.bf16.mxu0 0
      %2192 = vmatpush1.bf16.msra.mxu0 %v2182
      %2193 = vmatprep.subr.bf16.mxu0 0
      %2194 = vmatpush1.bf16.msra.mxu0 %v2189
      %2195 = vmatprep.subr.bf16.mxu0 0
      %2196 = vmatpush1.bf16.msra.mxu0 0
      %2197 = vmatprep.subr.bf16.mxu0 0
      %2198 = vmatpush1.bf16.msra.mxu0 0
      %2199 = vmatprep.subr.bf16.mxu0 0
      %2200 = vmatpush1.bf16.msra.mxu0 0
      %2201 = vmatprep.subr.bf16.mxu0 0
      %2202 = vmatpush1.bf16.msra.mxu0 0
      %2203 = vmatprep.subr.bf16.mxu0 0
      %2204 = vmatpush1.bf16.msra.mxu0 0
      %2205 = vmatprep.subr.bf16.mxu0 0
      %2206 = vmatpush1.bf16.msra.mxu0 0
      %2207 = vmatprep.subr.bf16.mxu0 0
      %2208 = vmatpush1.bf16.msra.mxu0 0
      %2209 = vmatprep.subr.bf16.mxu0 0
      %2210 = vmatpush1.bf16.msra.mxu0 0
      %2211 = vmatprep.subr.bf16.mxu0 0
      %2212 = vmatpush1.bf16.msra.mxu0 0
      %2213 = vmatprep.subr.bf16.mxu0 0
      %2214 = vmatpush1.bf16.msra.mxu0 0
      %2215 = vmatprep.subr.bf16.mxu0 0
      %2216 = vmatpush1.bf16.msra.mxu0 0
      %2217 = vmatprep.subr.bf16.mxu0 0
      %2218 = vmatpush1.bf16.msra.mxu0 0
      %2219 = vmatprep.subr.bf16.mxu0 0
      %2220 = vmatpush1.bf16.msra.mxu0 0
      %2221 = vmatprep.subr.bf16.mxu0 0
      %2222 = vmatpush1.bf16.msra.mxu0 0
      %2223 = vmatprep.mubr.bf16.mxu0 0
      %2224 = vmatmul.mubr.bf16.gmra.mrb[0].mxu0 %v2186
      %v2225 = vpop.f32.mrb[0].mxu0
      %v2226 = vadd.f32 0.0, %v2225
      %v2227 = vpop.f32.mrb[0].mxu0
      %v2228 = vpop.f32.mrb[0].mxu0
      %v2229 = vpop.f32.mrb[0].mxu0
      %2230 = vdwg.mxu0
      %v2234 = vunpack.c.l.b16 %v1403
      %v2235 = vunpack.c.l.b16 %v1404
      %v2236 = vunpack.c.l.b16 %v1405
      %v2237 = vpack.c.b16 %v2235, %v2234
      %v2238 = vpack.c.b16 %v2236, %v2236
      %v2241 = vsel %vm449, %v1356, 0
      %v2244 = vand.u32 %v2238, %v455
      %2246 = vmatprep.subr.bf16.mxu0 0
      %2247 = vmatpush1.bf16.msra.mxu0 %v2237
      %2248 = vmatprep.subr.bf16.mxu0 0
      %2249 = vmatpush1.bf16.msra.mxu0 %v2244
      %2250 = vmatprep.subr.bf16.mxu0 0
      %2251 = vmatpush1.bf16.msra.mxu0 0
      %2252 = vmatprep.subr.bf16.mxu0 0
      %2253 = vmatpush1.bf16.msra.mxu0 0
      %2254 = vmatprep.subr.bf16.mxu0 0
      %2255 = vmatpush1.bf16.msra.mxu0 0
      %2256 = vmatprep.subr.bf16.mxu0 0
      %2257 = vmatpush1.bf16.msra.mxu0 0
      %2258 = vmatprep.subr.bf16.mxu0 0
      %2259 = vmatpush1.bf16.msra.mxu0 0
      %2260 = vmatprep.subr.bf16.mxu0 0
      %2261 = vmatpush1.bf16.msra.mxu0 0
      %2262 = vmatprep.subr.bf16.mxu0 0
      %2263 = vmatpush1.bf16.msra.mxu0 0
      %2264 = vmatprep.subr.bf16.mxu0 0
      %2265 = vmatpush1.bf16.msra.mxu0 0
      %2266 = vmatprep.subr.bf16.mxu0 0
      %2267 = vmatpush1.bf16.msra.mxu0 0
      %2268 = vmatprep.subr.bf16.mxu0 0
      %2269 = vmatpush1.bf16.msra.mxu0 0
      %2270 = vmatprep.subr.bf16.mxu0 0
      %2271 = vmatpush1.bf16.msra.mxu0 0
      %2272 = vmatprep.subr.bf16.mxu0 0
      %2273 = vmatpush1.bf16.msra.mxu0 0
      %2274 = vmatprep.subr.bf16.mxu0 0
      %2275 = vmatpush1.bf16.msra.mxu0 0
      %2276 = vmatprep.subr.bf16.mxu0 0
      %2277 = vmatpush1.bf16.msra.mxu0 0
      %2278 = vmatprep.mubr.bf16.mxu0 0
      %2279 = vmatmul.mubr.bf16.gmra.mrb[0].mxu0 %v2241
      %v2280 = vpop.f32.mrb[0].mxu0
      %v2281 = vadd.f32 0.0, %v2280
      %v2282 = vpop.f32.mrb[0].mxu0
      %v2283 = vpop.f32.mrb[0].mxu0
      %v2284 = vpop.f32.mrb[0].mxu0
      %2285 = vdwg.mxu0
      %v2286 = vld [vmem:[#allocation2] sm:$0xff]
      %v2287 = vld [vmem:[#allocation2 + $0x8] sm:$0xff]
      %v2288 = vld [vmem:[#allocation2 + $0x10] sm:$0xff]
      %v2289 = vld [vmem:[#allocation2 + $0x18] sm:$0xff]
      %v2290 = vld [vmem:[#allocation2 + $0x20] sm:$0xff]
      %v2291 = vld [vmem:[#allocation2 + $0x28] sm:$0xff]
      %v2292 = vld [vmem:[#allocation2 + $0x30] sm:$0xff]
      %v2293 = vld [vmem:[#allocation2 + $0x38] sm:$0xff]
      %v2294 = vld [vmem:[#allocation2 + $0x40] sm:$0xff]
      %v2295 = vld [vmem:[#allocation2 + $0x48] sm:$0xff]
      %v2296 = vld [vmem:[#allocation2 + $0x50] sm:$0xff]
      %v2297 = vld [vmem:[#allocation2 + $0x58] sm:$0xff]
      %v2298 = vld [vmem:[#allocation2 + $0x60] sm:$0xff]
      %v2299 = vld [vmem:[#allocation2 + $0x68] sm:$0xff]
      %v2300 = vld [vmem:[#allocation2 + $0x70] sm:$0xff]
      %v2301 = vld [vmem:[#allocation2 + $0x78] sm:$0xff]
      %v2302 = vadd.f32 %v2286, %v1456
      %v2303 = vadd.f32 %v2287, %v1511
      %v2304 = vadd.f32 %v2288, %v1566
      %v2305 = vadd.f32 %v2289, %v1621
      %v2306 = vadd.f32 %v2290, %v1676
      %v2307 = vadd.f32 %v2291, %v1731
      %v2308 = vadd.f32 %v2292, %v1786
      %v2309 = vadd.f32 %v2293, %v1841
      %v2310 = vadd.f32 %v2294, %v1896
      %v2311 = vadd.f32 %v2295, %v1951
      %v2312 = vadd.f32 %v2296, %v2006
      %v2313 = vadd.f32 %v2297, %v2061
      %v2314 = vadd.f32 %v2298, %v2116
      %v2315 = vadd.f32 %v2299, %v2171
      %v2316 = vadd.f32 %v2300, %v2226
      %v2317 = vadd.f32 %v2301, %v2281
      %2318 = vst.msk [vmem:[#allocation2] sm:$0xff] %vm449, %v2302
      %2319 = vst.msk [vmem:[#allocation2 + $0x8] sm:$0xff] %vm449, %v2303
      %2320 = vst.msk [vmem:[#allocation2 + $0x10] sm:$0xff] %vm449, %v2304
      %2321 = vst.msk [vmem:[#allocation2 + $0x18] sm:$0xff] %vm449, %v2305
      %2322 = vst.msk [vmem:[#allocation2 + $0x20] sm:$0xff] %vm449, %v2306
      %2323 = vst.msk [vmem:[#allocation2 + $0x28] sm:$0xff] %vm449, %v2307
      %2324 = vst.msk [vmem:[#allocation2 + $0x30] sm:$0xff] %vm449, %v2308
      %2325 = vst.msk [vmem:[#allocation2 + $0x38] sm:$0xff] %vm449, %v2309
      %2326 = vst.msk [vmem:[#allocation2 + $0x40] sm:$0xff] %vm449, %v2310
      %2327 = vst.msk [vmem:[#allocation2 + $0x48] sm:$0xff] %vm449, %v2311
      %2328 = vst.msk [vmem:[#allocation2 + $0x50] sm:$0xff] %vm449, %v2312
      %2329 = vst.msk [vmem:[#allocation2 + $0x58] sm:$0xff] %vm449, %v2313
      %2330 = vst.msk [vmem:[#allocation2 + $0x60] sm:$0xff] %vm449, %v2314
      %2331 = vst.msk [vmem:[#allocation2 + $0x68] sm:$0xff] %vm449, %v2315
      %2332 = vst.msk [vmem:[#allocation2 + $0x70] sm:$0xff] %vm449, %v2316
      %2333 = vst.msk [vmem:[#allocation2 + $0x78] sm:$0xff] %vm449, %v2317
      %s2334 = scalar_lea.vmem %s325, 128
      %v2335 = vld [vmem:[%s2334] sm:$0xf]
      %v2336 = vld [vmem:[%s2334 + $0x4] sm:$0xf]
      %v2337 = vld [vmem:[%s2334 + $0x8] sm:$0xf]
      %v2338 = vld [vmem:[%s2334 + $0xc] sm:$0xf]
      %v2339 = vld [vmem:[%s2334 + $0x10] sm:$0xf]
      %v2340 = vld [vmem:[%s2334 + $0x14] sm:$0xf]
      %v2341 = vld [vmem:[%s2334 + $0x18] sm:$0xf]
      %v2342 = vld [vmem:[%s2334 + $0x1c] sm:$0xf]
      %v2343 = vld [vmem:[%s2334 + $0x20] sm:$0xf]
      %v2344 = vld [vmem:[%s2334 + $0x24] sm:$0xf]
      %v2345 = vld [vmem:[%s2334 + $0x28] sm:$0xf]
      %v2346 = vld [vmem:[%s2334 + $0x2c] sm:$0xf]
      %v2347 = vld [vmem:[%s2334 + $0x30] sm:$0xf]
      %v2348 = vld [vmem:[%s2334 + $0x34] sm:$0xf]
      %v2349 = vld [vmem:[%s2334 + $0x38] sm:$0xf]
      %v2350 = vld [vmem:[%s2334 + $0x3c] sm:$0xf]
      %s2351 = scalar_lea.vmem %s343, 384
      %v2352 = vld [vmem:[%s2351] sm:$0xf]
      %v2353 = vld [vmem:[%s2351 + $0x4] sm:$0xf]
      %v2354 = vld [vmem:[%s2351 + $0x8] sm:$0x1]
      %v2355 = vld [vmem:[%s2351 + $0xc] sm:$0xf]
      %v2356 = vld [vmem:[%s2351 + $0x10] sm:$0xf]
      %v2357 = vld [vmem:[%s2351 + $0x14] sm:$0x1]
      %v2358 = vld [vmem:[%s2351 + $0x18] sm:$0xf]
      %v2359 = vld [vmem:[%s2351 + $0x1c] sm:$0xf]
      %v2360 = vld [vmem:[%s2351 + $0x20] sm:$0x1]
      %v2361 = vld [vmem:[%s2351 + $0x24] sm:$0xf]
      %v2362 = vld [vmem:[%s2351 + $0x28] sm:$0xf]
      %v2363 = vld [vmem:[%s2351 + $0x2c] sm:$0x1]
      %v2364 = vld [vmem:[%s2351 + $0x30] sm:$0xf]
      %v2365 = vld [vmem:[%s2351 + $0x34] sm:$0xf]
      %v2366 = vld [vmem:[%s2351 + $0x38] sm:$0x1]
      %v2367 = vld [vmem:[%s2351 + $0x3c] sm:$0xf]
      %v2368 = vld [vmem:[%s2351 + $0x40] sm:$0xf]
      %v2369 = vld [vmem:[%s2351 + $0x44] sm:$0x1]
      %v2370 = vld [vmem:[%s2351 + $0x48] sm:$0xf]
      %v2371 = vld [vmem:[%s2351 + $0x4c] sm:$0xf]
      %v2372 = vld [vmem:[%s2351 + $0x50] sm:$0x1]
      %v2373 = vld [vmem:[%s2351 + $0x54] sm:$0xf]
      %v2374 = vld [vmem:[%s2351 + $0x58] sm:$0xf]
      %v2375 = vld [vmem:[%s2351 + $0x5c] sm:$0x1]
      %v2376 = vld [vmem:[%s2351 + $0x60] sm:$0xf]
      %v2377 = vld [vmem:[%s2351 + $0x64] sm:$0xf]
      %v2378 = vld [vmem:[%s2351 + $0x68] sm:$0x1]
      %v2379 = vld [vmem:[%s2351 + $0x6c] sm:$0xf]
      %v2380 = vld [vmem:[%s2351 + $0x70] sm:$0xf]
      %v2381 = vld [vmem:[%s2351 + $0x74] sm:$0x1]
      %v2382 = vld [vmem:[%s2351 + $0x78] sm:$0xf]
      %v2383 = vld [vmem:[%s2351 + $0x7c] sm:$0xf]
      %v2384 = vld [vmem:[%s2351 + $0x80] sm:$0x1]
      %v2385 = vld [vmem:[%s2351 + $0x84] sm:$0xf]
      %v2386 = vld [vmem:[%s2351 + $0x88] sm:$0xf]
      %v2387 = vld [vmem:[%s2351 + $0x8c] sm:$0x1]
      %v2388 = vld [vmem:[%s2351 + $0x90] sm:$0xf]
      %v2389 = vld [vmem:[%s2351 + $0x94] sm:$0xf]
      %v2390 = vld [vmem:[%s2351 + $0x98] sm:$0x1]
      %v2391 = vld [vmem:[%s2351 + $0x9c] sm:$0xf]
      %v2392 = vld [vmem:[%s2351 + $0xa0] sm:$0xf]
      %v2393 = vld [vmem:[%s2351 + $0xa4] sm:$0x1]
      %v2394 = vld [vmem:[%s2351 + $0xa8] sm:$0xf]
      %v2395 = vld [vmem:[%s2351 + $0xac] sm:$0xf]
      %v2396 = vld [vmem:[%s2351 + $0xb0] sm:$0x1]
      %v2397 = vld [vmem:[%s2351 + $0xb4] sm:$0xf]
      %v2398 = vld [vmem:[%s2351 + $0xb8] sm:$0xf]
      %v2399 = vld [vmem:[%s2351 + $0xbc] sm:$0x1]
      %v2403 = vunpack.c.l.b16 %v2352
      %v2404 = vunpack.c.l.b16 %v2353
      %v2405 = vunpack.c.l.b16 %v2354
      %v2406 = vpack.c.b16 %v2404, %v2403
      %v2407 = vpack.c.b16 %v2405, %v2405
      %v2410 = vsel %vm449, %v2335, 0
      %v2413 = vand.u32 %v2407, %v455
      %2415 = vmatprep.subr.bf16.mxu0 0
      %2416 = vmatpush1.bf16.msra.mxu0 %v2406
      %2417 = vmatprep.subr.bf16.mxu0 0
      %2418 = vmatpush1.bf16.msra.mxu0 %v2413
      %2419 = vmatprep.subr.bf16.mxu0 0
      %2420 = vmatpush1.bf16.msra.mxu0 0
      %2421 = vmatprep.subr.bf16.mxu0 0
      %2422 = vmatpush1.bf16.msra.mxu0 0
      %2423 = vmatprep.subr.bf16.mxu0 0
      %2424 = vmatpush1.bf16.msra.mxu0 0
      %2425 = vmatprep.subr.bf16.mxu0 0
      %2426 = vmatpush1.bf16.msra.mxu0 0
      %2427 = vmatprep.subr.bf16.mxu0 0
      %2428 = vmatpush1.bf16.msra.mxu0 0
      %2429 = vmatprep.subr.bf16.mxu0 0
      %2430 = vmatpush1.bf16.msra.mxu0 0
      %2431 = vmatprep.subr.bf16.mxu0 0
      %2432 = vmatpush1.bf16.msra.mxu0 0
      %2433 = vmatprep.subr.bf16.mxu0 0
      %2434 = vmatpush1.bf16.msra.mxu0 0
      %2435 = vmatprep.subr.bf16.mxu0 0
      %2436 = vmatpush1.bf16.msra.mxu0 0
      %2437 = vmatprep.subr.bf16.mxu0 0
      %2438 = vmatpush1.bf16.msra.mxu0 0
      %2439 = vmatprep.subr.bf16.mxu0 0
      %2440 = vmatpush1.bf16.msra.mxu0 0
      %2441 = vmatprep.subr.bf16.mxu0 0
      %2442 = vmatpush1.bf16.msra.mxu0 0
      %2443 = vmatprep.subr.bf16.mxu0 0
      %2444 = vmatpush1.bf16.msra.mxu0 0
      %2445 = vmatprep.subr.bf16.mxu0 0
      %2446 = vmatpush1.bf16.msra.mxu0 0
      %2447 = vmatprep.mubr.bf16.mxu0 0
      %2448 = vmatmul.mubr.bf16.gmra.mrb[0].mxu0 %v2410
      %v2449 = vpop.f32.mrb[0].mxu0
      %v2450 = vadd.f32 0.0, %v2449
      %v2451 = vpop.f32.mrb[0].mxu0
      %v2452 = vpop.f32.mrb[0].mxu0
      %v2453 = vpop.f32.mrb[0].mxu0
      %2454 = vdwg.mxu0
      %v2458 = vunpack.c.l.b16 %v2355
      %v2459 = vunpack.c.l.b16 %v2356
      %v2460 = vunpack.c.l.b16 %v2357
      %v2461 = vpack.c.b16 %v2459, %v2458
      %v2462 = vpack.c.b16 %v2460, %v2460
      %v2465 = vsel %vm449, %v2336, 0
      %v2468 = vand.u32 %v2462, %v455
      %2470 = vmatprep.subr.bf16.mxu0 0
      %2471 = vmatpush1.bf16.msra.mxu0 %v2461
      %2472 = vmatprep.subr.bf16.mxu0 0
      %2473 = vmatpush1.bf16.msra.mxu0 %v2468
      %2474 = vmatprep.subr.bf16.mxu0 0
      %2475 = vmatpush1.bf16.msra.mxu0 0
      %2476 = vmatprep.subr.bf16.mxu0 0
      %2477 = vmatpush1.bf16.msra.mxu0 0
      %2478 = vmatprep.subr.bf16.mxu0 0
      %2479 = vmatpush1.bf16.msra.mxu0 0
      %2480 = vmatprep.subr.bf16.mxu0 0
      %2481 = vmatpush1.bf16.msra.mxu0 0
      %2482 = vmatprep.subr.bf16.mxu0 0
      %2483 = vmatpush1.bf16.msra.mxu0 0
      %2484 = vmatprep.subr.bf16.mxu0 0
      %2485 = vmatpush1.bf16.msra.mxu0 0
      %2486 = vmatprep.subr.bf16.mxu0 0
      %2487 = vmatpush1.bf16.msra.mxu0 0
      %2488 = vmatprep.subr.bf16.mxu0 0
      %2489 = vmatpush1.bf16.msra.mxu0 0
      %2490 = vmatprep.subr.bf16.mxu0 0
      %2491 = vmatpush1.bf16.msra.mxu0 0
      %2492 = vmatprep.subr.bf16.mxu0 0
      %2493 = vmatpush1.bf16.msra.mxu0 0
      %2494 = vmatprep.subr.bf16.mxu0 0
      %2495 = vmatpush1.bf16.msra.mxu0 0
      %2496 = vmatprep.subr.bf16.mxu0 0
      %2497 = vmatpush1.bf16.msra.mxu0 0
      %2498 = vmatprep.subr.bf16.mxu0 0
      %2499 = vmatpush1.bf16.msra.mxu0 0
      %2500 = vmatprep.subr.bf16.mxu0 0
      %2501 = vmatpush1.bf16.msra.mxu0 0
      %2502 = vmatprep.mubr.bf16.mxu0 0
      %2503 = vmatmul.mubr.bf16.gmra.mrb[0].mxu0 %v2465
      %v2504 = vpop.f32.mrb[0].mxu0
      %v2505 = vadd.f32 0.0, %v2504
      %v2506 = vpop.f32.mrb[0].mxu0
      %v2507 = vpop.f32.mrb[0].mxu0
      %v2508 = vpop.f32.mrb[0].mxu0
      %2509 = vdwg.mxu0
      %v2513 = vunpack.c.l.b16 %v2358
      %v2514 = vunpack.c.l.b16 %v2359
      %v2515 = vunpack.c.l.b16 %v2360
      %v2516 = vpack.c.b16 %v2514, %v2513
      %v2517 = vpack.c.b16 %v2515, %v2515
      %v2520 = vsel %vm449, %v2337, 0
      %v2523 = vand.u32 %v2517, %v455
      %2525 = vmatprep.subr.bf16.mxu0 0
      %2526 = vmatpush1.bf16.msra.mxu0 %v2516
      %2527 = vmatprep.subr.bf16.mxu0 0
      %2528 = vmatpush1.bf16.msra.mxu0 %v2523
      %2529 = vmatprep.subr.bf16.mxu0 0
      %2530 = vmatpush1.bf16.msra.mxu0 0
      %2531 = vmatprep.subr.bf16.mxu0 0
      %2532 = vmatpush1.bf16.msra.mxu0 0
      %2533 = vmatprep.subr.bf16.mxu0 0
      %2534 = vmatpush1.bf16.msra.mxu0 0
      %2535 = vmatprep.subr.bf16.mxu0 0
      %2536 = vmatpush1.bf16.msra.mxu0 0
      %2537 = vmatprep.subr.bf16.mxu0 0
      %2538 = vmatpush1.bf16.msra.mxu0 0
      %2539 = vmatprep.subr.bf16.mxu0 0
      %2540 = vmatpush1.bf16.msra.mxu0 0
      %2541 = vmatprep.subr.bf16.mxu0 0
      %2542 = vmatpush1.bf16.msra.mxu0 0
      %2543 = vmatprep.subr.bf16.mxu0 0
      %2544 = vmatpush1.bf16.msra.mxu0 0
      %2545 = vmatprep.subr.bf16.mxu0 0
      %2546 = vmatpush1.bf16.msra.mxu0 0
      %2547 = vmatprep.subr.bf16.mxu0 0
      %2548 = vmatpush1.bf16.msra.mxu0 0
      %2549 = vmatprep.subr.bf16.mxu0 0
      %2550 = vmatpush1.bf16.msra.mxu0 0
      %2551 = vmatprep.subr.bf16.mxu0 0
      %2552 = vmatpush1.bf16.msra.mxu0 0
      %2553 = vmatprep.subr.bf16.mxu0 0
      %2554 = vmatpush1.bf16.msra.mxu0 0
      %2555 = vmatprep.subr.bf16.mxu0 0
      %2556 = vmatpush1.bf16.msra.mxu0 0
      %2557 = vmatprep.mubr.bf16.mxu0 0
      %2558 = vmatmul.mubr.bf16.gmra.mrb[0].mxu0 %v2520
      %v2559 = vpop.f32.mrb[0].mxu0
      %v2560 = vadd.f32 0.0, %v2559
      %v2561 = vpop.f32.mrb[0].mxu0
      %v2562 = vpop.f32.mrb[0].mxu0
      %v2563 = vpop.f32.mrb[0].mxu0
      %2564 = vdwg.mxu0
      %v2568 = vunpack.c.l.b16 %v2361
      %v2569 = vunpack.c.l.b16 %v2362
      %v2570 = vunpack.c.l.b16 %v2363
      %v2571 = vpack.c.b16 %v2569, %v2568
      %v2572 = vpack.c.b16 %v2570, %v2570
      %v2575 = vsel %vm449, %v2338, 0
      %v2578 = vand.u32 %v2572, %v455
      %2580 = vmatprep.subr.bf16.mxu0 0
      %2581 = vmatpush1.bf16.msra.mxu0 %v2571
      %2582 = vmatprep.subr.bf16.mxu0 0
      %2583 = vmatpush1.bf16.msra.mxu0 %v2578
      %2584 = vmatprep.subr.bf16.mxu0 0
      %2585 = vmatpush1.bf16.msra.mxu0 0
      %2586 = vmatprep.subr.bf16.mxu0 0
      %2587 = vmatpush1.bf16.msra.mxu0 0
      %2588 = vmatprep.subr.bf16.mxu0 0
      %2589 = vmatpush1.bf16.msra.mxu0 0
      %2590 = vmatprep.subr.bf16.mxu0 0
      %2591 = vmatpush1.bf16.msra.mxu0 0
      %2592 = vmatprep.subr.bf16.mxu0 0
      %2593 = vmatpush1.bf16.msra.mxu0 0
      %2594 = vmatprep.subr.bf16.mxu0 0
      %2595 = vmatpush1.bf16.msra.mxu0 0
      %2596 = vmatprep.subr.bf16.mxu0 0
      %2597 = vmatpush1.bf16.msra.mxu0 0
      %2598 = vmatprep.subr.bf16.mxu0 0
      %2599 = vmatpush1.bf16.msra.mxu0 0
      %2600 = vmatprep.subr.bf16.mxu0 0
      %2601 = vmatpush1.bf16.msra.mxu0 0
      %2602 = vmatprep.subr.bf16.mxu0 0
      %2603 = vmatpush1.bf16.msra.mxu0 0
      %2604 = vmatprep.subr.bf16.mxu0 0
      %2605 = vmatpush1.bf16.msra.mxu0 0
      %2606 = vmatprep.subr.bf16.mxu0 0
      %2607 = vmatpush1.bf16.msra.mxu0 0
      %2608 = vmatprep.subr.bf16.mxu0 0
      %2609 = vmatpush1.bf16.msra.mxu0 0
      %2610 = vmatprep.subr.bf16.mxu0 0
      %2611 = vmatpush1.bf16.msra.mxu0 0
      %2612 = vmatprep.mubr.bf16.mxu0 0
      %2613 = vmatmul.mubr.bf16.gmra.mrb[0].mxu0 %v2575
      %v2614 = vpop.f32.mrb[0].mxu0
      %v2615 = vadd.f32 0.0, %v2614
      %v2616 = vpop.f32.mrb[0].mxu0
      %v2617 = vpop.f32.mrb[0].mxu0
      %v2618 = vpop.f32.mrb[0].mxu0
      %2619 = vdwg.mxu0
      %v2623 = vunpack.c.l.b16 %v2364
      %v2624 = vunpack.c.l.b16 %v2365
      %v2625 = vunpack.c.l.b16 %v2366
      %v2626 = vpack.c.b16 %v2624, %v2623
      %v2627 = vpack.c.b16 %v2625, %v2625
      %v2630 = vsel %vm449, %v2339, 0
      %v2633 = vand.u32 %v2627, %v455
      %2635 = vmatprep.subr.bf16.mxu0 0
      %2636 = vmatpush1.bf16.msra.mxu0 %v2626
      %2637 = vmatprep.subr.bf16.mxu0 0
      %2638 = vmatpush1.bf16.msra.mxu0 %v2633
      %2639 = vmatprep.subr.bf16.mxu0 0
      %2640 = vmatpush1.bf16.msra.mxu0 0
      %2641 = vmatprep.subr.bf16.mxu0 0
      %2642 = vmatpush1.bf16.msra.mxu0 0
      %2643 = vmatprep.subr.bf16.mxu0 0
      %2644 = vmatpush1.bf16.msra.mxu0 0
      %2645 = vmatprep.subr.bf16.mxu0 0
      %2646 = vmatpush1.bf16.msra.mxu0 0
      %2647 = vmatprep.subr.bf16.mxu0 0
      %2648 = vmatpush1.bf16.msra.mxu0 0
      %2649 = vmatprep.subr.bf16.mxu0 0
      %2650 = vmatpush1.bf16.msra.mxu0 0
      %2651 = vmatprep.subr.bf16.mxu0 0
      %2652 = vmatpush1.bf16.msra.mxu0 0
      %2653 = vmatprep.subr.bf16.mxu0 0
      %2654 = vmatpush1.bf16.msra.mxu0 0
      %2655 = vmatprep.subr.bf16.mxu0 0
      %2656 = vmatpush1.bf16.msra.mxu0 0
      %2657 = vmatprep.subr.bf16.mxu0 0
      %2658 = vmatpush1.bf16.msra.mxu0 0
      %2659 = vmatprep.subr.bf16.mxu0 0
      %2660 = vmatpush1.bf16.msra.mxu0 0
      %2661 = vmatprep.subr.bf16.mxu0 0
      %2662 = vmatpush1.bf16.msra.mxu0 0
      %2663 = vmatprep.subr.bf16.mxu0 0
      %2664 = vmatpush1.bf16.msra.mxu0 0
      %2665 = vmatprep.subr.bf16.mxu0 0
      %2666 = vmatpush1.bf16.msra.mxu0 0
      %2667 = vmatprep.mubr.bf16.mxu0 0
      %2668 = vmatmul.mubr.bf16.gmra.mrb[0].mxu0 %v2630
      %v2669 = vpop.f32.mrb[0].mxu0
      %v2670 = vadd.f32 0.0, %v2669
      %v2671 = vpop.f32.mrb[0].mxu0
      %v2672 = vpop.f32.mrb[0].mxu0
      %v2673 = vpop.f32.mrb[0].mxu0
      %2674 = vdwg.mxu0
      %v2678 = vunpack.c.l.b16 %v2367
      %v2679 = vunpack.c.l.b16 %v2368
      %v2680 = vunpack.c.l.b16 %v2369
      %v2681 = vpack.c.b16 %v2679, %v2678
      %v2682 = vpack.c.b16 %v2680, %v2680
      %v2685 = vsel %vm449, %v2340, 0
      %v2688 = vand.u32 %v2682, %v455
      %2690 = vmatprep.subr.bf16.mxu0 0
      %2691 = vmatpush1.bf16.msra.mxu0 %v2681
      %2692 = vmatprep.subr.bf16.mxu0 0
      %2693 = vmatpush1.bf16.msra.mxu0 %v2688
      %2694 = vmatprep.subr.bf16.mxu0 0
      %2695 = vmatpush1.bf16.msra.mxu0 0
      %2696 = vmatprep.subr.bf16.mxu0 0
      %2697 = vmatpush1.bf16.msra.mxu0 0
      %2698 = vmatprep.subr.bf16.mxu0 0
      %2699 = vmatpush1.bf16.msra.mxu0 0
      %2700 = vmatprep.subr.bf16.mxu0 0
      %2701 = vmatpush1.bf16.msra.mxu0 0
      %2702 = vmatprep.subr.bf16.mxu0 0
      %2703 = vmatpush1.bf16.msra.mxu0 0
      %2704 = vmatprep.subr.bf16.mxu0 0
      %2705 = vmatpush1.bf16.msra.mxu0 0
      %2706 = vmatprep.subr.bf16.mxu0 0
      %2707 = vmatpush1.bf16.msra.mxu0 0
      %2708 = vmatprep.subr.bf16.mxu0 0
      %2709 = vmatpush1.bf16.msra.mxu0 0
      %2710 = vmatprep.subr.bf16.mxu0 0
      %2711 = vmatpush1.bf16.msra.mxu0 0
      %2712 = vmatprep.subr.bf16.mxu0 0
      %2713 = vmatpush1.bf16.msra.mxu0 0
      %2714 = vmatprep.subr.bf16.mxu0 0
      %2715 = vmatpush1.bf16.msra.mxu0 0
      %2716 = vmatprep.subr.bf16.mxu0 0
      %2717 = vmatpush1.bf16.msra.mxu0 0
      %2718 = vmatprep.subr.bf16.mxu0 0
      %2719 = vmatpush1.bf16.msra.mxu0 0
      %2720 = vmatprep.subr.bf16.mxu0 0
      %2721 = vmatpush1.bf16.msra.mxu0 0
      %2722 = vmatprep.mubr.bf16.mxu0 0
      %2723 = vmatmul.mubr.bf16.gmra.mrb[0].mxu0 %v2685
      %v2724 = vpop.f32.mrb[0].mxu0
      %v2725 = vadd.f32 0.0, %v2724
      %v2726 = vpop.f32.mrb[0].mxu0
      %v2727 = vpop.f32.mrb[0].mxu0
      %v2728 = vpop.f32.mrb[0].mxu0
      %2729 = vdwg.mxu0
      %v2733 = vunpack.c.l.b16 %v2370
      %v2734 = vunpack.c.l.b16 %v2371
      %v2735 = vunpack.c.l.b16 %v2372
      %v2736 = vpack.c.b16 %v2734, %v2733
      %v2737 = vpack.c.b16 %v2735, %v2735
      %v2740 = vsel %vm449, %v2341, 0
      %v2743 = vand.u32 %v2737, %v455
      %2745 = vmatprep.subr.bf16.mxu0 0
      %2746 = vmatpush1.bf16.msra.mxu0 %v2736
      %2747 = vmatprep.subr.bf16.mxu0 0
      %2748 = vmatpush1.bf16.msra.mxu0 %v2743
      %2749 = vmatprep.subr.bf16.mxu0 0
      %2750 = vmatpush1.bf16.msra.mxu0 0
      %2751 = vmatprep.subr.bf16.mxu0 0
      %2752 = vmatpush1.bf16.msra.mxu0 0
      %2753 = vmatprep.subr.bf16.mxu0 0
      %2754 = vmatpush1.bf16.msra.mxu0 0
      %2755 = vmatprep.subr.bf16.mxu0 0
      %2756 = vmatpush1.bf16.msra.mxu0 0
      %2757 = vmatprep.subr.bf16.mxu0 0
      %2758 = vmatpush1.bf16.msra.mxu0 0
      %2759 = vmatprep.subr.bf16.mxu0 0
      %2760 = vmatpush1.bf16.msra.mxu0 0
      %2761 = vmatprep.subr.bf16.mxu0 0
      %2762 = vmatpush1.bf16.msra.mxu0 0
      %2763 = vmatprep.subr.bf16.mxu0 0
      %2764 = vmatpush1.bf16.msra.mxu0 0
      %2765 = vmatprep.subr.bf16.mxu0 0
      %2766 = vmatpush1.bf16.msra.mxu0 0
      %2767 = vmatprep.subr.bf16.mxu0 0
      %2768 = vmatpush1.bf16.msra.mxu0 0
      %2769 = vmatprep.subr.bf16.mxu0 0
      %2770 = vmatpush1.bf16.msra.mxu0 0
      %2771 = vmatprep.subr.bf16.mxu0 0
      %2772 = vmatpush1.bf16.msra.mxu0 0
      %2773 = vmatprep.subr.bf16.mxu0 0
      %2774 = vmatpush1.bf16.msra.mxu0 0
      %2775 = vmatprep.subr.bf16.mxu0 0
      %2776 = vmatpush1.bf16.msra.mxu0 0
      %2777 = vmatprep.mubr.bf16.mxu0 0
      %2778 = vmatmul.mubr.bf16.gmra.mrb[0].mxu0 %v2740
      %v2779 = vpop.f32.mrb[0].mxu0
      %v2780 = vadd.f32 0.0, %v2779
      %v2781 = vpop.f32.mrb[0].mxu0
      %v2782 = vpop.f32.mrb[0].mxu0
      %v2783 = vpop.f32.mrb[0].mxu0
      %2784 = vdwg.mxu0
      %v2788 = vunpack.c.l.b16 %v2373
      %v2789 = vunpack.c.l.b16 %v2374
      %v2790 = vunpack.c.l.b16 %v2375
      %v2791 = vpack.c.b16 %v2789, %v2788
      %v2792 = vpack.c.b16 %v2790, %v2790
      %v2795 = vsel %vm449, %v2342, 0
      %v2798 = vand.u32 %v2792, %v455
      %2800 = vmatprep.subr.bf16.mxu0 0
      %2801 = vmatpush1.bf16.msra.mxu0 %v2791
      %2802 = vmatprep.subr.bf16.mxu0 0
      %2803 = vmatpush1.bf16.msra.mxu0 %v2798
      %2804 = vmatprep.subr.bf16.mxu0 0
      %2805 = vmatpush1.bf16.msra.mxu0 0
      %2806 = vmatprep.subr.bf16.mxu0 0
      %2807 = vmatpush1.bf16.msra.mxu0 0
      %2808 = vmatprep.subr.bf16.mxu0 0
      %2809 = vmatpush1.bf16.msra.mxu0 0
      %2810 = vmatprep.subr.bf16.mxu0 0
      %2811 = vmatpush1.bf16.msra.mxu0 0
      %2812 = vmatprep.subr.bf16.mxu0 0
      %2813 = vmatpush1.bf16.msra.mxu0 0
      %2814 = vmatprep.subr.bf16.mxu0 0
      %2815 = vmatpush1.bf16.msra.mxu0 0
      %2816 = vmatprep.subr.bf16.mxu0 0
      %2817 = vmatpush1.bf16.msra.mxu0 0
      %2818 = vmatprep.subr.bf16.mxu0 0
      %2819 = vmatpush1.bf16.msra.mxu0 0
      %2820 = vmatprep.subr.bf16.mxu0 0
      %2821 = vmatpush1.bf16.msra.mxu0 0
      %2822 = vmatprep.subr.bf16.mxu0 0
      %2823 = vmatpush1.bf16.msra.mxu0 0
      %2824 = vmatprep.subr.bf16.mxu0 0
      %2825 = vmatpush1.bf16.msra.mxu0 0
      %2826 = vmatprep.subr.bf16.mxu0 0
      %2827 = vmatpush1.bf16.msra.mxu0 0
      %2828 = vmatprep.subr.bf16.mxu0 0
      %2829 = vmatpush1.bf16.msra.mxu0 0
      %2830 = vmatprep.subr.bf16.mxu0 0
      %2831 = vmatpush1.bf16.msra.mxu0 0
      %2832 = vmatprep.mubr.bf16.mxu0 0
      %2833 = vmatmul.mubr.bf16.gmra.mrb[0].mxu0 %v2795
      %v2834 = vpop.f32.mrb[0].mxu0
      %v2835 = vadd.f32 0.0, %v2834
      %v2836 = vpop.f32.mrb[0].mxu0
      %v2837 = vpop.f32.mrb[0].mxu0
      %v2838 = vpop.f32.mrb[0].mxu0
      %2839 = vdwg.mxu0
      %v2843 = vunpack.c.l.b16 %v2376
      %v2844 = vunpack.c.l.b16 %v2377
      %v2845 = vunpack.c.l.b16 %v2378
      %v2846 = vpack.c.b16 %v2844, %v2843
      %v2847 = vpack.c.b16 %v2845, %v2845
      %v2850 = vsel %vm449, %v2343, 0
      %v2853 = vand.u32 %v2847, %v455
      %2855 = vmatprep.subr.bf16.mxu0 0
      %2856 = vmatpush1.bf16.msra.mxu0 %v2846
      %2857 = vmatprep.subr.bf16.mxu0 0
      %2858 = vmatpush1.bf16.msra.mxu0 %v2853
      %2859 = vmatprep.subr.bf16.mxu0 0
      %2860 = vmatpush1.bf16.msra.mxu0 0
      %2861 = vmatprep.subr.bf16.mxu0 0
      %2862 = vmatpush1.bf16.msra.mxu0 0
      %2863 = vmatprep.subr.bf16.mxu0 0
      %2864 = vmatpush1.bf16.msra.mxu0 0
      %2865 = vmatprep.subr.bf16.mxu0 0
      %2866 = vmatpush1.bf16.msra.mxu0 0
      %2867 = vmatprep.subr.bf16.mxu0 0
      %2868 = vmatpush1.bf16.msra.mxu0 0
      %2869 = vmatprep.subr.bf16.mxu0 0
      %2870 = vmatpush1.bf16.msra.mxu0 0
      %2871 = vmatprep.subr.bf16.mxu0 0
      %2872 = vmatpush1.bf16.msra.mxu0 0
      %2873 = vmatprep.subr.bf16.mxu0 0
      %2874 = vmatpush1.bf16.msra.mxu0 0
      %2875 = vmatprep.subr.bf16.mxu0 0
      %2876 = vmatpush1.bf16.msra.mxu0 0
      %2877 = vmatprep.subr.bf16.mxu0 0
      %2878 = vmatpush1.bf16.msra.mxu0 0
      %2879 = vmatprep.subr.bf16.mxu0 0
      %2880 = vmatpush1.bf16.msra.mxu0 0
      %2881 = vmatprep.subr.bf16.mxu0 0
      %2882 = vmatpush1.bf16.msra.mxu0 0
      %2883 = vmatprep.subr.bf16.mxu0 0
      %2884 = vmatpush1.bf16.msra.mxu0 0
      %2885 = vmatprep.subr.bf16.mxu0 0
      %2886 = vmatpush1.bf16.msra.mxu0 0
      %2887 = vmatprep.mubr.bf16.mxu0 0
      %2888 = vmatmul.mubr.bf16.gmra.mrb[0].mxu0 %v2850
      %v2889 = vpop.f32.mrb[0].mxu0
      %v2890 = vadd.f32 0.0, %v2889
      %v2891 = vpop.f32.mrb[0].mxu0
      %v2892 = vpop.f32.mrb[0].mxu0
      %v2893 = vpop.f32.mrb[0].mxu0
      %2894 = vdwg.mxu0
      %v2898 = vunpack.c.l.b16 %v2379
      %v2899 = vunpack.c.l.b16 %v2380
      %v2900 = vunpack.c.l.b16 %v2381
      %v2901 = vpack.c.b16 %v2899, %v2898
      %v2902 = vpack.c.b16 %v2900, %v2900
      %v2905 = vsel %vm449, %v2344, 0
      %v2908 = vand.u32 %v2902, %v455
      %2910 = vmatprep.subr.bf16.mxu0 0
      %2911 = vmatpush1.bf16.msra.mxu0 %v2901
      %2912 = vmatprep.subr.bf16.mxu0 0
      %2913 = vmatpush1.bf16.msra.mxu0 %v2908
      %2914 = vmatprep.subr.bf16.mxu0 0
      %2915 = vmatpush1.bf16.msra.mxu0 0
      %2916 = vmatprep.subr.bf16.mxu0 0
      %2917 = vmatpush1.bf16.msra.mxu0 0
      %2918 = vmatprep.subr.bf16.mxu0 0
      %2919 = vmatpush1.bf16.msra.mxu0 0
      %2920 = vmatprep.subr.bf16.mxu0 0
      %2921 = vmatpush1.bf16.msra.mxu0 0
      %2922 = vmatprep.subr.bf16.mxu0 0
      %2923 = vmatpush1.bf16.msra.mxu0 0
      %2924 = vmatprep.subr.bf16.mxu0 0
      %2925 = vmatpush1.bf16.msra.mxu0 0
      %2926 = vmatprep.subr.bf16.mxu0 0
      %2927 = vmatpush1.bf16.msra.mxu0 0
      %2928 = vmatprep.subr.bf16.mxu0 0
      %2929 = vmatpush1.bf16.msra.mxu0 0
      %2930 = vmatprep.subr.bf16.mxu0 0
      %2931 = vmatpush1.bf16.msra.mxu0 0
      %2932 = vmatprep.subr.bf16.mxu0 0
      %2933 = vmatpush1.bf16.msra.mxu0 0
      %2934 = vmatprep.subr.bf16.mxu0 0
      %2935 = vmatpush1.bf16.msra.mxu0 0
      %2936 = vmatprep.subr.bf16.mxu0 0
      %2937 = vmatpush1.bf16.msra.mxu0 0
      %2938 = vmatprep.subr.bf16.mxu0 0
      %2939 = vmatpush1.bf16.msra.mxu0 0
      %2940 = vmatprep.subr.bf16.mxu0 0
      %2941 = vmatpush1.bf16.msra.mxu0 0
      %2942 = vmatprep.mubr.bf16.mxu0 0
      %2943 = vmatmul.mubr.bf16.gmra.mrb[0].mxu0 %v2905
      %v2944 = vpop.f32.mrb[0].mxu0
      %v2945 = vadd.f32 0.0, %v2944
      %v2946 = vpop.f32.mrb[0].mxu0
      %v2947 = vpop.f32.mrb[0].mxu0
      %v2948 = vpop.f32.mrb[0].mxu0
      %2949 = vdwg.mxu0
      %v2953 = vunpack.c.l.b16 %v2382
      %v2954 = vunpack.c.l.b16 %v2383
      %v2955 = vunpack.c.l.b16 %v2384
      %v2956 = vpack.c.b16 %v2954, %v2953
      %v2957 = vpack.c.b16 %v2955, %v2955
      %v2960 = vsel %vm449, %v2345, 0
      %v2963 = vand.u32 %v2957, %v455
      %2965 = vmatprep.subr.bf16.mxu0 0
      %2966 = vmatpush1.bf16.msra.mxu0 %v2956
      %2967 = vmatprep.subr.bf16.mxu0 0
      %2968 = vmatpush1.bf16.msra.mxu0 %v2963
      %2969 = vmatprep.subr.bf16.mxu0 0
      %2970 = vmatpush1.bf16.msra.mxu0 0
      %2971 = vmatprep.subr.bf16.mxu0 0
      %2972 = vmatpush1.bf16.msra.mxu0 0
      %2973 = vmatprep.subr.bf16.mxu0 0
      %2974 = vmatpush1.bf16.msra.mxu0 0
      %2975 = vmatprep.subr.bf16.mxu0 0
      %2976 = vmatpush1.bf16.msra.mxu0 0
      %2977 = vmatprep.subr.bf16.mxu0 0
      %2978 = vmatpush1.bf16.msra.mxu0 0
      %2979 = vmatprep.subr.bf16.mxu0 0
      %2980 = vmatpush1.bf16.msra.mxu0 0
      %2981 = vmatprep.subr.bf16.mxu0 0
      %2982 = vmatpush1.bf16.msra.mxu0 0
      %2983 = vmatprep.subr.bf16.mxu0 0
      %2984 = vmatpush1.bf16.msra.mxu0 0
      %2985 = vmatprep.subr.bf16.mxu0 0
      %2986 = vmatpush1.bf16.msra.mxu0 0
      %2987 = vmatprep.subr.bf16.mxu0 0
      %2988 = vmatpush1.bf16.msra.mxu0 0
      %2989 = vmatprep.subr.bf16.mxu0 0
      %2990 = vmatpush1.bf16.msra.mxu0 0
      %2991 = vmatprep.subr.bf16.mxu0 0
      %2992 = vmatpush1.bf16.msra.mxu0 0
      %2993 = vmatprep.subr.bf16.mxu0 0
      %2994 = vmatpush1.bf16.msra.mxu0 0
      %2995 = vmatprep.subr.bf16.mxu0 0
      %2996 = vmatpush1.bf16.msra.mxu0 0
      %2997 = vmatprep.mubr.bf16.mxu0 0
      %2998 = vmatmul.mubr.bf16.gmra.mrb[0].mxu0 %v2960
      %v2999 = vpop.f32.mrb[0].mxu0
      %v3000 = vadd.f32 0.0, %v2999
      %v3001 = vpop.f32.mrb[0].mxu0
      %v3002 = vpop.f32.mrb[0].mxu0
      %v3003 = vpop.f32.mrb[0].mxu0
      %3004 = vdwg.mxu0
      %v3008 = vunpack.c.l.b16 %v2385
      %v3009 = vunpack.c.l.b16 %v2386
      %v3010 = vunpack.c.l.b16 %v2387
      %v3011 = vpack.c.b16 %v3009, %v3008
      %v3012 = vpack.c.b16 %v3010, %v3010
      %v3015 = vsel %vm449, %v2346, 0
      %v3018 = vand.u32 %v3012, %v455
      %3020 = vmatprep.subr.bf16.mxu0 0
      %3021 = vmatpush1.bf16.msra.mxu0 %v3011
      %3022 = vmatprep.subr.bf16.mxu0 0
      %3023 = vmatpush1.bf16.msra.mxu0 %v3018
      %3024 = vmatprep.subr.bf16.mxu0 0
      %3025 = vmatpush1.bf16.msra.mxu0 0
      %3026 = vmatprep.subr.bf16.mxu0 0
      %3027 = vmatpush1.bf16.msra.mxu0 0
      %3028 = vmatprep.subr.bf16.mxu0 0
      %3029 = vmatpush1.bf16.msra.mxu0 0
      %3030 = vmatprep.subr.bf16.mxu0 0
      %3031 = vmatpush1.bf16.msra.mxu0 0
      %3032 = vmatprep.subr.bf16.mxu0 0
      %3033 = vmatpush1.bf16.msra.mxu0 0
      %3034 = vmatprep.subr.bf16.mxu0 0
      %3035 = vmatpush1.bf16.msra.mxu0 0
      %3036 = vmatprep.subr.bf16.mxu0 0
      %3037 = vmatpush1.bf16.msra.mxu0 0
      %3038 = vmatprep.subr.bf16.mxu0 0
      %3039 = vmatpush1.bf16.msra.mxu0 0
      %3040 = vmatprep.subr.bf16.mxu0 0
      %3041 = vmatpush1.bf16.msra.mxu0 0
      %3042 = vmatprep.subr.bf16.mxu0 0
      %3043 = vmatpush1.bf16.msra.mxu0 0
      %3044 = vmatprep.subr.bf16.mxu0 0
      %3045 = vmatpush1.bf16.msra.mxu0 0
      %3046 = vmatprep.subr.bf16.mxu0 0
      %3047 = vmatpush1.bf16.msra.mxu0 0
      %3048 = vmatprep.subr.bf16.mxu0 0
      %3049 = vmatpush1.bf16.msra.mxu0 0
      %3050 = vmatprep.subr.bf16.mxu0 0
      %3051 = vmatpush1.bf16.msra.mxu0 0
      %3052 = vmatprep.mubr.bf16.mxu0 0
      %3053 = vmatmul.mubr.bf16.gmra.mrb[0].mxu0 %v3015
      %v3054 = vpop.f32.mrb[0].mxu0
      %v3055 = vadd.f32 0.0, %v3054
      %v3056 = vpop.f32.mrb[0].mxu0
      %v3057 = vpop.f32.mrb[0].mxu0
      %v3058 = vpop.f32.mrb[0].mxu0
      %3059 = vdwg.mxu0
      %v3063 = vunpack.c.l.b16 %v2388
      %v3064 = vunpack.c.l.b16 %v2389
      %v3065 = vunpack.c.l.b16 %v2390
      %v3066 = vpack.c.b16 %v3064, %v3063
      %v3067 = vpack.c.b16 %v3065, %v3065
      %v3070 = vsel %vm449, %v2347, 0
      %v3073 = vand.u32 %v3067, %v455
      %3075 = vmatprep.subr.bf16.mxu0 0
      %3076 = vmatpush1.bf16.msra.mxu0 %v3066
      %3077 = vmatprep.subr.bf16.mxu0 0
      %3078 = vmatpush1.bf16.msra.mxu0 %v3073
      %3079 = vmatprep.subr.bf16.mxu0 0
      %3080 = vmatpush1.bf16.msra.mxu0 0
      %3081 = vmatprep.subr.bf16.mxu0 0
      %3082 = vmatpush1.bf16.msra.mxu0 0
      %3083 = vmatprep.subr.bf16.mxu0 0
      %3084 = vmatpush1.bf16.msra.mxu0 0
      %3085 = vmatprep.subr.bf16.mxu0 0
      %3086 = vmatpush1.bf16.msra.mxu0 0
      %3087 = vmatprep.subr.bf16.mxu0 0
      %3088 = vmatpush1.bf16.msra.mxu0 0
      %3089 = vmatprep.subr.bf16.mxu0 0
      %3090 = vmatpush1.bf16.msra.mxu0 0
      %3091 = vmatprep.subr.bf16.mxu0 0
      %3092 = vmatpush1.bf16.msra.mxu0 0
      %3093 = vmatprep.subr.bf16.mxu0 0
      %3094 = vmatpush1.bf16.msra.mxu0 0
      %3095 = vmatprep.subr.bf16.mxu0 0
      %3096 = vmatpush1.bf16.msra.mxu0 0
      %3097 = vmatprep.subr.bf16.mxu0 0
      %3098 = vmatpush1.bf16.msra.mxu0 0
      %3099 = vmatprep.subr.bf16.mxu0 0
      %3100 = vmatpush1.bf16.msra.mxu0 0
      %3101 = vmatprep.subr.bf16.mxu0 0
      %3102 = vmatpush1.bf16.msra.mxu0 0
      %3103 = vmatprep.subr.bf16.mxu0 0
      %3104 = vmatpush1.bf16.msra.mxu0 0
      %3105 = vmatprep.subr.bf16.mxu0 0
      %3106 = vmatpush1.bf16.msra.mxu0 0
      %3107 = vmatprep.mubr.bf16.mxu0 0
      %3108 = vmatmul.mubr.bf16.gmra.mrb[0].mxu0 %v3070
      %v3109 = vpop.f32.mrb[0].mxu0
      %v3110 = vadd.f32 0.0, %v3109
      %v3111 = vpop.f32.mrb[0].mxu0
      %v3112 = vpop.f32.mrb[0].mxu0
      %v3113 = vpop.f32.mrb[0].mxu0
      %3114 = vdwg.mxu0
      %v3118 = vunpack.c.l.b16 %v2391
      %v3119 = vunpack.c.l.b16 %v2392
      %v3120 = vunpack.c.l.b16 %v2393
      %v3121 = vpack.c.b16 %v3119, %v3118
      %v3122 = vpack.c.b16 %v3120, %v3120
      %v3125 = vsel %vm449, %v2348, 0
      %v3128 = vand.u32 %v3122, %v455
      %3130 = vmatprep.subr.bf16.mxu0 0
      %3131 = vmatpush1.bf16.msra.mxu0 %v3121
      %3132 = vmatprep.subr.bf16.mxu0 0
      %3133 = vmatpush1.bf16.msra.mxu0 %v3128
      %3134 = vmatprep.subr.bf16.mxu0 0
      %3135 = vmatpush1.bf16.msra.mxu0 0
      %3136 = vmatprep.subr.bf16.mxu0 0
      %3137 = vmatpush1.bf16.msra.mxu0 0
      %3138 = vmatprep.subr.bf16.mxu0 0
      %3139 = vmatpush1.bf16.msra.mxu0 0
      %3140 = vmatprep.subr.bf16.mxu0 0
      %3141 = vmatpush1.bf16.msra.mxu0 0
      %3142 = vmatprep.subr.bf16.mxu0 0
      %3143 = vmatpush1.bf16.msra.mxu0 0
      %3144 = vmatprep.subr.bf16.mxu0 0
      %3145 = vmatpush1.bf16.msra.mxu0 0
      %3146 = vmatprep.subr.bf16.mxu0 0
      %3147 = vmatpush1.bf16.msra.mxu0 0
      %3148 = vmatprep.subr.bf16.mxu0 0
      %3149 = vmatpush1.bf16.msra.mxu0 0
      %3150 = vmatprep.subr.bf16.mxu0 0
      %3151 = vmatpush1.bf16.msra.mxu0 0
      %3152 = vmatprep.subr.bf16.mxu0 0
      %3153 = vmatpush1.bf16.msra.mxu0 0
      %3154 = vmatprep.subr.bf16.mxu0 0
      %3155 = vmatpush1.bf16.msra.mxu0 0
      %3156 = vmatprep.subr.bf16.mxu0 0
      %3157 = vmatpush1.bf16.msra.mxu0 0
      %3158 = vmatprep.subr.bf16.mxu0 0
      %3159 = vmatpush1.bf16.msra.mxu0 0
      %3160 = vmatprep.subr.bf16.mxu0 0
      %3161 = vmatpush1.bf16.msra.mxu0 0
      %3162 = vmatprep.mubr.bf16.mxu0 0
      %3163 = vmatmul.mubr.bf16.gmra.mrb[0].mxu0 %v3125
      %v3164 = vpop.f32.mrb[0].mxu0
      %v3165 = vadd.f32 0.0, %v3164
      %v3166 = vpop.f32.mrb[0].mxu0
      %v3167 = vpop.f32.mrb[0].mxu0
      %v3168 = vpop.f32.mrb[0].mxu0
      %3169 = vdwg.mxu0
      %v3173 = vunpack.c.l.b16 %v2394
      %v3174 = vunpack.c.l.b16 %v2395
      %v3175 = vunpack.c.l.b16 %v2396
      %v3176 = vpack.c.b16 %v3174, %v3173
      %v3177 = vpack.c.b16 %v3175, %v3175
      %v3180 = vsel %vm449, %v2349, 0
      %v3183 = vand.u32 %v3177, %v455
      %3185 = vmatprep.subr.bf16.mxu0 0
      %3186 = vmatpush1.bf16.msra.mxu0 %v3176
      %3187 = vmatprep.subr.bf16.mxu0 0
      %3188 = vmatpush1.bf16.msra.mxu0 %v3183
      %3189 = vmatprep.subr.bf16.mxu0 0
      %3190 = vmatpush1.bf16.msra.mxu0 0
      %3191 = vmatprep.subr.bf16.mxu0 0
      %3192 = vmatpush1.bf16.msra.mxu0 0
      %3193 = vmatprep.subr.bf16.mxu0 0
      %3194 = vmatpush1.bf16.msra.mxu0 0
      %3195 = vmatprep.subr.bf16.mxu0 0
      %3196 = vmatpush1.bf16.msra.mxu0 0
      %3197 = vmatprep.subr.bf16.mxu0 0
      %3198 = vmatpush1.bf16.msra.mxu0 0
      %3199 = vmatprep.subr.bf16.mxu0 0
      %3200 = vmatpush1.bf16.msra.mxu0 0
      %3201 = vmatprep.subr.bf16.mxu0 0
      %3202 = vmatpush1.bf16.msra.mxu0 0
      %3203 = vmatprep.subr.bf16.mxu0 0
      %3204 = vmatpush1.bf16.msra.mxu0 0
      %3205 = vmatprep.subr.bf16.mxu0 0
      %3206 = vmatpush1.bf16.msra.mxu0 0
      %3207 = vmatprep.subr.bf16.mxu0 0
      %3208 = vmatpush1.bf16.msra.mxu0 0
      %3209 = vmatprep.subr.bf16.mxu0 0
      %3210 = vmatpush1.bf16.msra.mxu0 0
      %3211 = vmatprep.subr.bf16.mxu0 0
      %3212 = vmatpush1.bf16.msra.mxu0 0
      %3213 = vmatprep.subr.bf16.mxu0 0
      %3214 = vmatpush1.bf16.msra.mxu0 0
      %3215 = vmatprep.subr.bf16.mxu0 0
      %3216 = vmatpush1.bf16.msra.mxu0 0
      %3217 = vmatprep.mubr.bf16.mxu0 0
      %3218 = vmatmul.mubr.bf16.gmra.mrb[0].mxu0 %v3180
      %v3219 = vpop.f32.mrb[0].mxu0
      %v3220 = vadd.f32 0.0, %v3219
      %v3221 = vpop.f32.mrb[0].mxu0
      %v3222 = vpop.f32.mrb[0].mxu0
      %v3223 = vpop.f32.mrb[0].mxu0
      %3224 = vdwg.mxu0
      %v3228 = vunpack.c.l.b16 %v2397
      %v3229 = vunpack.c.l.b16 %v2398
      %v3230 = vunpack.c.l.b16 %v2399
      %v3231 = vpack.c.b16 %v3229, %v3228
      %v3232 = vpack.c.b16 %v3230, %v3230
      %v3235 = vsel %vm449, %v2350, 0
      %v3238 = vand.u32 %v3232, %v455
      %3240 = vmatprep.subr.bf16.mxu0 0
      %3241 = vmatpush1.bf16.msra.mxu0 %v3231
      %3242 = vmatprep.subr.bf16.mxu0 0
      %3243 = vmatpush1.bf16.msra.mxu0 %v3238
      %3244 = vmatprep.subr.bf16.mxu0 0
      %3245 = vmatpush1.bf16.msra.mxu0 0
      %3246 = vmatprep.subr.bf16.mxu0 0
      %3247 = vmatpush1.bf16.msra.mxu0 0
      %3248 = vmatprep.subr.bf16.mxu0 0
      %3249 = vmatpush1.bf16.msra.mxu0 0
      %3250 = vmatprep.subr.bf16.mxu0 0
      %3251 = vmatpush1.bf16.msra.mxu0 0
      %3252 = vmatprep.subr.bf16.mxu0 0
      %3253 = vmatpush1.bf16.msra.mxu0 0
      %3254 = vmatprep.subr.bf16.mxu0 0
      %3255 = vmatpush1.bf16.msra.mxu0 0
      %3256 = vmatprep.subr.bf16.mxu0 0
      %3257 = vmatpush1.bf16.msra.mxu0 0
      %3258 = vmatprep.subr.bf16.mxu0 0
      %3259 = vmatpush1.bf16.msra.mxu0 0
      %3260 = vmatprep.subr.bf16.mxu0 0
      %3261 = vmatpush1.bf16.msra.mxu0 0
      %3262 = vmatprep.subr.bf16.mxu0 0
      %3263 = vmatpush1.bf16.msra.mxu0 0
      %3264 = vmatprep.subr.bf16.mxu0 0
      %3265 = vmatpush1.bf16.msra.mxu0 0
      %3266 = vmatprep.subr.bf16.mxu0 0
      %3267 = vmatpush1.bf16.msra.mxu0 0
      %3268 = vmatprep.subr.bf16.mxu0 0
      %3269 = vmatpush1.bf16.msra.mxu0 0
      %3270 = vmatprep.subr.bf16.mxu0 0
      %3271 = vmatpush1.bf16.msra.mxu0 0
      %3272 = vmatprep.mubr.bf16.mxu0 0
      %3273 = vmatmul.mubr.bf16.gmra.mrb[0].mxu0 %v3235
      %v3274 = vpop.f32.mrb[0].mxu0
      %v3275 = vadd.f32 0.0, %v3274
      %v3276 = vpop.f32.mrb[0].mxu0
      %v3277 = vpop.f32.mrb[0].mxu0
      %v3278 = vpop.f32.mrb[0].mxu0
      %3279 = vdwg.mxu0
      %v3280 = vld [vmem:[#allocation2] sm:$0xff]
      %v3281 = vld [vmem:[#allocation2 + $0x8] sm:$0xff]
      %v3282 = vld [vmem:[#allocation2 + $0x10] sm:$0xff]
      %v3283 = vld [vmem:[#allocation2 + $0x18] sm:$0xff]
      %v3284 = vld [vmem:[#allocation2 + $0x20] sm:$0xff]
      %v3285 = vld [vmem:[#allocation2 + $0x28] sm:$0xff]
      %v3286 = vld [vmem:[#allocation2 + $0x30] sm:$0xff]
      %v3287 = vld [vmem:[#allocation2 + $0x38] sm:$0xff]
      %v3288 = vld [vmem:[#allocation2 + $0x40] sm:$0xff]
      %v3289 = vld [vmem:[#allocation2 + $0x48] sm:$0xff]
      %v3290 = vld [vmem:[#allocation2 + $0x50] sm:$0xff]
      %v3291 = vld [vmem:[#allocation2 + $0x58] sm:$0xff]
      %v3292 = vld [vmem:[#allocation2 + $0x60] sm:$0xff]
      %v3293 = vld [vmem:[#allocation2 + $0x68] sm:$0xff]
      %v3294 = vld [vmem:[#allocation2 + $0x70] sm:$0xff]
      %v3295 = vld [vmem:[#allocation2 + $0x78] sm:$0xff]
      %v3296 = vadd.f32 %v3280, %v2450
      %v3297 = vadd.f32 %v3281, %v2505
      %v3298 = vadd.f32 %v3282, %v2560
      %v3299 = vadd.f32 %v3283, %v2615
      %v3300 = vadd.f32 %v3284, %v2670
      %v3301 = vadd.f32 %v3285, %v2725
      %v3302 = vadd.f32 %v3286, %v2780
      %v3303 = vadd.f32 %v3287, %v2835
      %v3304 = vadd.f32 %v3288, %v2890
      %v3305 = vadd.f32 %v3289, %v2945
      %v3306 = vadd.f32 %v3290, %v3000
      %v3307 = vadd.f32 %v3291, %v3055
      %v3308 = vadd.f32 %v3292, %v3110
      %v3309 = vadd.f32 %v3293, %v3165
      %v3310 = vadd.f32 %v3294, %v3220
      %v3311 = vadd.f32 %v3295, %v3275
      %3312 = vst.msk [vmem:[#allocation2] sm:$0xff] %vm449, %v3296
      %3313 = vst.msk [vmem:[#allocation2 + $0x8] sm:$0xff] %vm449, %v3297
      %3314 = vst.msk [vmem:[#allocation2 + $0x10] sm:$0xff] %vm449, %v3298
      %3315 = vst.msk [vmem:[#allocation2 + $0x18] sm:$0xff] %vm449, %v3299
      %3316 = vst.msk [vmem:[#allocation2 + $0x20] sm:$0xff] %vm449, %v3300
      %3317 = vst.msk [vmem:[#allocation2 + $0x28] sm:$0xff] %vm449, %v3301
      %3318 = vst.msk [vmem:[#allocation2 + $0x30] sm:$0xff] %vm449, %v3302
      %3319 = vst.msk [vmem:[#allocation2 + $0x38] sm:$0xff] %vm449, %v3303
      %3320 = vst.msk [vmem:[#allocation2 + $0x40] sm:$0xff] %vm449, %v3304
      %3321 = vst.msk [vmem:[#allocation2 + $0x48] sm:$0xff] %vm449, %v3305
      %3322 = vst.msk [vmem:[#allocation2 + $0x50] sm:$0xff] %vm449, %v3306
      %3323 = vst.msk [vmem:[#allocation2 + $0x58] sm:$0xff] %vm449, %v3307
      %3324 = vst.msk [vmem:[#allocation2 + $0x60] sm:$0xff] %vm449, %v3308
      %3325 = vst.msk [vmem:[#allocation2 + $0x68] sm:$0xff] %vm449, %v3309
      %3326 = vst.msk [vmem:[#allocation2 + $0x70] sm:$0xff] %vm449, %v3310
      %3327 = vst.msk [vmem:[#allocation2 + $0x78] sm:$0xff] %vm449, %v3311
      %v3328 = vld [vmem:[%s325] sm:$0xf]
      %v3329 = vld [vmem:[%s325 + $0x4] sm:$0xf]
      %v3330 = vld [vmem:[%s325 + $0x8] sm:$0xf]
      %v3331 = vld [vmem:[%s325 + $0xc] sm:$0xf]
      %v3332 = vunpack.c.l.bf16 %v3328
      %v3333 = vunpack.c.l.bf16 %v3329
      %v3334 = vunpack.c.l.bf16 %v3330
      %v3335 = vunpack.c.l.bf16 %v3331
      %v3336 = vpack.c.bf16 %v3333, %v3332
      %v3337 = vpack.c.bf16 %v3335, %v3334
      %v3338 = vld [vmem:[%s336] sm:$0xff]
      %v3339 = vld [vmem:[%s336 + $0x8] sm:$0xff]
      %v3340 = vld [vmem:[%s336 + $0x10] sm:$0x1]
      %v3341 = vmul.f32 %v3338, 0.5
      %v3342 = vmul.f32 %v3339, 0.5
      %v3343 = vmul.f32 %v3340, 0.5
      %v3344 = vpack.c.bf16 %v3342, %v3341
      %v3345 = vpack.c.bf16 %v3343, %v3343
      %v3347 = vsel %vm449, %v3336, 0
      %v3350 = vsel %vm449, %v3337, 0
      %v3353 = vand.u32 %v3345, %v455
      %3355 = vmatprep.subr.bf16.mxu0 0
      %3356 = vmatpush1.bf16.msra.mxu0 %v3344
      %3357 = vmatprep.subr.bf16.mxu0 0
      %3358 = vmatpush1.bf16.msra.mxu0 %v3353
      %3359 = vmatprep.subr.bf16.mxu0 0
      %3360 = vmatpush1.bf16.msra.mxu0 0
      %3361 = vmatprep.subr.bf16.mxu0 0
      %3362 = vmatpush1.bf16.msra.mxu0 0
      %3363 = vmatprep.subr.bf16.mxu0 0
      %3364 = vmatpush1.bf16.msra.mxu0 0
      %3365 = vmatprep.subr.bf16.mxu0 0
      %3366 = vmatpush1.bf16.msra.mxu0 0
      %3367 = vmatprep.subr.bf16.mxu0 0
      %3368 = vmatpush1.bf16.msra.mxu0 0
      %3369 = vmatprep.subr.bf16.mxu0 0
      %3370 = vmatpush1.bf16.msra.mxu0 0
      %3371 = vmatprep.subr.bf16.mxu0 0
      %3372 = vmatpush1.bf16.msra.mxu0 0
      %3373 = vmatprep.subr.bf16.mxu0 0
      %3374 = vmatpush1.bf16.msra.mxu0 0
      %3375 = vmatprep.subr.bf16.mxu0 0
      %3376 = vmatpush1.bf16.msra.mxu0 0
      %3377 = vmatprep.subr.bf16.mxu0 0
      %3378 = vmatpush1.bf16.msra.mxu0 0
      %3379 = vmatprep.subr.bf16.mxu0 0
      %3380 = vmatpush1.bf16.msra.mxu0 0
      %3381 = vmatprep.subr.bf16.mxu0 0
      %3382 = vmatpush1.bf16.msra.mxu0 0
      %3383 = vmatprep.subr.bf16.mxu0 0
      %3384 = vmatpush1.bf16.msra.mxu0 0
      %3385 = vmatprep.subr.bf16.mxu0 0
      %3386 = vmatpush1.bf16.msra.mxu0 0
      %3387 = vmatprep.mubr.bf16.mxu0 0
      %3388 = vmatmul.mubr.bf16.gmra.mrb[0].mxu0 %v3347
      %v3389 = vpop.f32.mrb[0].mxu0
      %v3390 = vadd.f32 0.0, %v3389
      %v3391 = vpop.f32.mrb[0].mxu0
      %v3392 = vpop.f32.mrb[0].mxu0
      %v3393 = vadd.f32 0.0, %v3392
      %v3394 = vpop.f32.mrb[0].mxu0
      %3395 = vmatprep.mubr.bf16.mxu0 0
      %3396 = vmatmul.mubr.bf16.gmra.mrb[0].mxu0 %v3350
      %v3397 = vpop.f32.mrb[0].mxu0
      %v3398 = vadd.f32 0.0, %v3397
      %v3399 = vpop.f32.mrb[0].mxu0
      %v3400 = vpop.f32.mrb[0].mxu0
      %v3401 = vadd.f32 0.0, %v3400
      %v3402 = vpop.f32.mrb[0].mxu0
      %3403 = vdwg.mxu0
      %v3404 = vld [vmem:[#allocation2] sm:$0xff]
      %v3405 = vld [vmem:[#allocation2 + $0x8] sm:$0xff]
      %v3406 = vld [vmem:[#allocation2 + $0x10] sm:$0xff]
      %v3407 = vld [vmem:[#allocation2 + $0x18] sm:$0xff]
      %v3408 = vadd.f32 %v3404, %v3390
      %v3409 = vadd.f32 %v3405, %v3393
      %v3410 = vadd.f32 %v3406, %v3398
      %v3411 = vadd.f32 %v3407, %v3401
      %3412 = vst.msk [vmem:[#allocation2] sm:$0xff] %vm449, %v3408
      %3413 = vst.msk [vmem:[#allocation2 + $0x8] sm:$0xff] %vm449, %v3409
      %3414 = vst.msk [vmem:[#allocation2 + $0x10] sm:$0xff] %vm449, %v3410
      %3415 = vst.msk [vmem:[#allocation2 + $0x18] sm:$0xff] %vm449, %v3411
      %s3416 = scalar_lea.vmem %s325, 16
      %v3417 = vld [vmem:[%s3416] sm:$0xf]
      %v3418 = vld [vmem:[%s3416 + $0x4] sm:$0xf]
      %v3419 = vld [vmem:[%s3416 + $0x8] sm:$0xf]
      %v3420 = vld [vmem:[%s3416 + $0xc] sm:$0xf]
      %v3421 = vunpack.c.l.bf16 %v3417
      %v3422 = vunpack.c.l.bf16 %v3418
      %v3423 = vunpack.c.l.bf16 %v3419
      %v3424 = vunpack.c.l.bf16 %v3420
      %v3425 = vpack.c.bf16 %v3422, %v3421
      %v3426 = vpack.c.bf16 %v3424, %v3423
      %s3427 = scalar_lea.vmem %s336, 24
      %v3428 = vld [vmem:[%s3427] sm:$0xff]
      %v3429 = vld [vmem:[%s3427 + $0x8] sm:$0xff]
      %v3430 = vld [vmem:[%s3427 + $0x10] sm:$0x1]
      %v3431 = vmul.f32 %v3428, 0.5
      %v3432 = vmul.f32 %v3429, 0.5
      %v3433 = vmul.f32 %v3430, 0.5
      %v3434 = vpack.c.bf16 %v3432, %v3431
      %v3435 = vpack.c.bf16 %v3433, %v3433
      %v3437 = vsel %vm449, %v3425, 0
      %v3440 = vsel %vm449, %v3426, 0
      %v3443 = vand.u32 %v3435, %v455
      %3445 = vmatprep.subr.bf16.mxu0 0
      %3446 = vmatpush1.bf16.msra.mxu0 %v3434
      %3447 = vmatprep.subr.bf16.mxu0 0
      %3448 = vmatpush1.bf16.msra.mxu0 %v3443
      %3449 = vmatprep.subr.bf16.mxu0 0
      %3450 = vmatpush1.bf16.msra.mxu0 0
      %3451 = vmatprep.subr.bf16.mxu0 0
      %3452 = vmatpush1.bf16.msra.mxu0 0
      %3453 = vmatprep.subr.bf16.mxu0 0
      %3454 = vmatpush1.bf16.msra.mxu0 0
      %3455 = vmatprep.subr.bf16.mxu0 0
      %3456 = vmatpush1.bf16.msra.mxu0 0
      %3457 = vmatprep.subr.bf16.mxu0 0
      %3458 = vmatpush1.bf16.msra.mxu0 0
      %3459 = vmatprep.subr.bf16.mxu0 0
      %3460 = vmatpush1.bf16.msra.mxu0 0
      %3461 = vmatprep.subr.bf16.mxu0 0
      %3462 = vmatpush1.bf16.msra.mxu0 0
      %3463 = vmatprep.subr.bf16.mxu0 0
      %3464 = vmatpush1.bf16.msra.mxu0 0
      %3465 = vmatprep.subr.bf16.mxu0 0
      %3466 = vmatpush1.bf16.msra.mxu0 0
      %3467 = vmatprep.subr.bf16.mxu0 0
      %3468 = vmatpush1.bf16.msra.mxu0 0
      %3469 = vmatprep.subr.bf16.mxu0 0
      %3470 = vmatpush1.bf16.msra.mxu0 0
      %3471 = vmatprep.subr.bf16.mxu0 0
      %3472 = vmatpush1.bf16.msra.mxu0 0
      %3473 = vmatprep.subr.bf16.mxu0 0
      %3474 = vmatpush1.bf16.msra.mxu0 0
      %3475 = vmatprep.subr.bf16.mxu0 0
      %3476 = vmatpush1.bf16.msra.mxu0 0
      %3477 = vmatprep.mubr.bf16.mxu0 0
      %3478 = vmatmul.mubr.bf16.gmra.mrb[0].mxu0 %v3437
      %v3479 = vpop.f32.mrb[0].mxu0
      %v3480 = vadd.f32 0.0, %v3479
      %v3481 = vpop.f32.mrb[0].mxu0
      %v3482 = vpop.f32.mrb[0].mxu0
      %v3483 = vadd.f32 0.0, %v3482
      %v3484 = vpop.f32.mrb[0].mxu0
      %3485 = vmatprep.mubr.bf16.mxu0 0
      %3486 = vmatmul.mubr.bf16.gmra.mrb[0].mxu0 %v3440
      %v3487 = vpop.f32.mrb[0].mxu0
      %v3488 = vadd.f32 0.0, %v3487
      %v3489 = vpop.f32.mrb[0].mxu0
      %v3490 = vpop.f32.mrb[0].mxu0
      %v3491 = vadd.f32 0.0, %v3490
      %v3492 = vpop.f32.mrb[0].mxu0
      %3493 = vdwg.mxu0
      %s3494 = scalar_lea.vmem [#allocation2], 32
      %v3495 = vld [vmem:[%s3494] sm:$0xff]
      %v3496 = vld [vmem:[%s3494 + $0x8] sm:$0xff]
      %v3497 = vld [vmem:[%s3494 + $0x10] sm:$0xff]
      %v3498 = vld [vmem:[%s3494 + $0x18] sm:$0xff]
      %v3499 = vadd.f32 %v3495, %v3480
      %v3500 = vadd.f32 %v3496, %v3483
      %v3501 = vadd.f32 %v3497, %v3488
      %v3502 = vadd.f32 %v3498, %v3491
      %3503 = vst.msk [vmem:[%s3494] sm:$0xff] %vm449, %v3499
      %3504 = vst.msk [vmem:[%s3494 + $0x8] sm:$0xff] %vm449, %v3500
      %3505 = vst.msk [vmem:[%s3494 + $0x10] sm:$0xff] %vm449, %v3501
      %3506 = vst.msk [vmem:[%s3494 + $0x18] sm:$0xff] %vm449, %v3502
      %s3507 = scalar_lea.vmem %s325, 32
      %v3508 = vld [vmem:[%s3507] sm:$0xf]
      %v3509 = vld [vmem:[%s3507 + $0x4] sm:$0xf]
      %v3510 = vld [vmem:[%s3507 + $0x8] sm:$0xf]
      %v3511 = vld [vmem:[%s3507 + $0xc] sm:$0xf]
      %v3512 = vunpack.c.l.bf16 %v3508
      %v3513 = vunpack.c.l.bf16 %v3509
      %v3514 = vunpack.c.l.bf16 %v3510
      %v3515 = vunpack.c.l.bf16 %v3511
      %v3516 = vpack.c.bf16 %v3513, %v3512
      %v3517 = vpack.c.bf16 %v3515, %v3514
      %s3518 = scalar_lea.vmem %s336, 48
      %v3519 = vld [vmem:[%s3518] sm:$0xff]
      %v3520 = vld [vmem:[%s3518 + $0x8] sm:$0xff]
      %v3521 = vld [vmem:[%s3518 + $0x10] sm:$0x1]
      %v3522 = vmul.f32 %v3519, 0.5
      %v3523 = vmul.f32 %v3520, 0.5
      %v3524 = vmul.f32 %v3521, 0.5
      %v3525 = vpack.c.bf16 %v3523, %v3522
      %v3526 = vpack.c.bf16 %v3524, %v3524
      %v3528 = vsel %vm449, %v3516, 0
      %v3531 = vsel %vm449, %v3517, 0
      %v3534 = vand.u32 %v3526, %v455
      %3536 = vmatprep.subr.bf16.mxu0 0
      %3537 = vmatpush1.bf16.msra.mxu0 %v3525
      %3538 = vmatprep.subr.bf16.mxu0 0
      %3539 = vmatpush1.bf16.msra.mxu0 %v3534
      %3540 = vmatprep.subr.bf16.mxu0 0
      %3541 = vmatpush1.bf16.msra.mxu0 0
      %3542 = vmatprep.subr.bf16.mxu0 0
      %3543 = vmatpush1.bf16.msra.mxu0 0
      %3544 = vmatprep.subr.bf16.mxu0 0
      %3545 = vmatpush1.bf16.msra.mxu0 0
      %3546 = vmatprep.subr.bf16.mxu0 0
      %3547 = vmatpush1.bf16.msra.mxu0 0
      %3548 = vmatprep.subr.bf16.mxu0 0
      %3549 = vmatpush1.bf16.msra.mxu0 0
      %3550 = vmatprep.subr.bf16.mxu0 0
      %3551 = vmatpush1.bf16.msra.mxu0 0
      %3552 = vmatprep.subr.bf16.mxu0 0
      %3553 = vmatpush1.bf16.msra.mxu0 0
      %3554 = vmatprep.subr.bf16.mxu0 0
      %3555 = vmatpush1.bf16.msra.mxu0 0
      %3556 = vmatprep.subr.bf16.mxu0 0
      %3557 = vmatpush1.bf16.msra.mxu0 0
      %3558 = vmatprep.subr.bf16.mxu0 0
      %3559 = vmatpush1.bf16.msra.mxu0 0
      %3560 = vmatprep.subr.bf16.mxu0 0
      %3561 = vmatpush1.bf16.msra.mxu0 0
      %3562 = vmatprep.subr.bf16.mxu0 0
      %3563 = vmatpush1.bf16.msra.mxu0 0
      %3564 = vmatprep.subr.bf16.mxu0 0
      %3565 = vmatpush1.bf16.msra.mxu0 0
      %3566 = vmatprep.subr.bf16.mxu0 0
      %3567 = vmatpush1.bf16.msra.mxu0 0
      %3568 = vmatprep.mubr.bf16.mxu0 0
      %3569 = vmatmul.mubr.bf16.gmra.mrb[0].mxu0 %v3528
      %v3570 = vpop.f32.mrb[0].mxu0
      %v3571 = vadd.f32 0.0, %v3570
      %v3572 = vpop.f32.mrb[0].mxu0
      %v3573 = vpop.f32.mrb[0].mxu0
      %v3574 = vadd.f32 0.0, %v3573
      %v3575 = vpop.f32.mrb[0].mxu0
      %3576 = vmatprep.mubr.bf16.mxu0 0
      %3577 = vmatmul.mubr.bf16.gmra.mrb[0].mxu0 %v3531
      %v3578 = vpop.f32.mrb[0].mxu0
      %v3579 = vadd.f32 0.0, %v3578
      %v3580 = vpop.f32.mrb[0].mxu0
      %v3581 = vpop.f32.mrb[0].mxu0
      %v3582 = vadd.f32 0.0, %v3581
      %v3583 = vpop.f32.mrb[0].mxu0
      %3584 = vdwg.mxu0
      %s3585 = scalar_lea.vmem [#allocation2], 64
      %v3586 = vld [vmem:[%s3585] sm:$0xff]
      %v3587 = vld [vmem:[%s3585 + $0x8] sm:$0xff]
      %v3588 = vld [vmem:[%s3585 + $0x10] sm:$0xff]
      %v3589 = vld [vmem:[%s3585 + $0x18] sm:$0xff]
      %v3590 = vadd.f32 %v3586, %v3571
      %v3591 = vadd.f32 %v3587, %v3574
      %v3592 = vadd.f32 %v3588, %v3579
      %v3593 = vadd.f32 %v3589, %v3582
      %3594 = vst.msk [vmem:[%s3585] sm:$0xff] %vm449, %v3590
      %3595 = vst.msk [vmem:[%s3585 + $0x8] sm:$0xff] %vm449, %v3591
      %3596 = vst.msk [vmem:[%s3585 + $0x10] sm:$0xff] %vm449, %v3592
      %3597 = vst.msk [vmem:[%s3585 + $0x18] sm:$0xff] %vm449, %v3593
      %s3598 = scalar_lea.vmem %s325, 48
      %v3599 = vld [vmem:[%s3598] sm:$0xf]
      %v3600 = vld [vmem:[%s3598 + $0x4] sm:$0xf]
      %v3601 = vld [vmem:[%s3598 + $0x8] sm:$0xf]
      %v3602 = vld [vmem:[%s3598 + $0xc] sm:$0xf]
      %v3603 = vunpack.c.l.bf16 %v3599
      %v3604 = vunpack.c.l.bf16 %v3600
      %v3605 = vunpack.c.l.bf16 %v3601
      %v3606 = vunpack.c.l.bf16 %v3602
      %v3607 = vpack.c.bf16 %v3604, %v3603
      %v3608 = vpack.c.bf16 %v3606, %v3605
      %s3609 = scalar_lea.vmem %s336, 72
      %v3610 = vld [vmem:[%s3609] sm:$0xff]
      %v3611 = vld [vmem:[%s3609 + $0x8] sm:$0xff]
      %v3612 = vld [vmem:[%s3609 + $0x10] sm:$0x1]
      %v3613 = vmul.f32 %v3610, 0.5
      %v3614 = vmul.f32 %v3611, 0.5
      %v3615 = vmul.f32 %v3612, 0.5
      %v3616 = vpack.c.bf16 %v3614, %v3613
      %v3617 = vpack.c.bf16 %v3615, %v3615
      %v3619 = vsel %vm449, %v3607, 0
      %v3622 = vsel %vm449, %v3608, 0
      %v3625 = vand.u32 %v3617, %v455
      %3627 = vmatprep.subr.bf16.mxu0 0
      %3628 = vmatpush1.bf16.msra.mxu0 %v3616
      %3629 = vmatprep.subr.bf16.mxu0 0
      %3630 = vmatpush1.bf16.msra.mxu0 %v3625
      %3631 = vmatprep.subr.bf16.mxu0 0
      %3632 = vmatpush1.bf16.msra.mxu0 0
      %3633 = vmatprep.subr.bf16.mxu0 0
      %3634 = vmatpush1.bf16.msra.mxu0 0
      %3635 = vmatprep.subr.bf16.mxu0 0
      %3636 = vmatpush1.bf16.msra.mxu0 0
      %3637 = vmatprep.subr.bf16.mxu0 0
      %3638 = vmatpush1.bf16.msra.mxu0 0
      %3639 = vmatprep.subr.bf16.mxu0 0
      %3640 = vmatpush1.bf16.msra.mxu0 0
      %3641 = vmatprep.subr.bf16.mxu0 0
      %3642 = vmatpush1.bf16.msra.mxu0 0
      %3643 = vmatprep.subr.bf16.mxu0 0
      %3644 = vmatpush1.bf16.msra.mxu0 0
      %3645 = vmatprep.subr.bf16.mxu0 0
      %3646 = vmatpush1.bf16.msra.mxu0 0
      %3647 = vmatprep.subr.bf16.mxu0 0
      %3648 = vmatpush1.bf16.msra.mxu0 0
      %3649 = vmatprep.subr.bf16.mxu0 0
      %3650 = vmatpush1.bf16.msra.mxu0 0
      %3651 = vmatprep.subr.bf16.mxu0 0
      %3652 = vmatpush1.bf16.msra.mxu0 0
      %3653 = vmatprep.subr.bf16.mxu0 0
      %3654 = vmatpush1.bf16.msra.mxu0 0
      %3655 = vmatprep.subr.bf16.mxu0 0
      %3656 = vmatpush1.bf16.msra.mxu0 0
      %3657 = vmatprep.subr.bf16.mxu0 0
      %3658 = vmatpush1.bf16.msra.mxu0 0
      %3659 = vmatprep.mubr.bf16.mxu0 0
      %3660 = vmatmul.mubr.bf16.gmra.mrb[0].mxu0 %v3619
      %v3661 = vpop.f32.mrb[0].mxu0
      %v3662 = vadd.f32 0.0, %v3661
      %v3663 = vpop.f32.mrb[0].mxu0
      %v3664 = vpop.f32.mrb[0].mxu0
      %v3665 = vadd.f32 0.0, %v3664
      %v3666 = vpop.f32.mrb[0].mxu0
      %3667 = vmatprep.mubr.bf16.mxu0 0
      %3668 = vmatmul.mubr.bf16.gmra.mrb[0].mxu0 %v3622
      %v3669 = vpop.f32.mrb[0].mxu0
      %v3670 = vadd.f32 0.0, %v3669
      %v3671 = vpop.f32.mrb[0].mxu0
      %v3672 = vpop.f32.mrb[0].mxu0
      %v3673 = vadd.f32 0.0, %v3672
      %v3674 = vpop.f32.mrb[0].mxu0
      %3675 = vdwg.mxu0
      %s3676 = scalar_lea.vmem [#allocation2], 96
      %v3677 = vld [vmem:[%s3676] sm:$0xff]
      %v3678 = vld [vmem:[%s3676 + $0x8] sm:$0xff]
      %v3679 = vld [vmem:[%s3676 + $0x10] sm:$0xff]
      %v3680 = vld [vmem:[%s3676 + $0x18] sm:$0xff]
      %v3681 = vadd.f32 %v3677, %v3662
      %v3682 = vadd.f32 %v3678, %v3665
      %v3683 = vadd.f32 %v3679, %v3670
      %v3684 = vadd.f32 %v3680, %v3673
      %3685 = vst.msk [vmem:[%s3676] sm:$0xff] %vm449, %v3681
      %3686 = vst.msk [vmem:[%s3676 + $0x8] sm:$0xff] %vm449, %v3682
      %3687 = vst.msk [vmem:[%s3676 + $0x10] sm:$0xff] %vm449, %v3683
      %3688 = vst.msk [vmem:[%s3676 + $0x18] sm:$0xff] %vm449, %v3684
      %v3689 = vld [vmem:[%s1340] sm:$0xf]
      %v3690 = vld [vmem:[%s1340 + $0x4] sm:$0xf]
      %v3691 = vld [vmem:[%s1340 + $0x8] sm:$0xf]
      %v3692 = vld [vmem:[%s1340 + $0xc] sm:$0xf]
      %v3693 = vunpack.c.l.bf16 %v3689
      %v3694 = vunpack.c.l.bf16 %v3690
      %v3695 = vunpack.c.l.bf16 %v3691
      %v3696 = vunpack.c.l.bf16 %v3692
      %v3697 = vpack.c.bf16 %v3694, %v3693
      %v3698 = vpack.c.bf16 %v3696, %v3695
      %s3699 = scalar_lea.vmem %s336, 96
      %v3700 = vld [vmem:[%s3699] sm:$0xff]
      %v3701 = vld [vmem:[%s3699 + $0x8] sm:$0xff]
      %v3702 = vld [vmem:[%s3699 + $0x10] sm:$0x1]
      %v3703 = vmul.f32 %v3700, 0.5
      %v3704 = vmul.f32 %v3701, 0.5
      %v3705 = vmul.f32 %v3702, 0.5
      %v3706 = vpack.c.bf16 %v3704, %v3703
      %v3707 = vpack.c.bf16 %v3705, %v3705
      %v3709 = vsel %vm449, %v3697, 0
      %v3712 = vsel %vm449, %v3698, 0
      %v3715 = vand.u32 %v3707, %v455
      %3717 = vmatprep.subr.bf16.mxu0 0
      %3718 = vmatpush1.bf16.msra.mxu0 %v3706
      %3719 = vmatprep.subr.bf16.mxu0 0
      %3720 = vmatpush1.bf16.msra.mxu0 %v3715
      %3721 = vmatprep.subr.bf16.mxu0 0
      %3722 = vmatpush1.bf16.msra.mxu0 0
      %3723 = vmatprep.subr.bf16.mxu0 0
      %3724 = vmatpush1.bf16.msra.mxu0 0
      %3725 = vmatprep.subr.bf16.mxu0 0
      %3726 = vmatpush1.bf16.msra.mxu0 0
      %3727 = vmatprep.subr.bf16.mxu0 0
      %3728 = vmatpush1.bf16.msra.mxu0 0
      %3729 = vmatprep.subr.bf16.mxu0 0
      %3730 = vmatpush1.bf16.msra.mxu0 0
      %3731 = vmatprep.subr.bf16.mxu0 0
      %3732 = vmatpush1.bf16.msra.mxu0 0
      %3733 = vmatprep.subr.bf16.mxu0 0
      %3734 = vmatpush1.bf16.msra.mxu0 0
      %3735 = vmatprep.subr.bf16.mxu0 0
      %3736 = vmatpush1.bf16.msra.mxu0 0
      %3737 = vmatprep.subr.bf16.mxu0 0
      %3738 = vmatpush1.bf16.msra.mxu0 0
      %3739 = vmatprep.subr.bf16.mxu0 0
      %3740 = vmatpush1.bf16.msra.mxu0 0
      %3741 = vmatprep.subr.bf16.mxu0 0
      %3742 = vmatpush1.bf16.msra.mxu0 0
      %3743 = vmatprep.subr.bf16.mxu0 0
      %3744 = vmatpush1.bf16.msra.mxu0 0
      %3745 = vmatprep.subr.bf16.mxu0 0
      %3746 = vmatpush1.bf16.msra.mxu0 0
      %3747 = vmatprep.subr.bf16.mxu0 0
      %3748 = vmatpush1.bf16.msra.mxu0 0
      %3749 = vmatprep.mubr.bf16.mxu0 0
      %3750 = vmatmul.mubr.bf16.gmra.mrb[0].mxu0 %v3709
      %v3751 = vpop.f32.mrb[0].mxu0
      %v3752 = vadd.f32 0.0, %v3751
      %v3753 = vpop.f32.mrb[0].mxu0
      %v3754 = vpop.f32.mrb[0].mxu0
      %v3755 = vadd.f32 0.0, %v3754
      %v3756 = vpop.f32.mrb[0].mxu0
      %3757 = vmatprep.mubr.bf16.mxu0 0
      %3758 = vmatmul.mubr.bf16.gmra.mrb[0].mxu0 %v3712
      %v3759 = vpop.f32.mrb[0].mxu0
      %v3760 = vadd.f32 0.0, %v3759
      %v3761 = vpop.f32.mrb[0].mxu0
      %v3762 = vpop.f32.mrb[0].mxu0
      %v3763 = vadd.f32 0.0, %v3762
      %v3764 = vpop.f32.mrb[0].mxu0
      %3765 = vdwg.mxu0
      %v3766 = vld [vmem:[#allocation2] sm:$0xff]
      %v3767 = vld [vmem:[#allocation2 + $0x8] sm:$0xff]
      %v3768 = vld [vmem:[#allocation2 + $0x10] sm:$0xff]
      %v3769 = vld [vmem:[#allocation2 + $0x18] sm:$0xff]
      %v3770 = vadd.f32 %v3766, %v3752
      %v3771 = vadd.f32 %v3767, %v3755
      %v3772 = vadd.f32 %v3768, %v3760
      %v3773 = vadd.f32 %v3769, %v3763
      %3774 = vst.msk [vmem:[#allocation2] sm:$0xff] %vm449, %v3770
      %3775 = vst.msk [vmem:[#allocation2 + $0x8] sm:$0xff] %vm449, %v3771
      %3776 = vst.msk [vmem:[#allocation2 + $0x10] sm:$0xff] %vm449, %v3772
      %3777 = vst.msk [vmem:[#allocation2 + $0x18] sm:$0xff] %vm449, %v3773
      %s3778 = scalar_lea.vmem %s325, 80
      %v3779 = vld [vmem:[%s3778] sm:$0xf]
      %v3780 = vld [vmem:[%s3778 + $0x4] sm:$0xf]
      %v3781 = vld [vmem:[%s3778 + $0x8] sm:$0xf]
      %v3782 = vld [vmem:[%s3778 + $0xc] sm:$0xf]
      %v3783 = vunpack.c.l.bf16 %v3779
      %v3784 = vunpack.c.l.bf16 %v3780
      %v3785 = vunpack.c.l.bf16 %v3781
      %v3786 = vunpack.c.l.bf16 %v3782
      %v3787 = vpack.c.bf16 %v3784, %v3783
      %v3788 = vpack.c.bf16 %v3786, %v3785
      %s3789 = scalar_lea.vmem %s336, 120
      %v3790 = vld [vmem:[%s3789] sm:$0xff]
      %v3791 = vld [vmem:[%s3789 + $0x8] sm:$0xff]
      %v3792 = vld [vmem:[%s3789 + $0x10] sm:$0x1]
      %v3793 = vmul.f32 %v3790, 0.5
      %v3794 = vmul.f32 %v3791, 0.5
      %v3795 = vmul.f32 %v3792, 0.5
      %v3796 = vpack.c.bf16 %v3794, %v3793
      %v3797 = vpack.c.bf16 %v3795, %v3795
      %v3799 = vsel %vm449, %v3787, 0
      %v3802 = vsel %vm449, %v3788, 0
      %v3805 = vand.u32 %v3797, %v455
      %3807 = vmatprep.subr.bf16.mxu0 0
      %3808 = vmatpush1.bf16.msra.mxu0 %v3796
      %3809 = vmatprep.subr.bf16.mxu0 0
      %3810 = vmatpush1.bf16.msra.mxu0 %v3805
      %3811 = vmatprep.subr.bf16.mxu0 0
      %3812 = vmatpush1.bf16.msra.mxu0 0
      %3813 = vmatprep.subr.bf16.mxu0 0
      %3814 = vmatpush1.bf16.msra.mxu0 0
      %3815 = vmatprep.subr.bf16.mxu0 0
      %3816 = vmatpush1.bf16.msra.mxu0 0
      %3817 = vmatprep.subr.bf16.mxu0 0
      %3818 = vmatpush1.bf16.msra.mxu0 0
      %3819 = vmatprep.subr.bf16.mxu0 0
      %3820 = vmatpush1.bf16.msra.mxu0 0
      %3821 = vmatprep.subr.bf16.mxu0 0
      %3822 = vmatpush1.bf16.msra.mxu0 0
      %3823 = vmatprep.subr.bf16.mxu0 0
      %3824 = vmatpush1.bf16.msra.mxu0 0
      %3825 = vmatprep.subr.bf16.mxu0 0
      %3826 = vmatpush1.bf16.msra.mxu0 0
      %3827 = vmatprep.subr.bf16.mxu0 0
      %3828 = vmatpush1.bf16.msra.mxu0 0
      %3829 = vmatprep.subr.bf16.mxu0 0
      %3830 = vmatpush1.bf16.msra.mxu0 0
      %3831 = vmatprep.subr.bf16.mxu0 0
      %3832 = vmatpush1.bf16.msra.mxu0 0
      %3833 = vmatprep.subr.bf16.mxu0 0
      %3834 = vmatpush1.bf16.msra.mxu0 0
      %3835 = vmatprep.subr.bf16.mxu0 0
      %3836 = vmatpush1.bf16.msra.mxu0 0
      %3837 = vmatprep.subr.bf16.mxu0 0
      %3838 = vmatpush1.bf16.msra.mxu0 0
      %3839 = vmatprep.mubr.bf16.mxu0 0
      %3840 = vmatmul.mubr.bf16.gmra.mrb[0].mxu0 %v3799
      %v3841 = vpop.f32.mrb[0].mxu0
      %v3842 = vadd.f32 0.0, %v3841
      %v3843 = vpop.f32.mrb[0].mxu0
      %v3844 = vpop.f32.mrb[0].mxu0
      %v3845 = vadd.f32 0.0, %v3844
      %v3846 = vpop.f32.mrb[0].mxu0
      %3847 = vmatprep.mubr.bf16.mxu0 0
      %3848 = vmatmul.mubr.bf16.gmra.mrb[0].mxu0 %v3802
      %v3849 = vpop.f32.mrb[0].mxu0
      %v3850 = vadd.f32 0.0, %v3849
      %v3851 = vpop.f32.mrb[0].mxu0
      %v3852 = vpop.f32.mrb[0].mxu0
      %v3853 = vadd.f32 0.0, %v3852
      %v3854 = vpop.f32.mrb[0].mxu0
      %3855 = vdwg.mxu0
      %v3856 = vld [vmem:[%s3494] sm:$0xff]
      %v3857 = vld [vmem:[%s3494 + $0x8] sm:$0xff]
      %v3858 = vld [vmem:[%s3494 + $0x10] sm:$0xff]
      %v3859 = vld [vmem:[%s3494 + $0x18] sm:$0xff]
      %v3860 = vadd.f32 %v3856, %v3842
      %v3861 = vadd.f32 %v3857, %v3845
      %v3862 = vadd.f32 %v3858, %v3850
      %v3863 = vadd.f32 %v3859, %v3853
      %3864 = vst.msk [vmem:[%s3494] sm:$0xff] %vm449, %v3860
      %3865 = vst.msk [vmem:[%s3494 + $0x8] sm:$0xff] %vm449, %v3861
      %3866 = vst.msk [vmem:[%s3494 + $0x10] sm:$0xff] %vm449, %v3862
      %3867 = vst.msk [vmem:[%s3494 + $0x18] sm:$0xff] %vm449, %v3863
      %s3868 = scalar_lea.vmem %s325, 96
      %v3869 = vld [vmem:[%s3868] sm:$0xf]
      %v3870 = vld [vmem:[%s3868 + $0x4] sm:$0xf]
      %v3871 = vld [vmem:[%s3868 + $0x8] sm:$0xf]
      %v3872 = vld [vmem:[%s3868 + $0xc] sm:$0xf]
      %v3873 = vunpack.c.l.bf16 %v3869
      %v3874 = vunpack.c.l.bf16 %v3870
      %v3875 = vunpack.c.l.bf16 %v3871
      %v3876 = vunpack.c.l.bf16 %v3872
      %v3877 = vpack.c.bf16 %v3874, %v3873
      %v3878 = vpack.c.bf16 %v3876, %v3875
      %s3879 = scalar_lea.vmem %s336, 144
      %v3880 = vld [vmem:[%s3879] sm:$0xff]
      %v3881 = vld [vmem:[%s3879 + $0x8] sm:$0xff]
      %v3882 = vld [vmem:[%s3879 + $0x10] sm:$0x1]
      %v3883 = vmul.f32 %v3880, 0.5
      %v3884 = vmul.f32 %v3881, 0.5
      %v3885 = vmul.f32 %v3882, 0.5
      %v3886 = vpack.c.bf16 %v3884, %v3883
      %v3887 = vpack.c.bf16 %v3885, %v3885
      %v3889 = vsel %vm449, %v3877, 0
      %v3892 = vsel %vm449, %v3878, 0
      %v3895 = vand.u32 %v3887, %v455
      %3897 = vmatprep.subr.bf16.mxu0 0
      %3898 = vmatpush1.bf16.msra.mxu0 %v3886
      %3899 = vmatprep.subr.bf16.mxu0 0
      %3900 = vmatpush1.bf16.msra.mxu0 %v3895
      %3901 = vmatprep.subr.bf16.mxu0 0
      %3902 = vmatpush1.bf16.msra.mxu0 0
      %3903 = vmatprep.subr.bf16.mxu0 0
      %3904 = vmatpush1.bf16.msra.mxu0 0
      %3905 = vmatprep.subr.bf16.mxu0 0
      %3906 = vmatpush1.bf16.msra.mxu0 0
      %3907 = vmatprep.subr.bf16.mxu0 0
      %3908 = vmatpush1.bf16.msra.mxu0 0
      %3909 = vmatprep.subr.bf16.mxu0 0
      %3910 = vmatpush1.bf16.msra.mxu0 0
      %3911 = vmatprep.subr.bf16.mxu0 0
      %3912 = vmatpush1.bf16.msra.mxu0 0
      %3913 = vmatprep.subr.bf16.mxu0 0
      %3914 = vmatpush1.bf16.msra.mxu0 0
      %3915 = vmatprep.subr.bf16.mxu0 0
      %3916 = vmatpush1.bf16.msra.mxu0 0
      %3917 = vmatprep.subr.bf16.mxu0 0
      %3918 = vmatpush1.bf16.msra.mxu0 0
      %3919 = vmatprep.subr.bf16.mxu0 0
      %3920 = vmatpush1.bf16.msra.mxu0 0
      %3921 = vmatprep.subr.bf16.mxu0 0
      %3922 = vmatpush1.bf16.msra.mxu0 0
      %3923 = vmatprep.subr.bf16.mxu0 0
      %3924 = vmatpush1.bf16.msra.mxu0 0
      %3925 = vmatprep.subr.bf16.mxu0 0
      %3926 = vmatpush1.bf16.msra.mxu0 0
      %3927 = vmatprep.subr.bf16.mxu0 0
      %3928 = vmatpush1.bf16.msra.mxu0 0
      %3929 = vmatprep.mubr.bf16.mxu0 0
      %3930 = vmatmul.mubr.bf16.gmra.mrb[0].mxu0 %v3889
      %v3931 = vpop.f32.mrb[0].mxu0
      %v3932 = vadd.f32 0.0, %v3931
      %v3933 = vpop.f32.mrb[0].mxu0
      %v3934 = vpop.f32.mrb[0].mxu0
      %v3935 = vadd.f32 0.0, %v3934
      %v3936 = vpop.f32.mrb[0].mxu0
      %3937 = vmatprep.mubr.bf16.mxu0 0
      %3938 = vmatmul.mubr.bf16.gmra.mrb[0].mxu0 %v3892
      %v3939 = vpop.f32.mrb[0].mxu0
      %v3940 = vadd.f32 0.0, %v3939
      %v3941 = vpop.f32.mrb[0].mxu0
      %v3942 = vpop.f32.mrb[0].mxu0
      %v3943 = vadd.f32 0.0, %v3942
      %v3944 = vpop.f32.mrb[0].mxu0
      %3945 = vdwg.mxu0
      %v3946 = vld [vmem:[%s3585] sm:$0xff]
      %v3947 = vld [vmem:[%s3585 + $0x8] sm:$0xff]
      %v3948 = vld [vmem:[%s3585 + $0x10] sm:$0xff]
      %v3949 = vld [vmem:[%s3585 + $0x18] sm:$0xff]
      %v3950 = vadd.f32 %v3946, %v3932
      %v3951 = vadd.f32 %v3947, %v3935
      %v3952 = vadd.f32 %v3948, %v3940
      %v3953 = vadd.f32 %v3949, %v3943
      %3954 = vst.msk [vmem:[%s3585] sm:$0xff] %vm449, %v3950
      %3955 = vst.msk [vmem:[%s3585 + $0x8] sm:$0xff] %vm449, %v3951
      %3956 = vst.msk [vmem:[%s3585 + $0x10] sm:$0xff] %vm449, %v3952
      %3957 = vst.msk [vmem:[%s3585 + $0x18] sm:$0xff] %vm449, %v3953
      %s3958 = scalar_lea.vmem %s325, 112
      %v3959 = vld [vmem:[%s3958] sm:$0xf]
      %v3960 = vld [vmem:[%s3958 + $0x4] sm:$0xf]
      %v3961 = vld [vmem:[%s3958 + $0x8] sm:$0xf]
      %v3962 = vld [vmem:[%s3958 + $0xc] sm:$0xf]
      %v3963 = vunpack.c.l.bf16 %v3959
      %v3964 = vunpack.c.l.bf16 %v3960
      %v3965 = vunpack.c.l.bf16 %v3961
      %v3966 = vunpack.c.l.bf16 %v3962
      %v3967 = vpack.c.bf16 %v3964, %v3963
      %v3968 = vpack.c.bf16 %v3966, %v3965
      %s3969 = scalar_lea.vmem %s336, 168
      %v3970 = vld [vmem:[%s3969] sm:$0xff]
      %v3971 = vld [vmem:[%s3969 + $0x8] sm:$0xff]
      %v3972 = vld [vmem:[%s3969 + $0x10] sm:$0x1]
      %v3973 = vmul.f32 %v3970, 0.5
      %v3974 = vmul.f32 %v3971, 0.5
      %v3975 = vmul.f32 %v3972, 0.5
      %v3976 = vpack.c.bf16 %v3974, %v3973
      %v3977 = vpack.c.bf16 %v3975, %v3975
      %v3979 = vsel %vm449, %v3967, 0
      %v3982 = vsel %vm449, %v3968, 0
      %v3985 = vand.u32 %v3977, %v455
      %3987 = vmatprep.subr.bf16.mxu0 0
      %3988 = vmatpush1.bf16.msra.mxu0 %v3976
      %3989 = vmatprep.subr.bf16.mxu0 0
      %3990 = vmatpush1.bf16.msra.mxu0 %v3985
      %3991 = vmatprep.subr.bf16.mxu0 0
      %3992 = vmatpush1.bf16.msra.mxu0 0
      %3993 = vmatprep.subr.bf16.mxu0 0
      %3994 = vmatpush1.bf16.msra.mxu0 0
      %3995 = vmatprep.subr.bf16.mxu0 0
      %3996 = vmatpush1.bf16.msra.mxu0 0
      %3997 = vmatprep.subr.bf16.mxu0 0
      %3998 = vmatpush1.bf16.msra.mxu0 0
      %3999 = vmatprep.subr.bf16.mxu0 0
      %4000 = vmatpush1.bf16.msra.mxu0 0
      %4001 = vmatprep.subr.bf16.mxu0 0
      %4002 = vmatpush1.bf16.msra.mxu0 0
      %4003 = vmatprep.subr.bf16.mxu0 0
      %4004 = vmatpush1.bf16.msra.mxu0 0
      %4005 = vmatprep.subr.bf16.mxu0 0
      %4006 = vmatpush1.bf16.msra.mxu0 0
      %4007 = vmatprep.subr.bf16.mxu0 0
      %4008 = vmatpush1.bf16.msra.mxu0 0
      %4009 = vmatprep.subr.bf16.mxu0 0
      %4010 = vmatpush1.bf16.msra.mxu0 0
      %4011 = vmatprep.subr.bf16.mxu0 0
      %4012 = vmatpush1.bf16.msra.mxu0 0
      %4013 = vmatprep.subr.bf16.mxu0 0
      %4014 = vmatpush1.bf16.msra.mxu0 0
      %4015 = vmatprep.subr.bf16.mxu0 0
      %4016 = vmatpush1.bf16.msra.mxu0 0
      %4017 = vmatprep.subr.bf16.mxu0 0
      %4018 = vmatpush1.bf16.msra.mxu0 0
      %4019 = vmatprep.mubr.bf16.mxu0 0
      %4020 = vmatmul.mubr.bf16.gmra.mrb[0].mxu0 %v3979
      %v4021 = vpop.f32.mrb[0].mxu0
      %v4022 = vadd.f32 0.0, %v4021
      %v4023 = vpop.f32.mrb[0].mxu0
      %v4024 = vpop.f32.mrb[0].mxu0
      %v4025 = vadd.f32 0.0, %v4024
      %v4026 = vpop.f32.mrb[0].mxu0
      %4027 = vmatprep.mubr.bf16.mxu0 0
      %4028 = vmatmul.mubr.bf16.gmra.mrb[0].mxu0 %v3982
      %v4029 = vpop.f32.mrb[0].mxu0
      %v4030 = vadd.f32 0.0, %v4029
      %v4031 = vpop.f32.mrb[0].mxu0
      %v4032 = vpop.f32.mrb[0].mxu0
      %v4033 = vadd.f32 0.0, %v4032
      %v4034 = vpop.f32.mrb[0].mxu0
      %4035 = vdwg.mxu0
      %v4036 = vld [vmem:[%s3676] sm:$0xff]
      %v4037 = vld [vmem:[%s3676 + $0x8] sm:$0xff]
      %v4038 = vld [vmem:[%s3676 + $0x10] sm:$0xff]
      %v4039 = vld [vmem:[%s3676 + $0x18] sm:$0xff]
      %v4040 = vadd.f32 %v4036, %v4022
      %v4041 = vadd.f32 %v4037, %v4025
      %v4042 = vadd.f32 %v4038, %v4030
      %v4043 = vadd.f32 %v4039, %v4033
      %4044 = vst.msk [vmem:[%s3676] sm:$0xff] %vm449, %v4040
      %4045 = vst.msk [vmem:[%s3676 + $0x8] sm:$0xff] %vm449, %v4041
      %4046 = vst.msk [vmem:[%s3676 + $0x10] sm:$0xff] %vm449, %v4042
      %4047 = vst.msk [vmem:[%s3676 + $0x18] sm:$0xff] %vm449, %v4043
      %v4048 = vld [vmem:[%s2334] sm:$0xf]
      %v4049 = vld [vmem:[%s2334 + $0x4] sm:$0xf]
      %v4050 = vld [vmem:[%s2334 + $0x8] sm:$0xf]
      %v4051 = vld [vmem:[%s2334 + $0xc] sm:$0xf]
      %v4052 = vunpack.c.l.bf16 %v4048
      %v4053 = vunpack.c.l.bf16 %v4049
      %v4054 = vunpack.c.l.bf16 %v4050
      %v4055 = vunpack.c.l.bf16 %v4051
      %v4056 = vpack.c.bf16 %v4053, %v4052
      %v4057 = vpack.c.bf16 %v4055, %v4054
      %s4058 = scalar_lea.vmem %s336, 192
      %v4059 = vld [vmem:[%s4058] sm:$0xff]
      %v4060 = vld [vmem:[%s4058 + $0x8] sm:$0xff]
      %v4061 = vld [vmem:[%s4058 + $0x10] sm:$0x1]
      %v4062 = vmul.f32 %v4059, 0.5
      %v4063 = vmul.f32 %v4060, 0.5
      %v4064 = vmul.f32 %v4061, 0.5
      %v4065 = vpack.c.bf16 %v4063, %v4062
      %v4066 = vpack.c.bf16 %v4064, %v4064
      %v4068 = vsel %vm449, %v4056, 0
      %v4071 = vsel %vm449, %v4057, 0
      %v4074 = vand.u32 %v4066, %v455
      %4076 = vmatprep.subr.bf16.mxu0 0
      %4077 = vmatpush1.bf16.msra.mxu0 %v4065
      %4078 = vmatprep.subr.bf16.mxu0 0
      %4079 = vmatpush1.bf16.msra.mxu0 %v4074
      %4080 = vmatprep.subr.bf16.mxu0 0
      %4081 = vmatpush1.bf16.msra.mxu0 0
      %4082 = vmatprep.subr.bf16.mxu0 0
      %4083 = vmatpush1.bf16.msra.mxu0 0
      %4084 = vmatprep.subr.bf16.mxu0 0
      %4085 = vmatpush1.bf16.msra.mxu0 0
      %4086 = vmatprep.subr.bf16.mxu0 0
      %4087 = vmatpush1.bf16.msra.mxu0 0
      %4088 = vmatprep.subr.bf16.mxu0 0
      %4089 = vmatpush1.bf16.msra.mxu0 0
      %4090 = vmatprep.subr.bf16.mxu0 0
      %4091 = vmatpush1.bf16.msra.mxu0 0
      %4092 = vmatprep.subr.bf16.mxu0 0
      %4093 = vmatpush1.bf16.msra.mxu0 0
      %4094 = vmatprep.subr.bf16.mxu0 0
      %4095 = vmatpush1.bf16.msra.mxu0 0
      %4096 = vmatprep.subr.bf16.mxu0 0
      %4097 = vmatpush1.bf16.msra.mxu0 0
      %4098 = vmatprep.subr.bf16.mxu0 0
      %4099 = vmatpush1.bf16.msra.mxu0 0
      %4100 = vmatprep.subr.bf16.mxu0 0
      %4101 = vmatpush1.bf16.msra.mxu0 0
      %4102 = vmatprep.subr.bf16.mxu0 0
      %4103 = vmatpush1.bf16.msra.mxu0 0
      %4104 = vmatprep.subr.bf16.mxu0 0
      %4105 = vmatpush1.bf16.msra.mxu0 0
      %4106 = vmatprep.subr.bf16.mxu0 0
      %4107 = vmatpush1.bf16.msra.mxu0 0
      %4108 = vmatprep.mubr.bf16.mxu0 0
      %4109 = vmatmul.mubr.bf16.gmra.mrb[0].mxu0 %v4068
      %v4110 = vpop.f32.mrb[0].mxu0
      %v4111 = vadd.f32 0.0, %v4110
      %v4112 = vpop.f32.mrb[0].mxu0
      %v4113 = vpop.f32.mrb[0].mxu0
      %v4114 = vadd.f32 0.0, %v4113
      %v4115 = vpop.f32.mrb[0].mxu0
      %4116 = vmatprep.mubr.bf16.mxu0 0
      %4117 = vmatmul.mubr.bf16.gmra.mrb[0].mxu0 %v4071
      %v4118 = vpop.f32.mrb[0].mxu0
      %v4119 = vadd.f32 0.0, %v4118
      %v4120 = vpop.f32.mrb[0].mxu0
      %v4121 = vpop.f32.mrb[0].mxu0
      %v4122 = vadd.f32 0.0, %v4121
      %v4123 = vpop.f32.mrb[0].mxu0
      %4124 = vdwg.mxu0
      %v4125 = vld [vmem:[#allocation2] sm:$0xff]
      %v4126 = vld [vmem:[#allocation2 + $0x8] sm:$0xff]
      %v4127 = vld [vmem:[#allocation2 + $0x10] sm:$0xff]
      %v4128 = vld [vmem:[#allocation2 + $0x18] sm:$0xff]
      %v4129 = vadd.f32 %v4125, %v4111
      %v4130 = vadd.f32 %v4126, %v4114
      %v4131 = vadd.f32 %v4127, %v4119
      %v4132 = vadd.f32 %v4128, %v4122
      %4133 = vst.msk [vmem:[#allocation2] sm:$0xff] %vm449, %v4129
      %4134 = vst.msk [vmem:[#allocation2 + $0x8] sm:$0xff] %vm449, %v4130
      %4135 = vst.msk [vmem:[#allocation2 + $0x10] sm:$0xff] %vm449, %v4131
      %4136 = vst.msk [vmem:[#allocation2 + $0x18] sm:$0xff] %vm449, %v4132
      %s4137 = scalar_lea.vmem %s325, 144
      %v4138 = vld [vmem:[%s4137] sm:$0xf]
      %v4139 = vld [vmem:[%s4137 + $0x4] sm:$0xf]
      %v4140 = vld [vmem:[%s4137 + $0x8] sm:$0xf]
      %v4141 = vld [vmem:[%s4137 + $0xc] sm:$0xf]
      %v4142 = vunpack.c.l.bf16 %v4138
      %v4143 = vunpack.c.l.bf16 %v4139
      %v4144 = vunpack.c.l.bf16 %v4140
      %v4145 = vunpack.c.l.bf16 %v4141
      %v4146 = vpack.c.bf16 %v4143, %v4142
      %v4147 = vpack.c.bf16 %v4145, %v4144
      %s4148 = scalar_lea.vmem %s336, 216
      %v4149 = vld [vmem:[%s4148] sm:$0xff]
      %v4150 = vld [vmem:[%s4148 + $0x8] sm:$0xff]
      %v4151 = vld [vmem:[%s4148 + $0x10] sm:$0x1]
      %v4152 = vmul.f32 %v4149, 0.5
      %v4153 = vmul.f32 %v4150, 0.5
      %v4154 = vmul.f32 %v4151, 0.5
      %v4155 = vpack.c.bf16 %v4153, %v4152
      %v4156 = vpack.c.bf16 %v4154, %v4154
      %v4158 = vsel %vm449, %v4146, 0
      %v4161 = vsel %vm449, %v4147, 0
      %v4164 = vand.u32 %v4156, %v455
      %4166 = vmatprep.subr.bf16.mxu0 0
      %4167 = vmatpush1.bf16.msra.mxu0 %v4155
      %4168 = vmatprep.subr.bf16.mxu0 0
      %4169 = vmatpush1.bf16.msra.mxu0 %v4164
      %4170 = vmatprep.subr.bf16.mxu0 0
      %4171 = vmatpush1.bf16.msra.mxu0 0
      %4172 = vmatprep.subr.bf16.mxu0 0
      %4173 = vmatpush1.bf16.msra.mxu0 0
      %4174 = vmatprep.subr.bf16.mxu0 0
      %4175 = vmatpush1.bf16.msra.mxu0 0
      %4176 = vmatprep.subr.bf16.mxu0 0
      %4177 = vmatpush1.bf16.msra.mxu0 0
      %4178 = vmatprep.subr.bf16.mxu0 0
      %4179 = vmatpush1.bf16.msra.mxu0 0
      %4180 = vmatprep.subr.bf16.mxu0 0
      %4181 = vmatpush1.bf16.msra.mxu0 0
      %4182 = vmatprep.subr.bf16.mxu0 0
      %4183 = vmatpush1.bf16.msra.mxu0 0
      %4184 = vmatprep.subr.bf16.mxu0 0
      %4185 = vmatpush1.bf16.msra.mxu0 0
      %4186 = vmatprep.subr.bf16.mxu0 0
      %4187 = vmatpush1.bf16.msra.mxu0 0
      %4188 = vmatprep.subr.bf16.mxu0 0
      %4189 = vmatpush1.bf16.msra.mxu0 0
      %4190 = vmatprep.subr.bf16.mxu0 0
      %4191 = vmatpush1.bf16.msra.mxu0 0
      %4192 = vmatprep.subr.bf16.mxu0 0
      %4193 = vmatpush1.bf16.msra.mxu0 0
      %4194 = vmatprep.subr.bf16.mxu0 0
      %4195 = vmatpush1.bf16.msra.mxu0 0
      %4196 = vmatprep.subr.bf16.mxu0 0
      %4197 = vmatpush1.bf16.msra.mxu0 0
      %4198 = vmatprep.mubr.bf16.mxu0 0
      %4199 = vmatmul.mubr.bf16.gmra.mrb[0].mxu0 %v4158
      %v4200 = vpop.f32.mrb[0].mxu0
      %v4201 = vadd.f32 0.0, %v4200
      %v4202 = vpop.f32.mrb[0].mxu0
      %v4203 = vpop.f32.mrb[0].mxu0
      %v4204 = vadd.f32 0.0, %v4203
      %v4205 = vpop.f32.mrb[0].mxu0
      %4206 = vmatprep.mubr.bf16.mxu0 0
      %4207 = vmatmul.mubr.bf16.gmra.mrb[0].mxu0 %v4161
      %v4208 = vpop.f32.mrb[0].mxu0
      %v4209 = vadd.f32 0.0, %v4208
      %v4210 = vpop.f32.mrb[0].mxu0
      %v4211 = vpop.f32.mrb[0].mxu0
      %v4212 = vadd.f32 0.0, %v4211
      %v4213 = vpop.f32.mrb[0].mxu0
      %4214 = vdwg.mxu0
      %v4215 = vld [vmem:[%s3494] sm:$0xff]
      %v4216 = vld [vmem:[%s3494 + $0x8] sm:$0xff]
      %v4217 = vld [vmem:[%s3494 + $0x10] sm:$0xff]
      %v4218 = vld [vmem:[%s3494 + $0x18] sm:$0xff]
      %v4219 = vadd.f32 %v4215, %v4201
      %v4220 = vadd.f32 %v4216, %v4204
      %v4221 = vadd.f32 %v4217, %v4209
      %v4222 = vadd.f32 %v4218, %v4212
      %4223 = vst.msk [vmem:[%s3494] sm:$0xff] %vm449, %v4219
      %4224 = vst.msk [vmem:[%s3494 + $0x8] sm:$0xff] %vm449, %v4220
      %4225 = vst.msk [vmem:[%s3494 + $0x10] sm:$0xff] %vm449, %v4221
      %4226 = vst.msk [vmem:[%s3494 + $0x18] sm:$0xff] %vm449, %v4222
      %s4227 = scalar_lea.vmem %s325, 160
      %v4228 = vld [vmem:[%s4227] sm:$0xf]
      %v4229 = vld [vmem:[%s4227 + $0x4] sm:$0xf]
      %v4230 = vld [vmem:[%s4227 + $0x8] sm:$0xf]
      %v4231 = vld [vmem:[%s4227 + $0xc] sm:$0xf]
      %v4232 = vunpack.c.l.bf16 %v4228
      %v4233 = vunpack.c.l.bf16 %v4229
      %v4234 = vunpack.c.l.bf16 %v4230
      %v4235 = vunpack.c.l.bf16 %v4231
      %v4236 = vpack.c.bf16 %v4233, %v4232
      %v4237 = vpack.c.bf16 %v4235, %v4234
      %s4238 = scalar_lea.vmem %s336, 240
      %v4239 = vld [vmem:[%s4238] sm:$0xff]
      %v4240 = vld [vmem:[%s4238 + $0x8] sm:$0xff]
      %v4241 = vld [vmem:[%s4238 + $0x10] sm:$0x1]
      %v4242 = vmul.f32 %v4239, 0.5
      %v4243 = vmul.f32 %v4240, 0.5
      %v4244 = vmul.f32 %v4241, 0.5
      %v4245 = vpack.c.bf16 %v4243, %v4242
      %v4246 = vpack.c.bf16 %v4244, %v4244
      %v4248 = vsel %vm449, %v4236, 0
      %v4251 = vsel %vm449, %v4237, 0
      %v4254 = vand.u32 %v4246, %v455
      %4256 = vmatprep.subr.bf16.mxu0 0
      %4257 = vmatpush1.bf16.msra.mxu0 %v4245
      %4258 = vmatprep.subr.bf16.mxu0 0
      %4259 = vmatpush1.bf16.msra.mxu0 %v4254
      %4260 = vmatprep.subr.bf16.mxu0 0
      %4261 = vmatpush1.bf16.msra.mxu0 0
      %4262 = vmatprep.subr.bf16.mxu0 0
      %4263 = vmatpush1.bf16.msra.mxu0 0
      %4264 = vmatprep.subr.bf16.mxu0 0
      %4265 = vmatpush1.bf16.msra.mxu0 0
      %4266 = vmatprep.subr.bf16.mxu0 0
      %4267 = vmatpush1.bf16.msra.mxu0 0
      %4268 = vmatprep.subr.bf16.mxu0 0
      %4269 = vmatpush1.bf16.msra.mxu0 0
      %4270 = vmatprep.subr.bf16.mxu0 0
      %4271 = vmatpush1.bf16.msra.mxu0 0
      %4272 = vmatprep.subr.bf16.mxu0 0
      %4273 = vmatpush1.bf16.msra.mxu0 0
      %4274 = vmatprep.subr.bf16.mxu0 0
      %4275 = vmatpush1.bf16.msra.mxu0 0
      %4276 = vmatprep.subr.bf16.mxu0 0
      %4277 = vmatpush1.bf16.msra.mxu0 0
      %4278 = vmatprep.subr.bf16.mxu0 0
      %4279 = vmatpush1.bf16.msra.mxu0 0
      %4280 = vmatprep.subr.bf16.mxu0 0
      %4281 = vmatpush1.bf16.msra.mxu0 0
      %4282 = vmatprep.subr.bf16.mxu0 0
      %4283 = vmatpush1.bf16.msra.mxu0 0
      %4284 = vmatprep.subr.bf16.mxu0 0
      %4285 = vmatpush1.bf16.msra.mxu0 0
      %4286 = vmatprep.subr.bf16.mxu0 0
      %4287 = vmatpush1.bf16.msra.mxu0 0
      %4288 = vmatprep.mubr.bf16.mxu0 0
      %4289 = vmatmul.mubr.bf16.gmra.mrb[0].mxu0 %v4248
      %v4290 = vpop.f32.mrb[0].mxu0
      %v4291 = vadd.f32 0.0, %v4290
      %v4292 = vpop.f32.mrb[0].mxu0
      %v4293 = vpop.f32.mrb[0].mxu0
      %v4294 = vadd.f32 0.0, %v4293
      %v4295 = vpop.f32.mrb[0].mxu0
      %4296 = vmatprep.mubr.bf16.mxu0 0
      %4297 = vmatmul.mubr.bf16.gmra.mrb[0].mxu0 %v4251
      %v4298 = vpop.f32.mrb[0].mxu0
      %v4299 = vadd.f32 0.0, %v4298
      %v4300 = vpop.f32.mrb[0].mxu0
      %v4301 = vpop.f32.mrb[0].mxu0
      %v4302 = vadd.f32 0.0, %v4301
      %v4303 = vpop.f32.mrb[0].mxu0
      %4304 = vdwg.mxu0
      %v4305 = vld [vmem:[%s3585] sm:$0xff]
      %v4306 = vld [vmem:[%s3585 + $0x8] sm:$0xff]
      %v4307 = vld [vmem:[%s3585 + $0x10] sm:$0xff]
      %v4308 = vld [vmem:[%s3585 + $0x18] sm:$0xff]
      %v4309 = vadd.f32 %v4305, %v4291
      %v4310 = vadd.f32 %v4306, %v4294
      %v4311 = vadd.f32 %v4307, %v4299
      %v4312 = vadd.f32 %v4308, %v4302
      %4313 = vst.msk [vmem:[%s3585] sm:$0xff] %vm449, %v4309
      %4314 = vst.msk [vmem:[%s3585 + $0x8] sm:$0xff] %vm449, %v4310
      %4315 = vst.msk [vmem:[%s3585 + $0x10] sm:$0xff] %vm449, %v4311
      %4316 = vst.msk [vmem:[%s3585 + $0x18] sm:$0xff] %vm449, %v4312
      %s4317 = scalar_lea.vmem %s325, 176
      %v4318 = vld [vmem:[%s4317] sm:$0xf]
      %v4319 = vld [vmem:[%s4317 + $0x4] sm:$0xf]
      %v4320 = vld [vmem:[%s4317 + $0x8] sm:$0xf]
      %v4321 = vld [vmem:[%s4317 + $0xc] sm:$0xf]
      %v4322 = vunpack.c.l.bf16 %v4318
      %v4323 = vunpack.c.l.bf16 %v4319
      %v4324 = vunpack.c.l.bf16 %v4320
      %v4325 = vunpack.c.l.bf16 %v4321
      %v4326 = vpack.c.bf16 %v4323, %v4322
      %v4327 = vpack.c.bf16 %v4325, %v4324
      %s4328 = scalar_lea.vmem %s336, 264
      %v4329 = vld [vmem:[%s4328] sm:$0xff]
      %v4330 = vld [vmem:[%s4328 + $0x8] sm:$0xff]
      %v4331 = vld [vmem:[%s4328 + $0x10] sm:$0x1]
      %v4332 = vmul.f32 %v4329, 0.5
      %v4333 = vmul.f32 %v4330, 0.5
      %v4334 = vmul.f32 %v4331, 0.5
      %v4335 = vpack.c.bf16 %v4333, %v4332
      %v4336 = vpack.c.bf16 %v4334, %v4334
      %v4338 = vsel %vm449, %v4326, 0
      %v4341 = vsel %vm449, %v4327, 0
      %v4344 = vand.u32 %v4336, %v455
      %4346 = vmatprep.subr.bf16.mxu0 0
      %4347 = vmatpush1.bf16.msra.mxu0 %v4335
      %4348 = vmatprep.subr.bf16.mxu0 0
      %4349 = vmatpush1.bf16.msra.mxu0 %v4344
      %4350 = vmatprep.subr.bf16.mxu0 0
      %4351 = vmatpush1.bf16.msra.mxu0 0
      %4352 = vmatprep.subr.bf16.mxu0 0
      %4353 = vmatpush1.bf16.msra.mxu0 0
      %4354 = vmatprep.subr.bf16.mxu0 0
      %4355 = vmatpush1.bf16.msra.mxu0 0
      %4356 = vmatprep.subr.bf16.mxu0 0
      %4357 = vmatpush1.bf16.msra.mxu0 0
      %4358 = vmatprep.subr.bf16.mxu0 0
      %4359 = vmatpush1.bf16.msra.mxu0 0
      %4360 = vmatprep.subr.bf16.mxu0 0
      %4361 = vmatpush1.bf16.msra.mxu0 0
      %4362 = vmatprep.subr.bf16.mxu0 0
      %4363 = vmatpush1.bf16.msra.mxu0 0
      %4364 = vmatprep.subr.bf16.mxu0 0
      %4365 = vmatpush1.bf16.msra.mxu0 0
      %4366 = vmatprep.subr.bf16.mxu0 0
      %4367 = vmatpush1.bf16.msra.mxu0 0
      %4368 = vmatprep.subr.bf16.mxu0 0
      %4369 = vmatpush1.bf16.msra.mxu0 0
      %4370 = vmatprep.subr.bf16.mxu0 0
      %4371 = vmatpush1.bf16.msra.mxu0 0
      %4372 = vmatprep.subr.bf16.mxu0 0
      %4373 = vmatpush1.bf16.msra.mxu0 0
      %4374 = vmatprep.subr.bf16.mxu0 0
      %4375 = vmatpush1.bf16.msra.mxu0 0
      %4376 = vmatprep.subr.bf16.mxu0 0
      %4377 = vmatpush1.bf16.msra.mxu0 0
      %4378 = vmatprep.mubr.bf16.mxu0 0
      %4379 = vmatmul.mubr.bf16.gmra.mrb[0].mxu0 %v4338
      %v4380 = vpop.f32.mrb[0].mxu0
      %v4381 = vadd.f32 0.0, %v4380
      %v4382 = vpop.f32.mrb[0].mxu0
      %v4383 = vpop.f32.mrb[0].mxu0
      %v4384 = vadd.f32 0.0, %v4383
      %v4385 = vpop.f32.mrb[0].mxu0
      %4386 = vmatprep.mubr.bf16.mxu0 0
      %4387 = vmatmul.mubr.bf16.gmra.mrb[0].mxu0 %v4341
      %v4388 = vpop.f32.mrb[0].mxu0
      %v4389 = vadd.f32 0.0, %v4388
      %v4390 = vpop.f32.mrb[0].mxu0
      %v4391 = vpop.f32.mrb[0].mxu0
      %v4392 = vadd.f32 0.0, %v4391
      %v4393 = vpop.f32.mrb[0].mxu0
      %4394 = vdwg.mxu0
      %v4395 = vld [vmem:[%s3676] sm:$0xff]
      %v4396 = vld [vmem:[%s3676 + $0x8] sm:$0xff]
      %v4397 = vld [vmem:[%s3676 + $0x10] sm:$0xff]
      %v4398 = vld [vmem:[%s3676 + $0x18] sm:$0xff]
      %v4399 = vadd.f32 %v4395, %v4381
      %v4400 = vadd.f32 %v4396, %v4384
      %v4401 = vadd.f32 %v4397, %v4389
      %v4402 = vadd.f32 %v4398, %v4392
      %4403 = vst.msk [vmem:[%s3676] sm:$0xff] %vm449, %v4399
      %4404 = vst.msk [vmem:[%s3676 + $0x8] sm:$0xff] %vm449, %v4400
      %4405 = vst.msk [vmem:[%s3676 + $0x10] sm:$0xff] %vm449, %v4401
      %4406 = vst.msk [vmem:[%s3676 + $0x18] sm:$0xff] %vm449, %v4402
      %v4407 = vld [vmem:[#allocation2] sm:$0xff]
      %v4408 = vld [vmem:[#allocation2 + $0x8] sm:$0xff]
      %v4409 = vld [vmem:[#allocation2 + $0x10] sm:$0xff]
      %v4410 = vld [vmem:[#allocation2 + $0x18] sm:$0xff]
      %v4411 = vld [vmem:[#allocation2 + $0x20] sm:$0xff]
      %v4412 = vld [vmem:[#allocation2 + $0x28] sm:$0xff]
      %v4413 = vld [vmem:[#allocation2 + $0x30] sm:$0xff]
      %v4414 = vld [vmem:[#allocation2 + $0x38] sm:$0xff]
      %v4415 = vld [vmem:[#allocation2 + $0x40] sm:$0xff]
      %v4416 = vld [vmem:[#allocation2 + $0x48] sm:$0xff]
      %v4417 = vld [vmem:[#allocation2 + $0x50] sm:$0xff]
      %v4418 = vld [vmem:[#allocation2 + $0x58] sm:$0xff]
      %v4419 = vld [vmem:[#allocation2 + $0x60] sm:$0xff]
      %v4420 = vld [vmem:[#allocation2 + $0x68] sm:$0xff]
      %v4421 = vld [vmem:[#allocation2 + $0x70] sm:$0xff]
      %v4422 = vld [vmem:[#allocation2 + $0x78] sm:$0xff]
      %v4423 = vpack.c.bf16 %v4407, %v4407
      %v4424 = vpack.c.bf16 %v4408, %v4408
      %v4425 = vpack.c.bf16 %v4409, %v4409
      %v4426 = vpack.c.bf16 %v4410, %v4410
      %v4427 = vpack.c.bf16 %v4411, %v4411
      %v4428 = vpack.c.bf16 %v4412, %v4412
      %v4429 = vpack.c.bf16 %v4413, %v4413
      %v4430 = vpack.c.bf16 %v4414, %v4414
      %v4431 = vpack.c.bf16 %v4415, %v4415
      %v4432 = vpack.c.bf16 %v4416, %v4416
      %v4433 = vpack.c.bf16 %v4417, %v4417
      %v4434 = vpack.c.bf16 %v4418, %v4418
      %v4435 = vpack.c.bf16 %v4419, %v4419
      %v4436 = vpack.c.bf16 %v4420, %v4420
      %v4437 = vpack.c.bf16 %v4421, %v4421
      %v4438 = vpack.c.bf16 %v4422, %v4422
      %vm4439 = vcmask 134144
      %4440 = vst.msk [vmem:[%s353] sm:$0xf] %vm4439, %v4423
      %4441 = vst.msk [vmem:[%s353 + $0x4] sm:$0xf] %vm4439, %v4424
      %4442 = vst.msk [vmem:[%s353 + $0x8] sm:$0xf] %vm4439, %v4425
      %4443 = vst.msk [vmem:[%s353 + $0xc] sm:$0xf] %vm4439, %v4426
      %4444 = vst.msk [vmem:[%s353 + $0x10] sm:$0xf] %vm4439, %v4427
      %4445 = vst.msk [vmem:[%s353 + $0x14] sm:$0xf] %vm4439, %v4428
      %4446 = vst.msk [vmem:[%s353 + $0x18] sm:$0xf] %vm4439, %v4429
      %4447 = vst.msk [vmem:[%s353 + $0x1c] sm:$0xf] %vm4439, %v4430
      %4448 = vst.msk [vmem:[%s353 + $0x20] sm:$0xf] %vm4439, %v4431
      %4449 = vst.msk [vmem:[%s353 + $0x24] sm:$0xf] %vm4439, %v4432
      %4450 = vst.msk [vmem:[%s353 + $0x28] sm:$0xf] %vm4439, %v4433
      %4451 = vst.msk [vmem:[%s353 + $0x2c] sm:$0xf] %vm4439, %v4434
      %4452 = vst.msk [vmem:[%s353 + $0x30] sm:$0xf] %vm4439, %v4435
      %4453 = vst.msk [vmem:[%s353 + $0x34] sm:$0xf] %vm4439, %v4436
      %4454 = vst.msk [vmem:[%s353 + $0x38] sm:$0xf] %vm4439, %v4437
      %4455 = vst.msk [vmem:[%s353 + $0x3c] sm:$0xf] %vm4439, %v4438
      %v4456 = vsel %vm449, %v4407, 0.0
      %v4457 = vrot.slane %v4456, 4
      %v4458 = vadd.f32 %v4456, %v4457
      %v4459 = vrot.slane %v4458, 2
      %v4460 = vadd.f32 %v4458, %v4459
      %v4461 = vrot.slane %v4460, 1
      %v4462 = vadd.f32 %v4460, %v4461
      %v4463 = vsel %vm449, %v4408, 0.0
      %v4464 = vrot.slane %v4463, 4
      %v4465 = vadd.f32 %v4463, %v4464
      %v4466 = vrot.slane %v4465, 2
      %v4467 = vadd.f32 %v4465, %v4466
      %v4468 = vrot.slane %v4467, 1
      %v4469 = vadd.f32 %v4467, %v4468
      %v4470 = vsel %vm449, %v4409, 0.0
      %v4471 = vrot.slane %v4470, 4
      %v4472 = vadd.f32 %v4470, %v4471
      %v4473 = vrot.slane %v4472, 2
      %v4474 = vadd.f32 %v4472, %v4473
      %v4475 = vrot.slane %v4474, 1
      %v4476 = vadd.f32 %v4474, %v4475
      %v4477 = vsel %vm449, %v4410, 0.0
      %v4478 = vrot.slane %v4477, 4
      %v4479 = vadd.f32 %v4477, %v4478
      %v4480 = vrot.slane %v4479, 2
      %v4481 = vadd.f32 %v4479, %v4480
      %v4482 = vrot.slane %v4481, 1
      %v4483 = vadd.f32 %v4481, %v4482
      %v4484 = vsel %vm449, %v4411, 0.0
      %v4485 = vrot.slane %v4484, 4
      %v4486 = vadd.f32 %v4484, %v4485
      %v4487 = vrot.slane %v4486, 2
      %v4488 = vadd.f32 %v4486, %v4487
      %v4489 = vrot.slane %v4488, 1
      %v4490 = vadd.f32 %v4488, %v4489
      %v4491 = vsel %vm449, %v4412, 0.0
      %v4492 = vrot.slane %v4491, 4
      %v4493 = vadd.f32 %v4491, %v4492
      %v4494 = vrot.slane %v4493, 2
      %v4495 = vadd.f32 %v4493, %v4494
      %v4496 = vrot.slane %v4495, 1
      %v4497 = vadd.f32 %v4495, %v4496
      %v4498 = vsel %vm449, %v4413, 0.0
      %v4499 = vrot.slane %v4498, 4
      %v4500 = vadd.f32 %v4498, %v4499
      %v4501 = vrot.slane %v4500, 2
      %v4502 = vadd.f32 %v4500, %v4501
      %v4503 = vrot.slane %v4502, 1
      %v4504 = vadd.f32 %v4502, %v4503
      %v4505 = vsel %vm449, %v4414, 0.0
      %v4506 = vrot.slane %v4505, 4
      %v4507 = vadd.f32 %v4505, %v4506
      %v4508 = vrot.slane %v4507, 2
      %v4509 = vadd.f32 %v4507, %v4508
      %v4510 = vrot.slane %v4509, 1
      %v4511 = vadd.f32 %v4509, %v4510
      %v4512 = vsel %vm449, %v4415, 0.0
      %v4513 = vrot.slane %v4512, 4
      %v4514 = vadd.f32 %v4512, %v4513
      %v4515 = vrot.slane %v4514, 2
      %v4516 = vadd.f32 %v4514, %v4515
      %v4517 = vrot.slane %v4516, 1
      %v4518 = vadd.f32 %v4516, %v4517
      %v4519 = vsel %vm449, %v4416, 0.0
      %v4520 = vrot.slane %v4519, 4
      %v4521 = vadd.f32 %v4519, %v4520
      %v4522 = vrot.slane %v4521, 2
      %v4523 = vadd.f32 %v4521, %v4522
      %v4524 = vrot.slane %v4523, 1
      %v4525 = vadd.f32 %v4523, %v4524
      %v4526 = vsel %vm449, %v4417, 0.0
      %v4527 = vrot.slane %v4526, 4
      %v4528 = vadd.f32 %v4526, %v4527
      %v4529 = vrot.slane %v4528, 2
      %v4530 = vadd.f32 %v4528, %v4529
      %v4531 = vrot.slane %v4530, 1
      %v4532 = vadd.f32 %v4530, %v4531
      %v4533 = vsel %vm449, %v4418, 0.0
      %v4534 = vrot.slane %v4533, 4
      %v4535 = vadd.f32 %v4533, %v4534
      %v4536 = vrot.slane %v4535, 2
      %v4537 = vadd.f32 %v4535, %v4536
      %v4538 = vrot.slane %v4537, 1
      %v4539 = vadd.f32 %v4537, %v4538
      %v4540 = vsel %vm449, %v4419, 0.0
      %v4541 = vrot.slane %v4540, 4
      %v4542 = vadd.f32 %v4540, %v4541
      %v4543 = vrot.slane %v4542, 2
      %v4544 = vadd.f32 %v4542, %v4543
      %v4545 = vrot.slane %v4544, 1
      %v4546 = vadd.f32 %v4544, %v4545
      %v4547 = vsel %vm449, %v4420, 0.0
      %v4548 = vrot.slane %v4547, 4
      %v4549 = vadd.f32 %v4547, %v4548
      %v4550 = vrot.slane %v4549, 2
      %v4551 = vadd.f32 %v4549, %v4550
      %v4552 = vrot.slane %v4551, 1
      %v4553 = vadd.f32 %v4551, %v4552
      %v4554 = vsel %vm449, %v4421, 0.0
      %v4555 = vrot.slane %v4554, 4
      %v4556 = vadd.f32 %v4554, %v4555
      %v4557 = vrot.slane %v4556, 2
      %v4558 = vadd.f32 %v4556, %v4557
      %v4559 = vrot.slane %v4558, 1
      %v4560 = vadd.f32 %v4558, %v4559
      %v4561 = vsel %vm449, %v4422, 0.0
      %v4562 = vrot.slane %v4561, 4
      %v4563 = vadd.f32 %v4561, %v4562
      %v4564 = vrot.slane %v4563, 2
      %v4565 = vadd.f32 %v4563, %v4564
      %v4566 = vrot.slane %v4565, 1
      %v4567 = vadd.f32 %v4565, %v4566
      %v4568 = vmul.f32 %v4407, %v4407
      %v4569 = vmul.f32 %v4408, %v4408
      %v4570 = vmul.f32 %v4409, %v4409
      %v4571 = vmul.f32 %v4410, %v4410
      %v4572 = vmul.f32 %v4411, %v4411
      %v4573 = vmul.f32 %v4412, %v4412
      %v4574 = vmul.f32 %v4413, %v4413
      %v4575 = vmul.f32 %v4414, %v4414
      %v4576 = vmul.f32 %v4415, %v4415
      %v4577 = vmul.f32 %v4416, %v4416
      %v4578 = vmul.f32 %v4417, %v4417
      %v4579 = vmul.f32 %v4418, %v4418
      %v4580 = vmul.f32 %v4419, %v4419
      %v4581 = vmul.f32 %v4420, %v4420
      %v4582 = vmul.f32 %v4421, %v4421
      %v4583 = vmul.f32 %v4422, %v4422
      %v4584 = vsel %vm449, %v4568, 0.0
      %v4585 = vrot.slane %v4584, 4
      %v4586 = vadd.f32 %v4584, %v4585
      %v4587 = vrot.slane %v4586, 2
      %v4588 = vadd.f32 %v4586, %v4587
      %v4589 = vrot.slane %v4588, 1
      %v4590 = vadd.f32 %v4588, %v4589
      %v4591 = vsel %vm449, %v4569, 0.0
      %v4592 = vrot.slane %v4591, 4
      %v4593 = vadd.f32 %v4591, %v4592
      %v4594 = vrot.slane %v4593, 2
      %v4595 = vadd.f32 %v4593, %v4594
      %v4596 = vrot.slane %v4595, 1
      %v4597 = vadd.f32 %v4595, %v4596
      %v4598 = vsel %vm449, %v4570, 0.0
      %v4599 = vrot.slane %v4598, 4
      %v4600 = vadd.f32 %v4598, %v4599
      %v4601 = vrot.slane %v4600, 2
      %v4602 = vadd.f32 %v4600, %v4601
      %v4603 = vrot.slane %v4602, 1
      %v4604 = vadd.f32 %v4602, %v4603
      %v4605 = vsel %vm449, %v4571, 0.0
      %v4606 = vrot.slane %v4605, 4
      %v4607 = vadd.f32 %v4605, %v4606
      %v4608 = vrot.slane %v4607, 2
      %v4609 = vadd.f32 %v4607, %v4608
      %v4610 = vrot.slane %v4609, 1
      %v4611 = vadd.f32 %v4609, %v4610
      %v4612 = vsel %vm449, %v4572, 0.0
      %v4613 = vrot.slane %v4612, 4
      %v4614 = vadd.f32 %v4612, %v4613
      %v4615 = vrot.slane %v4614, 2
      %v4616 = vadd.f32 %v4614, %v4615
      %v4617 = vrot.slane %v4616, 1
      %v4618 = vadd.f32 %v4616, %v4617
      %v4619 = vsel %vm449, %v4573, 0.0
      %v4620 = vrot.slane %v4619, 4
      %v4621 = vadd.f32 %v4619, %v4620
      %v4622 = vrot.slane %v4621, 2
      %v4623 = vadd.f32 %v4621, %v4622
      %v4624 = vrot.slane %v4623, 1
      %v4625 = vadd.f32 %v4623, %v4624
      %v4626 = vsel %vm449, %v4574, 0.0
      %v4627 = vrot.slane %v4626, 4
      %v4628 = vadd.f32 %v4626, %v4627
      %v4629 = vrot.slane %v4628, 2
      %v4630 = vadd.f32 %v4628, %v4629
      %v4631 = vrot.slane %v4630, 1
      %v4632 = vadd.f32 %v4630, %v4631
      %v4633 = vsel %vm449, %v4575, 0.0
      %v4634 = vrot.slane %v4633, 4
      %v4635 = vadd.f32 %v4633, %v4634
      %v4636 = vrot.slane %v4635, 2
      %v4637 = vadd.f32 %v4635, %v4636
      %v4638 = vrot.slane %v4637, 1
      %v4639 = vadd.f32 %v4637, %v4638
      %v4640 = vsel %vm449, %v4576, 0.0
      %v4641 = vrot.slane %v4640, 4
      %v4642 = vadd.f32 %v4640, %v4641
      %v4643 = vrot.slane %v4642, 2
      %v4644 = vadd.f32 %v4642, %v4643
      %v4645 = vrot.slane %v4644, 1
      %v4646 = vadd.f32 %v4644, %v4645
      %v4647 = vsel %vm449, %v4577, 0.0
      %v4648 = vrot.slane %v4647, 4
      %v4649 = vadd.f32 %v4647, %v4648
      %v4650 = vrot.slane %v4649, 2
      %v4651 = vadd.f32 %v4649, %v4650
      %v4652 = vrot.slane %v4651, 1
      %v4653 = vadd.f32 %v4651, %v4652
      %v4654 = vsel %vm449, %v4578, 0.0
      %v4655 = vrot.slane %v4654, 4
      %v4656 = vadd.f32 %v4654, %v4655
      %v4657 = vrot.slane %v4656, 2
      %v4658 = vadd.f32 %v4656, %v4657
      %v4659 = vrot.slane %v4658, 1
      %v4660 = vadd.f32 %v4658, %v4659
      %v4661 = vsel %vm449, %v4579, 0.0
      %v4662 = vrot.slane %v4661, 4
      %v4663 = vadd.f32 %v4661, %v4662
      %v4664 = vrot.slane %v4663, 2
      %v4665 = vadd.f32 %v4663, %v4664
      %v4666 = vrot.slane %v4665, 1
      %v4667 = vadd.f32 %v4665, %v4666
      %v4668 = vsel %vm449, %v4580, 0.0
      %v4669 = vrot.slane %v4668, 4
      %v4670 = vadd.f32 %v4668, %v4669
      %v4671 = vrot.slane %v4670, 2
      %v4672 = vadd.f32 %v4670, %v4671
      %v4673 = vrot.slane %v4672, 1
      %v4674 = vadd.f32 %v4672, %v4673
      %v4675 = vsel %vm449, %v4581, 0.0
      %v4676 = vrot.slane %v4675, 4
      %v4677 = vadd.f32 %v4675, %v4676
      %v4678 = vrot.slane %v4677, 2
      %v4679 = vadd.f32 %v4677, %v4678
      %v4680 = vrot.slane %v4679, 1
      %v4681 = vadd.f32 %v4679, %v4680
      %v4682 = vsel %vm449, %v4582, 0.0
      %v4683 = vrot.slane %v4682, 4
      %v4684 = vadd.f32 %v4682, %v4683
      %v4685 = vrot.slane %v4684, 2
      %v4686 = vadd.f32 %v4684, %v4685
      %v4687 = vrot.slane %v4686, 1
      %v4688 = vadd.f32 %v4686, %v4687
      %v4689 = vsel %vm449, %v4583, 0.0
      %v4690 = vrot.slane %v4689, 4
      %v4691 = vadd.f32 %v4689, %v4690
      %v4692 = vrot.slane %v4691, 2
      %v4693 = vadd.f32 %v4691, %v4692
      %v4694 = vrot.slane %v4693, 1
      %v4695 = vadd.f32 %v4693, %v4694
      %vm4712 = vcmask 1041409
      %v4713 = vsel %vm4712, %v4469, %v4462
      %vm4714 = vcmask 1042434
      %v4715 = vsel %vm4714, %v4476, %v4713
      %vm4716 = vcmask 1043459
      %v4717 = vsel %vm4716, %v4483, %v4715
      %vm4718 = vcmask 1044484
      %v4719 = vsel %vm4718, %v4490, %v4717
      %vm4720 = vcmask 1045509
      %v4721 = vsel %vm4720, %v4497, %v4719
      %vm4722 = vcmask 1046534
      %v4723 = vsel %vm4722, %v4504, %v4721
      %vm4724 = vcmask 1047559
      %v4725 = vsel %vm4724, %v4511, %v4723
      %v4726 = vsel %vm4712, %v4525, %v4518
      %v4727 = vsel %vm4714, %v4532, %v4726
      %v4728 = vsel %vm4716, %v4539, %v4727
      %v4729 = vsel %vm4718, %v4546, %v4728
      %v4730 = vsel %vm4720, %v4553, %v4729
      %v4731 = vsel %vm4722, %v4560, %v4730
      %v4732 = vsel %vm4724, %v4567, %v4731
      %v4735 = vsel %vm449, %v4725, 0.0
      %4736 = vadd.xlane.f32.xlu0 %v4735
      %v4737 = vpop.xlane.xlu0 %4736
      %v4738 = vsel %vm449, %v4732, 0.0
      %4739 = vadd.xlane.f32.xlu0 %v4738
      %v4740 = vpop.xlane.xlu0 %4739
      %vm4741 = vcmask 7168
      %4742 = vst.msk [vmem:[%s363] sm:$0xff] %vm4741, %v4737
      %4743 = vst.msk [vmem:[%s363 + $0x8] sm:$0xff] %vm4741, %v4740
      %v4760 = vsel %vm4712, %v4597, %v4590
      %v4761 = vsel %vm4714, %v4604, %v4760
      %v4762 = vsel %vm4716, %v4611, %v4761
      %v4763 = vsel %vm4718, %v4618, %v4762
      %v4764 = vsel %vm4720, %v4625, %v4763
      %v4765 = vsel %vm4722, %v4632, %v4764
      %v4766 = vsel %vm4724, %v4639, %v4765
      %v4767 = vsel %vm4712, %v4653, %v4646
      %v4768 = vsel %vm4714, %v4660, %v4767
      %v4769 = vsel %vm4716, %v4667, %v4768
      %v4770 = vsel %vm4718, %v4674, %v4769
      %v4771 = vsel %vm4720, %v4681, %v4770
      %v4772 = vsel %vm4722, %v4688, %v4771
      %v4773 = vsel %vm4724, %v4695, %v4772
      %v4776 = vsel %vm449, %v4766, 0.0
      %4777 = vadd.xlane.f32.xlu0 %v4776
      %v4778 = vpop.xlane.xlu0 %4777
      %v4779 = vsel %vm449, %v4773, 0.0
      %4780 = vadd.xlane.f32.xlu0 %v4779
      %v4781 = vpop.xlane.xlu0 %4780
      %4782 = vst.msk [vmem:[%s373] sm:$0xff] %vm4741, %v4778
      %4783 = vst.msk [vmem:[%s373 + $0x8] sm:$0xff] %vm4741, %v4781
      %s4784 = smul.u32 16, %s22
      %p4785 = scmp.lt.s32.totalorder %s21, 1
      %s4786 = scalar_select %p4785, %s21, 1
      %p4787 = scmp.lt.s32.totalorder %s4784, 15
      %s4788 = scalar_select %p4787, %s4784, 15
      %s4789 = smul.addr %s4786, 16
      %s4790 = sadd.s32 %s4788, %s4789
      %s4791 = smul.addr %s4790, 4
      %s4792 = scalar_lea.vmem %s3, %s4791
      %s4793 = smul.u32 2, %s22
      %p4794 = scmp.lt.s32.totalorder %s21, 1
      %s4795 = scalar_select %p4794, %s21, 1
      %p4796 = scmp.lt.s32.totalorder %s4793, 1
      %s4797 = scalar_select %p4796, %s4793, 1
      %s4798 = smul.addr %s4795, 2
      %s4799 = sadd.s32 %s4797, %s4798
      %s4800 = smul.addr %s4799, 8
      %s4801 = scalar_lea.vmem %s4, %s4800
      %s4802 = smul.u32 2, %s22
      %p4803 = scmp.lt.s32.totalorder %s21, 1
      %s4804 = scalar_select %p4803, %s21, 1
      %p4805 = scmp.lt.s32.totalorder %s4802, 1
      %s4806 = scalar_select %p4805, %s4802, 1
      %s4807 = smul.addr %s4804, 2
      %s4808 = sadd.s32 %s4806, %s4807
      %s4809 = smul.addr %s4808, 8
      %s4810 = scalar_lea.vmem %s5, %s4809
      // Predicated region
      $region33: #{spatial_mixformer_forward.6} parent=31 // pred_check
        %p4811 = pneg %p131
      $region34: #{spatial_mixformer_forward.6} parent=31 // pred_check_branch
        %4813 = sbr.rel (%p4811) target = $region36
      $region35: #{spatial_mixformer_forward.6} parent=31 // pred_region
        %s4814 = smul.u32 16, %s22
      $region36: #{spatial_mixformer_forward.6} parent=31 // pred_fallthru
        _
      // Predicated region
      $region37: #{spatial_mixformer_forward.6} parent=31 // pred_check
        %p4815 = pneg %p159
      $region38: #{spatial_mixformer_forward.6} parent=31 // pred_check_branch
        %4817 = sbr.rel (%p4815) target = $region40
      $region39: #{spatial_mixformer_forward.6} parent=31 // pred_region
        %s4818 = smul.u32 2, %s22
      $region40: #{spatial_mixformer_forward.6} parent=31 // pred_fallthru
        _
      // Predicated region
      $region41: #{spatial_mixformer_forward.6} parent=31 // pred_check
        %p4819 = pneg %p187
      $region42: #{spatial_mixformer_forward.6} parent=31 // pred_check_branch
        %4821 = sbr.rel (%p4819) target = $region44
      $region43: #{spatial_mixformer_forward.6} parent=31 // pred_region
        %s4822 = smul.u32 2, %s22
      $region44: #{spatial_mixformer_forward.6} parent=31 // pred_fallthru
        _
    $region32: #{spatial_mixformer_forward.6} parent=5 // pred_fallthru
      _
    %p4823 = scmp.le.s32.totalorder 2, %s12
    // Predicated region
    $region45: #{spatial_mixformer_forward.6} parent=5 // pred_check
      %p4824 = pneg %p4823
    $region46: #{spatial_mixformer_forward.6} parent=5 // pred_check_branch
      %4826 = sbr.rel (%p4824) target = $region48
    $region47: #{spatial_mixformer_forward.6} parent=5 // pred_region
      %s4827 = ssub.s32 %s12, 2
      // Predicated region
      $region49: #{spatial_mixformer_forward.6} parent=47 // pred_check
        %p4828 = pneg %p137
      $region50: #{spatial_mixformer_forward.6} parent=47 // pred_check_branch
        %4830 = sbr.rel (%p4828) target = $region52
      $region51: #{spatial_mixformer_forward.6} parent=47 // pred_region
        %s4831 = smul.u32 16, %s24
        %p4832 = scmp.lt.s32.totalorder %s23, 1
        %s4833 = scalar_select %p4832, %s23, 1
        %p4834 = scmp.lt.s32.totalorder %s4831, 15
        %s4835 = scalar_select %p4834, %s4831, 15
        %s4836 = smul.addr %s4833, 16
        %s4837 = sadd.s32 %s4835, %s4836
        %s4838 = smul.addr %s4837, 4
        %s4839 = scalar_lea.vmem %s3, %s4838
      $region52: #{spatial_mixformer_forward.6} parent=47 // pred_fallthru
        _
      // Predicated region
      $region53: #{spatial_mixformer_forward.6} parent=47 // pred_check
        %p4840 = pneg %p165
      $region54: #{spatial_mixformer_forward.6} parent=47 // pred_check_branch
        %4842 = sbr.rel (%p4840) target = $region56
      $region55: #{spatial_mixformer_forward.6} parent=47 // pred_region
        %s4843 = smul.u32 2, %s24
        %p4844 = scmp.lt.s32.totalorder %s23, 1
        %s4845 = scalar_select %p4844, %s23, 1
        %p4846 = scmp.lt.s32.totalorder %s4843, 1
        %s4847 = scalar_select %p4846, %s4843, 1
        %s4848 = smul.addr %s4845, 2
        %s4849 = sadd.s32 %s4847, %s4848
        %s4850 = smul.addr %s4849, 8
        %s4851 = scalar_lea.vmem %s4, %s4850
      $region56: #{spatial_mixformer_forward.6} parent=47 // pred_fallthru
        _
      // Predicated region
      $region57: #{spatial_mixformer_forward.6} parent=47 // pred_check
        %p4852 = pneg %p193
      $region58: #{spatial_mixformer_forward.6} parent=47 // pred_check_branch
        %4854 = sbr.rel (%p4852) target = $region60
      $region59: #{spatial_mixformer_forward.6} parent=47 // pred_region
        %s4855 = smul.u32 2, %s24
        %p4856 = scmp.lt.s32.totalorder %s23, 1
        %s4857 = scalar_select %p4856, %s23, 1
        %p4858 = scmp.lt.s32.totalorder %s4855, 1
        %s4859 = scalar_select %p4858, %s4855, 1
        %s4860 = smul.addr %s4857, 2
        %s4861 = sadd.s32 %s4859, %s4860
        %s4862 = smul.addr %s4861, 8
        %s4863 = scalar_lea.vmem %s5, %s4862
      $region60: #{spatial_mixformer_forward.6} parent=47 // pred_fallthru
        _
    $region48: #{spatial_mixformer_forward.6} parent=5 // pred_fallthru
      _
  $region6: #{spatial_mixformer_forward.6} parent=0 // loop_footer
    %s16 = sadd.s32 1, %s12
  $region7: #{spatial_mixformer_forward.6} parent=0 // loop_footer_branch
    %11 = sbr.rel target = $region3
  $region8: #{spatial_mixformer_forward.6} parent=0 // loop_exit
    _

</llo_original>
